<compile_context>
chip_gen: v6e
topology: v6e:2x2x1
jax: 0.10.0
libtpu: 0.0.40
codegen_flags: <defaults>
</compile_context>

<pallas_src>
import functools

import jax
import jax.numpy as jnp
import numpy as np
from jax import lax
from jax.experimental import pallas as pl
from jax.experimental.pallas import tpu as pltpu

_HALO = 8  # sublane-aligned first data row inside the halo scratch


# ------------------------------- Pallas kernel --------------------------------
def tgram_kernel(
    chunks_ref,     # (BB, T+1, hop)       bf16  padded signal in hop-sized rows
    w12_ref,        # (hop, 2C)            bf16  [W_lo | W_hi] extractor weight
    wenc_ref,       # (L, 3, C, C)         bf16  encoder taps (layer, k, in, out)
    g_ref,          # (L, T, C)            f32   LayerNorm gamma (dense)
    b_ref,          # (L, T, C)            f32   LayerNorm beta  (dense)
    o_ref,          # (BB, C, T)           f32   output, PyTorch layout
    buf_ref,        # (T+2*_HALO, C)       f32   halo scratch for the 3-tap conv
    *, neg_slope, eps,
):
    BB = chunks_ref.shape[0]
    C = o_ref.shape[1]
    T = o_ref.shape[2]
    num_layer = wenc_ref.shape[0]

    # zero halo rows once per grid step (data writes never touch them)
    zrow = jnp.zeros((1, C), jnp.float32)
    buf_ref[_HALO - 1:_HALO, :] = zrow
    buf_ref[_HALO + T:_HALO + T + 1, :] = zrow

    w12 = w12_ref[...]                                              # (hop, 2C)

    for bidx in range(BB):
        # ---- conv_extrctor: frame t = [chunk t ; chunk t+1] ------------------
        chunks = chunks_ref[bidx]                                   # (T+1, hop) bf16
        s = jnp.dot(chunks, w12, preferred_element_type=jnp.float32)  # (T+1, 2C)
        h = s[:T, :C] + s[1:, C:]                                   # (T, C) f32

        # ---- conv_encoder: L x [LayerNorm(T) -> LeakyReLU -> Conv1d(3)] ------
        for l in range(num_layer):
            # single-pass stats over the time axis (axis 0), per channel
            mu = jnp.mean(h, axis=0, keepdims=True)                 # (1, C)
            msq = jnp.mean(h * h, axis=0, keepdims=True)            # (1, C)
            inv = lax.rsqrt(msq - mu * mu + eps)
            shift = -mu * inv
            # normalize + per-time affine + LeakyReLU in one traversal
            a = (h * inv + shift) * g_ref[l] + b_ref[l]             # (T, C)
            a = jnp.where(a >= 0, a, neg_slope * a)

            # Conv1d(C, C, k=3, pad=1): halo write, then 3 shifted-window taps
            buf_ref[_HALO:_HALO + T, :] = a
            t0 = buf_ref[_HALO - 1:_HALO - 1 + T, :].astype(jnp.bfloat16)
            t1 = a.astype(jnp.bfloat16)
            t2 = buf_ref[_HALO + 1:_HALO + 1 + T, :].astype(jnp.bfloat16)
            h = (jnp.dot(t0, wenc_ref[l, 0], preferred_element_type=jnp.float32)
                 + jnp.dot(t1, wenc_ref[l, 1], preferred_element_type=jnp.float32)
                 + jnp.dot(t2, wenc_ref[l, 2], preferred_element_type=jnp.float32))

        # ---- in-VMEM transpose (T,C) -> (C,T) in 128x128 blocks, then store --
        nblk = (T + 127) // 128
        pad_rows = nblk * 128 - T
        if pad_rows:
            h = jnp.concatenate(
                [h, jnp.zeros((pad_rows, C), jnp.float32)], axis=0)
        for i in range(nblk):
            r0 = i * 128
            bt = jnp.transpose(h[r0:r0 + 128, :])                   # (C, 128)
            w = min(128, T - r0)
            if w < 128:
                o_ref[bidx, :, r0:r0 + w] = bt[:, :w]
            else:
                o_ref[bidx, :, r0:r0 + 128] = bt


# --------------------------------- wrapper ------------------------------------
def tgram_pallas(x, kparams, *, win_len, hop_len, num_layer,
                 neg_slope=0.2, eps=1e-5, batch_block=1):
    """x: (N, 1, L) float32 (PyTorch layout).  Returns (N, mel_bins, T)."""
    w12, wenc, ln_g, ln_b = kparams
    N, _, L = x.shape
    hop = hop_len
    pad = win_len // 2
    # TODO(synk): general win_len/hop_len framing not implemented in-kernel.
    assert win_len == 2 * hop_len and L % hop_len == 0
    T = L // hop_len + 1
    C = wenc.shape[-1]
    assert wenc.shape[0] == num_layer
    BB = batch_block
    assert N % BB == 0

    # padded signal -> (N, T+1, hop) chunks, pre-cast to bf16 (halves the
    # dominant per-step DMA; numerics identical to casting inside the kernel).
    chunks = jnp.pad(x[:, 0, :].astype(jnp.bfloat16),
                     ((0, 0), (pad, pad))).reshape(N, T + 1, hop)

    kernel = functools.partial(tgram_kernel, neg_slope=neg_slope, eps=eps)

    return pl.pallas_call(
        kernel,
        out_shape=jax.ShapeDtypeStruct((N, C, T), jnp.float32),
        grid_spec=pltpu.PrefetchScalarGridSpec(
            num_scalar_prefetch=0,
            grid=(N // BB,),
            in_specs=[
                pl.BlockSpec((BB, T + 1, hop), lambda n: (n, 0, 0)),
                pl.BlockSpec((hop, 2 * C), lambda n: (0, 0)),
                pl.BlockSpec((num_layer, 3, C, C), lambda n: (0, 0, 0, 0)),
                pl.BlockSpec((num_layer, T, C), lambda n: (0, 0, 0)),
                pl.BlockSpec((num_layer, T, C), lambda n: (0, 0, 0)),
            ],
            out_specs=pl.BlockSpec((BB, C, T), lambda n: (n, 0, 0)),
            scratch_shapes=[pltpu.VMEM((T + 2 * _HALO, C), jnp.float32)],
        ),
        compiler_params=pltpu.CompilerParams(
            dimension_semantics=("parallel",)),
    )(chunks, w12, wenc, ln_g, ln_b)


# ----------------------------- parameter helpers ------------------------------
def make_params(key, *, mel_bins, win_len, num_layer, T):
    """Parameters in PyTorch layout."""
    kw, ke, kg, kb = jax.random.split(key, 4)
    w_ext = (jax.random.normal(kw, (mel_bins, 1, win_len), jnp.float32)
             / np.sqrt(win_len))                                    # Conv1d(1, C, win)
    wenc = (jax.random.normal(ke, (num_layer, mel_bins, mel_bins, 3), jnp.float32)
            / np.sqrt(3 * mel_bins))                                # Conv1d(C, C, 3)
    ln_g = 1.0 + 0.1 * jax.random.normal(kg, (num_layer, T), jnp.float32)
    ln_b = 0.05 * jax.random.normal(kb, (num_layer, T), jnp.float32)
    return w_ext, wenc, ln_g, ln_b


def to_kernel_params(w_ext, wenc, ln_g, ln_b, *, hop_len):
    """Rearrange PyTorch-layout params into the kernel's lane-dense layouts."""
    C = w_ext.shape[0]
    w_flat = w_ext[:, 0, :]                                         # (C, win)
    w_lo = jnp.transpose(w_flat[:, :hop_len])                       # (hop, C)
    w_hi = jnp.transpose(w_flat[:, hop_len:])                       # (hop, C)
    w12 = jnp.concatenate([w_lo, w_hi], axis=1).astype(jnp.bfloat16)  # (hop, 2C)
    # (L, C_out, C_in, k) -> (L, k, C_in, C_out)
    wenc_k = jnp.transpose(wenc, (0, 3, 2, 1)).astype(jnp.bfloat16)
    g = jnp.broadcast_to(ln_g[:, :, None], (*ln_g.shape, C)).astype(jnp.float32)
    b = jnp.broadcast_to(ln_b[:, :, None], (*ln_b.shape, C)).astype(jnp.float32)
    return w12, wenc_k, g, b


# ------------------------------ pure-JAX reference ----------------------------
def tgram_ref(x, torch_params, *, win_len, hop_len, neg_slope=0.2, eps=1e-5):
    """Mirrors the PyTorch forward.  Matmul/conv operands are cast to bf16 with
    f32 accumulation to match the kernel's MXU precision; other math f32."""
    w_ext, wenc, ln_g, ln_b = torch_params
    N, _, L = x.shape
    pad = win_len // 2
    T = (L + 2 * pad - win_len) // hop_len + 1

    xp = jnp.pad(x[:, 0, :], ((0, 0), (pad, pad)))
    idx = jnp.arange(T)[:, None] * hop_len + jnp.arange(win_len)[None, :]
    frames = xp[:, idx]                                             # (N, T, win)
    h = jnp.einsum("ntw,cw->nct", frames.astype(jnp.bfloat16),
                   w_ext[:, 0, :].astype(jnp.bfloat16),
                   preferred_element_type=jnp.float32)              # (N, C, T)

    for l in range(wenc.shape[0]):
        mu = jnp.mean(h, axis=-1, keepdims=True)
        var = jnp.mean(jnp.square(h - mu), axis=-1, keepdims=True)
        h = (h - mu) / jnp.sqrt(var + eps)
        h = h * ln_g[l][None, None, :] + ln_b[l][None, None, :]
        h = jnp.where(h >= 0, h, neg_slope * h)
        h = lax.conv_general_dilated(
            h.astype(jnp.bfloat16), wenc[l].astype(jnp.bfloat16),
            window_strides=(1,), padding=((1, 1),),
            dimension_numbers=("NCH", "OIH", "NCH"),
            preferred_element_type=jnp.float32)
    return h


# ------------------------------------ test ------------------------------------
if __name__ == "__main__":
    NUM_LAYER, MEL_BINS, WIN_LEN, HOP_LEN = 3, 128, 1024, 512   # module defaults
    T = 313                          # hard-coded by LayerNorm(313) in the spec
    L = (T - 1) * HOP_LEN            # -> conv_extrctor output length 313
    N = 2

    key = jax.random.PRNGKey(0)
    kx, kp = jax.random.split(key)
    x = jax.random.normal(kx, (N, 1, L), dtype=jnp.float32)

    torch_params = make_params(kp, mel_bins=MEL_BINS, win_len=WIN_LEN,
                               num_layer=NUM_LAYER, T=T)
    kparams = to_kernel_params(*torch_params, hop_len=HOP_LEN)

    out = tgram_pallas(x, kparams, win_len=WIN_LEN, hop_len=HOP_LEN,
                       num_layer=NUM_LAYER)          # batch_block=1: grid=(2,)
    out = jax.block_until_ready(out)

    ref = jax.block_until_ready(
        tgram_ref(x, torch_params, win_len=WIN_LEN, hop_len=HOP_LEN))

    # kernel-vs-reference gap is bf16-MXU accumulation-order level only
    np.testing.assert_allclose(np.asarray(out), np.asarray(ref),
                               atol=2e-2, rtol=2e-2)
    print("KERNEL_OK")
</pallas_src>

<mosaic_0001>
module attributes {stable_mosaic.version = 11 : i64} {
  func.func @tgram_kernel(%arg0: i32, %arg1: memref<1x314x512xbf16, #tpu.memory_space<vmem>>, %arg2: memref<512x256xbf16, #tpu.memory_space<vmem>>, %arg3: memref<3x3x128x128xbf16, #tpu.memory_space<vmem>>, %arg4: memref<3x313x128xf32, #tpu.memory_space<vmem>>, %arg5: memref<3x313x128xf32, #tpu.memory_space<vmem>>, %arg6: memref<1x128x313xf32, #tpu.memory_space<vmem>>, %arg7: memref<329x128xf32, #tpu.memory_space<vmem>>) attributes {dimension_semantics = [#tpu.dimension_semantics<parallel>], iteration_bounds = array<i64: 2>, scalar_prefetch = 0 : i64, scratch_operands = 1 : i64, tpu.core_type = #tpu.core_type<tc>, window_params = [{transform_indices = @transform_0, window_bounds = array<i64: 1, 314, 512>}, {pipeline_mode = #tpu.pipeline_mode<synchronous>, transform_indices = @transform_1, window_bounds = array<i64: 512, 256>}, {pipeline_mode = #tpu.pipeline_mode<synchronous>, transform_indices = @transform_2, window_bounds = array<i64: 3, 3, 128, 128>}, {pipeline_mode = #tpu.pipeline_mode<synchronous>, transform_indices = @transform_3, window_bounds = array<i64: 3, 313, 128>}, {pipeline_mode = #tpu.pipeline_mode<synchronous>, transform_indices = @transform_4, window_bounds = array<i64: 3, 313, 128>}, {transform_indices = @transform_5, window_bounds = array<i64: 1, 128, 313>}]} {
    %cst = arith.constant 0.000000e+00 : f32
    %0 = vector.broadcast %cst : f32 to vector<1x128xf32>
    %c7 = arith.constant 7 : index
    %c0 = arith.constant 0 : index
    %1 = vector.load %arg7[%c7, %c0] : memref<329x128xf32, #tpu.memory_space<vmem>>, vector<1x128xf32>
    tpu.vector_store %arg7[%c7, %c0], %0 {strides = array<i32>} : memref<329x128xf32, #tpu.memory_space<vmem>>, vector<1x128xf32>,
    %c321 = arith.constant 321 : index
    %c0_0 = arith.constant 0 : index
    %2 = vector.load %arg7[%c321, %c0_0] : memref<329x128xf32, #tpu.memory_space<vmem>>, vector<1x128xf32>
    tpu.vector_store %arg7[%c321, %c0_0], %0 {strides = array<i32>} : memref<329x128xf32, #tpu.memory_space<vmem>>, vector<1x128xf32>,
    %c0_1 = arith.constant 0 : index
    %c0_2 = arith.constant 0 : index
    %3 = vector.load %arg2[%c0_1, %c0_2] : memref<512x256xbf16, #tpu.memory_space<vmem>>, vector<512x256xbf16>
    %c0_3 = arith.constant 0 : index
    %c0_4 = arith.constant 0 : index
    %c0_5 = arith.constant 0 : index
    %4 = vector.load %arg1[%c0_3, %c0_4, %c0_5] : memref<1x314x512xbf16, #tpu.memory_space<vmem>>, vector<1x314x512xbf16>
    %5 = vector.shape_cast %4 : vector<1x314x512xbf16> to vector<314x512xbf16>
    %cst_6 = arith.constant dense<0.000000e+00> : vector<314x256xf32>
    %6 = tpu.matmul %5, %3, %cst_6 {dimension_numbers = #tpu.dot_dimension_numbers<[1], [0], [0], [1], [0, 0, 1, 1], [], []>} : vector<314x512xbf16>, vector<512x256xbf16>, vector<314x256xf32> -> vector<314x256xf32>
    %7 = vector.extract_strided_slice %6 {offsets = [0, 0], sizes = [313, 128], strides = [1, 1]} : vector<314x256xf32> to vector<313x128xf32>
    %8 = vector.extract_strided_slice %6 {offsets = [1, 128], sizes = [313, 128], strides = [1, 1]} : vector<314x256xf32> to vector<313x128xf32>
    %9 = arith.addf %7, %8 : vector<313x128xf32>
    %cst_7 = arith.constant dense<0.000000e+00> : vector<128xf32>
    %10 = vector.multi_reduction <add>, %9, %cst_7 [0] : vector<313x128xf32> to vector<128xf32>
    %11 = vector.shape_cast %10 : vector<128xf32> to vector<1x128xf32>
    %cst_8 = arith.constant 3.130000e+02 : f32
    %12 = vector.broadcast %cst_8 : f32 to vector<1x128xf32>
    %13 = arith.divf %11, %12 : vector<1x128xf32>
    %14 = arith.mulf %9, %9 : vector<313x128xf32>
    %cst_9 = arith.constant dense<0.000000e+00> : vector<128xf32>
    %15 = vector.multi_reduction <add>, %14, %cst_9 [0] : vector<313x128xf32> to vector<128xf32>
    %16 = vector.shape_cast %15 : vector<128xf32> to vector<1x128xf32>
    %cst_10 = arith.constant 3.130000e+02 : f32
    %17 = vector.broadcast %cst_10 : f32 to vector<1x128xf32>
    %18 = arith.divf %16, %17 : vector<1x128xf32>
    %19 = arith.mulf %13, %13 : vector<1x128xf32>
    %20 = arith.subf %18, %19 : vector<1x128xf32>
    %cst_11 = arith.constant 9.99999974E-6 : f32
    %21 = vector.broadcast %cst_11 : f32 to vector<1x128xf32>
    %22 = arith.addf %20, %21 : vector<1x128xf32>
    %23 = math.rsqrt %22 : vector<1x128xf32>
    %cst_12 = arith.constant 0.000000e+00 : f32
    %24 = vector.broadcast %cst_12 : f32 to vector<1x128xf32>
    %25 = arith.subf %24, %13 : vector<1x128xf32>
    %26 = arith.mulf %25, %23 : vector<1x128xf32>
    %27 = vector.broadcast %23 : vector<1x128xf32> to vector<313x128xf32>
    %28 = arith.mulf %9, %27 : vector<313x128xf32>
    %29 = vector.broadcast %26 : vector<1x128xf32> to vector<313x128xf32>
    %30 = arith.addf %28, %29 : vector<313x128xf32>
    %c0_13 = arith.constant 0 : index
    %c0_14 = arith.constant 0 : index
    %c0_15 = arith.constant 0 : index
    %31 = vector.load %arg4[%c0_13, %c0_14, %c0_15] : memref<3x313x128xf32, #tpu.memory_space<vmem>>, vector<1x313x128xf32>
    %32 = vector.shape_cast %31 : vector<1x313x128xf32> to vector<313x128xf32>
    %33 = arith.mulf %30, %32 : vector<313x128xf32>
    %c0_16 = arith.constant 0 : index
    %c0_17 = arith.constant 0 : index
    %c0_18 = arith.constant 0 : index
    %34 = vector.load %arg5[%c0_16, %c0_17, %c0_18] : memref<3x313x128xf32, #tpu.memory_space<vmem>>, vector<1x313x128xf32>
    %35 = vector.shape_cast %34 : vector<1x313x128xf32> to vector<313x128xf32>
    %36 = arith.addf %33, %35 : vector<313x128xf32>
    %cst_19 = arith.constant 0.000000e+00 : f32
    %37 = vector.broadcast %cst_19 : f32 to vector<313x128xf32>
    %38 = arith.cmpf oge, %36, %37 : vector<313x128xf32>
    %cst_20 = arith.constant 2.000000e-01 : f32
    %39 = vector.broadcast %cst_20 : f32 to vector<313x128xf32>
    %40 = arith.mulf %39, %36 : vector<313x128xf32>
    %41 = arith.select %38, %36, %40 : vector<313x128xi1>, vector<313x128xf32>
    %c8 = arith.constant 8 : index
    %c0_21 = arith.constant 0 : index
    %42 = vector.load %arg7[%c8, %c0_21] : memref<329x128xf32, #tpu.memory_space<vmem>>, vector<313x128xf32>
    tpu.vector_store %arg7[%c8, %c0_21], %41 {strides = array<i32>} : memref<329x128xf32, #tpu.memory_space<vmem>>, vector<313x128xf32>,
    %c7_22 = arith.constant 7 : index
    %c0_23 = arith.constant 0 : index
    %43 = vector.load %arg7[%c7_22, %c0_23] : memref<329x128xf32, #tpu.memory_space<vmem>>, vector<313x128xf32>
    %44 = arith.truncf %43 : vector<313x128xf32> to vector<313x128xbf16>
    %45 = arith.truncf %41 : vector<313x128xf32> to vector<313x128xbf16>
    %c9 = arith.constant 9 : index
    %c0_24 = arith.constant 0 : index
    %46 = vector.load %arg7[%c9, %c0_24] : memref<329x128xf32, #tpu.memory_space<vmem>>, vector<313x128xf32>
    %47 = arith.truncf %46 : vector<313x128xf32> to vector<313x128xbf16>
    %c0_25 = arith.constant 0 : index
    %c0_26 = arith.constant 0 : index
    %c0_27 = arith.constant 0 : index
    %c0_28 = arith.constant 0 : index
    %48 = vector.load %arg3[%c0_25, %c0_26, %c0_27, %c0_28] : memref<3x3x128x128xbf16, #tpu.memory_space<vmem>>, vector<1x1x128x128xbf16>
    %49 = vector.shape_cast %48 : vector<1x1x128x128xbf16> to vector<128x128xbf16>
    %cst_29 = arith.constant dense<0.000000e+00> : vector<313x128xf32>
    %50 = tpu.matmul %44, %49, %cst_29 {dimension_numbers = #tpu.dot_dimension_numbers<[1], [0], [0], [1], [0, 0, 1, 1], [], []>} : vector<313x128xbf16>, vector<128x128xbf16>, vector<313x128xf32> -> vector<313x128xf32>
    %c0_30 = arith.constant 0 : index
    %c1 = arith.constant 1 : index
    %c0_31 = arith.constant 0 : index
    %c0_32 = arith.constant 0 : index
    %51 = vector.load %arg3[%c0_30, %c1, %c0_31, %c0_32] : memref<3x3x128x128xbf16, #tpu.memory_space<vmem>>, vector<1x1x128x128xbf16>
    %52 = vector.shape_cast %51 : vector<1x1x128x128xbf16> to vector<128x128xbf16>
    %cst_33 = arith.constant dense<0.000000e+00> : vector<313x128xf32>
    %53 = tpu.matmul %45, %52, %cst_33 {dimension_numbers = #tpu.dot_dimension_numbers<[1], [0], [0], [1], [0, 0, 1, 1], [], []>} : vector<313x128xbf16>, vector<128x128xbf16>, vector<313x128xf32> -> vector<313x128xf32>
    %54 = arith.addf %50, %53 : vector<313x128xf32>
    %c0_34 = arith.constant 0 : index
    %c2 = arith.constant 2 : index
    %c0_35 = arith.constant 0 : index
    %c0_36 = arith.constant 0 : index
    %55 = vector.load %arg3[%c0_34, %c2, %c0_35, %c0_36] : memref<3x3x128x128xbf16, #tpu.memory_space<vmem>>, vector<1x1x128x128xbf16>
    %56 = vector.shape_cast %55 : vector<1x1x128x128xbf16> to vector<128x128xbf16>
    %cst_37 = arith.constant dense<0.000000e+00> : vector<313x128xf32>
    %57 = tpu.matmul %47, %56, %cst_37 {dimension_numbers = #tpu.dot_dimension_numbers<[1], [0], [0], [1], [0, 0, 1, 1], [], []>} : vector<313x128xbf16>, vector<128x128xbf16>, vector<313x128xf32> -> vector<313x128xf32>
    %58 = arith.addf %54, %57 : vector<313x128xf32>
    %cst_38 = arith.constant dense<0.000000e+00> : vector<128xf32>
    %59 = vector.multi_reduction <add>, %58, %cst_38 [0] : vector<313x128xf32> to vector<128xf32>
    %60 = vector.shape_cast %59 : vector<128xf32> to vector<1x128xf32>
    %cst_39 = arith.constant 3.130000e+02 : f32
    %61 = vector.broadcast %cst_39 : f32 to vector<1x128xf32>
    %62 = arith.divf %60, %61 : vector<1x128xf32>
    %63 = arith.mulf %58, %58 : vector<313x128xf32>
    %cst_40 = arith.constant dense<0.000000e+00> : vector<128xf32>
    %64 = vector.multi_reduction <add>, %63, %cst_40 [0] : vector<313x128xf32> to vector<128xf32>
    %65 = vector.shape_cast %64 : vector<128xf32> to vector<1x128xf32>
    %cst_41 = arith.constant 3.130000e+02 : f32
    %66 = vector.broadcast %cst_41 : f32 to vector<1x128xf32>
    %67 = arith.divf %65, %66 : vector<1x128xf32>
    %68 = arith.mulf %62, %62 : vector<1x128xf32>
    %69 = arith.subf %67, %68 : vector<1x128xf32>
    %cst_42 = arith.constant 9.99999974E-6 : f32
    %70 = vector.broadcast %cst_42 : f32 to vector<1x128xf32>
    %71 = arith.addf %69, %70 : vector<1x128xf32>
    %72 = math.rsqrt %71 : vector<1x128xf32>
    %cst_43 = arith.constant 0.000000e+00 : f32
    %73 = vector.broadcast %cst_43 : f32 to vector<1x128xf32>
    %74 = arith.subf %73, %62 : vector<1x128xf32>
    %75 = arith.mulf %74, %72 : vector<1x128xf32>
    %76 = vector.broadcast %72 : vector<1x128xf32> to vector<313x128xf32>
    %77 = arith.mulf %58, %76 : vector<313x128xf32>
    %78 = vector.broadcast %75 : vector<1x128xf32> to vector<313x128xf32>
    %79 = arith.addf %77, %78 : vector<313x128xf32>
    %c1_44 = arith.constant 1 : index
    %c0_45 = arith.constant 0 : index
    %c0_46 = arith.constant 0 : index
    %80 = vector.load %arg4[%c1_44, %c0_45, %c0_46] : memref<3x313x128xf32, #tpu.memory_space<vmem>>, vector<1x313x128xf32>
    %81 = vector.shape_cast %80 : vector<1x313x128xf32> to vector<313x128xf32>
    %82 = arith.mulf %79, %81 : vector<313x128xf32>
    %c1_47 = arith.constant 1 : index
    %c0_48 = arith.constant 0 : index
    %c0_49 = arith.constant 0 : index
    %83 = vector.load %arg5[%c1_47, %c0_48, %c0_49] : memref<3x313x128xf32, #tpu.memory_space<vmem>>, vector<1x313x128xf32>
    %84 = vector.shape_cast %83 : vector<1x313x128xf32> to vector<313x128xf32>
    %85 = arith.addf %82, %84 : vector<313x128xf32>
    %cst_50 = arith.constant 0.000000e+00 : f32
    %86 = vector.broadcast %cst_50 : f32 to vector<313x128xf32>
    %87 = arith.cmpf oge, %85, %86 : vector<313x128xf32>
    %cst_51 = arith.constant 2.000000e-01 : f32
    %88 = vector.broadcast %cst_51 : f32 to vector<313x128xf32>
    %89 = arith.mulf %88, %85 : vector<313x128xf32>
    %90 = arith.select %87, %85, %89 : vector<313x128xi1>, vector<313x128xf32>
    %c8_52 = arith.constant 8 : index
    %c0_53 = arith.constant 0 : index
    %91 = vector.load %arg7[%c8_52, %c0_53] : memref<329x128xf32, #tpu.memory_space<vmem>>, vector<313x128xf32>
    tpu.vector_store %arg7[%c8_52, %c0_53], %90 {strides = array<i32>} : memref<329x128xf32, #tpu.memory_space<vmem>>, vector<313x128xf32>,
    %c7_54 = arith.constant 7 : index
    %c0_55 = arith.constant 0 : index
    %92 = vector.load %arg7[%c7_54, %c0_55] : memref<329x128xf32, #tpu.memory_space<vmem>>, vector<313x128xf32>
    %93 = arith.truncf %92 : vector<313x128xf32> to vector<313x128xbf16>
    %94 = arith.truncf %90 : vector<313x128xf32> to vector<313x128xbf16>
    %c9_56 = arith.constant 9 : index
    %c0_57 = arith.constant 0 : index
    %95 = vector.load %arg7[%c9_56, %c0_57] : memref<329x128xf32, #tpu.memory_space<vmem>>, vector<313x128xf32>
    %96 = arith.truncf %95 : vector<313x128xf32> to vector<313x128xbf16>
    %c1_58 = arith.constant 1 : index
    %c0_59 = arith.constant 0 : index
    %c0_60 = arith.constant 0 : index
    %c0_61 = arith.constant 0 : index
    %97 = vector.load %arg3[%c1_58, %c0_59, %c0_60, %c0_61] : memref<3x3x128x128xbf16, #tpu.memory_space<vmem>>, vector<1x1x128x128xbf16>
    %98 = vector.shape_cast %97 : vector<1x1x128x128xbf16> to vector<128x128xbf16>
    %cst_62 = arith.constant dense<0.000000e+00> : vector<313x128xf32>
    %99 = tpu.matmul %93, %98, %cst_62 {dimension_numbers = #tpu.dot_dimension_numbers<[1], [0], [0], [1], [0, 0, 1, 1], [], []>} : vector<313x128xbf16>, vector<128x128xbf16>, vector<313x128xf32> -> vector<313x128xf32>
    %c1_63 = arith.constant 1 : index
    %c1_64 = arith.constant 1 : index
    %c0_65 = arith.constant 0 : index
    %c0_66 = arith.constant 0 : index
    %100 = vector.load %arg3[%c1_63, %c1_64, %c0_65, %c0_66] : memref<3x3x128x128xbf16, #tpu.memory_space<vmem>>, vector<1x1x128x128xbf16>
    %101 = vector.shape_cast %100 : vector<1x1x128x128xbf16> to vector<128x128xbf16>
    %cst_67 = arith.constant dense<0.000000e+00> : vector<313x128xf32>
    %102 = tpu.matmul %94, %101, %cst_67 {dimension_numbers = #tpu.dot_dimension_numbers<[1], [0], [0], [1], [0, 0, 1, 1], [], []>} : vector<313x128xbf16>, vector<128x128xbf16>, vector<313x128xf32> -> vector<313x128xf32>
    %103 = arith.addf %99, %102 : vector<313x128xf32>
    %c1_68 = arith.constant 1 : index
    %c2_69 = arith.constant 2 : index
    %c0_70 = arith.constant 0 : index
    %c0_71 = arith.constant 0 : index
    %104 = vector.load %arg3[%c1_68, %c2_69, %c0_70, %c0_71] : memref<3x3x128x128xbf16, #tpu.memory_space<vmem>>, vector<1x1x128x128xbf16>
    %105 = vector.shape_cast %104 : vector<1x1x128x128xbf16> to vector<128x128xbf16>
    %cst_72 = arith.constant dense<0.000000e+00> : vector<313x128xf32>
    %106 = tpu.matmul %96, %105, %cst_72 {dimension_numbers = #tpu.dot_dimension_numbers<[1], [0], [0], [1], [0, 0, 1, 1], [], []>} : vector<313x128xbf16>, vector<128x128xbf16>, vector<313x128xf32> -> vector<313x128xf32>
    %107 = arith.addf %103, %106 : vector<313x128xf32>
    %cst_73 = arith.constant dense<0.000000e+00> : vector<128xf32>
    %108 = vector.multi_reduction <add>, %107, %cst_73 [0] : vector<313x128xf32> to vector<128xf32>
    %109 = vector.shape_cast %108 : vector<128xf32> to vector<1x128xf32>
    %cst_74 = arith.constant 3.130000e+02 : f32
    %110 = vector.broadcast %cst_74 : f32 to vector<1x128xf32>
    %111 = arith.divf %109, %110 : vector<1x128xf32>
    %112 = arith.mulf %107, %107 : vector<313x128xf32>
    %cst_75 = arith.constant dense<0.000000e+00> : vector<128xf32>
    %113 = vector.multi_reduction <add>, %112, %cst_75 [0] : vector<313x128xf32> to vector<128xf32>
    %114 = vector.shape_cast %113 : vector<128xf32> to vector<1x128xf32>
    %cst_76 = arith.constant 3.130000e+02 : f32
    %115 = vector.broadcast %cst_76 : f32 to vector<1x128xf32>
    %116 = arith.divf %114, %115 : vector<1x128xf32>
    %117 = arith.mulf %111, %111 : vector<1x128xf32>
    %118 = arith.subf %116, %117 : vector<1x128xf32>
    %cst_77 = arith.constant 9.99999974E-6 : f32
    %119 = vector.broadcast %cst_77 : f32 to vector<1x128xf32>
    %120 = arith.addf %118, %119 : vector<1x128xf32>
    %121 = math.rsqrt %120 : vector<1x128xf32>
    %cst_78 = arith.constant 0.000000e+00 : f32
    %122 = vector.broadcast %cst_78 : f32 to vector<1x128xf32>
    %123 = arith.subf %122, %111 : vector<1x128xf32>
    %124 = arith.mulf %123, %121 : vector<1x128xf32>
    %125 = vector.broadcast %121 : vector<1x128xf32> to vector<313x128xf32>
    %126 = arith.mulf %107, %125 : vector<313x128xf32>
    %127 = vector.broadcast %124 : vector<1x128xf32> to vector<313x128xf32>
    %128 = arith.addf %126, %127 : vector<313x128xf32>
    %c2_79 = arith.constant 2 : index
    %c0_80 = arith.constant 0 : index
    %c0_81 = arith.constant 0 : index
    %129 = vector.load %arg4[%c2_79, %c0_80, %c0_81] : memref<3x313x128xf32, #tpu.memory_space<vmem>>, vector<1x313x128xf32>
    %130 = vector.shape_cast %129 : vector<1x313x128xf32> to vector<313x128xf32>
    %131 = arith.mulf %128, %130 : vector<313x128xf32>
    %c2_82 = arith.constant 2 : index
    %c0_83 = arith.constant 0 : index
    %c0_84 = arith.constant 0 : index
    %132 = vector.load %arg5[%c2_82, %c0_83, %c0_84] : memref<3x313x128xf32, #tpu.memory_space<vmem>>, vector<1x313x128xf32>
    %133 = vector.shape_cast %132 : vector<1x313x128xf32> to vector<313x128xf32>
    %134 = arith.addf %131, %133 : vector<313x128xf32>
    %cst_85 = arith.constant 0.000000e+00 : f32
    %135 = vector.broadcast %cst_85 : f32 to vector<313x128xf32>
    %136 = arith.cmpf oge, %134, %135 : vector<313x128xf32>
    %cst_86 = arith.constant 2.000000e-01 : f32
    %137 = vector.broadcast %cst_86 : f32 to vector<313x128xf32>
    %138 = arith.mulf %137, %134 : vector<313x128xf32>
    %139 = arith.select %136, %134, %138 : vector<313x128xi1>, vector<313x128xf32>
    %c8_87 = arith.constant 8 : index
    %c0_88 = arith.constant 0 : index
    %140 = vector.load %arg7[%c8_87, %c0_88] : memref<329x128xf32, #tpu.memory_space<vmem>>, vector<313x128xf32>
    tpu.vector_store %arg7[%c8_87, %c0_88], %139 {strides = array<i32>} : memref<329x128xf32, #tpu.memory_space<vmem>>, vector<313x128xf32>,
    %c7_89 = arith.constant 7 : index
    %c0_90 = arith.constant 0 : index
    %141 = vector.load %arg7[%c7_89, %c0_90] : memref<329x128xf32, #tpu.memory_space<vmem>>, vector<313x128xf32>
    %142 = arith.truncf %141 : vector<313x128xf32> to vector<313x128xbf16>
    %143 = arith.truncf %139 : vector<313x128xf32> to vector<313x128xbf16>
    %c9_91 = arith.constant 9 : index
    %c0_92 = arith.constant 0 : index
    %144 = vector.load %arg7[%c9_91, %c0_92] : memref<329x128xf32, #tpu.memory_space<vmem>>, vector<313x128xf32>
    %145 = arith.truncf %144 : vector<313x128xf32> to vector<313x128xbf16>
    %c2_93 = arith.constant 2 : index
    %c0_94 = arith.constant 0 : index
    %c0_95 = arith.constant 0 : index
    %c0_96 = arith.constant 0 : index
    %146 = vector.load %arg3[%c2_93, %c0_94, %c0_95, %c0_96] : memref<3x3x128x128xbf16, #tpu.memory_space<vmem>>, vector<1x1x128x128xbf16>
    %147 = vector.shape_cast %146 : vector<1x1x128x128xbf16> to vector<128x128xbf16>
    %cst_97 = arith.constant dense<0.000000e+00> : vector<313x128xf32>
    %148 = tpu.matmul %142, %147, %cst_97 {dimension_numbers = #tpu.dot_dimension_numbers<[1], [0], [0], [1], [0, 0, 1, 1], [], []>} : vector<313x128xbf16>, vector<128x128xbf16>, vector<313x128xf32> -> vector<313x128xf32>
    %c2_98 = arith.constant 2 : index
    %c1_99 = arith.constant 1 : index
    %c0_100 = arith.constant 0 : index
    %c0_101 = arith.constant 0 : index
    %149 = vector.load %arg3[%c2_98, %c1_99, %c0_100, %c0_101] : memref<3x3x128x128xbf16, #tpu.memory_space<vmem>>, vector<1x1x128x128xbf16>
    %150 = vector.shape_cast %149 : vector<1x1x128x128xbf16> to vector<128x128xbf16>
    %cst_102 = arith.constant dense<0.000000e+00> : vector<313x128xf32>
    %151 = tpu.matmul %143, %150, %cst_102 {dimension_numbers = #tpu.dot_dimension_numbers<[1], [0], [0], [1], [0, 0, 1, 1], [], []>} : vector<313x128xbf16>, vector<128x128xbf16>, vector<313x128xf32> -> vector<313x128xf32>
    %152 = arith.addf %148, %151 : vector<313x128xf32>
    %c2_103 = arith.constant 2 : index
    %c2_104 = arith.constant 2 : index
    %c0_105 = arith.constant 0 : index
    %c0_106 = arith.constant 0 : index
    %153 = vector.load %arg3[%c2_103, %c2_104, %c0_105, %c0_106] : memref<3x3x128x128xbf16, #tpu.memory_space<vmem>>, vector<1x1x128x128xbf16>
    %154 = vector.shape_cast %153 : vector<1x1x128x128xbf16> to vector<128x128xbf16>
    %cst_107 = arith.constant dense<0.000000e+00> : vector<313x128xf32>
    %155 = tpu.matmul %145, %154, %cst_107 {dimension_numbers = #tpu.dot_dimension_numbers<[1], [0], [0], [1], [0, 0, 1, 1], [], []>} : vector<313x128xbf16>, vector<128x128xbf16>, vector<313x128xf32> -> vector<313x128xf32>
    %156 = arith.addf %152, %155 : vector<313x128xf32>
    %cst_108 = arith.constant 0.000000e+00 : f32
    %157 = vector.broadcast %cst_108 : f32 to vector<71x128xf32>
    %158 = tpu.concatenate %156, %157 in 0 : vector<313x128xf32>, vector<71x128xf32> -> vector<384x128xf32>
    %159 = vector.extract_strided_slice %158 {offsets = [0, 0], sizes = [128, 128], strides = [1, 1]} : vector<384x128xf32> to vector<128x128xf32>
    %160 = tpu.transpose %159, [1, 0] : vector<128x128xf32> -> vector<128x128xf32>
    %c0_109 = arith.constant 0 : index
    %c0_110 = arith.constant 0 : index
    %c0_111 = arith.constant 0 : index
    %161 = vector.load %arg6[%c0_109, %c0_110, %c0_111] : memref<1x128x313xf32, #tpu.memory_space<vmem>>, vector<1x128x128xf32>
    %162 = vector.shape_cast %161 : vector<1x128x128xf32> to vector<128x128xf32>
    %163 = vector.shape_cast %160 : vector<128x128xf32> to vector<1x128x128xf32>
    tpu.vector_store %arg6[%c0_109, %c0_110, %c0_111], %163 {strides = array<i32>} : memref<1x128x313xf32, #tpu.memory_space<vmem>>, vector<1x128x128xf32>,
    %164 = vector.extract_strided_slice %158 {offsets = [128, 0], sizes = [128, 128], strides = [1, 1]} : vector<384x128xf32> to vector<128x128xf32>
    %165 = tpu.transpose %164, [1, 0] : vector<128x128xf32> -> vector<128x128xf32>
    %c0_112 = arith.constant 0 : index
    %c0_113 = arith.constant 0 : index
    %c128 = arith.constant 128 : index
    %166 = vector.load %arg6[%c0_112, %c0_113, %c128] : memref<1x128x313xf32, #tpu.memory_space<vmem>>, vector<1x128x128xf32>
    %167 = vector.shape_cast %166 : vector<1x128x128xf32> to vector<128x128xf32>
    %168 = vector.shape_cast %165 : vector<128x128xf32> to vector<1x128x128xf32>
    tpu.vector_store %arg6[%c0_112, %c0_113, %c128], %168 {strides = array<i32>} : memref<1x128x313xf32, #tpu.memory_space<vmem>>, vector<1x128x128xf32>,
    %169 = vector.extract_strided_slice %158 {offsets = [256, 0], sizes = [128, 128], strides = [1, 1]} : vector<384x128xf32> to vector<128x128xf32>
    %170 = tpu.transpose %169, [1, 0] : vector<128x128xf32> -> vector<128x128xf32>
    %171 = vector.extract_strided_slice %170 {offsets = [0, 0], sizes = [128, 57], strides = [1, 1]} : vector<128x128xf32> to vector<128x57xf32>
    %c0_114 = arith.constant 0 : index
    %c0_115 = arith.constant 0 : index
    %c256 = arith.constant 256 : index
    %172 = vector.load %arg6[%c0_114, %c0_115, %c256] : memref<1x128x313xf32, #tpu.memory_space<vmem>>, vector<1x128x57xf32>
    %173 = vector.shape_cast %172 : vector<1x128x57xf32> to vector<128x57xf32>
    %174 = vector.shape_cast %171 : vector<128x57xf32> to vector<1x128x57xf32>
    tpu.vector_store %arg6[%c0_114, %c0_115, %c256], %174 {strides = array<i32>} : memref<1x128x313xf32, #tpu.memory_space<vmem>>, vector<1x128x57xf32>,
    return
  }
  func.func @transform_0(%arg0: i32) -> (i32, i32, i32) {
    %c0_i32 = arith.constant 0 : i32
    %c0_i32_0 = arith.constant 0 : i32
    %c0_i32_1 = arith.constant 0 : i32
    return %arg0, %c0_i32, %c0_i32_0 : i32, i32, i32
  }
  func.func @transform_1(%arg0: i32) -> (i32, i32) {
    %c0_i32 = arith.constant 0 : i32
    %c0_i32_0 = arith.constant 0 : i32
    %c0_i32_1 = arith.constant 0 : i32
    return %c0_i32, %c0_i32_0 : i32, i32
  }
  func.func @transform_2(%arg0: i32) -> (i32, i32, i32, i32) {
    %c0_i32 = arith.constant 0 : i32
    %c0_i32_0 = arith.constant 0 : i32
    %c0_i32_1 = arith.constant 0 : i32
    %c0_i32_2 = arith.constant 0 : i32
    %c0_i32_3 = arith.constant 0 : i32
    return %c0_i32, %c0_i32_0, %c0_i32_1, %c0_i32_2 : i32, i32, i32, i32
  }
  func.func @transform_3(%arg0: i32) -> (i32, i32, i32) {
    %c0_i32 = arith.constant 0 : i32
    %c0_i32_0 = arith.constant 0 : i32
    %c0_i32_1 = arith.constant 0 : i32
    %c0_i32_2 = arith.constant 0 : i32
    return %c0_i32, %c0_i32_0, %c0_i32_1 : i32, i32, i32
  }
  func.func @transform_4(%arg0: i32) -> (i32, i32, i32) {
    %c0_i32 = arith.constant 0 : i32
    %c0_i32_0 = arith.constant 0 : i32
    %c0_i32_1 = arith.constant 0 : i32
    %c0_i32_2 = arith.constant 0 : i32
    return %c0_i32, %c0_i32_0, %c0_i32_1 : i32, i32, i32
  }
  func.func @transform_5(%arg0: i32) -> (i32, i32, i32) {
    %c0_i32 = arith.constant 0 : i32
    %c0_i32_0 = arith.constant 0 : i32
    %c0_i32_1 = arith.constant 0 : i32
    return %arg0, %c0_i32, %c0_i32_0 : i32, i32, i32
  }
}

</mosaic_0001>

<llo_original>
// kernel: tpu_custom_call.1
$region0: #{tpu_custom_call.1}
  #allocation0 [shape = 'u32[]', space=smem, size = 0x4, offset = 0x4, fixed_abs, tag = 'smem constant byte address 0x4 - core index']
  #allocation1 [shape = 'u32[144,128]{1,0:T(1,128)}', space=vmem, size = 0x12000, scoped, tag = 'internal scratch']
  #allocation2 [shape = 'f32[329,128]{1,0:T(8,128)}', space=vmem, size = 0x2a000, scoped, tag = 'scratch operand']
  %s0 = inlined_call_operand.vmem [shape: bf16[2,314,512], index: 0, kind: input, shape index: {}]
  %s1 = inlined_call_operand.hbm [shape: bf16[512,256], index: 1, kind: input, shape index: {}]
  %s2 = inlined_call_operand.vmem [shape: bf16[3,3,128,128], index: 2, kind: input, shape index: {}]
  %s3 = inlined_call_operand.vmem [shape: f32[3,313,128], index: 3, kind: input, shape index: {}]
  %s4 = inlined_call_operand.vmem [shape: f32[3,313,128], index: 4, kind: input, shape index: {}]
  %s5 = inlined_call_operand.vmem [shape: f32[2,128,313], index: 5, kind: output, shape index: {}]
  %s6 = sld [smem:[#allocation0]]
  $region57: #{tpu_custom_call.1} parent=0
    _
  %s8 = ssub.s32 1, %s6
  %s9 = scalar_select 0, %s8, %s6
  $region1: #{tpu_custom_call.1} parent=0
    #allocation3 [shape = 'u8[262144]{0}', space=vmem, size = 0x40000, scoped, tag = 'input window, operand 1, single buffered']
    #allocation4 [shape = 's32[2]{0}', space=sflag, size = 0x8, scoped, tag = 'scoped memory for tpu_custom_call.1']
    %10 = vsyncpa [#allocation4], 0
    loop: start=0, step=1, limit=4
    $region2: #{tpu_custom_call.1} parent=1 // loop_pre_header
      _
    $region3: #{tpu_custom_call.1} parent=1 // loop_header
      %s12 = sphi 0, %s16
      %p13 = scmp.ge.s32.totalorder %s12, 4
      %s22 = sphi 0, %s24
      %s25 = sphi 0, %s22
      %s26 = sphi 0, %s25
      %s42 = sphi 0, %s26
      %s46 = sphi 0, %s46
      %s48 = sphi 0, %s46
      %s49 = sphi 0, %s48
      %s63 = sphi 0, %s49
      %s67 = sphi 0, %s67
      %s69 = sphi 0, %s67
      %s70 = sphi 0, %s69
      %s84 = sphi 0, %s70
      %s88 = sphi 0, %s88
      %s90 = sphi 0, %s88
      %s91 = sphi 0, %s90
      %s105 = sphi 0, %s91
      %s109 = sphi 0, %s109
      %s111 = sphi 0, %s109
      %s112 = sphi 0, %s111
      %s126 = sphi 0, %s112
      %s132 = sphi 0, %s134
      %s135 = sphi 0, %s132
      %s136 = sphi 0, %s135
      %s152 = sphi 0, %s136
    $region4: #{tpu_custom_call.1} parent=1 // loop_header_branch
      %15 = sbr.rel (%p13) target = $region8
    $region5: #{tpu_custom_call.1} parent=1 // loop_body
      %s17 = ssub.s32 %s12, 1
      %s18 = ssub.s32 %s12, 2
      %s19 = sadd.s32 %s12, 1
      %s20 = ssub.s32 %s12, %s19
      %p21 = scmp.eq.s32.totalorder %s20, 0
      %s23 = sadd.s32 %s22, 1
      %s24 = scalar_select %p21, %s22, %s23
      %p27 = pneg %p21
      %p28 = scmp.eq.s32.totalorder %s12, 1
      %p29 = por %p27, %p28
      %p30 = scmp.ne.s32.totalorder %s22, %s25
      %p31 = scmp.eq.s32.totalorder %s12, 0
      %p32 = por %p30, %p31
      %p33 = scmp.ne.s32.totalorder %s22, %s25
      %p34 = scmp.eq.s32.totalorder %s17, 1
      %p35 = por %p33, %p34
      %p36 = scmp.ne.s32.totalorder %s25, %s26
      %p37 = scmp.eq.s32.totalorder %s17, 0
      %p38 = por %p36, %p37
      %p39 = scmp.ne.s32.totalorder %s25, %s26
      %p40 = scmp.eq.s32.totalorder %s18, 1
      %p41 = por %p39, %p40
      %p43 = scmp.ne.s32.totalorder %s26, %s42
      %p44 = scmp.eq.s32.totalorder %s18, 0
      %p45 = por %p43, %p44
      %s47 = sadd.s32 %s46, 1
      %p50 = scmp.eq.s32.totalorder %s12, 1
      %p51 = scmp.ne.s32.totalorder %s46, %s48
      %p52 = scmp.eq.s32.totalorder %s12, 0
      %p53 = por %p51, %p52
      %p54 = scmp.ne.s32.totalorder %s46, %s48
      %p55 = scmp.eq.s32.totalorder %s17, 1
      %p56 = por %p54, %p55
      %p57 = scmp.ne.s32.totalorder %s48, %s49
      %p58 = scmp.eq.s32.totalorder %s17, 0
      %p59 = por %p57, %p58
      %p60 = scmp.ne.s32.totalorder %s48, %s49
      %p61 = scmp.eq.s32.totalorder %s18, 1
      %p62 = por %p60, %p61
      %p64 = scmp.ne.s32.totalorder %s49, %s63
      %p65 = scmp.eq.s32.totalorder %s18, 0
      %p66 = por %p64, %p65
      %s68 = sadd.s32 %s67, 1
      %p71 = scmp.eq.s32.totalorder %s12, 1
      %p72 = scmp.ne.s32.totalorder %s67, %s69
      %p73 = scmp.eq.s32.totalorder %s12, 0
      %p74 = por %p72, %p73
      %p75 = scmp.ne.s32.totalorder %s67, %s69
      %p76 = scmp.eq.s32.totalorder %s17, 1
      %p77 = por %p75, %p76
      %p78 = scmp.ne.s32.totalorder %s69, %s70
      %p79 = scmp.eq.s32.totalorder %s17, 0
      %p80 = por %p78, %p79
      %p81 = scmp.ne.s32.totalorder %s69, %s70
      %p82 = scmp.eq.s32.totalorder %s18, 1
      %p83 = por %p81, %p82
      %p85 = scmp.ne.s32.totalorder %s70, %s84
      %p86 = scmp.eq.s32.totalorder %s18, 0
      %p87 = por %p85, %p86
      %s89 = sadd.s32 %s88, 1
      %p92 = scmp.eq.s32.totalorder %s12, 1
      %p93 = scmp.ne.s32.totalorder %s88, %s90
      %p94 = scmp.eq.s32.totalorder %s12, 0
      %p95 = por %p93, %p94
      %p96 = scmp.ne.s32.totalorder %s88, %s90
      %p97 = scmp.eq.s32.totalorder %s17, 1
      %p98 = por %p96, %p97
      %p99 = scmp.ne.s32.totalorder %s90, %s91
      %p100 = scmp.eq.s32.totalorder %s17, 0
      %p101 = por %p99, %p100
      %p102 = scmp.ne.s32.totalorder %s90, %s91
      %p103 = scmp.eq.s32.totalorder %s18, 1
      %p104 = por %p102, %p103
      %p106 = scmp.ne.s32.totalorder %s91, %s105
      %p107 = scmp.eq.s32.totalorder %s18, 0
      %p108 = por %p106, %p107
      %s110 = sadd.s32 %s109, 1
      %p113 = scmp.eq.s32.totalorder %s12, 1
      %p114 = scmp.ne.s32.totalorder %s109, %s111
      %p115 = scmp.eq.s32.totalorder %s12, 0
      %p116 = por %p114, %p115
      %p117 = scmp.ne.s32.totalorder %s109, %s111
      %p118 = scmp.eq.s32.totalorder %s17, 1
      %p119 = por %p117, %p118
      %p120 = scmp.ne.s32.totalorder %s111, %s112
      %p121 = scmp.eq.s32.totalorder %s17, 0
      %p122 = por %p120, %p121
      %p123 = scmp.ne.s32.totalorder %s111, %s112
      %p124 = scmp.eq.s32.totalorder %s18, 1
      %p125 = por %p123, %p124
      %p127 = scmp.ne.s32.totalorder %s112, %s126
      %p128 = scmp.eq.s32.totalorder %s18, 0
      %p129 = por %p127, %p128
      %s130 = ssub.s32 %s12, %s19
      %p131 = scmp.eq.s32.totalorder %s130, 0
      %s133 = sadd.s32 %s132, 1
      %s134 = scalar_select %p131, %s132, %s133
      %p137 = pneg %p131
      %p138 = scmp.eq.s32.totalorder %s12, 1
      %p139 = por %p137, %p138
      %p140 = scmp.ne.s32.totalorder %s132, %s135
      %p141 = scmp.eq.s32.totalorder %s12, 0
      %p142 = por %p140, %p141
      %p143 = scmp.ne.s32.totalorder %s132, %s135
      %p144 = scmp.eq.s32.totalorder %s17, 1
      %p145 = por %p143, %p144
      %p146 = scmp.ne.s32.totalorder %s135, %s136
      %p147 = scmp.eq.s32.totalorder %s17, 0
      %p148 = por %p146, %p147
      %p149 = scmp.ne.s32.totalorder %s135, %s136
      %p150 = scmp.eq.s32.totalorder %s18, 1
      %p151 = por %p149, %p150
      %p153 = scmp.ne.s32.totalorder %s136, %s152
      %p154 = scmp.eq.s32.totalorder %s18, 0
      %p155 = por %p153, %p154
      %p156 = scmp.le.s32.totalorder 1, %s12
      %p157 = scmp.lt.s32.totalorder %s12, 3
      %p158 = pnand %p156, %p157
      %p159 = pneg %p158
      // Predicated region
      $region9: #{tpu_custom_call.1} parent=5 // pred_check
        _
      $region10: #{tpu_custom_call.1} parent=5 // pred_check_branch
        %161 = sbr.rel (%p158) target = $region12
      $region11: #{tpu_custom_call.1} parent=5 // pred_region
        %s162 = ssub.s32 %s12, 1
        // Predicated region
        $region13: #{tpu_custom_call.1} parent=11 // pred_check
          %p163 = pneg %p59
        $region14: #{tpu_custom_call.1} parent=11 // pred_check_branch
          %165 = sbr.rel (%p163) target = $region16
        $region15: #{tpu_custom_call.1} parent=11 // pred_region
          %s167 = ssub.s32 8192, 8192
          %168 = vsyncadd [#allocation4], %s167
          %s169 = sshll.u32 [#allocation3], 4
          %s170 = int_to_ptr.vmem [resolvable:$true] %s169
          %175 = dma.hbm_to_vmem [thread:$0]  %s1, 8192, %s170, [#allocation4], 128, 128, 8
        $region16: #{tpu_custom_call.1} parent=11 // pred_fallthru
          _
        // Predicated region
        $region17: #{tpu_custom_call.1} parent=11 // pred_check
          %p176 = pneg %p80
        $region18: #{tpu_custom_call.1} parent=11 // pred_check_branch
          %178 = sbr.rel (%p176) target = $region20
        $region19: #{tpu_custom_call.1} parent=11 // pred_region
          _
        $region20: #{tpu_custom_call.1} parent=11 // pred_fallthru
          _
        // Predicated region
        $region21: #{tpu_custom_call.1} parent=11 // pred_check
          %p179 = pneg %p101
        $region22: #{tpu_custom_call.1} parent=11 // pred_check_branch
          %181 = sbr.rel (%p179) target = $region24
        $region23: #{tpu_custom_call.1} parent=11 // pred_region
          _
        $region24: #{tpu_custom_call.1} parent=11 // pred_fallthru
          _
        // Predicated region
        $region25: #{tpu_custom_call.1} parent=11 // pred_check
          %p182 = pneg %p122
        $region26: #{tpu_custom_call.1} parent=11 // pred_check_branch
          %184 = sbr.rel (%p182) target = $region28
        $region27: #{tpu_custom_call.1} parent=11 // pred_region
          _
        $region28: #{tpu_custom_call.1} parent=11 // pred_fallthru
          _
      $region12: #{tpu_custom_call.1} parent=5 // pred_fallthru
        _
      %p185 = scmp.lt.s32.totalorder %s12, 2
      // Predicated region
      $region29: #{tpu_custom_call.1} parent=5 // pred_check
        %p186 = pneg %p185
      $region30: #{tpu_custom_call.1} parent=5 // pred_check_branch
        %188 = sbr.rel (%p186) target = $region32
      $region31: #{tpu_custom_call.1} parent=5 // pred_region
        // Predicated region
        $region33: #{tpu_custom_call.1} parent=31 // pred_check
          %p189 = pneg %p32
        $region34: #{tpu_custom_call.1} parent=31 // pred_check_branch
          %191 = sbr.rel (%p189) target = $region36
        $region35: #{tpu_custom_call.1} parent=31 // pred_region
          %p192 = scmp.lt.s32.totalorder %s12, 1
          %s193 = scalar_select %p192, %s12, 1
          %s194 = smul.addr %s193, 160
          %s195 = smul.addr %s194, 4
          %s196 = scalar_lea.vmem %s0, %s195
        $region36: #{tpu_custom_call.1} parent=31 // pred_fallthru
          _
      $region32: #{tpu_custom_call.1} parent=5 // pred_fallthru
        _
      %p197 = scmp.le.s32.totalorder 1, %s12
      %p198 = scmp.lt.s32.totalorder %s12, 3
      %p199 = pnand %p197, %p198
      %p200 = pneg %p199
      // Predicated region
      $region37: #{tpu_custom_call.1} parent=5 // pred_check
        _
      $region38: #{tpu_custom_call.1} parent=5 // pred_check_branch
        %202 = sbr.rel (%p199) target = $region40
      $region39: #{tpu_custom_call.1} parent=5 // pred_region
        %s203 = ssub.s32 %s12, 1
        // Predicated region
        $region41: #{tpu_custom_call.1} parent=39 // pred_check
          %p204 = pneg %p59
        $region42: #{tpu_custom_call.1} parent=39 // pred_check_branch
          %206 = sbr.rel (%p204) target = $region44
        $region43: #{tpu_custom_call.1} parent=39 // pred_region
          %207 = dma.done [#allocation4], 8192
        $region44: #{tpu_custom_call.1} parent=39 // pred_fallthru
          _
        %p208 = scmp.lt.s32.totalorder %s17, 1
        %s209 = scalar_select %p208, %s17, 1
        %s210 = smul.addr %s209, 160
        %s211 = smul.addr %s210, 4
        %s212 = scalar_lea.vmem %s0, %s211
        %p213 = pneg %p38
        %p214 = pneg %p35
        %p215 = pneg %p59
        %p216 = pneg %p56
        %p217 = pneg %p80
        %p218 = pneg %p77
        %p219 = pneg %p101
        %p220 = pneg %p98
        %p221 = pneg %p122
        %p222 = pneg %p119
        %p223 = pneg %p148
        %p224 = pneg %p145
        %p225 = scmp.lt.s32.totalorder %s17, 1
        %s226 = scalar_select %p225, %s17, 1
        %s227 = smul.addr %s226, 48
        %s228 = smul.addr %s227, 8
        %s229 = scalar_lea.vmem %s5, %s228
        %p230 = scmp.lt.s32.totalorder %s17, 1
        %s231 = scalar_select %p230, %s17, 1
        %s232 = smul.addr %s231, 160
        %s233 = smul.addr %s232, 4
        %s234 = scalar_lea.vmem %s0, %s233
        %p235 = scmp.lt.s32.totalorder %s17, 1
        %s236 = scalar_select %p235, %s17, 1
        %s237 = smul.addr %s236, 48
        %s238 = smul.addr %s237, 8
        %s239 = scalar_lea.vmem %s5, %s238
        %241 = vst [vmem:[#allocation2 + $0x7] sm:$0x1] 0.0
        %242 = vst [vmem:[#allocation2 + $0x141] sm:$0x1] 0.0
        %v243 = vld [vmem:[#allocation3] sm:$0xff]
        %v244 = vld [vmem:[#allocation3 + $0x8] sm:$0xff]
        %v245 = vld [vmem:[#allocation3 + $0x10] sm:$0xff]
        %v246 = vld [vmem:[#allocation3 + $0x18] sm:$0xff]
        %v247 = vld [vmem:[#allocation3 + $0x20] sm:$0xff]
        %v248 = vld [vmem:[#allocation3 + $0x28] sm:$0xff]
        %v249 = vld [vmem:[#allocation3 + $0x30] sm:$0xff]
        %v250 = vld [vmem:[#allocation3 + $0x38] sm:$0xff]
        %v251 = vld [vmem:[#allocation3 + $0x40] sm:$0xff]
        %v252 = vld [vmem:[#allocation3 + $0x48] sm:$0xff]
        %v253 = vld [vmem:[#allocation3 + $0x50] sm:$0xff]
        %v254 = vld [vmem:[#allocation3 + $0x58] sm:$0xff]
        %v255 = vld [vmem:[#allocation3 + $0x60] sm:$0xff]
        %v256 = vld [vmem:[#allocation3 + $0x68] sm:$0xff]
        %v257 = vld [vmem:[#allocation3 + $0x70] sm:$0xff]
        %v258 = vld [vmem:[#allocation3 + $0x78] sm:$0xff]
        %v259 = vld [vmem:[#allocation3 + $0x80] sm:$0xff]
        %v260 = vld [vmem:[#allocation3 + $0x88] sm:$0xff]
        %v261 = vld [vmem:[#allocation3 + $0x90] sm:$0xff]
        %v262 = vld [vmem:[#allocation3 + $0x98] sm:$0xff]
        %v263 = vld [vmem:[#allocation3 + $0xa0] sm:$0xff]
        %v264 = vld [vmem:[#allocation3 + $0xa8] sm:$0xff]
        %v265 = vld [vmem:[#allocation3 + $0xb0] sm:$0xff]
        %v266 = vld [vmem:[#allocation3 + $0xb8] sm:$0xff]
        %v267 = vld [vmem:[#allocation3 + $0xc0] sm:$0xff]
        %v268 = vld [vmem:[#allocation3 + $0xc8] sm:$0xff]
        %v269 = vld [vmem:[#allocation3 + $0xd0] sm:$0xff]
        %v270 = vld [vmem:[#allocation3 + $0xd8] sm:$0xff]
        %v271 = vld [vmem:[#allocation3 + $0xe0] sm:$0xff]
        %v272 = vld [vmem:[#allocation3 + $0xe8] sm:$0xff]
        %v273 = vld [vmem:[#allocation3 + $0xf0] sm:$0xff]
        %v274 = vld [vmem:[#allocation3 + $0xf8] sm:$0xff]
        %v275 = vld [vmem:[#allocation3 + $0x100] sm:$0xff]
        %v276 = vld [vmem:[#allocation3 + $0x108] sm:$0xff]
        %v277 = vld [vmem:[#allocation3 + $0x110] sm:$0xff]
        %v278 = vld [vmem:[#allocation3 + $0x118] sm:$0xff]
        %v279 = vld [vmem:[#allocation3 + $0x120] sm:$0xff]
        %v280 = vld [vmem:[#allocation3 + $0x128] sm:$0xff]
        %v281 = vld [vmem:[#allocation3 + $0x130] sm:$0xff]
        %v282 = vld [vmem:[#allocation3 + $0x138] sm:$0xff]
        %v283 = vld [vmem:[#allocation3 + $0x140] sm:$0xff]
        %v284 = vld [vmem:[#allocation3 + $0x148] sm:$0xff]
        %v285 = vld [vmem:[#allocation3 + $0x150] sm:$0xff]
        %v286 = vld [vmem:[#allocation3 + $0x158] sm:$0xff]
        %v287 = vld [vmem:[#allocation3 + $0x160] sm:$0xff]
        %v288 = vld [vmem:[#allocation3 + $0x168] sm:$0xff]
        %v289 = vld [vmem:[#allocation3 + $0x170] sm:$0xff]
        %v290 = vld [vmem:[#allocation3 + $0x178] sm:$0xff]
        %v291 = vld [vmem:[#allocation3 + $0x180] sm:$0xff]
        %v292 = vld [vmem:[#allocation3 + $0x188] sm:$0xff]
        %v293 = vld [vmem:[#allocation3 + $0x190] sm:$0xff]
        %v294 = vld [vmem:[#allocation3 + $0x198] sm:$0xff]
        %v295 = vld [vmem:[#allocation3 + $0x1a0] sm:$0xff]
        %v296 = vld [vmem:[#allocation3 + $0x1a8] sm:$0xff]
        %v297 = vld [vmem:[#allocation3 + $0x1b0] sm:$0xff]
        %v298 = vld [vmem:[#allocation3 + $0x1b8] sm:$0xff]
        %v299 = vld [vmem:[#allocation3 + $0x1c0] sm:$0xff]
        %v300 = vld [vmem:[#allocation3 + $0x1c8] sm:$0xff]
        %v301 = vld [vmem:[#allocation3 + $0x1d0] sm:$0xff]
        %v302 = vld [vmem:[#allocation3 + $0x1d8] sm:$0xff]
        %v303 = vld [vmem:[#allocation3 + $0x1e0] sm:$0xff]
        %v304 = vld [vmem:[#allocation3 + $0x1e8] sm:$0xff]
        %v305 = vld [vmem:[#allocation3 + $0x1f0] sm:$0xff]
        %v306 = vld [vmem:[#allocation3 + $0x1f8] sm:$0xff]
        %v307 = vld [vmem:[%s234] sm:$0xff]
        %v308 = vld [vmem:[%s234 + $0x8] sm:$0xff]
        %v309 = vld [vmem:[%s234 + $0x10] sm:$0xff]
        %v310 = vld [vmem:[%s234 + $0x18] sm:$0xff]
        %v311 = vld [vmem:[%s234 + $0x20] sm:$0xff]
        %v312 = vld [vmem:[%s234 + $0x28] sm:$0xff]
        %v313 = vld [vmem:[%s234 + $0x30] sm:$0xff]
        %v314 = vld [vmem:[%s234 + $0x38] sm:$0xff]
        %v315 = vld [vmem:[%s234 + $0x40] sm:$0xff]
        %v316 = vld [vmem:[%s234 + $0x48] sm:$0xff]
        %v317 = vld [vmem:[%s234 + $0x50] sm:$0xff]
        %v318 = vld [vmem:[%s234 + $0x58] sm:$0xff]
        %v319 = vld [vmem:[%s234 + $0x60] sm:$0xff]
        %v320 = vld [vmem:[%s234 + $0x68] sm:$0xff]
        %v321 = vld [vmem:[%s234 + $0x70] sm:$0xff]
        %v322 = vld [vmem:[%s234 + $0x78] sm:$0xff]
        %v323 = vld [vmem:[%s234 + $0x80] sm:$0xff]
        %v324 = vld [vmem:[%s234 + $0x88] sm:$0xff]
        %v325 = vld [vmem:[%s234 + $0x90] sm:$0xff]
        %v326 = vld [vmem:[%s234 + $0x98] sm:$0xff]
        %v327 = vld [vmem:[%s234 + $0xa0] sm:$0xff]
        %v328 = vld [vmem:[%s234 + $0xa8] sm:$0xff]
        %v329 = vld [vmem:[%s234 + $0xb0] sm:$0xff]
        %v330 = vld [vmem:[%s234 + $0xb8] sm:$0xff]
        %v331 = vld [vmem:[%s234 + $0xc0] sm:$0xff]
        %v332 = vld [vmem:[%s234 + $0xc8] sm:$0xff]
        %v333 = vld [vmem:[%s234 + $0xd0] sm:$0xff]
        %v334 = vld [vmem:[%s234 + $0xd8] sm:$0xff]
        %v335 = vld [vmem:[%s234 + $0xe0] sm:$0xff]
        %v336 = vld [vmem:[%s234 + $0xe8] sm:$0xff]
        %v337 = vld [vmem:[%s234 + $0xf0] sm:$0xff]
        %v338 = vld [vmem:[%s234 + $0xf8] sm:$0xff]
        %v339 = vld [vmem:[%s234 + $0x100] sm:$0xff]
        %v340 = vld [vmem:[%s234 + $0x108] sm:$0xff]
        %v341 = vld [vmem:[%s234 + $0x110] sm:$0xff]
        %v342 = vld [vmem:[%s234 + $0x118] sm:$0xff]
        %v343 = vld [vmem:[%s234 + $0x120] sm:$0xff]
        %v344 = vld [vmem:[%s234 + $0x128] sm:$0xff]
        %v345 = vld [vmem:[%s234 + $0x130] sm:$0xff]
        %v346 = vld [vmem:[%s234 + $0x138] sm:$0xff]
        %v347 = vld [vmem:[%s234 + $0x140] sm:$0xff]
        %v348 = vld [vmem:[%s234 + $0x148] sm:$0xff]
        %v349 = vld [vmem:[%s234 + $0x150] sm:$0xff]
        %v350 = vld [vmem:[%s234 + $0x158] sm:$0xff]
        %v351 = vld [vmem:[%s234 + $0x160] sm:$0xff]
        %v352 = vld [vmem:[%s234 + $0x168] sm:$0xff]
        %v353 = vld [vmem:[%s234 + $0x170] sm:$0xff]
        %v354 = vld [vmem:[%s234 + $0x178] sm:$0xff]
        %v355 = vld [vmem:[%s234 + $0x180] sm:$0xff]
        %v356 = vld [vmem:[%s234 + $0x188] sm:$0xff]
        %v357 = vld [vmem:[%s234 + $0x190] sm:$0xff]
        %v358 = vld [vmem:[%s234 + $0x198] sm:$0xff]
        %v359 = vld [vmem:[%s234 + $0x1a0] sm:$0xff]
        %v360 = vld [vmem:[%s234 + $0x1a8] sm:$0xff]
        %v361 = vld [vmem:[%s234 + $0x1b0] sm:$0xff]
        %v362 = vld [vmem:[%s234 + $0x1b8] sm:$0xff]
        %v363 = vld [vmem:[%s234 + $0x1c0] sm:$0xff]
        %v364 = vld [vmem:[%s234 + $0x1c8] sm:$0xff]
        %v365 = vld [vmem:[%s234 + $0x1d0] sm:$0xff]
        %v366 = vld [vmem:[%s234 + $0x1d8] sm:$0xff]
        %v367 = vld [vmem:[%s234 + $0x1e0] sm:$0xff]
        %v368 = vld [vmem:[%s234 + $0x1e8] sm:$0xff]
        %v369 = vld [vmem:[%s234 + $0x1f0] sm:$0xff]
        %v370 = vld [vmem:[%s234 + $0x1f8] sm:$0xff]
        %v371 = vld [vmem:[%s234 + $0x200] sm:$0xff]
        %v372 = vld [vmem:[%s234 + $0x208] sm:$0xff]
        %v373 = vld [vmem:[%s234 + $0x210] sm:$0xff]
        %v374 = vld [vmem:[%s234 + $0x218] sm:$0xff]
        %v375 = vld [vmem:[%s234 + $0x220] sm:$0xff]
        %v376 = vld [vmem:[%s234 + $0x228] sm:$0xff]
        %v377 = vld [vmem:[%s234 + $0x230] sm:$0xff]
        %v378 = vld [vmem:[%s234 + $0x238] sm:$0xff]
        %v379 = vld [vmem:[%s234 + $0x240] sm:$0xff]
        %v380 = vld [vmem:[%s234 + $0x248] sm:$0xff]
        %v381 = vld [vmem:[%s234 + $0x250] sm:$0xff]
        %v382 = vld [vmem:[%s234 + $0x258] sm:$0xff]
        %v383 = vld [vmem:[%s234 + $0x260] sm:$0xff]
        %v384 = vld [vmem:[%s234 + $0x268] sm:$0xff]
        %v385 = vld [vmem:[%s234 + $0x270] sm:$0x11]
        %v386 = vld [vmem:[%s234 + $0x278] sm:$0x11]
        %v467 = vunpack.c.l.b16 %v307
        %v468 = vunpack.c.h.b16 %v307
        %v469 = vunpack.c.l.b16 %v308
        %v470 = vunpack.c.h.b16 %v308
        %v471 = vunpack.c.l.b16 %v309
        %v472 = vunpack.c.h.b16 %v309
        %v473 = vunpack.c.l.b16 %v310
        %v474 = vunpack.c.h.b16 %v310
        %v475 = vunpack.c.l.b16 %v311
        %v476 = vunpack.c.h.b16 %v311
        %v477 = vunpack.c.l.b16 %v312
        %v478 = vunpack.c.h.b16 %v312
        %v479 = vunpack.c.l.b16 %v313
        %v480 = vunpack.c.h.b16 %v313
        %v481 = vunpack.c.l.b16 %v314
        %v482 = vunpack.c.h.b16 %v314
        %v483 = vunpack.c.l.b16 %v315
        %v484 = vunpack.c.h.b16 %v315
        %v485 = vunpack.c.l.b16 %v316
        %v486 = vunpack.c.h.b16 %v316
        %v487 = vunpack.c.l.b16 %v317
        %v488 = vunpack.c.h.b16 %v317
        %v489 = vunpack.c.l.b16 %v318
        %v490 = vunpack.c.h.b16 %v318
        %v491 = vunpack.c.l.b16 %v319
        %v492 = vunpack.c.h.b16 %v319
        %v493 = vunpack.c.l.b16 %v320
        %v494 = vunpack.c.h.b16 %v320
        %v495 = vunpack.c.l.b16 %v321
        %v496 = vunpack.c.h.b16 %v321
        %v497 = vunpack.c.l.b16 %v322
        %v498 = vunpack.c.h.b16 %v322
        %v499 = vunpack.c.l.b16 %v323
        %v500 = vunpack.c.h.b16 %v323
        %v501 = vunpack.c.l.b16 %v324
        %v502 = vunpack.c.h.b16 %v324
        %v503 = vunpack.c.l.b16 %v325
        %v504 = vunpack.c.h.b16 %v325
        %v505 = vunpack.c.l.b16 %v326
        %v506 = vunpack.c.h.b16 %v326
        %v507 = vunpack.c.l.b16 %v327
        %v508 = vunpack.c.h.b16 %v327
        %v509 = vunpack.c.l.b16 %v328
        %v510 = vunpack.c.h.b16 %v328
        %v511 = vunpack.c.l.b16 %v329
        %v512 = vunpack.c.h.b16 %v329
        %v513 = vunpack.c.l.b16 %v330
        %v514 = vunpack.c.h.b16 %v330
        %v515 = vunpack.c.l.b16 %v331
        %v516 = vunpack.c.h.b16 %v331
        %v517 = vunpack.c.l.b16 %v332
        %v518 = vunpack.c.h.b16 %v332
        %v519 = vunpack.c.l.b16 %v333
        %v520 = vunpack.c.h.b16 %v333
        %v521 = vunpack.c.l.b16 %v334
        %v522 = vunpack.c.h.b16 %v334
        %v523 = vunpack.c.l.b16 %v335
        %v524 = vunpack.c.h.b16 %v335
        %v525 = vunpack.c.l.b16 %v336
        %v526 = vunpack.c.h.b16 %v336
        %v527 = vunpack.c.l.b16 %v337
        %v528 = vunpack.c.h.b16 %v337
        %v529 = vunpack.c.l.b16 %v338
        %v530 = vunpack.c.h.b16 %v338
        %v531 = vunpack.c.l.b16 %v339
        %v532 = vunpack.c.h.b16 %v339
        %v533 = vunpack.c.l.b16 %v340
        %v534 = vunpack.c.h.b16 %v340
        %v535 = vunpack.c.l.b16 %v341
        %v536 = vunpack.c.h.b16 %v341
        %v537 = vunpack.c.l.b16 %v342
        %v538 = vunpack.c.h.b16 %v342
        %v539 = vunpack.c.l.b16 %v343
        %v540 = vunpack.c.h.b16 %v343
        %v541 = vunpack.c.l.b16 %v344
        %v542 = vunpack.c.h.b16 %v344
        %v543 = vunpack.c.l.b16 %v345
        %v544 = vunpack.c.h.b16 %v345
        %v545 = vunpack.c.l.b16 %v346
        %v546 = vunpack.c.h.b16 %v346
        %v547 = vunpack.c.l.b16 %v347
        %v548 = vunpack.c.h.b16 %v347
        %v549 = vunpack.c.l.b16 %v348
        %v550 = vunpack.c.h.b16 %v348
        %v551 = vunpack.c.l.b16 %v349
        %v552 = vunpack.c.h.b16 %v349
        %v553 = vunpack.c.l.b16 %v350
        %v554 = vunpack.c.h.b16 %v350
        %v555 = vunpack.c.l.b16 %v351
        %v556 = vunpack.c.h.b16 %v351
        %v557 = vunpack.c.l.b16 %v352
        %v558 = vunpack.c.h.b16 %v352
        %v559 = vunpack.c.l.b16 %v353
        %v560 = vunpack.c.h.b16 %v353
        %v561 = vunpack.c.l.b16 %v354
        %v562 = vunpack.c.h.b16 %v354
        %v563 = vunpack.c.l.b16 %v355
        %v564 = vunpack.c.h.b16 %v355
        %v565 = vunpack.c.l.b16 %v356
        %v566 = vunpack.c.h.b16 %v356
        %v567 = vunpack.c.l.b16 %v357
        %v568 = vunpack.c.h.b16 %v357
        %v569 = vunpack.c.l.b16 %v358
        %v570 = vunpack.c.h.b16 %v358
        %v571 = vunpack.c.l.b16 %v359
        %v572 = vunpack.c.h.b16 %v359
        %v573 = vunpack.c.l.b16 %v360
        %v574 = vunpack.c.h.b16 %v360
        %v575 = vunpack.c.l.b16 %v361
        %v576 = vunpack.c.h.b16 %v361
        %v577 = vunpack.c.l.b16 %v362
        %v578 = vunpack.c.h.b16 %v362
        %v579 = vunpack.c.l.b16 %v363
        %v580 = vunpack.c.h.b16 %v363
        %v581 = vunpack.c.l.b16 %v364
        %v582 = vunpack.c.h.b16 %v364
        %v583 = vunpack.c.l.b16 %v365
        %v584 = vunpack.c.h.b16 %v365
        %v585 = vunpack.c.l.b16 %v366
        %v586 = vunpack.c.h.b16 %v366
        %v587 = vunpack.c.l.b16 %v367
        %v588 = vunpack.c.h.b16 %v367
        %v589 = vunpack.c.l.b16 %v368
        %v590 = vunpack.c.h.b16 %v368
        %v591 = vunpack.c.l.b16 %v369
        %v592 = vunpack.c.h.b16 %v369
        %v593 = vunpack.c.l.b16 %v370
        %v594 = vunpack.c.h.b16 %v370
        %v595 = vunpack.c.l.b16 %v371
        %v596 = vunpack.c.h.b16 %v371
        %v597 = vunpack.c.l.b16 %v372
        %v598 = vunpack.c.h.b16 %v372
        %v599 = vunpack.c.l.b16 %v373
        %v600 = vunpack.c.h.b16 %v373
        %v601 = vunpack.c.l.b16 %v374
        %v602 = vunpack.c.h.b16 %v374
        %v603 = vunpack.c.l.b16 %v375
        %v604 = vunpack.c.h.b16 %v375
        %v605 = vunpack.c.l.b16 %v376
        %v606 = vunpack.c.h.b16 %v376
        %v607 = vunpack.c.l.b16 %v377
        %v608 = vunpack.c.h.b16 %v377
        %v609 = vunpack.c.l.b16 %v378
        %v610 = vunpack.c.h.b16 %v378
        %v611 = vunpack.c.l.b16 %v379
        %v612 = vunpack.c.h.b16 %v379
        %v613 = vunpack.c.l.b16 %v380
        %v614 = vunpack.c.h.b16 %v380
        %v615 = vunpack.c.l.b16 %v381
        %v616 = vunpack.c.h.b16 %v381
        %v617 = vunpack.c.l.b16 %v382
        %v618 = vunpack.c.h.b16 %v382
        %v619 = vunpack.c.l.b16 %v383
        %v620 = vunpack.c.h.b16 %v383
        %v621 = vunpack.c.l.b16 %v384
        %v622 = vunpack.c.h.b16 %v384
        %v623 = vunpack.c.l.b16 %v385
        %v624 = vunpack.c.h.b16 %v385
        %v625 = vunpack.c.l.b16 %v386
        %v626 = vunpack.c.h.b16 %v386
        %v627 = vpack.c.b16 %v471, %v467
        %v628 = vpack.c.b16 %v472, %v468
        %v629 = vpack.c.b16 %v473, %v469
        %v630 = vpack.c.b16 %v474, %v470
        %v631 = vpack.c.b16 %v479, %v475
        %v632 = vpack.c.b16 %v480, %v476
        %v633 = vpack.c.b16 %v481, %v477
        %v634 = vpack.c.b16 %v482, %v478
        %v635 = vpack.c.b16 %v487, %v483
        %v636 = vpack.c.b16 %v488, %v484
        %v637 = vpack.c.b16 %v489, %v485
        %v638 = vpack.c.b16 %v490, %v486
        %v639 = vpack.c.b16 %v495, %v491
        %v640 = vpack.c.b16 %v496, %v492
        %v641 = vpack.c.b16 %v497, %v493
        %v642 = vpack.c.b16 %v498, %v494
        %v643 = vpack.c.b16 %v503, %v499
        %v644 = vpack.c.b16 %v504, %v500
        %v645 = vpack.c.b16 %v505, %v501
        %v646 = vpack.c.b16 %v506, %v502
        %v647 = vpack.c.b16 %v511, %v507
        %v648 = vpack.c.b16 %v512, %v508
        %v649 = vpack.c.b16 %v513, %v509
        %v650 = vpack.c.b16 %v514, %v510
        %v651 = vpack.c.b16 %v519, %v515
        %v652 = vpack.c.b16 %v520, %v516
        %v653 = vpack.c.b16 %v521, %v517
        %v654 = vpack.c.b16 %v522, %v518
        %v655 = vpack.c.b16 %v527, %v523
        %v656 = vpack.c.b16 %v528, %v524
        %v657 = vpack.c.b16 %v529, %v525
        %v658 = vpack.c.b16 %v530, %v526
        %v659 = vpack.c.b16 %v535, %v531
        %v660 = vpack.c.b16 %v536, %v532
        %v661 = vpack.c.b16 %v537, %v533
        %v662 = vpack.c.b16 %v538, %v534
        %v663 = vpack.c.b16 %v543, %v539
        %v664 = vpack.c.b16 %v544, %v540
        %v665 = vpack.c.b16 %v545, %v541
        %v666 = vpack.c.b16 %v546, %v542
        %v667 = vpack.c.b16 %v551, %v547
        %v668 = vpack.c.b16 %v552, %v548
        %v669 = vpack.c.b16 %v553, %v549
        %v670 = vpack.c.b16 %v554, %v550
        %v671 = vpack.c.b16 %v559, %v555
        %v672 = vpack.c.b16 %v560, %v556
        %v673 = vpack.c.b16 %v561, %v557
        %v674 = vpack.c.b16 %v562, %v558
        %v675 = vpack.c.b16 %v567, %v563
        %v676 = vpack.c.b16 %v568, %v564
        %v677 = vpack.c.b16 %v569, %v565
        %v678 = vpack.c.b16 %v570, %v566
        %v679 = vpack.c.b16 %v575, %v571
        %v680 = vpack.c.b16 %v576, %v572
        %v681 = vpack.c.b16 %v577, %v573
        %v682 = vpack.c.b16 %v578, %v574
        %v683 = vpack.c.b16 %v583, %v579
        %v684 = vpack.c.b16 %v584, %v580
        %v685 = vpack.c.b16 %v585, %v581
        %v686 = vpack.c.b16 %v586, %v582
        %v687 = vpack.c.b16 %v591, %v587
        %v688 = vpack.c.b16 %v592, %v588
        %v689 = vpack.c.b16 %v593, %v589
        %v690 = vpack.c.b16 %v594, %v590
        %v691 = vpack.c.b16 %v599, %v595
        %v692 = vpack.c.b16 %v600, %v596
        %v693 = vpack.c.b16 %v601, %v597
        %v694 = vpack.c.b16 %v602, %v598
        %v695 = vpack.c.b16 %v607, %v603
        %v696 = vpack.c.b16 %v608, %v604
        %v697 = vpack.c.b16 %v609, %v605
        %v698 = vpack.c.b16 %v610, %v606
        %v699 = vpack.c.b16 %v615, %v611
        %v700 = vpack.c.b16 %v616, %v612
        %v701 = vpack.c.b16 %v617, %v613
        %v702 = vpack.c.b16 %v618, %v614
        %v703 = vpack.c.b16 %v623, %v619
        %v704 = vpack.c.b16 %v624, %v620
        %v705 = vpack.c.b16 %v625, %v621
        %v706 = vpack.c.b16 %v626, %v622
        %v851 = vunpack.c.l.b16 %v243
        %v852 = vunpack.c.h.b16 %v243
        %v853 = vunpack.c.l.b16 %v244
        %v854 = vunpack.c.h.b16 %v244
        %v855 = vunpack.c.l.b16 %v245
        %v856 = vunpack.c.h.b16 %v245
        %v857 = vunpack.c.l.b16 %v246
        %v858 = vunpack.c.h.b16 %v246
        %v859 = vunpack.c.l.b16 %v247
        %v860 = vunpack.c.h.b16 %v247
        %v861 = vunpack.c.l.b16 %v248
        %v862 = vunpack.c.h.b16 %v248
        %v863 = vunpack.c.l.b16 %v249
        %v864 = vunpack.c.h.b16 %v249
        %v865 = vunpack.c.l.b16 %v250
        %v866 = vunpack.c.h.b16 %v250
        %v867 = vunpack.c.l.b16 %v251
        %v868 = vunpack.c.h.b16 %v251
        %v869 = vunpack.c.l.b16 %v252
        %v870 = vunpack.c.h.b16 %v252
        %v871 = vunpack.c.l.b16 %v253
        %v872 = vunpack.c.h.b16 %v253
        %v873 = vunpack.c.l.b16 %v254
        %v874 = vunpack.c.h.b16 %v254
        %v875 = vunpack.c.l.b16 %v255
        %v876 = vunpack.c.h.b16 %v255
        %v877 = vunpack.c.l.b16 %v256
        %v878 = vunpack.c.h.b16 %v256
        %v879 = vunpack.c.l.b16 %v257
        %v880 = vunpack.c.h.b16 %v257
        %v881 = vunpack.c.l.b16 %v258
        %v882 = vunpack.c.h.b16 %v258
        %v883 = vunpack.c.l.b16 %v259
        %v884 = vunpack.c.h.b16 %v259
        %v885 = vunpack.c.l.b16 %v260
        %v886 = vunpack.c.h.b16 %v260
        %v887 = vunpack.c.l.b16 %v261
        %v888 = vunpack.c.h.b16 %v261
        %v889 = vunpack.c.l.b16 %v262
        %v890 = vunpack.c.h.b16 %v262
        %v891 = vunpack.c.l.b16 %v263
        %v892 = vunpack.c.h.b16 %v263
        %v893 = vunpack.c.l.b16 %v264
        %v894 = vunpack.c.h.b16 %v264
        %v895 = vunpack.c.l.b16 %v265
        %v896 = vunpack.c.h.b16 %v265
        %v897 = vunpack.c.l.b16 %v266
        %v898 = vunpack.c.h.b16 %v266
        %v899 = vunpack.c.l.b16 %v267
        %v900 = vunpack.c.h.b16 %v267
        %v901 = vunpack.c.l.b16 %v268
        %v902 = vunpack.c.h.b16 %v268
        %v903 = vunpack.c.l.b16 %v269
        %v904 = vunpack.c.h.b16 %v269
        %v905 = vunpack.c.l.b16 %v270
        %v906 = vunpack.c.h.b16 %v270
        %v907 = vunpack.c.l.b16 %v271
        %v908 = vunpack.c.h.b16 %v271
        %v909 = vunpack.c.l.b16 %v272
        %v910 = vunpack.c.h.b16 %v272
        %v911 = vunpack.c.l.b16 %v273
        %v912 = vunpack.c.h.b16 %v273
        %v913 = vunpack.c.l.b16 %v274
        %v914 = vunpack.c.h.b16 %v274
        %v915 = vunpack.c.l.b16 %v275
        %v916 = vunpack.c.h.b16 %v275
        %v917 = vunpack.c.l.b16 %v276
        %v918 = vunpack.c.h.b16 %v276
        %v919 = vunpack.c.l.b16 %v277
        %v920 = vunpack.c.h.b16 %v277
        %v921 = vunpack.c.l.b16 %v278
        %v922 = vunpack.c.h.b16 %v278
        %v923 = vunpack.c.l.b16 %v279
        %v924 = vunpack.c.h.b16 %v279
        %v925 = vunpack.c.l.b16 %v280
        %v926 = vunpack.c.h.b16 %v280
        %v927 = vunpack.c.l.b16 %v281
        %v928 = vunpack.c.h.b16 %v281
        %v929 = vunpack.c.l.b16 %v282
        %v930 = vunpack.c.h.b16 %v282
        %v931 = vunpack.c.l.b16 %v283
        %v932 = vunpack.c.h.b16 %v283
        %v933 = vunpack.c.l.b16 %v284
        %v934 = vunpack.c.h.b16 %v284
        %v935 = vunpack.c.l.b16 %v285
        %v936 = vunpack.c.h.b16 %v285
        %v937 = vunpack.c.l.b16 %v286
        %v938 = vunpack.c.h.b16 %v286
        %v939 = vunpack.c.l.b16 %v287
        %v940 = vunpack.c.h.b16 %v287
        %v941 = vunpack.c.l.b16 %v288
        %v942 = vunpack.c.h.b16 %v288
        %v943 = vunpack.c.l.b16 %v289
        %v944 = vunpack.c.h.b16 %v289
        %v945 = vunpack.c.l.b16 %v290
        %v946 = vunpack.c.h.b16 %v290
        %v947 = vunpack.c.l.b16 %v291
        %v948 = vunpack.c.h.b16 %v291
        %v949 = vunpack.c.l.b16 %v292
        %v950 = vunpack.c.h.b16 %v292
        %v951 = vunpack.c.l.b16 %v293
        %v952 = vunpack.c.h.b16 %v293
        %v953 = vunpack.c.l.b16 %v294
        %v954 = vunpack.c.h.b16 %v294
        %v955 = vunpack.c.l.b16 %v295
        %v956 = vunpack.c.h.b16 %v295
        %v957 = vunpack.c.l.b16 %v296
        %v958 = vunpack.c.h.b16 %v296
        %v959 = vunpack.c.l.b16 %v297
        %v960 = vunpack.c.h.b16 %v297
        %v961 = vunpack.c.l.b16 %v298
        %v962 = vunpack.c.h.b16 %v298
        %v963 = vunpack.c.l.b16 %v299
        %v964 = vunpack.c.h.b16 %v299
        %v965 = vunpack.c.l.b16 %v300
        %v966 = vunpack.c.h.b16 %v300
        %v967 = vunpack.c.l.b16 %v301
        %v968 = vunpack.c.h.b16 %v301
        %v969 = vunpack.c.l.b16 %v302
        %v970 = vunpack.c.h.b16 %v302
        %v971 = vunpack.c.l.b16 %v303
        %v972 = vunpack.c.h.b16 %v303
        %v973 = vunpack.c.l.b16 %v304
        %v974 = vunpack.c.h.b16 %v304
        %v975 = vunpack.c.l.b16 %v305
        %v976 = vunpack.c.h.b16 %v305
        %v977 = vunpack.c.l.b16 %v306
        %v978 = vunpack.c.h.b16 %v306
        %v979 = vpack.c.b16 %v853, %v851
        %v980 = vpack.c.b16 %v854, %v852
        %v981 = vpack.c.b16 %v857, %v855
        %v982 = vpack.c.b16 %v858, %v856
        %v983 = vpack.c.b16 %v861, %v859
        %v984 = vpack.c.b16 %v862, %v860
        %v985 = vpack.c.b16 %v865, %v863
        %v986 = vpack.c.b16 %v866, %v864
        %v987 = vpack.c.b16 %v869, %v867
        %v988 = vpack.c.b16 %v870, %v868
        %v989 = vpack.c.b16 %v873, %v871
        %v990 = vpack.c.b16 %v874, %v872
        %v991 = vpack.c.b16 %v877, %v875
        %v992 = vpack.c.b16 %v878, %v876
        %v993 = vpack.c.b16 %v881, %v879
        %v994 = vpack.c.b16 %v882, %v880
        %v995 = vpack.c.b16 %v885, %v883
        %v996 = vpack.c.b16 %v886, %v884
        %v997 = vpack.c.b16 %v889, %v887
        %v998 = vpack.c.b16 %v890, %v888
        %v999 = vpack.c.b16 %v893, %v891
        %v1000 = vpack.c.b16 %v894, %v892
        %v1001 = vpack.c.b16 %v897, %v895
        %v1002 = vpack.c.b16 %v898, %v896
        %v1003 = vpack.c.b16 %v901, %v899
        %v1004 = vpack.c.b16 %v902, %v900
        %v1005 = vpack.c.b16 %v905, %v903
        %v1006 = vpack.c.b16 %v906, %v904
        %v1007 = vpack.c.b16 %v909, %v907
        %v1008 = vpack.c.b16 %v910, %v908
        %v1009 = vpack.c.b16 %v913, %v911
        %v1010 = vpack.c.b16 %v914, %v912
        %v1011 = vpack.c.b16 %v917, %v915
        %v1012 = vpack.c.b16 %v918, %v916
        %v1013 = vpack.c.b16 %v921, %v919
        %v1014 = vpack.c.b16 %v922, %v920
        %v1015 = vpack.c.b16 %v925, %v923
        %v1016 = vpack.c.b16 %v926, %v924
        %v1017 = vpack.c.b16 %v929, %v927
        %v1018 = vpack.c.b16 %v930, %v928
        %v1019 = vpack.c.b16 %v933, %v931
        %v1020 = vpack.c.b16 %v934, %v932
        %v1021 = vpack.c.b16 %v937, %v935
        %v1022 = vpack.c.b16 %v938, %v936
        %v1023 = vpack.c.b16 %v941, %v939
        %v1024 = vpack.c.b16 %v942, %v940
        %v1025 = vpack.c.b16 %v945, %v943
        %v1026 = vpack.c.b16 %v946, %v944
        %v1027 = vpack.c.b16 %v949, %v947
        %v1028 = vpack.c.b16 %v950, %v948
        %v1029 = vpack.c.b16 %v953, %v951
        %v1030 = vpack.c.b16 %v954, %v952
        %v1031 = vpack.c.b16 %v957, %v955
        %v1032 = vpack.c.b16 %v958, %v956
        %v1033 = vpack.c.b16 %v961, %v959
        %v1034 = vpack.c.b16 %v962, %v960
        %v1035 = vpack.c.b16 %v965, %v963
        %v1036 = vpack.c.b16 %v966, %v964
        %v1037 = vpack.c.b16 %v969, %v967
        %v1038 = vpack.c.b16 %v970, %v968
        %v1039 = vpack.c.b16 %v973, %v971
        %v1040 = vpack.c.b16 %v974, %v972
        %v1041 = vpack.c.b16 %v977, %v975
        %v1042 = vpack.c.b16 %v978, %v976
        %1107 = vmatprep.subr.bf16.mxu0 %v994
        %1108 = vmatpush1.bf16.msra.mxu0 %v993
        %1109 = vmatprep.subr.bf16.mxu0 %v992
        %1110 = vmatpush1.bf16.msra.mxu0 %v991
        %1111 = vmatprep.subr.bf16.mxu0 %v990
        %1112 = vmatpush1.bf16.msra.mxu0 %v989
        %1113 = vmatprep.subr.bf16.mxu0 %v988
        %1114 = vmatpush1.bf16.msra.mxu0 %v987
        %1115 = vmatprep.subr.bf16.mxu0 %v986
        %1116 = vmatpush1.bf16.msra.mxu0 %v985
        %1117 = vmatprep.subr.bf16.mxu0 %v984
        %1118 = vmatpush1.bf16.msra.mxu0 %v983
        %1119 = vmatprep.subr.bf16.mxu0 %v982
        %1120 = vmatpush1.bf16.msra.mxu0 %v981
        %1121 = vmatprep.subr.bf16.mxu0 %v980
        %1122 = vmatpush1.bf16.msra.mxu0 %v979
        %1123 = vmatprep.subr.bf16.mxu0 %v1010
        %1124 = vmatpush2.bf16.msra.mxu0 %v1009
        %1125 = vmatprep.subr.bf16.mxu0 %v1008
        %1126 = vmatpush2.bf16.msra.mxu0 %v1007
        %1127 = vmatprep.subr.bf16.mxu0 %v1006
        %1128 = vmatpush2.bf16.msra.mxu0 %v1005
        %1129 = vmatprep.subr.bf16.mxu0 %v1004
        %1130 = vmatpush2.bf16.msra.mxu0 %v1003
        %1131 = vmatprep.subr.bf16.mxu0 %v1002
        %1132 = vmatpush2.bf16.msra.mxu0 %v1001
        %1133 = vmatprep.subr.bf16.mxu0 %v1000
        %1134 = vmatpush2.bf16.msra.mxu0 %v999
        %1135 = vmatprep.subr.bf16.mxu0 %v998
        %1136 = vmatpush2.bf16.msra.mxu0 %v997
        %1137 = vmatprep.subr.bf16.mxu0 %v996
        %1138 = vmatpush2.bf16.msra.mxu0 %v995
        %1139 = vmatprep.mubr.bf16.mxu0 %v628
        %1140 = vmatmul.mubr.bf16.gmra.mxu0 %v627
        %v1141 = vpop.f32.mrf.mxu0
        %v1142 = vadd.f32 0.0, %v1141
        %v1143 = vpop.f32.mrf.mxu0
        %v1144 = vadd.f32 0.0, %v1143
        %v1145 = vpop.f32.mrf.mxu0
        %v1146 = vadd.f32 0.0, %v1145
        %v1147 = vpop.f32.mrf.mxu0
        %v1148 = vadd.f32 0.0, %v1147
        %1149 = vmatprep.mubr.bf16.mxu0 %v632
        %1150 = vmatmul.mubr.bf16.gmra.mxu0 %v631
        %v1151 = vpop.f32.mrf.mxu0
        %v1152 = vadd.f32 0.0, %v1151
        %v1153 = vpop.f32.mrf.mxu0
        %v1154 = vadd.f32 0.0, %v1153
        %v1155 = vpop.f32.mrf.mxu0
        %v1156 = vadd.f32 0.0, %v1155
        %v1157 = vpop.f32.mrf.mxu0
        %v1158 = vadd.f32 0.0, %v1157
        %1159 = vmatprep.mubr.bf16.mxu0 %v636
        %1160 = vmatmul.mubr.bf16.gmra.mxu0 %v635
        %v1161 = vpop.f32.mrf.mxu0
        %v1162 = vadd.f32 0.0, %v1161
        %v1163 = vpop.f32.mrf.mxu0
        %v1164 = vadd.f32 0.0, %v1163
        %v1165 = vpop.f32.mrf.mxu0
        %v1166 = vadd.f32 0.0, %v1165
        %v1167 = vpop.f32.mrf.mxu0
        %v1168 = vadd.f32 0.0, %v1167
        %1169 = vmatprep.mubr.bf16.mxu0 %v640
        %1170 = vmatmul.mubr.bf16.gmra.mxu0 %v639
        %v1171 = vpop.f32.mrf.mxu0
        %v1172 = vadd.f32 0.0, %v1171
        %v1173 = vpop.f32.mrf.mxu0
        %v1174 = vadd.f32 0.0, %v1173
        %v1175 = vpop.f32.mrf.mxu0
        %v1176 = vadd.f32 0.0, %v1175
        %v1177 = vpop.f32.mrf.mxu0
        %v1178 = vadd.f32 0.0, %v1177
        %1179 = vmatprep.mubr.bf16.mxu0 %v644
        %1180 = vmatmul.mubr.bf16.gmra.mxu0 %v643
        %v1181 = vpop.f32.mrf.mxu0
        %v1182 = vadd.f32 0.0, %v1181
        %v1183 = vpop.f32.mrf.mxu0
        %v1184 = vadd.f32 0.0, %v1183
        %v1185 = vpop.f32.mrf.mxu0
        %v1186 = vadd.f32 0.0, %v1185
        %v1187 = vpop.f32.mrf.mxu0
        %v1188 = vadd.f32 0.0, %v1187
        %1189 = vmatprep.mubr.bf16.mxu0 %v648
        %1190 = vmatmul.mubr.bf16.gmra.mxu0 %v647
        %v1191 = vpop.f32.mrf.mxu0
        %v1192 = vadd.f32 0.0, %v1191
        %v1193 = vpop.f32.mrf.mxu0
        %v1194 = vadd.f32 0.0, %v1193
        %v1195 = vpop.f32.mrf.mxu0
        %v1196 = vadd.f32 0.0, %v1195
        %v1197 = vpop.f32.mrf.mxu0
        %v1198 = vadd.f32 0.0, %v1197
        %1199 = vmatprep.mubr.bf16.mxu0 %v652
        %1200 = vmatmul.mubr.bf16.gmra.mxu0 %v651
        %v1201 = vpop.f32.mrf.mxu0
        %v1202 = vadd.f32 0.0, %v1201
        %v1203 = vpop.f32.mrf.mxu0
        %v1204 = vadd.f32 0.0, %v1203
        %v1205 = vpop.f32.mrf.mxu0
        %v1206 = vadd.f32 0.0, %v1205
        %v1207 = vpop.f32.mrf.mxu0
        %v1208 = vadd.f32 0.0, %v1207
        %1209 = vmatprep.mubr.bf16.mxu0 %v656
        %1210 = vmatmul.mubr.bf16.gmra.mxu0 %v655
        %v1211 = vpop.f32.mrf.mxu0
        %v1212 = vadd.f32 0.0, %v1211
        %v1213 = vpop.f32.mrf.mxu0
        %v1214 = vadd.f32 0.0, %v1213
        %v1215 = vpop.f32.mrf.mxu0
        %v1216 = vadd.f32 0.0, %v1215
        %v1217 = vpop.f32.mrf.mxu0
        %v1218 = vadd.f32 0.0, %v1217
        %1219 = vmatprep.mubr.bf16.mxu0 %v660
        %1220 = vmatmul.mubr.bf16.gmra.mxu0 %v659
        %v1221 = vpop.f32.mrf.mxu0
        %v1222 = vadd.f32 0.0, %v1221
        %v1223 = vpop.f32.mrf.mxu0
        %v1224 = vadd.f32 0.0, %v1223
        %v1225 = vpop.f32.mrf.mxu0
        %v1226 = vadd.f32 0.0, %v1225
        %v1227 = vpop.f32.mrf.mxu0
        %v1228 = vadd.f32 0.0, %v1227
        %1229 = vmatprep.mubr.bf16.mxu0 %v664
        %1230 = vmatmul.mubr.bf16.gmra.mxu0 %v663
        %v1231 = vpop.f32.mrf.mxu0
        %v1232 = vadd.f32 0.0, %v1231
        %v1233 = vpop.f32.mrf.mxu0
        %v1234 = vadd.f32 0.0, %v1233
        %v1235 = vpop.f32.mrf.mxu0
        %v1236 = vadd.f32 0.0, %v1235
        %v1237 = vpop.f32.mrf.mxu0
        %v1238 = vadd.f32 0.0, %v1237
        %1239 = vmatprep.mubr.bf16.mxu0 %v668
        %1240 = vmatmul.mubr.bf16.gmra.mxu0 %v667
        %v1241 = vpop.f32.mrf.mxu0
        %v1242 = vadd.f32 0.0, %v1241
        %v1243 = vpop.f32.mrf.mxu0
        %v1244 = vadd.f32 0.0, %v1243
        %v1245 = vpop.f32.mrf.mxu0
        %v1246 = vadd.f32 0.0, %v1245
        %v1247 = vpop.f32.mrf.mxu0
        %v1248 = vadd.f32 0.0, %v1247
        %1249 = vmatprep.mubr.bf16.mxu0 %v672
        %1250 = vmatmul.mubr.bf16.gmra.mxu0 %v671
        %v1251 = vpop.f32.mrf.mxu0
        %v1252 = vadd.f32 0.0, %v1251
        %v1253 = vpop.f32.mrf.mxu0
        %v1254 = vadd.f32 0.0, %v1253
        %v1255 = vpop.f32.mrf.mxu0
        %v1256 = vadd.f32 0.0, %v1255
        %v1257 = vpop.f32.mrf.mxu0
        %v1258 = vadd.f32 0.0, %v1257
        %1259 = vmatprep.mubr.bf16.mxu0 %v676
        %1260 = vmatmul.mubr.bf16.gmra.mxu0 %v675
        %v1261 = vpop.f32.mrf.mxu0
        %v1262 = vadd.f32 0.0, %v1261
        %v1263 = vpop.f32.mrf.mxu0
        %v1264 = vadd.f32 0.0, %v1263
        %v1265 = vpop.f32.mrf.mxu0
        %v1266 = vadd.f32 0.0, %v1265
        %v1267 = vpop.f32.mrf.mxu0
        %v1268 = vadd.f32 0.0, %v1267
        %1269 = vmatprep.mubr.bf16.mxu0 %v680
        %1270 = vmatmul.mubr.bf16.gmra.mxu0 %v679
        %v1271 = vpop.f32.mrf.mxu0
        %v1272 = vadd.f32 0.0, %v1271
        %v1273 = vpop.f32.mrf.mxu0
        %v1274 = vadd.f32 0.0, %v1273
        %v1275 = vpop.f32.mrf.mxu0
        %v1276 = vadd.f32 0.0, %v1275
        %v1277 = vpop.f32.mrf.mxu0
        %v1278 = vadd.f32 0.0, %v1277
        %1279 = vmatprep.mubr.bf16.mxu0 %v684
        %1280 = vmatmul.mubr.bf16.gmra.mxu0 %v683
        %v1281 = vpop.f32.mrf.mxu0
        %v1282 = vadd.f32 0.0, %v1281
        %v1283 = vpop.f32.mrf.mxu0
        %v1284 = vadd.f32 0.0, %v1283
        %v1285 = vpop.f32.mrf.mxu0
        %v1286 = vadd.f32 0.0, %v1285
        %v1287 = vpop.f32.mrf.mxu0
        %v1288 = vadd.f32 0.0, %v1287
        %1289 = vmatprep.mubr.bf16.mxu0 %v688
        %1290 = vmatmul.mubr.bf16.gmra.mxu0 %v687
        %v1291 = vpop.f32.mrf.mxu0
        %v1292 = vadd.f32 0.0, %v1291
        %v1293 = vpop.f32.mrf.mxu0
        %v1294 = vadd.f32 0.0, %v1293
        %v1295 = vpop.f32.mrf.mxu0
        %v1296 = vadd.f32 0.0, %v1295
        %v1297 = vpop.f32.mrf.mxu0
        %v1298 = vadd.f32 0.0, %v1297
        %1299 = vmatprep.mubr.bf16.mxu0 %v692
        %1300 = vmatmul.mubr.bf16.gmra.mxu0 %v691
        %v1301 = vpop.f32.mrf.mxu0
        %v1302 = vadd.f32 0.0, %v1301
        %v1303 = vpop.f32.mrf.mxu0
        %v1304 = vadd.f32 0.0, %v1303
        %v1305 = vpop.f32.mrf.mxu0
        %v1306 = vadd.f32 0.0, %v1305
        %v1307 = vpop.f32.mrf.mxu0
        %v1308 = vadd.f32 0.0, %v1307
        %1309 = vmatprep.mubr.bf16.mxu0 %v696
        %1310 = vmatmul.mubr.bf16.gmra.mxu0 %v695
        %v1311 = vpop.f32.mrf.mxu0
        %v1312 = vadd.f32 0.0, %v1311
        %v1313 = vpop.f32.mrf.mxu0
        %v1314 = vadd.f32 0.0, %v1313
        %v1315 = vpop.f32.mrf.mxu0
        %v1316 = vadd.f32 0.0, %v1315
        %v1317 = vpop.f32.mrf.mxu0
        %v1318 = vadd.f32 0.0, %v1317
        %1319 = vmatprep.mubr.bf16.mxu0 %v700
        %1320 = vmatmul.mubr.bf16.gmra.mxu0 %v699
        %v1321 = vpop.f32.mrf.mxu0
        %v1322 = vadd.f32 0.0, %v1321
        %v1323 = vpop.f32.mrf.mxu0
        %v1324 = vadd.f32 0.0, %v1323
        %v1325 = vpop.f32.mrf.mxu0
        %v1326 = vadd.f32 0.0, %v1325
        %v1327 = vpop.f32.mrf.mxu0
        %v1328 = vadd.f32 0.0, %v1327
        %1329 = vmatprep.mubr.bf16.mxu0 %v704
        %1330 = vmatmul.mubr.bf16.gmra.mxu0 %v703
        %v1331 = vpop.f32.mrf.mxu0
        %v1332 = vadd.f32 0.0, %v1331
        %v1333 = vpop.f32.mrf.mxu0
        %v1334 = vadd.f32 0.0, %v1333
        %v1335 = vpop.f32.mrf.mxu0
        %v1336 = vadd.f32 0.0, %v1335
        %v1337 = vpop.f32.mrf.mxu0
        %v1338 = vadd.f32 0.0, %v1337
        %1339 = vdwg.mxu0
        %1340 = vmatprep.subr.bf16.mxu0 %v1026
        %1341 = vmatpush1.bf16.msra.mxu0 %v1025
        %1342 = vmatprep.subr.bf16.mxu0 %v1024
        %1343 = vmatpush1.bf16.msra.mxu0 %v1023
        %1344 = vmatprep.subr.bf16.mxu0 %v1022
        %1345 = vmatpush1.bf16.msra.mxu0 %v1021
        %1346 = vmatprep.subr.bf16.mxu0 %v1020
        %1347 = vmatpush1.bf16.msra.mxu0 %v1019
        %1348 = vmatprep.subr.bf16.mxu0 %v1018
        %1349 = vmatpush1.bf16.msra.mxu0 %v1017
        %1350 = vmatprep.subr.bf16.mxu0 %v1016
        %1351 = vmatpush1.bf16.msra.mxu0 %v1015
        %1352 = vmatprep.subr.bf16.mxu0 %v1014
        %1353 = vmatpush1.bf16.msra.mxu0 %v1013
        %1354 = vmatprep.subr.bf16.mxu0 %v1012
        %1355 = vmatpush1.bf16.msra.mxu0 %v1011
        %1356 = vmatprep.subr.bf16.mxu0 %v1042
        %1357 = vmatpush2.bf16.msra.mxu0 %v1041
        %1358 = vmatprep.subr.bf16.mxu0 %v1040
        %1359 = vmatpush2.bf16.msra.mxu0 %v1039
        %1360 = vmatprep.subr.bf16.mxu0 %v1038
        %1361 = vmatpush2.bf16.msra.mxu0 %v1037
        %1362 = vmatprep.subr.bf16.mxu0 %v1036
        %1363 = vmatpush2.bf16.msra.mxu0 %v1035
        %1364 = vmatprep.subr.bf16.mxu0 %v1034
        %1365 = vmatpush2.bf16.msra.mxu0 %v1033
        %1366 = vmatprep.subr.bf16.mxu0 %v1032
        %1367 = vmatpush2.bf16.msra.mxu0 %v1031
        %1368 = vmatprep.subr.bf16.mxu0 %v1030
        %1369 = vmatpush2.bf16.msra.mxu0 %v1029
        %1370 = vmatprep.subr.bf16.mxu0 %v1028
        %1371 = vmatpush2.bf16.msra.mxu0 %v1027
        %1372 = vmatprep.mubr.bf16.mxu0 %v630
        %1373 = vmatmul.mubr.bf16.gmra.mxu0 %v629
        %v1374 = vpop.f32.mrf.mxu0
        %v1375 = vadd.f32 %v1142, %v1374
        %v1376 = vpop.f32.mrf.mxu0
        %v1377 = vadd.f32 %v1144, %v1376
        %v1378 = vpop.f32.mrf.mxu0
        %v1379 = vadd.f32 %v1146, %v1378
        %v1380 = vpop.f32.mrf.mxu0
        %v1381 = vadd.f32 %v1148, %v1380
        %1382 = vmatprep.mubr.bf16.mxu0 %v634
        %1383 = vmatmul.mubr.bf16.gmra.mxu0 %v633
        %v1384 = vpop.f32.mrf.mxu0
        %v1385 = vadd.f32 %v1152, %v1384
        %v1386 = vpop.f32.mrf.mxu0
        %v1387 = vadd.f32 %v1154, %v1386
        %v1388 = vpop.f32.mrf.mxu0
        %v1389 = vadd.f32 %v1156, %v1388
        %v1390 = vpop.f32.mrf.mxu0
        %v1391 = vadd.f32 %v1158, %v1390
        %1392 = vmatprep.mubr.bf16.mxu0 %v638
        %1393 = vmatmul.mubr.bf16.gmra.mxu0 %v637
        %v1394 = vpop.f32.mrf.mxu0
        %v1395 = vadd.f32 %v1162, %v1394
        %v1396 = vpop.f32.mrf.mxu0
        %v1397 = vadd.f32 %v1164, %v1396
        %v1398 = vpop.f32.mrf.mxu0
        %v1399 = vadd.f32 %v1166, %v1398
        %v1400 = vpop.f32.mrf.mxu0
        %v1401 = vadd.f32 %v1168, %v1400
        %1402 = vmatprep.mubr.bf16.mxu0 %v642
        %1403 = vmatmul.mubr.bf16.gmra.mxu0 %v641
        %v1404 = vpop.f32.mrf.mxu0
        %v1405 = vadd.f32 %v1172, %v1404
        %v1406 = vpop.f32.mrf.mxu0
        %v1407 = vadd.f32 %v1174, %v1406
        %v1408 = vpop.f32.mrf.mxu0
        %v1409 = vadd.f32 %v1176, %v1408
        %v1410 = vpop.f32.mrf.mxu0
        %v1411 = vadd.f32 %v1178, %v1410
        %1412 = vmatprep.mubr.bf16.mxu0 %v646
        %1413 = vmatmul.mubr.bf16.gmra.mxu0 %v645
        %v1414 = vpop.f32.mrf.mxu0
        %v1415 = vadd.f32 %v1182, %v1414
        %v1416 = vpop.f32.mrf.mxu0
        %v1417 = vadd.f32 %v1184, %v1416
        %v1418 = vpop.f32.mrf.mxu0
        %v1419 = vadd.f32 %v1186, %v1418
        %v1420 = vpop.f32.mrf.mxu0
        %v1421 = vadd.f32 %v1188, %v1420
        %1422 = vmatprep.mubr.bf16.mxu0 %v650
        %1423 = vmatmul.mubr.bf16.gmra.mxu0 %v649
        %v1424 = vpop.f32.mrf.mxu0
        %v1425 = vadd.f32 %v1192, %v1424
        %v1426 = vpop.f32.mrf.mxu0
        %v1427 = vadd.f32 %v1194, %v1426
        %v1428 = vpop.f32.mrf.mxu0
        %v1429 = vadd.f32 %v1196, %v1428
        %v1430 = vpop.f32.mrf.mxu0
        %v1431 = vadd.f32 %v1198, %v1430
        %1432 = vmatprep.mubr.bf16.mxu0 %v654
        %1433 = vmatmul.mubr.bf16.gmra.mxu0 %v653
        %v1434 = vpop.f32.mrf.mxu0
        %v1435 = vadd.f32 %v1202, %v1434
        %v1436 = vpop.f32.mrf.mxu0
        %v1437 = vadd.f32 %v1204, %v1436
        %v1438 = vpop.f32.mrf.mxu0
        %v1439 = vadd.f32 %v1206, %v1438
        %v1440 = vpop.f32.mrf.mxu0
        %v1441 = vadd.f32 %v1208, %v1440
        %1442 = vmatprep.mubr.bf16.mxu0 %v658
        %1443 = vmatmul.mubr.bf16.gmra.mxu0 %v657
        %v1444 = vpop.f32.mrf.mxu0
        %v1445 = vadd.f32 %v1212, %v1444
        %v1446 = vpop.f32.mrf.mxu0
        %v1447 = vadd.f32 %v1214, %v1446
        %v1448 = vpop.f32.mrf.mxu0
        %v1449 = vadd.f32 %v1216, %v1448
        %v1450 = vpop.f32.mrf.mxu0
        %v1451 = vadd.f32 %v1218, %v1450
        %1452 = vmatprep.mubr.bf16.mxu0 %v662
        %1453 = vmatmul.mubr.bf16.gmra.mxu0 %v661
        %v1454 = vpop.f32.mrf.mxu0
        %v1455 = vadd.f32 %v1222, %v1454
        %v1456 = vpop.f32.mrf.mxu0
        %v1457 = vadd.f32 %v1224, %v1456
        %v1458 = vpop.f32.mrf.mxu0
        %v1459 = vadd.f32 %v1226, %v1458
        %v1460 = vpop.f32.mrf.mxu0
        %v1461 = vadd.f32 %v1228, %v1460
        %1462 = vmatprep.mubr.bf16.mxu0 %v666
        %1463 = vmatmul.mubr.bf16.gmra.mxu0 %v665
        %v1464 = vpop.f32.mrf.mxu0
        %v1465 = vadd.f32 %v1232, %v1464
        %v1466 = vpop.f32.mrf.mxu0
        %v1467 = vadd.f32 %v1234, %v1466
        %v1468 = vpop.f32.mrf.mxu0
        %v1469 = vadd.f32 %v1236, %v1468
        %v1470 = vpop.f32.mrf.mxu0
        %v1471 = vadd.f32 %v1238, %v1470
        %1472 = vmatprep.mubr.bf16.mxu0 %v670
        %1473 = vmatmul.mubr.bf16.gmra.mxu0 %v669
        %v1474 = vpop.f32.mrf.mxu0
        %v1475 = vadd.f32 %v1242, %v1474
        %v1476 = vpop.f32.mrf.mxu0
        %v1477 = vadd.f32 %v1244, %v1476
        %v1478 = vpop.f32.mrf.mxu0
        %v1479 = vadd.f32 %v1246, %v1478
        %v1480 = vpop.f32.mrf.mxu0
        %v1481 = vadd.f32 %v1248, %v1480
        %1482 = vmatprep.mubr.bf16.mxu0 %v674
        %1483 = vmatmul.mubr.bf16.gmra.mxu0 %v673
        %v1484 = vpop.f32.mrf.mxu0
        %v1485 = vadd.f32 %v1252, %v1484
        %v1486 = vpop.f32.mrf.mxu0
        %v1487 = vadd.f32 %v1254, %v1486
        %v1488 = vpop.f32.mrf.mxu0
        %v1489 = vadd.f32 %v1256, %v1488
        %v1490 = vpop.f32.mrf.mxu0
        %v1491 = vadd.f32 %v1258, %v1490
        %1492 = vmatprep.mubr.bf16.mxu0 %v678
        %1493 = vmatmul.mubr.bf16.gmra.mxu0 %v677
        %v1494 = vpop.f32.mrf.mxu0
        %v1495 = vadd.f32 %v1262, %v1494
        %v1496 = vpop.f32.mrf.mxu0
        %v1497 = vadd.f32 %v1264, %v1496
        %v1498 = vpop.f32.mrf.mxu0
        %v1499 = vadd.f32 %v1266, %v1498
        %v1500 = vpop.f32.mrf.mxu0
        %v1501 = vadd.f32 %v1268, %v1500
        %1502 = vmatprep.mubr.bf16.mxu0 %v682
        %1503 = vmatmul.mubr.bf16.gmra.mxu0 %v681
        %v1504 = vpop.f32.mrf.mxu0
        %v1505 = vadd.f32 %v1272, %v1504
        %v1506 = vpop.f32.mrf.mxu0
        %v1507 = vadd.f32 %v1274, %v1506
        %v1508 = vpop.f32.mrf.mxu0
        %v1509 = vadd.f32 %v1276, %v1508
        %v1510 = vpop.f32.mrf.mxu0
        %v1511 = vadd.f32 %v1278, %v1510
        %1512 = vmatprep.mubr.bf16.mxu0 %v686
        %1513 = vmatmul.mubr.bf16.gmra.mxu0 %v685
        %v1514 = vpop.f32.mrf.mxu0
        %v1515 = vadd.f32 %v1282, %v1514
        %v1516 = vpop.f32.mrf.mxu0
        %v1517 = vadd.f32 %v1284, %v1516
        %v1518 = vpop.f32.mrf.mxu0
        %v1519 = vadd.f32 %v1286, %v1518
        %v1520 = vpop.f32.mrf.mxu0
        %v1521 = vadd.f32 %v1288, %v1520
        %1522 = vmatprep.mubr.bf16.mxu0 %v690
        %1523 = vmatmul.mubr.bf16.gmra.mxu0 %v689
        %v1524 = vpop.f32.mrf.mxu0
        %v1525 = vadd.f32 %v1292, %v1524
        %v1526 = vpop.f32.mrf.mxu0
        %v1527 = vadd.f32 %v1294, %v1526
        %v1528 = vpop.f32.mrf.mxu0
        %v1529 = vadd.f32 %v1296, %v1528
        %v1530 = vpop.f32.mrf.mxu0
        %v1531 = vadd.f32 %v1298, %v1530
        %1532 = vmatprep.mubr.bf16.mxu0 %v694
        %1533 = vmatmul.mubr.bf16.gmra.mxu0 %v693
        %v1534 = vpop.f32.mrf.mxu0
        %v1535 = vadd.f32 %v1302, %v1534
        %v1536 = vpop.f32.mrf.mxu0
        %v1537 = vadd.f32 %v1304, %v1536
        %v1538 = vpop.f32.mrf.mxu0
        %v1539 = vadd.f32 %v1306, %v1538
        %v1540 = vpop.f32.mrf.mxu0
        %v1541 = vadd.f32 %v1308, %v1540
        %1542 = vmatprep.mubr.bf16.mxu0 %v698
        %1543 = vmatmul.mubr.bf16.gmra.mxu0 %v697
        %v1544 = vpop.f32.mrf.mxu0
        %v1545 = vadd.f32 %v1312, %v1544
        %v1546 = vpop.f32.mrf.mxu0
        %v1547 = vadd.f32 %v1314, %v1546
        %v1548 = vpop.f32.mrf.mxu0
        %v1549 = vadd.f32 %v1316, %v1548
        %v1550 = vpop.f32.mrf.mxu0
        %v1551 = vadd.f32 %v1318, %v1550
        %1552 = vmatprep.mubr.bf16.mxu0 %v702
        %1553 = vmatmul.mubr.bf16.gmra.mxu0 %v701
        %v1554 = vpop.f32.mrf.mxu0
        %v1555 = vadd.f32 %v1322, %v1554
        %v1556 = vpop.f32.mrf.mxu0
        %v1557 = vadd.f32 %v1324, %v1556
        %v1558 = vpop.f32.mrf.mxu0
        %v1559 = vadd.f32 %v1326, %v1558
        %v1560 = vpop.f32.mrf.mxu0
        %v1561 = vadd.f32 %v1328, %v1560
        %1562 = vmatprep.mubr.bf16.mxu0 %v706
        %1563 = vmatmul.mubr.bf16.gmra.mxu0 %v705
        %v1564 = vpop.f32.mrf.mxu0
        %v1565 = vadd.f32 %v1332, %v1564
        %v1566 = vpop.f32.mrf.mxu0
        %v1567 = vadd.f32 %v1334, %v1566
        %v1568 = vpop.f32.mrf.mxu0
        %v1569 = vadd.f32 %v1336, %v1568
        %v1570 = vpop.f32.mrf.mxu0
        %v1571 = vadd.f32 %v1338, %v1570
        %1572 = vdwg.mxu0
        %vm1613 = vcmask 1046528
        %v1614 = vrot.slane %v1377, 1
        %v1615 = vrot.slane %v1381, 1
        %v1616 = vsel %vm1613, %v1614, %v1615
        %v1617 = vrot.slane %v1387, 1
        %v1618 = vsel %vm1613, %v1615, %v1617
        %v1619 = vrot.slane %v1391, 1
        %v1620 = vsel %vm1613, %v1617, %v1619
        %v1621 = vrot.slane %v1397, 1
        %v1622 = vsel %vm1613, %v1619, %v1621
        %v1623 = vrot.slane %v1401, 1
        %v1624 = vsel %vm1613, %v1621, %v1623
        %v1625 = vrot.slane %v1407, 1
        %v1626 = vsel %vm1613, %v1623, %v1625
        %v1627 = vrot.slane %v1411, 1
        %v1628 = vsel %vm1613, %v1625, %v1627
        %v1629 = vrot.slane %v1417, 1
        %v1630 = vsel %vm1613, %v1627, %v1629
        %v1631 = vrot.slane %v1421, 1
        %v1632 = vsel %vm1613, %v1629, %v1631
        %v1633 = vrot.slane %v1427, 1
        %v1634 = vsel %vm1613, %v1631, %v1633
        %v1635 = vrot.slane %v1431, 1
        %v1636 = vsel %vm1613, %v1633, %v1635
        %v1637 = vrot.slane %v1437, 1
        %v1638 = vsel %vm1613, %v1635, %v1637
        %v1639 = vrot.slane %v1441, 1
        %v1640 = vsel %vm1613, %v1637, %v1639
        %v1641 = vrot.slane %v1447, 1
        %v1642 = vsel %vm1613, %v1639, %v1641
        %v1643 = vrot.slane %v1451, 1
        %v1644 = vsel %vm1613, %v1641, %v1643
        %v1645 = vrot.slane %v1457, 1
        %v1646 = vsel %vm1613, %v1643, %v1645
        %v1647 = vrot.slane %v1461, 1
        %v1648 = vsel %vm1613, %v1645, %v1647
        %v1649 = vrot.slane %v1467, 1
        %v1650 = vsel %vm1613, %v1647, %v1649
        %v1651 = vrot.slane %v1471, 1
        %v1652 = vsel %vm1613, %v1649, %v1651
        %v1653 = vrot.slane %v1477, 1
        %v1654 = vsel %vm1613, %v1651, %v1653
        %v1655 = vrot.slane %v1481, 1
        %v1656 = vsel %vm1613, %v1653, %v1655
        %v1657 = vrot.slane %v1487, 1
        %v1658 = vsel %vm1613, %v1655, %v1657
        %v1659 = vrot.slane %v1491, 1
        %v1660 = vsel %vm1613, %v1657, %v1659
        %v1661 = vrot.slane %v1497, 1
        %v1662 = vsel %vm1613, %v1659, %v1661
        %v1663 = vrot.slane %v1501, 1
        %v1664 = vsel %vm1613, %v1661, %v1663
        %v1665 = vrot.slane %v1507, 1
        %v1666 = vsel %vm1613, %v1663, %v1665
        %v1667 = vrot.slane %v1511, 1
        %v1668 = vsel %vm1613, %v1665, %v1667
        %v1669 = vrot.slane %v1517, 1
        %v1670 = vsel %vm1613, %v1667, %v1669
        %v1671 = vrot.slane %v1521, 1
        %v1672 = vsel %vm1613, %v1669, %v1671
        %v1673 = vrot.slane %v1527, 1
        %v1674 = vsel %vm1613, %v1671, %v1673
        %v1675 = vrot.slane %v1531, 1
        %v1676 = vsel %vm1613, %v1673, %v1675
        %v1677 = vrot.slane %v1537, 1
        %v1678 = vsel %vm1613, %v1675, %v1677
        %v1679 = vrot.slane %v1541, 1
        %v1680 = vsel %vm1613, %v1677, %v1679
        %v1681 = vrot.slane %v1547, 1
        %v1682 = vsel %vm1613, %v1679, %v1681
        %v1683 = vrot.slane %v1551, 1
        %v1684 = vsel %vm1613, %v1681, %v1683
        %v1685 = vrot.slane %v1557, 1
        %v1686 = vsel %vm1613, %v1683, %v1685
        %v1687 = vrot.slane %v1561, 1
        %v1688 = vsel %vm1613, %v1685, %v1687
        %v1689 = vrot.slane %v1567, 1
        %v1690 = vsel %vm1613, %v1687, %v1689
        %v1691 = vrot.slane %v1571, 1
        %v1692 = vsel %vm1613, %v1689, %v1691
        %v1733 = vadd.f32 %v1375, %v1616
        %v1734 = vadd.f32 %v1379, %v1618
        %v1735 = vadd.f32 %v1385, %v1620
        %v1736 = vadd.f32 %v1389, %v1622
        %v1737 = vadd.f32 %v1395, %v1624
        %v1738 = vadd.f32 %v1399, %v1626
        %v1739 = vadd.f32 %v1405, %v1628
        %v1740 = vadd.f32 %v1409, %v1630
        %v1741 = vadd.f32 %v1415, %v1632
        %v1742 = vadd.f32 %v1419, %v1634
        %v1743 = vadd.f32 %v1425, %v1636
        %v1744 = vadd.f32 %v1429, %v1638
        %v1745 = vadd.f32 %v1435, %v1640
        %v1746 = vadd.f32 %v1439, %v1642
        %v1747 = vadd.f32 %v1445, %v1644
        %v1748 = vadd.f32 %v1449, %v1646
        %v1749 = vadd.f32 %v1455, %v1648
        %v1750 = vadd.f32 %v1459, %v1650
        %v1751 = vadd.f32 %v1465, %v1652
        %v1752 = vadd.f32 %v1469, %v1654
        %v1753 = vadd.f32 %v1475, %v1656
        %v1754 = vadd.f32 %v1479, %v1658
        %v1755 = vadd.f32 %v1485, %v1660
        %v1756 = vadd.f32 %v1489, %v1662
        %v1757 = vadd.f32 %v1495, %v1664
        %v1758 = vadd.f32 %v1499, %v1666
        %v1759 = vadd.f32 %v1505, %v1668
        %v1760 = vadd.f32 %v1509, %v1670
        %v1761 = vadd.f32 %v1515, %v1672
        %v1762 = vadd.f32 %v1519, %v1674
        %v1763 = vadd.f32 %v1525, %v1676
        %v1764 = vadd.f32 %v1529, %v1678
        %v1765 = vadd.f32 %v1535, %v1680
        %v1766 = vadd.f32 %v1539, %v1682
        %v1767 = vadd.f32 %v1545, %v1684
        %v1768 = vadd.f32 %v1549, %v1686
        %v1769 = vadd.f32 %v1555, %v1688
        %v1770 = vadd.f32 %v1559, %v1690
        %v1771 = vadd.f32 %v1565, %v1692
        %v1772 = vadd.f32 %v1569, %v1691
        %v1773 = vadd.f32 %v1733, %v1734
        %v1774 = vadd.f32 %v1773, %v1735
        %v1775 = vadd.f32 %v1774, %v1736
        %v1776 = vadd.f32 %v1775, %v1737
        %v1777 = vadd.f32 %v1776, %v1738
        %v1778 = vadd.f32 %v1777, %v1739
        %v1779 = vadd.f32 %v1778, %v1740
        %v1780 = vadd.f32 %v1779, %v1741
        %v1781 = vadd.f32 %v1780, %v1742
        %v1782 = vadd.f32 %v1781, %v1743
        %v1783 = vadd.f32 %v1782, %v1744
        %v1784 = vadd.f32 %v1783, %v1745
        %v1785 = vadd.f32 %v1784, %v1746
        %v1786 = vadd.f32 %v1785, %v1747
        %v1787 = vadd.f32 %v1786, %v1748
        %v1788 = vadd.f32 %v1787, %v1749
        %v1789 = vadd.f32 %v1788, %v1750
        %v1790 = vadd.f32 %v1789, %v1751
        %v1791 = vadd.f32 %v1790, %v1752
        %v1792 = vadd.f32 %v1791, %v1753
        %v1793 = vadd.f32 %v1792, %v1754
        %v1794 = vadd.f32 %v1793, %v1755
        %v1795 = vadd.f32 %v1794, %v1756
        %v1796 = vadd.f32 %v1795, %v1757
        %v1797 = vadd.f32 %v1796, %v1758
        %v1798 = vadd.f32 %v1797, %v1759
        %v1799 = vadd.f32 %v1798, %v1760
        %v1800 = vadd.f32 %v1799, %v1761
        %v1801 = vadd.f32 %v1800, %v1762
        %v1802 = vadd.f32 %v1801, %v1763
        %v1803 = vadd.f32 %v1802, %v1764
        %v1804 = vadd.f32 %v1803, %v1765
        %v1805 = vadd.f32 %v1804, %v1766
        %v1806 = vadd.f32 %v1805, %v1767
        %v1807 = vadd.f32 %v1806, %v1768
        %v1808 = vadd.f32 %v1807, %v1769
        %v1809 = vadd.f32 %v1808, %v1770
        %v1810 = vadd.f32 %v1809, %v1771
        %vm1811 = vcmask 1040384
        %v1812 = vsel %vm1811, %v1772, 0.0
        %v1813 = vadd.f32 %v1810, %v1812
        %v1814 = vrot.slane %v1813, 4
        %v1815 = vadd.f32 %v1813, %v1814
        %v1816 = vrot.slane %v1815, 2
        %v1817 = vadd.f32 %v1815, %v1816
        %v1818 = vrot.slane %v1817, 1
        %v1819 = vadd.f32 %v1817, %v1818
        %v1820 = vrcp.pop 313.0
        %v1821 = vmul.f32 %v1819, %v1820
        %v1822 = vmul.f32 %v1733, %v1733
        %v1823 = vmul.f32 %v1734, %v1734
        %v1824 = vmul.f32 %v1735, %v1735
        %v1825 = vmul.f32 %v1736, %v1736
        %v1826 = vmul.f32 %v1737, %v1737
        %v1827 = vmul.f32 %v1738, %v1738
        %v1828 = vmul.f32 %v1739, %v1739
        %v1829 = vmul.f32 %v1740, %v1740
        %v1830 = vmul.f32 %v1741, %v1741
        %v1831 = vmul.f32 %v1742, %v1742
        %v1832 = vmul.f32 %v1743, %v1743
        %v1833 = vmul.f32 %v1744, %v1744
        %v1834 = vmul.f32 %v1745, %v1745
        %v1835 = vmul.f32 %v1746, %v1746
        %v1836 = vmul.f32 %v1747, %v1747
        %v1837 = vmul.f32 %v1748, %v1748
        %v1838 = vmul.f32 %v1749, %v1749
        %v1839 = vmul.f32 %v1750, %v1750
        %v1840 = vmul.f32 %v1751, %v1751
        %v1841 = vmul.f32 %v1752, %v1752
        %v1842 = vmul.f32 %v1753, %v1753
        %v1843 = vmul.f32 %v1754, %v1754
        %v1844 = vmul.f32 %v1755, %v1755
        %v1845 = vmul.f32 %v1756, %v1756
        %v1846 = vmul.f32 %v1757, %v1757
        %v1847 = vmul.f32 %v1758, %v1758
        %v1848 = vmul.f32 %v1759, %v1759
        %v1849 = vmul.f32 %v1760, %v1760
        %v1850 = vmul.f32 %v1761, %v1761
        %v1851 = vmul.f32 %v1762, %v1762
        %v1852 = vmul.f32 %v1763, %v1763
        %v1853 = vmul.f32 %v1764, %v1764
        %v1854 = vmul.f32 %v1765, %v1765
        %v1855 = vmul.f32 %v1766, %v1766
        %v1856 = vmul.f32 %v1767, %v1767
        %v1857 = vmul.f32 %v1768, %v1768
        %v1858 = vmul.f32 %v1769, %v1769
        %v1859 = vmul.f32 %v1770, %v1770
        %v1860 = vmul.f32 %v1771, %v1771
        %v1861 = vmul.f32 %v1772, %v1772
        %v1862 = vadd.f32 %v1822, %v1823
        %v1863 = vadd.f32 %v1862, %v1824
        %v1864 = vadd.f32 %v1863, %v1825
        %v1865 = vadd.f32 %v1864, %v1826
        %v1866 = vadd.f32 %v1865, %v1827
        %v1867 = vadd.f32 %v1866, %v1828
        %v1868 = vadd.f32 %v1867, %v1829
        %v1869 = vadd.f32 %v1868, %v1830
        %v1870 = vadd.f32 %v1869, %v1831
        %v1871 = vadd.f32 %v1870, %v1832
        %v1872 = vadd.f32 %v1871, %v1833
        %v1873 = vadd.f32 %v1872, %v1834
        %v1874 = vadd.f32 %v1873, %v1835
        %v1875 = vadd.f32 %v1874, %v1836
        %v1876 = vadd.f32 %v1875, %v1837
        %v1877 = vadd.f32 %v1876, %v1838
        %v1878 = vadd.f32 %v1877, %v1839
        %v1879 = vadd.f32 %v1878, %v1840
        %v1880 = vadd.f32 %v1879, %v1841
        %v1881 = vadd.f32 %v1880, %v1842
        %v1882 = vadd.f32 %v1881, %v1843
        %v1883 = vadd.f32 %v1882, %v1844
        %v1884 = vadd.f32 %v1883, %v1845
        %v1885 = vadd.f32 %v1884, %v1846
        %v1886 = vadd.f32 %v1885, %v1847
        %v1887 = vadd.f32 %v1886, %v1848
        %v1888 = vadd.f32 %v1887, %v1849
        %v1889 = vadd.f32 %v1888, %v1850
        %v1890 = vadd.f32 %v1889, %v1851
        %v1891 = vadd.f32 %v1890, %v1852
        %v1892 = vadd.f32 %v1891, %v1853
        %v1893 = vadd.f32 %v1892, %v1854
        %v1894 = vadd.f32 %v1893, %v1855
        %v1895 = vadd.f32 %v1894, %v1856
        %v1896 = vadd.f32 %v1895, %v1857
        %v1897 = vadd.f32 %v1896, %v1858
        %v1898 = vadd.f32 %v1897, %v1859
        %v1899 = vadd.f32 %v1898, %v1860
        %v1900 = vsel %vm1811, %v1861, 0.0
        %v1901 = vadd.f32 %v1899, %v1900
        %v1902 = vrot.slane %v1901, 4
        %v1903 = vadd.f32 %v1901, %v1902
        %v1904 = vrot.slane %v1903, 2
        %v1905 = vadd.f32 %v1903, %v1904
        %v1906 = vrot.slane %v1905, 1
        %v1907 = vadd.f32 %v1905, %v1906
        %v1908 = vmul.f32 %v1907, %v1820
        %v1909 = vmul.f32 %v1821, %v1821
        %v1910 = vsub.f32 %v1908, %v1909
        %v1911 = vadd.f32 %v1910, 1e-05
        %v1912 = vrsqrt.pop %v1911
        %v1913 = vsub.f32 0.0, %v1821
        %v1914 = vmul.f32 %v1913, %v1912
        %v1915 = vmul.f32 %v1733, %v1912
        %v1916 = vmul.f32 %v1734, %v1912
        %v1917 = vmul.f32 %v1735, %v1912
        %v1918 = vmul.f32 %v1736, %v1912
        %v1919 = vmul.f32 %v1737, %v1912
        %v1920 = vmul.f32 %v1738, %v1912
        %v1921 = vmul.f32 %v1739, %v1912
        %v1922 = vmul.f32 %v1740, %v1912
        %v1923 = vmul.f32 %v1741, %v1912
        %v1924 = vmul.f32 %v1742, %v1912
        %v1925 = vmul.f32 %v1743, %v1912
        %v1926 = vmul.f32 %v1744, %v1912
        %v1927 = vmul.f32 %v1745, %v1912
        %v1928 = vmul.f32 %v1746, %v1912
        %v1929 = vmul.f32 %v1747, %v1912
        %v1930 = vmul.f32 %v1748, %v1912
        %v1931 = vmul.f32 %v1749, %v1912
        %v1932 = vmul.f32 %v1750, %v1912
        %v1933 = vmul.f32 %v1751, %v1912
        %v1934 = vmul.f32 %v1752, %v1912
        %v1935 = vmul.f32 %v1753, %v1912
        %v1936 = vmul.f32 %v1754, %v1912
        %v1937 = vmul.f32 %v1755, %v1912
        %v1938 = vmul.f32 %v1756, %v1912
        %v1939 = vmul.f32 %v1757, %v1912
        %v1940 = vmul.f32 %v1758, %v1912
        %v1941 = vmul.f32 %v1759, %v1912
        %v1942 = vmul.f32 %v1760, %v1912
        %v1943 = vmul.f32 %v1761, %v1912
        %v1944 = vmul.f32 %v1762, %v1912
        %v1945 = vmul.f32 %v1763, %v1912
        %v1946 = vmul.f32 %v1764, %v1912
        %v1947 = vmul.f32 %v1765, %v1912
        %v1948 = vmul.f32 %v1766, %v1912
        %v1949 = vmul.f32 %v1767, %v1912
        %v1950 = vmul.f32 %v1768, %v1912
        %v1951 = vmul.f32 %v1769, %v1912
        %v1952 = vmul.f32 %v1770, %v1912
        %v1953 = vmul.f32 %v1771, %v1912
        %v1954 = vmul.f32 %v1772, %v1912
        %v1955 = vadd.f32 %v1915, %v1914
        %v1956 = vadd.f32 %v1916, %v1914
        %v1957 = vadd.f32 %v1917, %v1914
        %v1958 = vadd.f32 %v1918, %v1914
        %v1959 = vadd.f32 %v1919, %v1914
        %v1960 = vadd.f32 %v1920, %v1914
        %v1961 = vadd.f32 %v1921, %v1914
        %v1962 = vadd.f32 %v1922, %v1914
        %v1963 = vadd.f32 %v1923, %v1914
        %v1964 = vadd.f32 %v1924, %v1914
        %v1965 = vadd.f32 %v1925, %v1914
        %v1966 = vadd.f32 %v1926, %v1914
        %v1967 = vadd.f32 %v1927, %v1914
        %v1968 = vadd.f32 %v1928, %v1914
        %v1969 = vadd.f32 %v1929, %v1914
        %v1970 = vadd.f32 %v1930, %v1914
        %v1971 = vadd.f32 %v1931, %v1914
        %v1972 = vadd.f32 %v1932, %v1914
        %v1973 = vadd.f32 %v1933, %v1914
        %v1974 = vadd.f32 %v1934, %v1914
        %v1975 = vadd.f32 %v1935, %v1914
        %v1976 = vadd.f32 %v1936, %v1914
        %v1977 = vadd.f32 %v1937, %v1914
        %v1978 = vadd.f32 %v1938, %v1914
        %v1979 = vadd.f32 %v1939, %v1914
        %v1980 = vadd.f32 %v1940, %v1914
        %v1981 = vadd.f32 %v1941, %v1914
        %v1982 = vadd.f32 %v1942, %v1914
        %v1983 = vadd.f32 %v1943, %v1914
        %v1984 = vadd.f32 %v1944, %v1914
        %v1985 = vadd.f32 %v1945, %v1914
        %v1986 = vadd.f32 %v1946, %v1914
        %v1987 = vadd.f32 %v1947, %v1914
        %v1988 = vadd.f32 %v1948, %v1914
        %v1989 = vadd.f32 %v1949, %v1914
        %v1990 = vadd.f32 %v1950, %v1914
        %v1991 = vadd.f32 %v1951, %v1914
        %v1992 = vadd.f32 %v1952, %v1914
        %v1993 = vadd.f32 %v1953, %v1914
        %v1994 = vadd.f32 %v1954, %v1914
        %v1995 = vld [vmem:[%s3] sm:$0xff]
        %v1996 = vld [vmem:[%s3 + $0x8] sm:$0xff]
        %v1997 = vld [vmem:[%s3 + $0x10] sm:$0xff]
        %v1998 = vld [vmem:[%s3 + $0x18] sm:$0xff]
        %v1999 = vld [vmem:[%s3 + $0x20] sm:$0xff]
        %v2000 = vld [vmem:[%s3 + $0x28] sm:$0xff]
        %v2001 = vld [vmem:[%s3 + $0x30] sm:$0xff]
        %v2002 = vld [vmem:[%s3 + $0x38] sm:$0xff]
        %v2003 = vld [vmem:[%s3 + $0x40] sm:$0xff]
        %v2004 = vld [vmem:[%s3 + $0x48] sm:$0xff]
        %v2005 = vld [vmem:[%s3 + $0x50] sm:$0xff]
        %v2006 = vld [vmem:[%s3 + $0x58] sm:$0xff]
        %v2007 = vld [vmem:[%s3 + $0x60] sm:$0xff]
        %v2008 = vld [vmem:[%s3 + $0x68] sm:$0xff]
        %v2009 = vld [vmem:[%s3 + $0x70] sm:$0xff]
        %v2010 = vld [vmem:[%s3 + $0x78] sm:$0xff]
        %v2011 = vld [vmem:[%s3 + $0x80] sm:$0xff]
        %v2012 = vld [vmem:[%s3 + $0x88] sm:$0xff]
        %v2013 = vld [vmem:[%s3 + $0x90] sm:$0xff]
        %v2014 = vld [vmem:[%s3 + $0x98] sm:$0xff]
        %v2015 = vld [vmem:[%s3 + $0xa0] sm:$0xff]
        %v2016 = vld [vmem:[%s3 + $0xa8] sm:$0xff]
        %v2017 = vld [vmem:[%s3 + $0xb0] sm:$0xff]
        %v2018 = vld [vmem:[%s3 + $0xb8] sm:$0xff]
        %v2019 = vld [vmem:[%s3 + $0xc0] sm:$0xff]
        %v2020 = vld [vmem:[%s3 + $0xc8] sm:$0xff]
        %v2021 = vld [vmem:[%s3 + $0xd0] sm:$0xff]
        %v2022 = vld [vmem:[%s3 + $0xd8] sm:$0xff]
        %v2023 = vld [vmem:[%s3 + $0xe0] sm:$0xff]
        %v2024 = vld [vmem:[%s3 + $0xe8] sm:$0xff]
        %v2025 = vld [vmem:[%s3 + $0xf0] sm:$0xff]
        %v2026 = vld [vmem:[%s3 + $0xf8] sm:$0xff]
        %v2027 = vld [vmem:[%s3 + $0x100] sm:$0xff]
        %v2028 = vld [vmem:[%s3 + $0x108] sm:$0xff]
        %v2029 = vld [vmem:[%s3 + $0x110] sm:$0xff]
        %v2030 = vld [vmem:[%s3 + $0x118] sm:$0xff]
        %v2031 = vld [vmem:[%s3 + $0x120] sm:$0xff]
        %v2032 = vld [vmem:[%s3 + $0x128] sm:$0xff]
        %v2033 = vld [vmem:[%s3 + $0x130] sm:$0xff]
        %v2034 = vld [vmem:[%s3 + $0x138] sm:$0x1]
        %v2035 = vmul.f32 %v1955, %v1995
        %v2036 = vmul.f32 %v1956, %v1996
        %v2037 = vmul.f32 %v1957, %v1997
        %v2038 = vmul.f32 %v1958, %v1998
        %v2039 = vmul.f32 %v1959, %v1999
        %v2040 = vmul.f32 %v1960, %v2000
        %v2041 = vmul.f32 %v1961, %v2001
        %v2042 = vmul.f32 %v1962, %v2002
        %v2043 = vmul.f32 %v1963, %v2003
        %v2044 = vmul.f32 %v1964, %v2004
        %v2045 = vmul.f32 %v1965, %v2005
        %v2046 = vmul.f32 %v1966, %v2006
        %v2047 = vmul.f32 %v1967, %v2007
        %v2048 = vmul.f32 %v1968, %v2008
        %v2049 = vmul.f32 %v1969, %v2009
        %v2050 = vmul.f32 %v1970, %v2010
        %v2051 = vmul.f32 %v1971, %v2011
        %v2052 = vmul.f32 %v1972, %v2012
        %v2053 = vmul.f32 %v1973, %v2013
        %v2054 = vmul.f32 %v1974, %v2014
        %v2055 = vmul.f32 %v1975, %v2015
        %v2056 = vmul.f32 %v1976, %v2016
        %v2057 = vmul.f32 %v1977, %v2017
        %v2058 = vmul.f32 %v1978, %v2018
        %v2059 = vmul.f32 %v1979, %v2019
        %v2060 = vmul.f32 %v1980, %v2020
        %v2061 = vmul.f32 %v1981, %v2021
        %v2062 = vmul.f32 %v1982, %v2022
        %v2063 = vmul.f32 %v1983, %v2023
        %v2064 = vmul.f32 %v1984, %v2024
        %v2065 = vmul.f32 %v1985, %v2025
        %v2066 = vmul.f32 %v1986, %v2026
        %v2067 = vmul.f32 %v1987, %v2027
        %v2068 = vmul.f32 %v1988, %v2028
        %v2069 = vmul.f32 %v1989, %v2029
        %v2070 = vmul.f32 %v1990, %v2030
        %v2071 = vmul.f32 %v1991, %v2031
        %v2072 = vmul.f32 %v1992, %v2032
        %v2073 = vmul.f32 %v1993, %v2033
        %v2074 = vmul.f32 %v1994, %v2034
        %v2075 = vld [vmem:[%s4] sm:$0xff]
        %v2076 = vld [vmem:[%s4 + $0x8] sm:$0xff]
        %v2077 = vld [vmem:[%s4 + $0x10] sm:$0xff]
        %v2078 = vld [vmem:[%s4 + $0x18] sm:$0xff]
        %v2079 = vld [vmem:[%s4 + $0x20] sm:$0xff]
        %v2080 = vld [vmem:[%s4 + $0x28] sm:$0xff]
        %v2081 = vld [vmem:[%s4 + $0x30] sm:$0xff]
        %v2082 = vld [vmem:[%s4 + $0x38] sm:$0xff]
        %v2083 = vld [vmem:[%s4 + $0x40] sm:$0xff]
        %v2084 = vld [vmem:[%s4 + $0x48] sm:$0xff]
        %v2085 = vld [vmem:[%s4 + $0x50] sm:$0xff]
        %v2086 = vld [vmem:[%s4 + $0x58] sm:$0xff]
        %v2087 = vld [vmem:[%s4 + $0x60] sm:$0xff]
        %v2088 = vld [vmem:[%s4 + $0x68] sm:$0xff]
        %v2089 = vld [vmem:[%s4 + $0x70] sm:$0xff]
        %v2090 = vld [vmem:[%s4 + $0x78] sm:$0xff]
        %v2091 = vld [vmem:[%s4 + $0x80] sm:$0xff]
        %v2092 = vld [vmem:[%s4 + $0x88] sm:$0xff]
        %v2093 = vld [vmem:[%s4 + $0x90] sm:$0xff]
        %v2094 = vld [vmem:[%s4 + $0x98] sm:$0xff]
        %v2095 = vld [vmem:[%s4 + $0xa0] sm:$0xff]
        %v2096 = vld [vmem:[%s4 + $0xa8] sm:$0xff]
        %v2097 = vld [vmem:[%s4 + $0xb0] sm:$0xff]
        %v2098 = vld [vmem:[%s4 + $0xb8] sm:$0xff]
        %v2099 = vld [vmem:[%s4 + $0xc0] sm:$0xff]
        %v2100 = vld [vmem:[%s4 + $0xc8] sm:$0xff]
        %v2101 = vld [vmem:[%s4 + $0xd0] sm:$0xff]
        %v2102 = vld [vmem:[%s4 + $0xd8] sm:$0xff]
        %v2103 = vld [vmem:[%s4 + $0xe0] sm:$0xff]
        %v2104 = vld [vmem:[%s4 + $0xe8] sm:$0xff]
        %v2105 = vld [vmem:[%s4 + $0xf0] sm:$0xff]
        %v2106 = vld [vmem:[%s4 + $0xf8] sm:$0xff]
        %v2107 = vld [vmem:[%s4 + $0x100] sm:$0xff]
        %v2108 = vld [vmem:[%s4 + $0x108] sm:$0xff]
        %v2109 = vld [vmem:[%s4 + $0x110] sm:$0xff]
        %v2110 = vld [vmem:[%s4 + $0x118] sm:$0xff]
        %v2111 = vld [vmem:[%s4 + $0x120] sm:$0xff]
        %v2112 = vld [vmem:[%s4 + $0x128] sm:$0xff]
        %v2113 = vld [vmem:[%s4 + $0x130] sm:$0xff]
        %v2114 = vld [vmem:[%s4 + $0x138] sm:$0x1]
        %v2115 = vadd.f32 %v2035, %v2075
        %v2116 = vadd.f32 %v2036, %v2076
        %v2117 = vadd.f32 %v2037, %v2077
        %v2118 = vadd.f32 %v2038, %v2078
        %v2119 = vadd.f32 %v2039, %v2079
        %v2120 = vadd.f32 %v2040, %v2080
        %v2121 = vadd.f32 %v2041, %v2081
        %v2122 = vadd.f32 %v2042, %v2082
        %v2123 = vadd.f32 %v2043, %v2083
        %v2124 = vadd.f32 %v2044, %v2084
        %v2125 = vadd.f32 %v2045, %v2085
        %v2126 = vadd.f32 %v2046, %v2086
        %v2127 = vadd.f32 %v2047, %v2087
        %v2128 = vadd.f32 %v2048, %v2088
        %v2129 = vadd.f32 %v2049, %v2089
        %v2130 = vadd.f32 %v2050, %v2090
        %v2131 = vadd.f32 %v2051, %v2091
        %v2132 = vadd.f32 %v2052, %v2092
        %v2133 = vadd.f32 %v2053, %v2093
        %v2134 = vadd.f32 %v2054, %v2094
        %v2135 = vadd.f32 %v2055, %v2095
        %v2136 = vadd.f32 %v2056, %v2096
        %v2137 = vadd.f32 %v2057, %v2097
        %v2138 = vadd.f32 %v2058, %v2098
        %v2139 = vadd.f32 %v2059, %v2099
        %v2140 = vadd.f32 %v2060, %v2100
        %v2141 = vadd.f32 %v2061, %v2101
        %v2142 = vadd.f32 %v2062, %v2102
        %v2143 = vadd.f32 %v2063, %v2103
        %v2144 = vadd.f32 %v2064, %v2104
        %v2145 = vadd.f32 %v2065, %v2105
        %v2146 = vadd.f32 %v2066, %v2106
        %v2147 = vadd.f32 %v2067, %v2107
        %v2148 = vadd.f32 %v2068, %v2108
        %v2149 = vadd.f32 %v2069, %v2109
        %v2150 = vadd.f32 %v2070, %v2110
        %v2151 = vadd.f32 %v2071, %v2111
        %v2152 = vadd.f32 %v2072, %v2112
        %v2153 = vadd.f32 %v2073, %v2113
        %v2154 = vadd.f32 %v2074, %v2114
        %vm2155 = vcmp.ge.f32.partialorder %v2115, 0.0
        %vm2156 = vcmp.ge.f32.partialorder %v2116, 0.0
        %vm2157 = vcmp.ge.f32.partialorder %v2117, 0.0
        %vm2158 = vcmp.ge.f32.partialorder %v2118, 0.0
        %vm2159 = vcmp.ge.f32.partialorder %v2119, 0.0
        %vm2160 = vcmp.ge.f32.partialorder %v2120, 0.0
        %vm2161 = vcmp.ge.f32.partialorder %v2121, 0.0
        %vm2162 = vcmp.ge.f32.partialorder %v2122, 0.0
        %vm2163 = vcmp.ge.f32.partialorder %v2123, 0.0
        %vm2164 = vcmp.ge.f32.partialorder %v2124, 0.0
        %vm2165 = vcmp.ge.f32.partialorder %v2125, 0.0
        %vm2166 = vcmp.ge.f32.partialorder %v2126, 0.0
        %vm2167 = vcmp.ge.f32.partialorder %v2127, 0.0
        %vm2168 = vcmp.ge.f32.partialorder %v2128, 0.0
        %vm2169 = vcmp.ge.f32.partialorder %v2129, 0.0
        %vm2170 = vcmp.ge.f32.partialorder %v2130, 0.0
        %vm2171 = vcmp.ge.f32.partialorder %v2131, 0.0
        %vm2172 = vcmp.ge.f32.partialorder %v2132, 0.0
        %vm2173 = vcmp.ge.f32.partialorder %v2133, 0.0
        %vm2174 = vcmp.ge.f32.partialorder %v2134, 0.0
        %vm2175 = vcmp.ge.f32.partialorder %v2135, 0.0
        %vm2176 = vcmp.ge.f32.partialorder %v2136, 0.0
        %vm2177 = vcmp.ge.f32.partialorder %v2137, 0.0
        %vm2178 = vcmp.ge.f32.partialorder %v2138, 0.0
        %vm2179 = vcmp.ge.f32.partialorder %v2139, 0.0
        %vm2180 = vcmp.ge.f32.partialorder %v2140, 0.0
        %vm2181 = vcmp.ge.f32.partialorder %v2141, 0.0
        %vm2182 = vcmp.ge.f32.partialorder %v2142, 0.0
        %vm2183 = vcmp.ge.f32.partialorder %v2143, 0.0
        %vm2184 = vcmp.ge.f32.partialorder %v2144, 0.0
        %vm2185 = vcmp.ge.f32.partialorder %v2145, 0.0
        %vm2186 = vcmp.ge.f32.partialorder %v2146, 0.0
        %vm2187 = vcmp.ge.f32.partialorder %v2147, 0.0
        %vm2188 = vcmp.ge.f32.partialorder %v2148, 0.0
        %vm2189 = vcmp.ge.f32.partialorder %v2149, 0.0
        %vm2190 = vcmp.ge.f32.partialorder %v2150, 0.0
        %vm2191 = vcmp.ge.f32.partialorder %v2151, 0.0
        %vm2192 = vcmp.ge.f32.partialorder %v2152, 0.0
        %vm2193 = vcmp.ge.f32.partialorder %v2153, 0.0
        %vm2194 = vcmp.ge.f32.partialorder %v2154, 0.0
        %v2195 = vmul.f32 %v2115, 0.2
        %v2196 = vmul.f32 %v2116, 0.2
        %v2197 = vmul.f32 %v2117, 0.2
        %v2198 = vmul.f32 %v2118, 0.2
        %v2199 = vmul.f32 %v2119, 0.2
        %v2200 = vmul.f32 %v2120, 0.2
        %v2201 = vmul.f32 %v2121, 0.2
        %v2202 = vmul.f32 %v2122, 0.2
        %v2203 = vmul.f32 %v2123, 0.2
        %v2204 = vmul.f32 %v2124, 0.2
        %v2205 = vmul.f32 %v2125, 0.2
        %v2206 = vmul.f32 %v2126, 0.2
        %v2207 = vmul.f32 %v2127, 0.2
        %v2208 = vmul.f32 %v2128, 0.2
        %v2209 = vmul.f32 %v2129, 0.2
        %v2210 = vmul.f32 %v2130, 0.2
        %v2211 = vmul.f32 %v2131, 0.2
        %v2212 = vmul.f32 %v2132, 0.2
        %v2213 = vmul.f32 %v2133, 0.2
        %v2214 = vmul.f32 %v2134, 0.2
        %v2215 = vmul.f32 %v2135, 0.2
        %v2216 = vmul.f32 %v2136, 0.2
        %v2217 = vmul.f32 %v2137, 0.2
        %v2218 = vmul.f32 %v2138, 0.2
        %v2219 = vmul.f32 %v2139, 0.2
        %v2220 = vmul.f32 %v2140, 0.2
        %v2221 = vmul.f32 %v2141, 0.2
        %v2222 = vmul.f32 %v2142, 0.2
        %v2223 = vmul.f32 %v2143, 0.2
        %v2224 = vmul.f32 %v2144, 0.2
        %v2225 = vmul.f32 %v2145, 0.2
        %v2226 = vmul.f32 %v2146, 0.2
        %v2227 = vmul.f32 %v2147, 0.2
        %v2228 = vmul.f32 %v2148, 0.2
        %v2229 = vmul.f32 %v2149, 0.2
        %v2230 = vmul.f32 %v2150, 0.2
        %v2231 = vmul.f32 %v2151, 0.2
        %v2232 = vmul.f32 %v2152, 0.2
        %v2233 = vmul.f32 %v2153, 0.2
        %v2234 = vmul.f32 %v2154, 0.2
        %v2235 = vsel %vm2155, %v2115, %v2195
        %v2236 = vsel %vm2156, %v2116, %v2196
        %v2237 = vsel %vm2157, %v2117, %v2197
        %v2238 = vsel %vm2158, %v2118, %v2198
        %v2239 = vsel %vm2159, %v2119, %v2199
        %v2240 = vsel %vm2160, %v2120, %v2200
        %v2241 = vsel %vm2161, %v2121, %v2201
        %v2242 = vsel %vm2162, %v2122, %v2202
        %v2243 = vsel %vm2163, %v2123, %v2203
        %v2244 = vsel %vm2164, %v2124, %v2204
        %v2245 = vsel %vm2165, %v2125, %v2205
        %v2246 = vsel %vm2166, %v2126, %v2206
        %v2247 = vsel %vm2167, %v2127, %v2207
        %v2248 = vsel %vm2168, %v2128, %v2208
        %v2249 = vsel %vm2169, %v2129, %v2209
        %v2250 = vsel %vm2170, %v2130, %v2210
        %v2251 = vsel %vm2171, %v2131, %v2211
        %v2252 = vsel %vm2172, %v2132, %v2212
        %v2253 = vsel %vm2173, %v2133, %v2213
        %v2254 = vsel %vm2174, %v2134, %v2214
        %v2255 = vsel %vm2175, %v2135, %v2215
        %v2256 = vsel %vm2176, %v2136, %v2216
        %v2257 = vsel %vm2177, %v2137, %v2217
        %v2258 = vsel %vm2178, %v2138, %v2218
        %v2259 = vsel %vm2179, %v2139, %v2219
        %v2260 = vsel %vm2180, %v2140, %v2220
        %v2261 = vsel %vm2181, %v2141, %v2221
        %v2262 = vsel %vm2182, %v2142, %v2222
        %v2263 = vsel %vm2183, %v2143, %v2223
        %v2264 = vsel %vm2184, %v2144, %v2224
        %v2265 = vsel %vm2185, %v2145, %v2225
        %v2266 = vsel %vm2186, %v2146, %v2226
        %v2267 = vsel %vm2187, %v2147, %v2227
        %v2268 = vsel %vm2188, %v2148, %v2228
        %v2269 = vsel %vm2189, %v2149, %v2229
        %v2270 = vsel %vm2190, %v2150, %v2230
        %v2271 = vsel %vm2191, %v2151, %v2231
        %v2272 = vsel %vm2192, %v2152, %v2232
        %v2273 = vsel %vm2193, %v2153, %v2233
        %v2274 = vsel %vm2194, %v2154, %v2234
        %2275 = vst [vmem:[#allocation2 + $0x8] sm:$0xff] %v2235
        %2276 = vst [vmem:[#allocation2 + $0x10] sm:$0xff] %v2236
        %2277 = vst [vmem:[#allocation2 + $0x18] sm:$0xff] %v2237
        %2278 = vst [vmem:[#allocation2 + $0x20] sm:$0xff] %v2238
        %2279 = vst [vmem:[#allocation2 + $0x28] sm:$0xff] %v2239
        %2280 = vst [vmem:[#allocation2 + $0x30] sm:$0xff] %v2240
        %2281 = vst [vmem:[#allocation2 + $0x38] sm:$0xff] %v2241
        %2282 = vst [vmem:[#allocation2 + $0x40] sm:$0xff] %v2242
        %2283 = vst [vmem:[#allocation2 + $0x48] sm:$0xff] %v2243
        %2284 = vst [vmem:[#allocation2 + $0x50] sm:$0xff] %v2244
        %2285 = vst [vmem:[#allocation2 + $0x58] sm:$0xff] %v2245
        %2286 = vst [vmem:[#allocation2 + $0x60] sm:$0xff] %v2246
        %2287 = vst [vmem:[#allocation2 + $0x68] sm:$0xff] %v2247
        %2288 = vst [vmem:[#allocation2 + $0x70] sm:$0xff] %v2248
        %2289 = vst [vmem:[#allocation2 + $0x78] sm:$0xff] %v2249
        %2290 = vst [vmem:[#allocation2 + $0x80] sm:$0xff] %v2250
        %2291 = vst [vmem:[#allocation2 + $0x88] sm:$0xff] %v2251
        %2292 = vst [vmem:[#allocation2 + $0x90] sm:$0xff] %v2252
        %2293 = vst [vmem:[#allocation2 + $0x98] sm:$0xff] %v2253
        %2294 = vst [vmem:[#allocation2 + $0xa0] sm:$0xff] %v2254
        %2295 = vst [vmem:[#allocation2 + $0xa8] sm:$0xff] %v2255
        %2296 = vst [vmem:[#allocation2 + $0xb0] sm:$0xff] %v2256
        %2297 = vst [vmem:[#allocation2 + $0xb8] sm:$0xff] %v2257
        %2298 = vst [vmem:[#allocation2 + $0xc0] sm:$0xff] %v2258
        %2299 = vst [vmem:[#allocation2 + $0xc8] sm:$0xff] %v2259
        %2300 = vst [vmem:[#allocation2 + $0xd0] sm:$0xff] %v2260
        %2301 = vst [vmem:[#allocation2 + $0xd8] sm:$0xff] %v2261
        %2302 = vst [vmem:[#allocation2 + $0xe0] sm:$0xff] %v2262
        %2303 = vst [vmem:[#allocation2 + $0xe8] sm:$0xff] %v2263
        %2304 = vst [vmem:[#allocation2 + $0xf0] sm:$0xff] %v2264
        %2305 = vst [vmem:[#allocation2 + $0xf8] sm:$0xff] %v2265
        %2306 = vst [vmem:[#allocation2 + $0x100] sm:$0xff] %v2266
        %2307 = vst [vmem:[#allocation2 + $0x108] sm:$0xff] %v2267
        %2308 = vst [vmem:[#allocation2 + $0x110] sm:$0xff] %v2268
        %2309 = vst [vmem:[#allocation2 + $0x118] sm:$0xff] %v2269
        %2310 = vst [vmem:[#allocation2 + $0x120] sm:$0xff] %v2270
        %2311 = vst [vmem:[#allocation2 + $0x128] sm:$0xff] %v2271
        %2312 = vst [vmem:[#allocation2 + $0x130] sm:$0xff] %v2272
        %2313 = vst [vmem:[#allocation2 + $0x138] sm:$0xff] %v2273
        %2314 = vst [vmem:[#allocation2 + $0x140] sm:$0x1] %v2274
        %v2315 = vld [vmem:[#allocation2 + $0x7] sm:$0xff]
        %v2316 = vld [vmem:[#allocation2 + $0xf] sm:$0xff]
        %v2317 = vld [vmem:[#allocation2 + $0x17] sm:$0xff]
        %v2318 = vld [vmem:[#allocation2 + $0x1f] sm:$0xff]
        %v2319 = vld [vmem:[#allocation2 + $0x27] sm:$0xff]
        %v2320 = vld [vmem:[#allocation2 + $0x2f] sm:$0xff]
        %v2321 = vld [vmem:[#allocation2 + $0x37] sm:$0xff]
        %v2322 = vld [vmem:[#allocation2 + $0x3f] sm:$0xff]
        %v2323 = vld [vmem:[#allocation2 + $0x47] sm:$0xff]
        %v2324 = vld [vmem:[#allocation2 + $0x4f] sm:$0xff]
        %v2325 = vld [vmem:[#allocation2 + $0x57] sm:$0xff]
        %v2326 = vld [vmem:[#allocation2 + $0x5f] sm:$0xff]
        %v2327 = vld [vmem:[#allocation2 + $0x67] sm:$0xff]
        %v2328 = vld [vmem:[#allocation2 + $0x6f] sm:$0xff]
        %v2329 = vld [vmem:[#allocation2 + $0x77] sm:$0xff]
        %v2330 = vld [vmem:[#allocation2 + $0x7f] sm:$0xff]
        %v2331 = vld [vmem:[#allocation2 + $0x87] sm:$0xff]
        %v2332 = vld [vmem:[#allocation2 + $0x8f] sm:$0xff]
        %v2333 = vld [vmem:[#allocation2 + $0x97] sm:$0xff]
        %v2334 = vld [vmem:[#allocation2 + $0x9f] sm:$0xff]
        %v2335 = vld [vmem:[#allocation2 + $0xa7] sm:$0xff]
        %v2336 = vld [vmem:[#allocation2 + $0xaf] sm:$0xff]
        %v2337 = vld [vmem:[#allocation2 + $0xb7] sm:$0xff]
        %v2338 = vld [vmem:[#allocation2 + $0xbf] sm:$0xff]
        %v2339 = vld [vmem:[#allocation2 + $0xc7] sm:$0xff]
        %v2340 = vld [vmem:[#allocation2 + $0xcf] sm:$0xff]
        %v2341 = vld [vmem:[#allocation2 + $0xd7] sm:$0xff]
        %v2342 = vld [vmem:[#allocation2 + $0xdf] sm:$0xff]
        %v2343 = vld [vmem:[#allocation2 + $0xe7] sm:$0xff]
        %v2344 = vld [vmem:[#allocation2 + $0xef] sm:$0xff]
        %v2345 = vld [vmem:[#allocation2 + $0xf7] sm:$0xff]
        %v2346 = vld [vmem:[#allocation2 + $0xff] sm:$0xff]
        %v2347 = vld [vmem:[#allocation2 + $0x107] sm:$0xff]
        %v2348 = vld [vmem:[#allocation2 + $0x10f] sm:$0xff]
        %v2349 = vld [vmem:[#allocation2 + $0x117] sm:$0xff]
        %v2350 = vld [vmem:[#allocation2 + $0x11f] sm:$0xff]
        %v2351 = vld [vmem:[#allocation2 + $0x127] sm:$0xff]
        %v2352 = vld [vmem:[#allocation2 + $0x12f] sm:$0xff]
        %v2353 = vld [vmem:[#allocation2 + $0x137] sm:$0xff]
        %v2354 = vld [vmem:[#allocation2 + $0x13f] sm:$0x1]
        %v2355 = vpack.c.bf16 %v2316, %v2315
        %v2356 = vpack.c.bf16 %v2318, %v2317
        %v2357 = vpack.c.bf16 %v2320, %v2319
        %v2358 = vpack.c.bf16 %v2322, %v2321
        %v2359 = vpack.c.bf16 %v2324, %v2323
        %v2360 = vpack.c.bf16 %v2326, %v2325
        %v2361 = vpack.c.bf16 %v2328, %v2327
        %v2362 = vpack.c.bf16 %v2330, %v2329
        %v2363 = vpack.c.bf16 %v2332, %v2331
        %v2364 = vpack.c.bf16 %v2334, %v2333
        %v2365 = vpack.c.bf16 %v2336, %v2335
        %v2366 = vpack.c.bf16 %v2338, %v2337
        %v2367 = vpack.c.bf16 %v2340, %v2339
        %v2368 = vpack.c.bf16 %v2342, %v2341
        %v2369 = vpack.c.bf16 %v2344, %v2343
        %v2370 = vpack.c.bf16 %v2346, %v2345
        %v2371 = vpack.c.bf16 %v2348, %v2347
        %v2372 = vpack.c.bf16 %v2350, %v2349
        %v2373 = vpack.c.bf16 %v2352, %v2351
        %v2374 = vpack.c.bf16 %v2354, %v2353
        %v2375 = vpack.c.bf16 %v2236, %v2235
        %v2376 = vpack.c.bf16 %v2238, %v2237
        %v2377 = vpack.c.bf16 %v2240, %v2239
        %v2378 = vpack.c.bf16 %v2242, %v2241
        %v2379 = vpack.c.bf16 %v2244, %v2243
        %v2380 = vpack.c.bf16 %v2246, %v2245
        %v2381 = vpack.c.bf16 %v2248, %v2247
        %v2382 = vpack.c.bf16 %v2250, %v2249
        %v2383 = vpack.c.bf16 %v2252, %v2251
        %v2384 = vpack.c.bf16 %v2254, %v2253
        %v2385 = vpack.c.bf16 %v2256, %v2255
        %v2386 = vpack.c.bf16 %v2258, %v2257
        %v2387 = vpack.c.bf16 %v2260, %v2259
        %v2388 = vpack.c.bf16 %v2262, %v2261
        %v2389 = vpack.c.bf16 %v2264, %v2263
        %v2390 = vpack.c.bf16 %v2266, %v2265
        %v2391 = vpack.c.bf16 %v2268, %v2267
        %v2392 = vpack.c.bf16 %v2270, %v2269
        %v2393 = vpack.c.bf16 %v2272, %v2271
        %v2394 = vpack.c.bf16 %v2274, %v2273
        %v2395 = vld [vmem:[#allocation2 + $0x9] sm:$0xff]
        %v2396 = vld [vmem:[#allocation2 + $0x11] sm:$0xff]
        %v2397 = vld [vmem:[#allocation2 + $0x19] sm:$0xff]
        %v2398 = vld [vmem:[#allocation2 + $0x21] sm:$0xff]
        %v2399 = vld [vmem:[#allocation2 + $0x29] sm:$0xff]
        %v2400 = vld [vmem:[#allocation2 + $0x31] sm:$0xff]
        %v2401 = vld [vmem:[#allocation2 + $0x39] sm:$0xff]
        %v2402 = vld [vmem:[#allocation2 + $0x41] sm:$0xff]
        %v2403 = vld [vmem:[#allocation2 + $0x49] sm:$0xff]
        %v2404 = vld [vmem:[#allocation2 + $0x51] sm:$0xff]
        %v2405 = vld [vmem:[#allocation2 + $0x59] sm:$0xff]
        %v2406 = vld [vmem:[#allocation2 + $0x61] sm:$0xff]
        %v2407 = vld [vmem:[#allocation2 + $0x69] sm:$0xff]
        %v2408 = vld [vmem:[#allocation2 + $0x71] sm:$0xff]
        %v2409 = vld [vmem:[#allocation2 + $0x79] sm:$0xff]
        %v2410 = vld [vmem:[#allocation2 + $0x81] sm:$0xff]
        %v2411 = vld [vmem:[#allocation2 + $0x89] sm:$0xff]
        %v2412 = vld [vmem:[#allocation2 + $0x91] sm:$0xff]
        %v2413 = vld [vmem:[#allocation2 + $0x99] sm:$0xff]
        %v2414 = vld [vmem:[#allocation2 + $0xa1] sm:$0xff]
        %v2415 = vld [vmem:[#allocation2 + $0xa9] sm:$0xff]
        %v2416 = vld [vmem:[#allocation2 + $0xb1] sm:$0xff]
        %v2417 = vld [vmem:[#allocation2 + $0xb9] sm:$0xff]
        %v2418 = vld [vmem:[#allocation2 + $0xc1] sm:$0xff]
        %v2419 = vld [vmem:[#allocation2 + $0xc9] sm:$0xff]
        %v2420 = vld [vmem:[#allocation2 + $0xd1] sm:$0xff]
        %v2421 = vld [vmem:[#allocation2 + $0xd9] sm:$0xff]
        %v2422 = vld [vmem:[#allocation2 + $0xe1] sm:$0xff]
        %v2423 = vld [vmem:[#allocation2 + $0xe9] sm:$0xff]
        %v2424 = vld [vmem:[#allocation2 + $0xf1] sm:$0xff]
        %v2425 = vld [vmem:[#allocation2 + $0xf9] sm:$0xff]
        %v2426 = vld [vmem:[#allocation2 + $0x101] sm:$0xff]
        %v2427 = vld [vmem:[#allocation2 + $0x109] sm:$0xff]
        %v2428 = vld [vmem:[#allocation2 + $0x111] sm:$0xff]
        %v2429 = vld [vmem:[#allocation2 + $0x119] sm:$0xff]
        %v2430 = vld [vmem:[#allocation2 + $0x121] sm:$0xff]
        %v2431 = vld [vmem:[#allocation2 + $0x129] sm:$0xff]
        %v2432 = vld [vmem:[#allocation2 + $0x131] sm:$0xff]
        %v2433 = vld [vmem:[#allocation2 + $0x139] sm:$0xff]
        %v2434 = vld [vmem:[#allocation2 + $0x141] sm:$0x1]
        %v2435 = vpack.c.bf16 %v2396, %v2395
        %v2436 = vpack.c.bf16 %v2398, %v2397
        %v2437 = vpack.c.bf16 %v2400, %v2399
        %v2438 = vpack.c.bf16 %v2402, %v2401
        %v2439 = vpack.c.bf16 %v2404, %v2403
        %v2440 = vpack.c.bf16 %v2406, %v2405
        %v2441 = vpack.c.bf16 %v2408, %v2407
        %v2442 = vpack.c.bf16 %v2410, %v2409
        %v2443 = vpack.c.bf16 %v2412, %v2411
        %v2444 = vpack.c.bf16 %v2414, %v2413
        %v2445 = vpack.c.bf16 %v2416, %v2415
        %v2446 = vpack.c.bf16 %v2418, %v2417
        %v2447 = vpack.c.bf16 %v2420, %v2419
        %v2448 = vpack.c.bf16 %v2422, %v2421
        %v2449 = vpack.c.bf16 %v2424, %v2423
        %v2450 = vpack.c.bf16 %v2426, %v2425
        %v2451 = vpack.c.bf16 %v2428, %v2427
        %v2452 = vpack.c.bf16 %v2430, %v2429
        %v2453 = vpack.c.bf16 %v2432, %v2431
        %v2454 = vpack.c.bf16 %v2434, %v2433
        %v2455 = vld [vmem:[%s2] sm:$0xf]
        %v2456 = vld [vmem:[%s2 + $0x4] sm:$0xf]
        %v2457 = vld [vmem:[%s2 + $0x8] sm:$0xf]
        %v2458 = vld [vmem:[%s2 + $0xc] sm:$0xf]
        %v2459 = vld [vmem:[%s2 + $0x10] sm:$0xf]
        %v2460 = vld [vmem:[%s2 + $0x14] sm:$0xf]
        %v2461 = vld [vmem:[%s2 + $0x18] sm:$0xf]
        %v2462 = vld [vmem:[%s2 + $0x1c] sm:$0xf]
        %v2463 = vld [vmem:[%s2 + $0x20] sm:$0xf]
        %v2464 = vld [vmem:[%s2 + $0x24] sm:$0xf]
        %v2465 = vld [vmem:[%s2 + $0x28] sm:$0xf]
        %v2466 = vld [vmem:[%s2 + $0x2c] sm:$0xf]
        %v2467 = vld [vmem:[%s2 + $0x30] sm:$0xf]
        %v2468 = vld [vmem:[%s2 + $0x34] sm:$0xf]
        %v2469 = vld [vmem:[%s2 + $0x38] sm:$0xf]
        %v2470 = vld [vmem:[%s2 + $0x3c] sm:$0xf]
        %s2471 = scalar_lea.vmem %s2, 64
        %v2472 = vld [vmem:[%s2471] sm:$0xf]
        %v2473 = vld [vmem:[%s2471 + $0x4] sm:$0xf]
        %v2474 = vld [vmem:[%s2471 + $0x8] sm:$0xf]
        %v2475 = vld [vmem:[%s2471 + $0xc] sm:$0xf]
        %v2476 = vld [vmem:[%s2471 + $0x10] sm:$0xf]
        %v2477 = vld [vmem:[%s2471 + $0x14] sm:$0xf]
        %v2478 = vld [vmem:[%s2471 + $0x18] sm:$0xf]
        %v2479 = vld [vmem:[%s2471 + $0x1c] sm:$0xf]
        %v2480 = vld [vmem:[%s2471 + $0x20] sm:$0xf]
        %v2481 = vld [vmem:[%s2471 + $0x24] sm:$0xf]
        %v2482 = vld [vmem:[%s2471 + $0x28] sm:$0xf]
        %v2483 = vld [vmem:[%s2471 + $0x2c] sm:$0xf]
        %v2484 = vld [vmem:[%s2471 + $0x30] sm:$0xf]
        %v2485 = vld [vmem:[%s2471 + $0x34] sm:$0xf]
        %v2486 = vld [vmem:[%s2471 + $0x38] sm:$0xf]
        %v2487 = vld [vmem:[%s2471 + $0x3c] sm:$0xf]
        %v2504 = vunpack.c.l.b16 %v2472
        %v2505 = vunpack.c.l.b16 %v2473
        %v2506 = vunpack.c.l.b16 %v2474
        %v2507 = vunpack.c.l.b16 %v2475
        %v2508 = vunpack.c.l.b16 %v2476
        %v2509 = vunpack.c.l.b16 %v2477
        %v2510 = vunpack.c.l.b16 %v2478
        %v2511 = vunpack.c.l.b16 %v2479
        %v2512 = vunpack.c.l.b16 %v2480
        %v2513 = vunpack.c.l.b16 %v2481
        %v2514 = vunpack.c.l.b16 %v2482
        %v2515 = vunpack.c.l.b16 %v2483
        %v2516 = vunpack.c.l.b16 %v2484
        %v2517 = vunpack.c.l.b16 %v2485
        %v2518 = vunpack.c.l.b16 %v2486
        %v2519 = vunpack.c.l.b16 %v2487
        %v2520 = vpack.c.b16 %v2505, %v2504
        %v2521 = vpack.c.b16 %v2507, %v2506
        %v2522 = vpack.c.b16 %v2509, %v2508
        %v2523 = vpack.c.b16 %v2511, %v2510
        %v2524 = vpack.c.b16 %v2513, %v2512
        %v2525 = vpack.c.b16 %v2515, %v2514
        %v2526 = vpack.c.b16 %v2517, %v2516
        %v2527 = vpack.c.b16 %v2519, %v2518
        %2536 = vmatprep.subr.bf16.mxu0 0
        %2537 = vmatpush1.bf16.msra.mxu0 %v2527
        %2538 = vmatprep.subr.bf16.mxu0 0
        %2539 = vmatpush1.bf16.msra.mxu0 %v2526
        %2540 = vmatprep.subr.bf16.mxu0 0
        %2541 = vmatpush1.bf16.msra.mxu0 %v2525
        %2542 = vmatprep.subr.bf16.mxu0 0
        %2543 = vmatpush1.bf16.msra.mxu0 %v2524
        %2544 = vmatprep.subr.bf16.mxu0 0
        %2545 = vmatpush1.bf16.msra.mxu0 %v2523
        %2546 = vmatprep.subr.bf16.mxu0 0
        %2547 = vmatpush1.bf16.msra.mxu0 %v2522
        %2548 = vmatprep.subr.bf16.mxu0 0
        %2549 = vmatpush1.bf16.msra.mxu0 %v2521
        %2550 = vmatprep.subr.bf16.mxu0 0
        %2551 = vmatpush1.bf16.msra.mxu0 %v2520
        %2552 = vmatprep.subr.bf16.mxu0 0
        %2553 = vmatpush2.bf16.msra.mxu0 0
        %2554 = vmatprep.subr.bf16.mxu0 0
        %2555 = vmatpush2.bf16.msra.mxu0 0
        %2556 = vmatprep.subr.bf16.mxu0 0
        %2557 = vmatpush2.bf16.msra.mxu0 0
        %2558 = vmatprep.subr.bf16.mxu0 0
        %2559 = vmatpush2.bf16.msra.mxu0 0
        %2560 = vmatprep.subr.bf16.mxu0 0
        %2561 = vmatpush2.bf16.msra.mxu0 0
        %2562 = vmatprep.subr.bf16.mxu0 0
        %2563 = vmatpush2.bf16.msra.mxu0 0
        %2564 = vmatprep.subr.bf16.mxu0 0
        %2565 = vmatpush2.bf16.msra.mxu0 0
        %2566 = vmatprep.subr.bf16.mxu0 0
        %2567 = vmatpush2.bf16.msra.mxu0 0
        %2568 = vmatprep.mubr.bf16.mxu0 0
        %2569 = vmatmul.mubr.bf16.gmra.mxu0 %v2375
        %v2570 = vpop.f32.mrf.mxu0
        %v2571 = vadd.f32 0.0, %v2570
        %v2572 = vpop.f32.mrf.mxu0
        %v2573 = vpop.f32.mrf.mxu0
        %v2574 = vadd.f32 0.0, %v2573
        %v2575 = vpop.f32.mrf.mxu0
        %2576 = vmatprep.mubr.bf16.mxu0 0
        %2577 = vmatmul.mubr.bf16.gmra.mxu0 %v2376
        %v2578 = vpop.f32.mrf.mxu0
        %v2579 = vadd.f32 0.0, %v2578
        %v2580 = vpop.f32.mrf.mxu0
        %v2581 = vpop.f32.mrf.mxu0
        %v2582 = vadd.f32 0.0, %v2581
        %v2583 = vpop.f32.mrf.mxu0
        %2584 = vmatprep.mubr.bf16.mxu0 0
        %2585 = vmatmul.mubr.bf16.gmra.mxu0 %v2377
        %v2586 = vpop.f32.mrf.mxu0
        %v2587 = vadd.f32 0.0, %v2586
        %v2588 = vpop.f32.mrf.mxu0
        %v2589 = vpop.f32.mrf.mxu0
        %v2590 = vadd.f32 0.0, %v2589
        %v2591 = vpop.f32.mrf.mxu0
        %2592 = vmatprep.mubr.bf16.mxu0 0
        %2593 = vmatmul.mubr.bf16.gmra.mxu0 %v2378
        %v2594 = vpop.f32.mrf.mxu0
        %v2595 = vadd.f32 0.0, %v2594
        %v2596 = vpop.f32.mrf.mxu0
        %v2597 = vpop.f32.mrf.mxu0
        %v2598 = vadd.f32 0.0, %v2597
        %v2599 = vpop.f32.mrf.mxu0
        %2600 = vmatprep.mubr.bf16.mxu0 0
        %2601 = vmatmul.mubr.bf16.gmra.mxu0 %v2379
        %v2602 = vpop.f32.mrf.mxu0
        %v2603 = vadd.f32 0.0, %v2602
        %v2604 = vpop.f32.mrf.mxu0
        %v2605 = vpop.f32.mrf.mxu0
        %v2606 = vadd.f32 0.0, %v2605
        %v2607 = vpop.f32.mrf.mxu0
        %2608 = vmatprep.mubr.bf16.mxu0 0
        %2609 = vmatmul.mubr.bf16.gmra.mxu0 %v2380
        %v2610 = vpop.f32.mrf.mxu0
        %v2611 = vadd.f32 0.0, %v2610
        %v2612 = vpop.f32.mrf.mxu0
        %v2613 = vpop.f32.mrf.mxu0
        %v2614 = vadd.f32 0.0, %v2613
        %v2615 = vpop.f32.mrf.mxu0
        %2616 = vmatprep.mubr.bf16.mxu0 0
        %2617 = vmatmul.mubr.bf16.gmra.mxu0 %v2381
        %v2618 = vpop.f32.mrf.mxu0
        %v2619 = vadd.f32 0.0, %v2618
        %v2620 = vpop.f32.mrf.mxu0
        %v2621 = vpop.f32.mrf.mxu0
        %v2622 = vadd.f32 0.0, %v2621
        %v2623 = vpop.f32.mrf.mxu0
        %2624 = vmatprep.mubr.bf16.mxu0 0
        %2625 = vmatmul.mubr.bf16.gmra.mxu0 %v2382
        %v2626 = vpop.f32.mrf.mxu0
        %v2627 = vadd.f32 0.0, %v2626
        %v2628 = vpop.f32.mrf.mxu0
        %v2629 = vpop.f32.mrf.mxu0
        %v2630 = vadd.f32 0.0, %v2629
        %v2631 = vpop.f32.mrf.mxu0
        %2632 = vmatprep.mubr.bf16.mxu0 0
        %2633 = vmatmul.mubr.bf16.gmra.mxu0 %v2383
        %v2634 = vpop.f32.mrf.mxu0
        %v2635 = vadd.f32 0.0, %v2634
        %v2636 = vpop.f32.mrf.mxu0
        %v2637 = vpop.f32.mrf.mxu0
        %v2638 = vadd.f32 0.0, %v2637
        %v2639 = vpop.f32.mrf.mxu0
        %2640 = vmatprep.mubr.bf16.mxu0 0
        %2641 = vmatmul.mubr.bf16.gmra.mxu0 %v2384
        %v2642 = vpop.f32.mrf.mxu0
        %v2643 = vadd.f32 0.0, %v2642
        %v2644 = vpop.f32.mrf.mxu0
        %v2645 = vpop.f32.mrf.mxu0
        %v2646 = vadd.f32 0.0, %v2645
        %v2647 = vpop.f32.mrf.mxu0
        %2648 = vmatprep.mubr.bf16.mxu0 0
        %2649 = vmatmul.mubr.bf16.gmra.mxu0 %v2385
        %v2650 = vpop.f32.mrf.mxu0
        %v2651 = vadd.f32 0.0, %v2650
        %v2652 = vpop.f32.mrf.mxu0
        %v2653 = vpop.f32.mrf.mxu0
        %v2654 = vadd.f32 0.0, %v2653
        %v2655 = vpop.f32.mrf.mxu0
        %2656 = vmatprep.mubr.bf16.mxu0 0
        %2657 = vmatmul.mubr.bf16.gmra.mxu0 %v2386
        %v2658 = vpop.f32.mrf.mxu0
        %v2659 = vadd.f32 0.0, %v2658
        %v2660 = vpop.f32.mrf.mxu0
        %v2661 = vpop.f32.mrf.mxu0
        %v2662 = vadd.f32 0.0, %v2661
        %v2663 = vpop.f32.mrf.mxu0
        %2664 = vmatprep.mubr.bf16.mxu0 0
        %2665 = vmatmul.mubr.bf16.gmra.mxu0 %v2387
        %v2666 = vpop.f32.mrf.mxu0
        %v2667 = vadd.f32 0.0, %v2666
        %v2668 = vpop.f32.mrf.mxu0
        %v2669 = vpop.f32.mrf.mxu0
        %v2670 = vadd.f32 0.0, %v2669
        %v2671 = vpop.f32.mrf.mxu0
        %2672 = vmatprep.mubr.bf16.mxu0 0
        %2673 = vmatmul.mubr.bf16.gmra.mxu0 %v2388
        %v2674 = vpop.f32.mrf.mxu0
        %v2675 = vadd.f32 0.0, %v2674
        %v2676 = vpop.f32.mrf.mxu0
        %v2677 = vpop.f32.mrf.mxu0
        %v2678 = vadd.f32 0.0, %v2677
        %v2679 = vpop.f32.mrf.mxu0
        %2680 = vmatprep.mubr.bf16.mxu0 0
        %2681 = vmatmul.mubr.bf16.gmra.mxu0 %v2389
        %v2682 = vpop.f32.mrf.mxu0
        %v2683 = vadd.f32 0.0, %v2682
        %v2684 = vpop.f32.mrf.mxu0
        %v2685 = vpop.f32.mrf.mxu0
        %v2686 = vadd.f32 0.0, %v2685
        %v2687 = vpop.f32.mrf.mxu0
        %2688 = vmatprep.mubr.bf16.mxu0 0
        %2689 = vmatmul.mubr.bf16.gmra.mxu0 %v2390
        %v2690 = vpop.f32.mrf.mxu0
        %v2691 = vadd.f32 0.0, %v2690
        %v2692 = vpop.f32.mrf.mxu0
        %v2693 = vpop.f32.mrf.mxu0
        %v2694 = vadd.f32 0.0, %v2693
        %v2695 = vpop.f32.mrf.mxu0
        %2696 = vmatprep.mubr.bf16.mxu0 0
        %2697 = vmatmul.mubr.bf16.gmra.mxu0 %v2391
        %v2698 = vpop.f32.mrf.mxu0
        %v2699 = vadd.f32 0.0, %v2698
        %v2700 = vpop.f32.mrf.mxu0
        %v2701 = vpop.f32.mrf.mxu0
        %v2702 = vadd.f32 0.0, %v2701
        %v2703 = vpop.f32.mrf.mxu0
        %2704 = vmatprep.mubr.bf16.mxu0 0
        %2705 = vmatmul.mubr.bf16.gmra.mxu0 %v2392
        %v2706 = vpop.f32.mrf.mxu0
        %v2707 = vadd.f32 0.0, %v2706
        %v2708 = vpop.f32.mrf.mxu0
        %v2709 = vpop.f32.mrf.mxu0
        %v2710 = vadd.f32 0.0, %v2709
        %v2711 = vpop.f32.mrf.mxu0
        %2712 = vmatprep.mubr.bf16.mxu0 0
        %2713 = vmatmul.mubr.bf16.gmra.mxu0 %v2393
        %v2714 = vpop.f32.mrf.mxu0
        %v2715 = vadd.f32 0.0, %v2714
        %v2716 = vpop.f32.mrf.mxu0
        %v2717 = vpop.f32.mrf.mxu0
        %v2718 = vadd.f32 0.0, %v2717
        %v2719 = vpop.f32.mrf.mxu0
        %2720 = vmatprep.mubr.bf16.mxu0 0
        %2721 = vmatmul.mubr.bf16.gmra.mxu0 %v2394
        %v2722 = vpop.f32.mrf.mxu0
        %v2723 = vadd.f32 0.0, %v2722
        %v2724 = vpop.f32.mrf.mxu0
        %v2725 = vpop.f32.mrf.mxu0
        %v2726 = vadd.f32 0.0, %v2725
        %v2727 = vpop.f32.mrf.mxu0
        %2728 = vdwg.mxu0
        %v2745 = vunpack.c.l.b16 %v2455
        %v2746 = vunpack.c.l.b16 %v2456
        %v2747 = vunpack.c.l.b16 %v2457
        %v2748 = vunpack.c.l.b16 %v2458
        %v2749 = vunpack.c.l.b16 %v2459
        %v2750 = vunpack.c.l.b16 %v2460
        %v2751 = vunpack.c.l.b16 %v2461
        %v2752 = vunpack.c.l.b16 %v2462
        %v2753 = vunpack.c.l.b16 %v2463
        %v2754 = vunpack.c.l.b16 %v2464
        %v2755 = vunpack.c.l.b16 %v2465
        %v2756 = vunpack.c.l.b16 %v2466
        %v2757 = vunpack.c.l.b16 %v2467
        %v2758 = vunpack.c.l.b16 %v2468
        %v2759 = vunpack.c.l.b16 %v2469
        %v2760 = vunpack.c.l.b16 %v2470
        %v2761 = vpack.c.b16 %v2746, %v2745
        %v2762 = vpack.c.b16 %v2748, %v2747
        %v2763 = vpack.c.b16 %v2750, %v2749
        %v2764 = vpack.c.b16 %v2752, %v2751
        %v2765 = vpack.c.b16 %v2754, %v2753
        %v2766 = vpack.c.b16 %v2756, %v2755
        %v2767 = vpack.c.b16 %v2758, %v2757
        %v2768 = vpack.c.b16 %v2760, %v2759
        %2777 = vmatprep.subr.bf16.mxu0 0
        %2778 = vmatpush1.bf16.msra.mxu0 %v2768
        %2779 = vmatprep.subr.bf16.mxu0 0
        %2780 = vmatpush1.bf16.msra.mxu0 %v2767
        %2781 = vmatprep.subr.bf16.mxu0 0
        %2782 = vmatpush1.bf16.msra.mxu0 %v2766
        %2783 = vmatprep.subr.bf16.mxu0 0
        %2784 = vmatpush1.bf16.msra.mxu0 %v2765
        %2785 = vmatprep.subr.bf16.mxu0 0
        %2786 = vmatpush1.bf16.msra.mxu0 %v2764
        %2787 = vmatprep.subr.bf16.mxu0 0
        %2788 = vmatpush1.bf16.msra.mxu0 %v2763
        %2789 = vmatprep.subr.bf16.mxu0 0
        %2790 = vmatpush1.bf16.msra.mxu0 %v2762
        %2791 = vmatprep.subr.bf16.mxu0 0
        %2792 = vmatpush1.bf16.msra.mxu0 %v2761
        %2793 = vmatprep.subr.bf16.mxu0 0
        %2794 = vmatpush2.bf16.msra.mxu0 0
        %2795 = vmatprep.subr.bf16.mxu0 0
        %2796 = vmatpush2.bf16.msra.mxu0 0
        %2797 = vmatprep.subr.bf16.mxu0 0
        %2798 = vmatpush2.bf16.msra.mxu0 0
        %2799 = vmatprep.subr.bf16.mxu0 0
        %2800 = vmatpush2.bf16.msra.mxu0 0
        %2801 = vmatprep.subr.bf16.mxu0 0
        %2802 = vmatpush2.bf16.msra.mxu0 0
        %2803 = vmatprep.subr.bf16.mxu0 0
        %2804 = vmatpush2.bf16.msra.mxu0 0
        %2805 = vmatprep.subr.bf16.mxu0 0
        %2806 = vmatpush2.bf16.msra.mxu0 0
        %2807 = vmatprep.subr.bf16.mxu0 0
        %2808 = vmatpush2.bf16.msra.mxu0 0
        %2809 = vmatprep.mubr.bf16.mxu0 0
        %2810 = vmatmul.mubr.bf16.gmra.mxu0 %v2355
        %v2811 = vpop.f32.mrf.mxu0
        %v2812 = vadd.f32 %v2571, %v2811
        %v2813 = vpop.f32.mrf.mxu0
        %v2814 = vpop.f32.mrf.mxu0
        %v2815 = vadd.f32 %v2574, %v2814
        %v2816 = vpop.f32.mrf.mxu0
        %2817 = vmatprep.mubr.bf16.mxu0 0
        %2818 = vmatmul.mubr.bf16.gmra.mxu0 %v2356
        %v2819 = vpop.f32.mrf.mxu0
        %v2820 = vadd.f32 %v2579, %v2819
        %v2821 = vpop.f32.mrf.mxu0
        %v2822 = vpop.f32.mrf.mxu0
        %v2823 = vadd.f32 %v2582, %v2822
        %v2824 = vpop.f32.mrf.mxu0
        %2825 = vmatprep.mubr.bf16.mxu0 0
        %2826 = vmatmul.mubr.bf16.gmra.mxu0 %v2357
        %v2827 = vpop.f32.mrf.mxu0
        %v2828 = vadd.f32 %v2587, %v2827
        %v2829 = vpop.f32.mrf.mxu0
        %v2830 = vpop.f32.mrf.mxu0
        %v2831 = vadd.f32 %v2590, %v2830
        %v2832 = vpop.f32.mrf.mxu0
        %2833 = vmatprep.mubr.bf16.mxu0 0
        %2834 = vmatmul.mubr.bf16.gmra.mxu0 %v2358
        %v2835 = vpop.f32.mrf.mxu0
        %v2836 = vadd.f32 %v2595, %v2835
        %v2837 = vpop.f32.mrf.mxu0
        %v2838 = vpop.f32.mrf.mxu0
        %v2839 = vadd.f32 %v2598, %v2838
        %v2840 = vpop.f32.mrf.mxu0
        %2841 = vmatprep.mubr.bf16.mxu0 0
        %2842 = vmatmul.mubr.bf16.gmra.mxu0 %v2359
        %v2843 = vpop.f32.mrf.mxu0
        %v2844 = vadd.f32 %v2603, %v2843
        %v2845 = vpop.f32.mrf.mxu0
        %v2846 = vpop.f32.mrf.mxu0
        %v2847 = vadd.f32 %v2606, %v2846
        %v2848 = vpop.f32.mrf.mxu0
        %2849 = vmatprep.mubr.bf16.mxu0 0
        %2850 = vmatmul.mubr.bf16.gmra.mxu0 %v2360
        %v2851 = vpop.f32.mrf.mxu0
        %v2852 = vadd.f32 %v2611, %v2851
        %v2853 = vpop.f32.mrf.mxu0
        %v2854 = vpop.f32.mrf.mxu0
        %v2855 = vadd.f32 %v2614, %v2854
        %v2856 = vpop.f32.mrf.mxu0
        %2857 = vmatprep.mubr.bf16.mxu0 0
        %2858 = vmatmul.mubr.bf16.gmra.mxu0 %v2361
        %v2859 = vpop.f32.mrf.mxu0
        %v2860 = vadd.f32 %v2619, %v2859
        %v2861 = vpop.f32.mrf.mxu0
        %v2862 = vpop.f32.mrf.mxu0
        %v2863 = vadd.f32 %v2622, %v2862
        %v2864 = vpop.f32.mrf.mxu0
        %2865 = vmatprep.mubr.bf16.mxu0 0
        %2866 = vmatmul.mubr.bf16.gmra.mxu0 %v2362
        %v2867 = vpop.f32.mrf.mxu0
        %v2868 = vadd.f32 %v2627, %v2867
        %v2869 = vpop.f32.mrf.mxu0
        %v2870 = vpop.f32.mrf.mxu0
        %v2871 = vadd.f32 %v2630, %v2870
        %v2872 = vpop.f32.mrf.mxu0
        %2873 = vmatprep.mubr.bf16.mxu0 0
        %2874 = vmatmul.mubr.bf16.gmra.mxu0 %v2363
        %v2875 = vpop.f32.mrf.mxu0
        %v2876 = vadd.f32 %v2635, %v2875
        %v2877 = vpop.f32.mrf.mxu0
        %v2878 = vpop.f32.mrf.mxu0
        %v2879 = vadd.f32 %v2638, %v2878
        %v2880 = vpop.f32.mrf.mxu0
        %2881 = vmatprep.mubr.bf16.mxu0 0
        %2882 = vmatmul.mubr.bf16.gmra.mxu0 %v2364
        %v2883 = vpop.f32.mrf.mxu0
        %v2884 = vadd.f32 %v2643, %v2883
        %v2885 = vpop.f32.mrf.mxu0
        %v2886 = vpop.f32.mrf.mxu0
        %v2887 = vadd.f32 %v2646, %v2886
        %v2888 = vpop.f32.mrf.mxu0
        %2889 = vmatprep.mubr.bf16.mxu0 0
        %2890 = vmatmul.mubr.bf16.gmra.mxu0 %v2365
        %v2891 = vpop.f32.mrf.mxu0
        %v2892 = vadd.f32 %v2651, %v2891
        %v2893 = vpop.f32.mrf.mxu0
        %v2894 = vpop.f32.mrf.mxu0
        %v2895 = vadd.f32 %v2654, %v2894
        %v2896 = vpop.f32.mrf.mxu0
        %2897 = vmatprep.mubr.bf16.mxu0 0
        %2898 = vmatmul.mubr.bf16.gmra.mxu0 %v2366
        %v2899 = vpop.f32.mrf.mxu0
        %v2900 = vadd.f32 %v2659, %v2899
        %v2901 = vpop.f32.mrf.mxu0
        %v2902 = vpop.f32.mrf.mxu0
        %v2903 = vadd.f32 %v2662, %v2902
        %v2904 = vpop.f32.mrf.mxu0
        %2905 = vmatprep.mubr.bf16.mxu0 0
        %2906 = vmatmul.mubr.bf16.gmra.mxu0 %v2367
        %v2907 = vpop.f32.mrf.mxu0
        %v2908 = vadd.f32 %v2667, %v2907
        %v2909 = vpop.f32.mrf.mxu0
        %v2910 = vpop.f32.mrf.mxu0
        %v2911 = vadd.f32 %v2670, %v2910
        %v2912 = vpop.f32.mrf.mxu0
        %2913 = vmatprep.mubr.bf16.mxu0 0
        %2914 = vmatmul.mubr.bf16.gmra.mxu0 %v2368
        %v2915 = vpop.f32.mrf.mxu0
        %v2916 = vadd.f32 %v2675, %v2915
        %v2917 = vpop.f32.mrf.mxu0
        %v2918 = vpop.f32.mrf.mxu0
        %v2919 = vadd.f32 %v2678, %v2918
        %v2920 = vpop.f32.mrf.mxu0
        %2921 = vmatprep.mubr.bf16.mxu0 0
        %2922 = vmatmul.mubr.bf16.gmra.mxu0 %v2369
        %v2923 = vpop.f32.mrf.mxu0
        %v2924 = vadd.f32 %v2683, %v2923
        %v2925 = vpop.f32.mrf.mxu0
        %v2926 = vpop.f32.mrf.mxu0
        %v2927 = vadd.f32 %v2686, %v2926
        %v2928 = vpop.f32.mrf.mxu0
        %2929 = vmatprep.mubr.bf16.mxu0 0
        %2930 = vmatmul.mubr.bf16.gmra.mxu0 %v2370
        %v2931 = vpop.f32.mrf.mxu0
        %v2932 = vadd.f32 %v2691, %v2931
        %v2933 = vpop.f32.mrf.mxu0
        %v2934 = vpop.f32.mrf.mxu0
        %v2935 = vadd.f32 %v2694, %v2934
        %v2936 = vpop.f32.mrf.mxu0
        %2937 = vmatprep.mubr.bf16.mxu0 0
        %2938 = vmatmul.mubr.bf16.gmra.mxu0 %v2371
        %v2939 = vpop.f32.mrf.mxu0
        %v2940 = vadd.f32 %v2699, %v2939
        %v2941 = vpop.f32.mrf.mxu0
        %v2942 = vpop.f32.mrf.mxu0
        %v2943 = vadd.f32 %v2702, %v2942
        %v2944 = vpop.f32.mrf.mxu0
        %2945 = vmatprep.mubr.bf16.mxu0 0
        %2946 = vmatmul.mubr.bf16.gmra.mxu0 %v2372
        %v2947 = vpop.f32.mrf.mxu0
        %v2948 = vadd.f32 %v2707, %v2947
        %v2949 = vpop.f32.mrf.mxu0
        %v2950 = vpop.f32.mrf.mxu0
        %v2951 = vadd.f32 %v2710, %v2950
        %v2952 = vpop.f32.mrf.mxu0
        %2953 = vmatprep.mubr.bf16.mxu0 0
        %2954 = vmatmul.mubr.bf16.gmra.mxu0 %v2373
        %v2955 = vpop.f32.mrf.mxu0
        %v2956 = vadd.f32 %v2715, %v2955
        %v2957 = vpop.f32.mrf.mxu0
        %v2958 = vpop.f32.mrf.mxu0
        %v2959 = vadd.f32 %v2718, %v2958
        %v2960 = vpop.f32.mrf.mxu0
        %2961 = vmatprep.mubr.bf16.mxu0 0
        %2962 = vmatmul.mubr.bf16.gmra.mxu0 %v2374
        %v2963 = vpop.f32.mrf.mxu0
        %v2964 = vadd.f32 %v2723, %v2963
        %v2965 = vpop.f32.mrf.mxu0
        %v2966 = vpop.f32.mrf.mxu0
        %v2967 = vadd.f32 %v2726, %v2966
        %v2968 = vpop.f32.mrf.mxu0
        %2969 = vdwg.mxu0
        %s2970 = scalar_lea.vmem %s2, 128
        %v2971 = vld [vmem:[%s2970] sm:$0xf]
        %v2972 = vld [vmem:[%s2970 + $0x4] sm:$0xf]
        %v2973 = vld [vmem:[%s2970 + $0x8] sm:$0xf]
        %v2974 = vld [vmem:[%s2970 + $0xc] sm:$0xf]
        %v2975 = vld [vmem:[%s2970 + $0x10] sm:$0xf]
        %v2976 = vld [vmem:[%s2970 + $0x14] sm:$0xf]
        %v2977 = vld [vmem:[%s2970 + $0x18] sm:$0xf]
        %v2978 = vld [vmem:[%s2970 + $0x1c] sm:$0xf]
        %v2979 = vld [vmem:[%s2970 + $0x20] sm:$0xf]
        %v2980 = vld [vmem:[%s2970 + $0x24] sm:$0xf]
        %v2981 = vld [vmem:[%s2970 + $0x28] sm:$0xf]
        %v2982 = vld [vmem:[%s2970 + $0x2c] sm:$0xf]
        %v2983 = vld [vmem:[%s2970 + $0x30] sm:$0xf]
        %v2984 = vld [vmem:[%s2970 + $0x34] sm:$0xf]
        %v2985 = vld [vmem:[%s2970 + $0x38] sm:$0xf]
        %v2986 = vld [vmem:[%s2970 + $0x3c] sm:$0xf]
        %v3003 = vunpack.c.l.b16 %v2971
        %v3004 = vunpack.c.l.b16 %v2972
        %v3005 = vunpack.c.l.b16 %v2973
        %v3006 = vunpack.c.l.b16 %v2974
        %v3007 = vunpack.c.l.b16 %v2975
        %v3008 = vunpack.c.l.b16 %v2976
        %v3009 = vunpack.c.l.b16 %v2977
        %v3010 = vunpack.c.l.b16 %v2978
        %v3011 = vunpack.c.l.b16 %v2979
        %v3012 = vunpack.c.l.b16 %v2980
        %v3013 = vunpack.c.l.b16 %v2981
        %v3014 = vunpack.c.l.b16 %v2982
        %v3015 = vunpack.c.l.b16 %v2983
        %v3016 = vunpack.c.l.b16 %v2984
        %v3017 = vunpack.c.l.b16 %v2985
        %v3018 = vunpack.c.l.b16 %v2986
        %v3019 = vpack.c.b16 %v3004, %v3003
        %v3020 = vpack.c.b16 %v3006, %v3005
        %v3021 = vpack.c.b16 %v3008, %v3007
        %v3022 = vpack.c.b16 %v3010, %v3009
        %v3023 = vpack.c.b16 %v3012, %v3011
        %v3024 = vpack.c.b16 %v3014, %v3013
        %v3025 = vpack.c.b16 %v3016, %v3015
        %v3026 = vpack.c.b16 %v3018, %v3017
        %3035 = vmatprep.subr.bf16.mxu0 0
        %3036 = vmatpush1.bf16.msra.mxu0 %v3026
        %3037 = vmatprep.subr.bf16.mxu0 0
        %3038 = vmatpush1.bf16.msra.mxu0 %v3025
        %3039 = vmatprep.subr.bf16.mxu0 0
        %3040 = vmatpush1.bf16.msra.mxu0 %v3024
        %3041 = vmatprep.subr.bf16.mxu0 0
        %3042 = vmatpush1.bf16.msra.mxu0 %v3023
        %3043 = vmatprep.subr.bf16.mxu0 0
        %3044 = vmatpush1.bf16.msra.mxu0 %v3022
        %3045 = vmatprep.subr.bf16.mxu0 0
        %3046 = vmatpush1.bf16.msra.mxu0 %v3021
        %3047 = vmatprep.subr.bf16.mxu0 0
        %3048 = vmatpush1.bf16.msra.mxu0 %v3020
        %3049 = vmatprep.subr.bf16.mxu0 0
        %3050 = vmatpush1.bf16.msra.mxu0 %v3019
        %3051 = vmatprep.subr.bf16.mxu0 0
        %3052 = vmatpush2.bf16.msra.mxu0 0
        %3053 = vmatprep.subr.bf16.mxu0 0
        %3054 = vmatpush2.bf16.msra.mxu0 0
        %3055 = vmatprep.subr.bf16.mxu0 0
        %3056 = vmatpush2.bf16.msra.mxu0 0
        %3057 = vmatprep.subr.bf16.mxu0 0
        %3058 = vmatpush2.bf16.msra.mxu0 0
        %3059 = vmatprep.subr.bf16.mxu0 0
        %3060 = vmatpush2.bf16.msra.mxu0 0
        %3061 = vmatprep.subr.bf16.mxu0 0
        %3062 = vmatpush2.bf16.msra.mxu0 0
        %3063 = vmatprep.subr.bf16.mxu0 0
        %3064 = vmatpush2.bf16.msra.mxu0 0
        %3065 = vmatprep.subr.bf16.mxu0 0
        %3066 = vmatpush2.bf16.msra.mxu0 0
        %3067 = vmatprep.mubr.bf16.mxu0 0
        %3068 = vmatmul.mubr.bf16.gmra.mxu0 %v2435
        %v3069 = vpop.f32.mrf.mxu0
        %v3070 = vadd.f32 0.0, %v3069
        %v3071 = vpop.f32.mrf.mxu0
        %v3072 = vpop.f32.mrf.mxu0
        %v3073 = vadd.f32 0.0, %v3072
        %v3074 = vpop.f32.mrf.mxu0
        %3075 = vmatprep.mubr.bf16.mxu0 0
        %3076 = vmatmul.mubr.bf16.gmra.mxu0 %v2436
        %v3077 = vpop.f32.mrf.mxu0
        %v3078 = vadd.f32 0.0, %v3077
        %v3079 = vpop.f32.mrf.mxu0
        %v3080 = vpop.f32.mrf.mxu0
        %v3081 = vadd.f32 0.0, %v3080
        %v3082 = vpop.f32.mrf.mxu0
        %3083 = vmatprep.mubr.bf16.mxu0 0
        %3084 = vmatmul.mubr.bf16.gmra.mxu0 %v2437
        %v3085 = vpop.f32.mrf.mxu0
        %v3086 = vadd.f32 0.0, %v3085
        %v3087 = vpop.f32.mrf.mxu0
        %v3088 = vpop.f32.mrf.mxu0
        %v3089 = vadd.f32 0.0, %v3088
        %v3090 = vpop.f32.mrf.mxu0
        %3091 = vmatprep.mubr.bf16.mxu0 0
        %3092 = vmatmul.mubr.bf16.gmra.mxu0 %v2438
        %v3093 = vpop.f32.mrf.mxu0
        %v3094 = vadd.f32 0.0, %v3093
        %v3095 = vpop.f32.mrf.mxu0
        %v3096 = vpop.f32.mrf.mxu0
        %v3097 = vadd.f32 0.0, %v3096
        %v3098 = vpop.f32.mrf.mxu0
        %3099 = vmatprep.mubr.bf16.mxu0 0
        %3100 = vmatmul.mubr.bf16.gmra.mxu0 %v2439
        %v3101 = vpop.f32.mrf.mxu0
        %v3102 = vadd.f32 0.0, %v3101
        %v3103 = vpop.f32.mrf.mxu0
        %v3104 = vpop.f32.mrf.mxu0
        %v3105 = vadd.f32 0.0, %v3104
        %v3106 = vpop.f32.mrf.mxu0
        %3107 = vmatprep.mubr.bf16.mxu0 0
        %3108 = vmatmul.mubr.bf16.gmra.mxu0 %v2440
        %v3109 = vpop.f32.mrf.mxu0
        %v3110 = vadd.f32 0.0, %v3109
        %v3111 = vpop.f32.mrf.mxu0
        %v3112 = vpop.f32.mrf.mxu0
        %v3113 = vadd.f32 0.0, %v3112
        %v3114 = vpop.f32.mrf.mxu0
        %3115 = vmatprep.mubr.bf16.mxu0 0
        %3116 = vmatmul.mubr.bf16.gmra.mxu0 %v2441
        %v3117 = vpop.f32.mrf.mxu0
        %v3118 = vadd.f32 0.0, %v3117
        %v3119 = vpop.f32.mrf.mxu0
        %v3120 = vpop.f32.mrf.mxu0
        %v3121 = vadd.f32 0.0, %v3120
        %v3122 = vpop.f32.mrf.mxu0
        %3123 = vmatprep.mubr.bf16.mxu0 0
        %3124 = vmatmul.mubr.bf16.gmra.mxu0 %v2442
        %v3125 = vpop.f32.mrf.mxu0
        %v3126 = vadd.f32 0.0, %v3125
        %v3127 = vpop.f32.mrf.mxu0
        %v3128 = vpop.f32.mrf.mxu0
        %v3129 = vadd.f32 0.0, %v3128
        %v3130 = vpop.f32.mrf.mxu0
        %3131 = vmatprep.mubr.bf16.mxu0 0
        %3132 = vmatmul.mubr.bf16.gmra.mxu0 %v2443
        %v3133 = vpop.f32.mrf.mxu0
        %v3134 = vadd.f32 0.0, %v3133
        %v3135 = vpop.f32.mrf.mxu0
        %v3136 = vpop.f32.mrf.mxu0
        %v3137 = vadd.f32 0.0, %v3136
        %v3138 = vpop.f32.mrf.mxu0
        %3139 = vmatprep.mubr.bf16.mxu0 0
        %3140 = vmatmul.mubr.bf16.gmra.mxu0 %v2444
        %v3141 = vpop.f32.mrf.mxu0
        %v3142 = vadd.f32 0.0, %v3141
        %v3143 = vpop.f32.mrf.mxu0
        %v3144 = vpop.f32.mrf.mxu0
        %v3145 = vadd.f32 0.0, %v3144
        %v3146 = vpop.f32.mrf.mxu0
        %3147 = vmatprep.mubr.bf16.mxu0 0
        %3148 = vmatmul.mubr.bf16.gmra.mxu0 %v2445
        %v3149 = vpop.f32.mrf.mxu0
        %v3150 = vadd.f32 0.0, %v3149
        %v3151 = vpop.f32.mrf.mxu0
        %v3152 = vpop.f32.mrf.mxu0
        %v3153 = vadd.f32 0.0, %v3152
        %v3154 = vpop.f32.mrf.mxu0
        %3155 = vmatprep.mubr.bf16.mxu0 0
        %3156 = vmatmul.mubr.bf16.gmra.mxu0 %v2446
        %v3157 = vpop.f32.mrf.mxu0
        %v3158 = vadd.f32 0.0, %v3157
        %v3159 = vpop.f32.mrf.mxu0
        %v3160 = vpop.f32.mrf.mxu0
        %v3161 = vadd.f32 0.0, %v3160
        %v3162 = vpop.f32.mrf.mxu0
        %3163 = vmatprep.mubr.bf16.mxu0 0
        %3164 = vmatmul.mubr.bf16.gmra.mxu0 %v2447
        %v3165 = vpop.f32.mrf.mxu0
        %v3166 = vadd.f32 0.0, %v3165
        %v3167 = vpop.f32.mrf.mxu0
        %v3168 = vpop.f32.mrf.mxu0
        %v3169 = vadd.f32 0.0, %v3168
        %v3170 = vpop.f32.mrf.mxu0
        %3171 = vmatprep.mubr.bf16.mxu0 0
        %3172 = vmatmul.mubr.bf16.gmra.mxu0 %v2448
        %v3173 = vpop.f32.mrf.mxu0
        %v3174 = vadd.f32 0.0, %v3173
        %v3175 = vpop.f32.mrf.mxu0
        %v3176 = vpop.f32.mrf.mxu0
        %v3177 = vadd.f32 0.0, %v3176
        %v3178 = vpop.f32.mrf.mxu0
        %3179 = vmatprep.mubr.bf16.mxu0 0
        %3180 = vmatmul.mubr.bf16.gmra.mxu0 %v2449
        %v3181 = vpop.f32.mrf.mxu0
        %v3182 = vadd.f32 0.0, %v3181
        %v3183 = vpop.f32.mrf.mxu0
        %v3184 = vpop.f32.mrf.mxu0
        %v3185 = vadd.f32 0.0, %v3184
        %v3186 = vpop.f32.mrf.mxu0
        %3187 = vmatprep.mubr.bf16.mxu0 0
        %3188 = vmatmul.mubr.bf16.gmra.mxu0 %v2450
        %v3189 = vpop.f32.mrf.mxu0
        %v3190 = vadd.f32 0.0, %v3189
        %v3191 = vpop.f32.mrf.mxu0
        %v3192 = vpop.f32.mrf.mxu0
        %v3193 = vadd.f32 0.0, %v3192
        %v3194 = vpop.f32.mrf.mxu0
        %3195 = vmatprep.mubr.bf16.mxu0 0
        %3196 = vmatmul.mubr.bf16.gmra.mxu0 %v2451
        %v3197 = vpop.f32.mrf.mxu0
        %v3198 = vadd.f32 0.0, %v3197
        %v3199 = vpop.f32.mrf.mxu0
        %v3200 = vpop.f32.mrf.mxu0
        %v3201 = vadd.f32 0.0, %v3200
        %v3202 = vpop.f32.mrf.mxu0
        %3203 = vmatprep.mubr.bf16.mxu0 0
        %3204 = vmatmul.mubr.bf16.gmra.mxu0 %v2452
        %v3205 = vpop.f32.mrf.mxu0
        %v3206 = vadd.f32 0.0, %v3205
        %v3207 = vpop.f32.mrf.mxu0
        %v3208 = vpop.f32.mrf.mxu0
        %v3209 = vadd.f32 0.0, %v3208
        %v3210 = vpop.f32.mrf.mxu0
        %3211 = vmatprep.mubr.bf16.mxu0 0
        %3212 = vmatmul.mubr.bf16.gmra.mxu0 %v2453
        %v3213 = vpop.f32.mrf.mxu0
        %v3214 = vadd.f32 0.0, %v3213
        %v3215 = vpop.f32.mrf.mxu0
        %v3216 = vpop.f32.mrf.mxu0
        %v3217 = vadd.f32 0.0, %v3216
        %v3218 = vpop.f32.mrf.mxu0
        %3219 = vmatprep.mubr.bf16.mxu0 0
        %3220 = vmatmul.mubr.bf16.gmra.mxu0 %v2454
        %v3221 = vpop.f32.mrf.mxu0
        %v3222 = vadd.f32 0.0, %v3221
        %v3223 = vpop.f32.mrf.mxu0
        %v3224 = vpop.f32.mrf.mxu0
        %v3225 = vadd.f32 0.0, %v3224
        %v3226 = vpop.f32.mrf.mxu0
        %3227 = vdwg.mxu0
        %v3228 = vadd.f32 %v2812, %v3070
        %v3229 = vadd.f32 %v2815, %v3073
        %v3230 = vadd.f32 %v2820, %v3078
        %v3231 = vadd.f32 %v2823, %v3081
        %v3232 = vadd.f32 %v2828, %v3086
        %v3233 = vadd.f32 %v2831, %v3089
        %v3234 = vadd.f32 %v2836, %v3094
        %v3235 = vadd.f32 %v2839, %v3097
        %v3236 = vadd.f32 %v2844, %v3102
        %v3237 = vadd.f32 %v2847, %v3105
        %v3238 = vadd.f32 %v2852, %v3110
        %v3239 = vadd.f32 %v2855, %v3113
        %v3240 = vadd.f32 %v2860, %v3118
        %v3241 = vadd.f32 %v2863, %v3121
        %v3242 = vadd.f32 %v2868, %v3126
        %v3243 = vadd.f32 %v2871, %v3129
        %v3244 = vadd.f32 %v2876, %v3134
        %v3245 = vadd.f32 %v2879, %v3137
        %v3246 = vadd.f32 %v2884, %v3142
        %v3247 = vadd.f32 %v2887, %v3145
        %v3248 = vadd.f32 %v2892, %v3150
        %v3249 = vadd.f32 %v2895, %v3153
        %v3250 = vadd.f32 %v2900, %v3158
        %v3251 = vadd.f32 %v2903, %v3161
        %v3252 = vadd.f32 %v2908, %v3166
        %v3253 = vadd.f32 %v2911, %v3169
        %v3254 = vadd.f32 %v2916, %v3174
        %v3255 = vadd.f32 %v2919, %v3177
        %v3256 = vadd.f32 %v2924, %v3182
        %v3257 = vadd.f32 %v2927, %v3185
        %v3258 = vadd.f32 %v2932, %v3190
        %v3259 = vadd.f32 %v2935, %v3193
        %v3260 = vadd.f32 %v2940, %v3198
        %v3261 = vadd.f32 %v2943, %v3201
        %v3262 = vadd.f32 %v2948, %v3206
        %v3263 = vadd.f32 %v2951, %v3209
        %v3264 = vadd.f32 %v2956, %v3214
        %v3265 = vadd.f32 %v2959, %v3217
        %v3266 = vadd.f32 %v2964, %v3222
        %v3267 = vadd.f32 %v2967, %v3225
        %v3268 = vadd.f32 %v3228, %v3229
        %v3269 = vadd.f32 %v3268, %v3230
        %v3270 = vadd.f32 %v3269, %v3231
        %v3271 = vadd.f32 %v3270, %v3232
        %v3272 = vadd.f32 %v3271, %v3233
        %v3273 = vadd.f32 %v3272, %v3234
        %v3274 = vadd.f32 %v3273, %v3235
        %v3275 = vadd.f32 %v3274, %v3236
        %v3276 = vadd.f32 %v3275, %v3237
        %v3277 = vadd.f32 %v3276, %v3238
        %v3278 = vadd.f32 %v3277, %v3239
        %v3279 = vadd.f32 %v3278, %v3240
        %v3280 = vadd.f32 %v3279, %v3241
        %v3281 = vadd.f32 %v3280, %v3242
        %v3282 = vadd.f32 %v3281, %v3243
        %v3283 = vadd.f32 %v3282, %v3244
        %v3284 = vadd.f32 %v3283, %v3245
        %v3285 = vadd.f32 %v3284, %v3246
        %v3286 = vadd.f32 %v3285, %v3247
        %v3287 = vadd.f32 %v3286, %v3248
        %v3288 = vadd.f32 %v3287, %v3249
        %v3289 = vadd.f32 %v3288, %v3250
        %v3290 = vadd.f32 %v3289, %v3251
        %v3291 = vadd.f32 %v3290, %v3252
        %v3292 = vadd.f32 %v3291, %v3253
        %v3293 = vadd.f32 %v3292, %v3254
        %v3294 = vadd.f32 %v3293, %v3255
        %v3295 = vadd.f32 %v3294, %v3256
        %v3296 = vadd.f32 %v3295, %v3257
        %v3297 = vadd.f32 %v3296, %v3258
        %v3298 = vadd.f32 %v3297, %v3259
        %v3299 = vadd.f32 %v3298, %v3260
        %v3300 = vadd.f32 %v3299, %v3261
        %v3301 = vadd.f32 %v3300, %v3262
        %v3302 = vadd.f32 %v3301, %v3263
        %v3303 = vadd.f32 %v3302, %v3264
        %v3304 = vadd.f32 %v3303, %v3265
        %v3305 = vadd.f32 %v3304, %v3266
        %v3306 = vsel %vm1811, %v3267, 0.0
        %v3307 = vadd.f32 %v3305, %v3306
        %v3308 = vrot.slane %v3307, 4
        %v3309 = vadd.f32 %v3307, %v3308
        %v3310 = vrot.slane %v3309, 2
        %v3311 = vadd.f32 %v3309, %v3310
        %v3312 = vrot.slane %v3311, 1
        %v3313 = vadd.f32 %v3311, %v3312
        %v3314 = vmul.f32 %v3313, %v1820
        %v3315 = vmul.f32 %v3228, %v3228
        %v3316 = vmul.f32 %v3229, %v3229
        %v3317 = vmul.f32 %v3230, %v3230
        %v3318 = vmul.f32 %v3231, %v3231
        %v3319 = vmul.f32 %v3232, %v3232
        %v3320 = vmul.f32 %v3233, %v3233
        %v3321 = vmul.f32 %v3234, %v3234
        %v3322 = vmul.f32 %v3235, %v3235
        %v3323 = vmul.f32 %v3236, %v3236
        %v3324 = vmul.f32 %v3237, %v3237
        %v3325 = vmul.f32 %v3238, %v3238
        %v3326 = vmul.f32 %v3239, %v3239
        %v3327 = vmul.f32 %v3240, %v3240
        %v3328 = vmul.f32 %v3241, %v3241
        %v3329 = vmul.f32 %v3242, %v3242
        %v3330 = vmul.f32 %v3243, %v3243
        %v3331 = vmul.f32 %v3244, %v3244
        %v3332 = vmul.f32 %v3245, %v3245
        %v3333 = vmul.f32 %v3246, %v3246
        %v3334 = vmul.f32 %v3247, %v3247
        %v3335 = vmul.f32 %v3248, %v3248
        %v3336 = vmul.f32 %v3249, %v3249
        %v3337 = vmul.f32 %v3250, %v3250
        %v3338 = vmul.f32 %v3251, %v3251
        %v3339 = vmul.f32 %v3252, %v3252
        %v3340 = vmul.f32 %v3253, %v3253
        %v3341 = vmul.f32 %v3254, %v3254
        %v3342 = vmul.f32 %v3255, %v3255
        %v3343 = vmul.f32 %v3256, %v3256
        %v3344 = vmul.f32 %v3257, %v3257
        %v3345 = vmul.f32 %v3258, %v3258
        %v3346 = vmul.f32 %v3259, %v3259
        %v3347 = vmul.f32 %v3260, %v3260
        %v3348 = vmul.f32 %v3261, %v3261
        %v3349 = vmul.f32 %v3262, %v3262
        %v3350 = vmul.f32 %v3263, %v3263
        %v3351 = vmul.f32 %v3264, %v3264
        %v3352 = vmul.f32 %v3265, %v3265
        %v3353 = vmul.f32 %v3266, %v3266
        %v3354 = vmul.f32 %v3267, %v3267
        %v3355 = vadd.f32 %v3315, %v3316
        %v3356 = vadd.f32 %v3355, %v3317
        %v3357 = vadd.f32 %v3356, %v3318
        %v3358 = vadd.f32 %v3357, %v3319
        %v3359 = vadd.f32 %v3358, %v3320
        %v3360 = vadd.f32 %v3359, %v3321
        %v3361 = vadd.f32 %v3360, %v3322
        %v3362 = vadd.f32 %v3361, %v3323
        %v3363 = vadd.f32 %v3362, %v3324
        %v3364 = vadd.f32 %v3363, %v3325
        %v3365 = vadd.f32 %v3364, %v3326
        %v3366 = vadd.f32 %v3365, %v3327
        %v3367 = vadd.f32 %v3366, %v3328
        %v3368 = vadd.f32 %v3367, %v3329
        %v3369 = vadd.f32 %v3368, %v3330
        %v3370 = vadd.f32 %v3369, %v3331
        %v3371 = vadd.f32 %v3370, %v3332
        %v3372 = vadd.f32 %v3371, %v3333
        %v3373 = vadd.f32 %v3372, %v3334
        %v3374 = vadd.f32 %v3373, %v3335
        %v3375 = vadd.f32 %v3374, %v3336
        %v3376 = vadd.f32 %v3375, %v3337
        %v3377 = vadd.f32 %v3376, %v3338
        %v3378 = vadd.f32 %v3377, %v3339
        %v3379 = vadd.f32 %v3378, %v3340
        %v3380 = vadd.f32 %v3379, %v3341
        %v3381 = vadd.f32 %v3380, %v3342
        %v3382 = vadd.f32 %v3381, %v3343
        %v3383 = vadd.f32 %v3382, %v3344
        %v3384 = vadd.f32 %v3383, %v3345
        %v3385 = vadd.f32 %v3384, %v3346
        %v3386 = vadd.f32 %v3385, %v3347
        %v3387 = vadd.f32 %v3386, %v3348
        %v3388 = vadd.f32 %v3387, %v3349
        %v3389 = vadd.f32 %v3388, %v3350
        %v3390 = vadd.f32 %v3389, %v3351
        %v3391 = vadd.f32 %v3390, %v3352
        %v3392 = vadd.f32 %v3391, %v3353
        %v3393 = vsel %vm1811, %v3354, 0.0
        %v3394 = vadd.f32 %v3392, %v3393
        %v3395 = vrot.slane %v3394, 4
        %v3396 = vadd.f32 %v3394, %v3395
        %v3397 = vrot.slane %v3396, 2
        %v3398 = vadd.f32 %v3396, %v3397
        %v3399 = vrot.slane %v3398, 1
        %v3400 = vadd.f32 %v3398, %v3399
        %v3401 = vmul.f32 %v3400, %v1820
        %v3402 = vmul.f32 %v3314, %v3314
        %v3403 = vsub.f32 %v3401, %v3402
        %v3404 = vadd.f32 %v3403, 1e-05
        %v3405 = vrsqrt.pop %v3404
        %v3406 = vsub.f32 0.0, %v3314
        %v3407 = vmul.f32 %v3406, %v3405
        %v3408 = vmul.f32 %v3228, %v3405
        %v3409 = vmul.f32 %v3229, %v3405
        %v3410 = vmul.f32 %v3230, %v3405
        %v3411 = vmul.f32 %v3231, %v3405
        %v3412 = vmul.f32 %v3232, %v3405
        %v3413 = vmul.f32 %v3233, %v3405
        %v3414 = vmul.f32 %v3234, %v3405
        %v3415 = vmul.f32 %v3235, %v3405
        %v3416 = vmul.f32 %v3236, %v3405
        %v3417 = vmul.f32 %v3237, %v3405
        %v3418 = vmul.f32 %v3238, %v3405
        %v3419 = vmul.f32 %v3239, %v3405
        %v3420 = vmul.f32 %v3240, %v3405
        %v3421 = vmul.f32 %v3241, %v3405
        %v3422 = vmul.f32 %v3242, %v3405
        %v3423 = vmul.f32 %v3243, %v3405
        %v3424 = vmul.f32 %v3244, %v3405
        %v3425 = vmul.f32 %v3245, %v3405
        %v3426 = vmul.f32 %v3246, %v3405
        %v3427 = vmul.f32 %v3247, %v3405
        %v3428 = vmul.f32 %v3248, %v3405
        %v3429 = vmul.f32 %v3249, %v3405
        %v3430 = vmul.f32 %v3250, %v3405
        %v3431 = vmul.f32 %v3251, %v3405
        %v3432 = vmul.f32 %v3252, %v3405
        %v3433 = vmul.f32 %v3253, %v3405
        %v3434 = vmul.f32 %v3254, %v3405
        %v3435 = vmul.f32 %v3255, %v3405
        %v3436 = vmul.f32 %v3256, %v3405
        %v3437 = vmul.f32 %v3257, %v3405
        %v3438 = vmul.f32 %v3258, %v3405
        %v3439 = vmul.f32 %v3259, %v3405
        %v3440 = vmul.f32 %v3260, %v3405
        %v3441 = vmul.f32 %v3261, %v3405
        %v3442 = vmul.f32 %v3262, %v3405
        %v3443 = vmul.f32 %v3263, %v3405
        %v3444 = vmul.f32 %v3264, %v3405
        %v3445 = vmul.f32 %v3265, %v3405
        %v3446 = vmul.f32 %v3266, %v3405
        %v3447 = vmul.f32 %v3267, %v3405
        %v3448 = vadd.f32 %v3408, %v3407
        %v3449 = vadd.f32 %v3409, %v3407
        %v3450 = vadd.f32 %v3410, %v3407
        %v3451 = vadd.f32 %v3411, %v3407
        %v3452 = vadd.f32 %v3412, %v3407
        %v3453 = vadd.f32 %v3413, %v3407
        %v3454 = vadd.f32 %v3414, %v3407
        %v3455 = vadd.f32 %v3415, %v3407
        %v3456 = vadd.f32 %v3416, %v3407
        %v3457 = vadd.f32 %v3417, %v3407
        %v3458 = vadd.f32 %v3418, %v3407
        %v3459 = vadd.f32 %v3419, %v3407
        %v3460 = vadd.f32 %v3420, %v3407
        %v3461 = vadd.f32 %v3421, %v3407
        %v3462 = vadd.f32 %v3422, %v3407
        %v3463 = vadd.f32 %v3423, %v3407
        %v3464 = vadd.f32 %v3424, %v3407
        %v3465 = vadd.f32 %v3425, %v3407
        %v3466 = vadd.f32 %v3426, %v3407
        %v3467 = vadd.f32 %v3427, %v3407
        %v3468 = vadd.f32 %v3428, %v3407
        %v3469 = vadd.f32 %v3429, %v3407
        %v3470 = vadd.f32 %v3430, %v3407
        %v3471 = vadd.f32 %v3431, %v3407
        %v3472 = vadd.f32 %v3432, %v3407
        %v3473 = vadd.f32 %v3433, %v3407
        %v3474 = vadd.f32 %v3434, %v3407
        %v3475 = vadd.f32 %v3435, %v3407
        %v3476 = vadd.f32 %v3436, %v3407
        %v3477 = vadd.f32 %v3437, %v3407
        %v3478 = vadd.f32 %v3438, %v3407
        %v3479 = vadd.f32 %v3439, %v3407
        %v3480 = vadd.f32 %v3440, %v3407
        %v3481 = vadd.f32 %v3441, %v3407
        %v3482 = vadd.f32 %v3442, %v3407
        %v3483 = vadd.f32 %v3443, %v3407
        %v3484 = vadd.f32 %v3444, %v3407
        %v3485 = vadd.f32 %v3445, %v3407
        %v3486 = vadd.f32 %v3446, %v3407
        %v3487 = vadd.f32 %v3447, %v3407
        %s3488 = scalar_lea.vmem %s3, 320
        %v3489 = vld [vmem:[%s3488] sm:$0xff]
        %v3490 = vld [vmem:[%s3488 + $0x8] sm:$0xff]
        %v3491 = vld [vmem:[%s3488 + $0x10] sm:$0xff]
        %v3492 = vld [vmem:[%s3488 + $0x18] sm:$0xff]
        %v3493 = vld [vmem:[%s3488 + $0x20] sm:$0xff]
        %v3494 = vld [vmem:[%s3488 + $0x28] sm:$0xff]
        %v3495 = vld [vmem:[%s3488 + $0x30] sm:$0xff]
        %v3496 = vld [vmem:[%s3488 + $0x38] sm:$0xff]
        %v3497 = vld [vmem:[%s3488 + $0x40] sm:$0xff]
        %v3498 = vld [vmem:[%s3488 + $0x48] sm:$0xff]
        %v3499 = vld [vmem:[%s3488 + $0x50] sm:$0xff]
        %v3500 = vld [vmem:[%s3488 + $0x58] sm:$0xff]
        %v3501 = vld [vmem:[%s3488 + $0x60] sm:$0xff]
        %v3502 = vld [vmem:[%s3488 + $0x68] sm:$0xff]
        %v3503 = vld [vmem:[%s3488 + $0x70] sm:$0xff]
        %v3504 = vld [vmem:[%s3488 + $0x78] sm:$0xff]
        %v3505 = vld [vmem:[%s3488 + $0x80] sm:$0xff]
        %v3506 = vld [vmem:[%s3488 + $0x88] sm:$0xff]
        %v3507 = vld [vmem:[%s3488 + $0x90] sm:$0xff]
        %v3508 = vld [vmem:[%s3488 + $0x98] sm:$0xff]
        %v3509 = vld [vmem:[%s3488 + $0xa0] sm:$0xff]
        %v3510 = vld [vmem:[%s3488 + $0xa8] sm:$0xff]
        %v3511 = vld [vmem:[%s3488 + $0xb0] sm:$0xff]
        %v3512 = vld [vmem:[%s3488 + $0xb8] sm:$0xff]
        %v3513 = vld [vmem:[%s3488 + $0xc0] sm:$0xff]
        %v3514 = vld [vmem:[%s3488 + $0xc8] sm:$0xff]
        %v3515 = vld [vmem:[%s3488 + $0xd0] sm:$0xff]
        %v3516 = vld [vmem:[%s3488 + $0xd8] sm:$0xff]
        %v3517 = vld [vmem:[%s3488 + $0xe0] sm:$0xff]
        %v3518 = vld [vmem:[%s3488 + $0xe8] sm:$0xff]
        %v3519 = vld [vmem:[%s3488 + $0xf0] sm:$0xff]
        %v3520 = vld [vmem:[%s3488 + $0xf8] sm:$0xff]
        %v3521 = vld [vmem:[%s3488 + $0x100] sm:$0xff]
        %v3522 = vld [vmem:[%s3488 + $0x108] sm:$0xff]
        %v3523 = vld [vmem:[%s3488 + $0x110] sm:$0xff]
        %v3524 = vld [vmem:[%s3488 + $0x118] sm:$0xff]
        %v3525 = vld [vmem:[%s3488 + $0x120] sm:$0xff]
        %v3526 = vld [vmem:[%s3488 + $0x128] sm:$0xff]
        %v3527 = vld [vmem:[%s3488 + $0x130] sm:$0xff]
        %v3528 = vld [vmem:[%s3488 + $0x138] sm:$0x1]
        %v3529 = vmul.f32 %v3448, %v3489
        %v3530 = vmul.f32 %v3449, %v3490
        %v3531 = vmul.f32 %v3450, %v3491
        %v3532 = vmul.f32 %v3451, %v3492
        %v3533 = vmul.f32 %v3452, %v3493
        %v3534 = vmul.f32 %v3453, %v3494
        %v3535 = vmul.f32 %v3454, %v3495
        %v3536 = vmul.f32 %v3455, %v3496
        %v3537 = vmul.f32 %v3456, %v3497
        %v3538 = vmul.f32 %v3457, %v3498
        %v3539 = vmul.f32 %v3458, %v3499
        %v3540 = vmul.f32 %v3459, %v3500
        %v3541 = vmul.f32 %v3460, %v3501
        %v3542 = vmul.f32 %v3461, %v3502
        %v3543 = vmul.f32 %v3462, %v3503
        %v3544 = vmul.f32 %v3463, %v3504
        %v3545 = vmul.f32 %v3464, %v3505
        %v3546 = vmul.f32 %v3465, %v3506
        %v3547 = vmul.f32 %v3466, %v3507
        %v3548 = vmul.f32 %v3467, %v3508
        %v3549 = vmul.f32 %v3468, %v3509
        %v3550 = vmul.f32 %v3469, %v3510
        %v3551 = vmul.f32 %v3470, %v3511
        %v3552 = vmul.f32 %v3471, %v3512
        %v3553 = vmul.f32 %v3472, %v3513
        %v3554 = vmul.f32 %v3473, %v3514
        %v3555 = vmul.f32 %v3474, %v3515
        %v3556 = vmul.f32 %v3475, %v3516
        %v3557 = vmul.f32 %v3476, %v3517
        %v3558 = vmul.f32 %v3477, %v3518
        %v3559 = vmul.f32 %v3478, %v3519
        %v3560 = vmul.f32 %v3479, %v3520
        %v3561 = vmul.f32 %v3480, %v3521
        %v3562 = vmul.f32 %v3481, %v3522
        %v3563 = vmul.f32 %v3482, %v3523
        %v3564 = vmul.f32 %v3483, %v3524
        %v3565 = vmul.f32 %v3484, %v3525
        %v3566 = vmul.f32 %v3485, %v3526
        %v3567 = vmul.f32 %v3486, %v3527
        %v3568 = vmul.f32 %v3487, %v3528
        %s3569 = scalar_lea.vmem %s4, 320
        %v3570 = vld [vmem:[%s3569] sm:$0xff]
        %v3571 = vld [vmem:[%s3569 + $0x8] sm:$0xff]
        %v3572 = vld [vmem:[%s3569 + $0x10] sm:$0xff]
        %v3573 = vld [vmem:[%s3569 + $0x18] sm:$0xff]
        %v3574 = vld [vmem:[%s3569 + $0x20] sm:$0xff]
        %v3575 = vld [vmem:[%s3569 + $0x28] sm:$0xff]
        %v3576 = vld [vmem:[%s3569 + $0x30] sm:$0xff]
        %v3577 = vld [vmem:[%s3569 + $0x38] sm:$0xff]
        %v3578 = vld [vmem:[%s3569 + $0x40] sm:$0xff]
        %v3579 = vld [vmem:[%s3569 + $0x48] sm:$0xff]
        %v3580 = vld [vmem:[%s3569 + $0x50] sm:$0xff]
        %v3581 = vld [vmem:[%s3569 + $0x58] sm:$0xff]
        %v3582 = vld [vmem:[%s3569 + $0x60] sm:$0xff]
        %v3583 = vld [vmem:[%s3569 + $0x68] sm:$0xff]
        %v3584 = vld [vmem:[%s3569 + $0x70] sm:$0xff]
        %v3585 = vld [vmem:[%s3569 + $0x78] sm:$0xff]
        %v3586 = vld [vmem:[%s3569 + $0x80] sm:$0xff]
        %v3587 = vld [vmem:[%s3569 + $0x88] sm:$0xff]
        %v3588 = vld [vmem:[%s3569 + $0x90] sm:$0xff]
        %v3589 = vld [vmem:[%s3569 + $0x98] sm:$0xff]
        %v3590 = vld [vmem:[%s3569 + $0xa0] sm:$0xff]
        %v3591 = vld [vmem:[%s3569 + $0xa8] sm:$0xff]
        %v3592 = vld [vmem:[%s3569 + $0xb0] sm:$0xff]
        %v3593 = vld [vmem:[%s3569 + $0xb8] sm:$0xff]
        %v3594 = vld [vmem:[%s3569 + $0xc0] sm:$0xff]
        %v3595 = vld [vmem:[%s3569 + $0xc8] sm:$0xff]
        %v3596 = vld [vmem:[%s3569 + $0xd0] sm:$0xff]
        %v3597 = vld [vmem:[%s3569 + $0xd8] sm:$0xff]
        %v3598 = vld [vmem:[%s3569 + $0xe0] sm:$0xff]
        %v3599 = vld [vmem:[%s3569 + $0xe8] sm:$0xff]
        %v3600 = vld [vmem:[%s3569 + $0xf0] sm:$0xff]
        %v3601 = vld [vmem:[%s3569 + $0xf8] sm:$0xff]
        %v3602 = vld [vmem:[%s3569 + $0x100] sm:$0xff]
        %v3603 = vld [vmem:[%s3569 + $0x108] sm:$0xff]
        %v3604 = vld [vmem:[%s3569 + $0x110] sm:$0xff]
        %v3605 = vld [vmem:[%s3569 + $0x118] sm:$0xff]
        %v3606 = vld [vmem:[%s3569 + $0x120] sm:$0xff]
        %v3607 = vld [vmem:[%s3569 + $0x128] sm:$0xff]
        %v3608 = vld [vmem:[%s3569 + $0x130] sm:$0xff]
        %v3609 = vld [vmem:[%s3569 + $0x138] sm:$0x1]
        %v3610 = vadd.f32 %v3529, %v3570
        %v3611 = vadd.f32 %v3530, %v3571
        %v3612 = vadd.f32 %v3531, %v3572
        %v3613 = vadd.f32 %v3532, %v3573
        %v3614 = vadd.f32 %v3533, %v3574
        %v3615 = vadd.f32 %v3534, %v3575
        %v3616 = vadd.f32 %v3535, %v3576
        %v3617 = vadd.f32 %v3536, %v3577
        %v3618 = vadd.f32 %v3537, %v3578
        %v3619 = vadd.f32 %v3538, %v3579
        %v3620 = vadd.f32 %v3539, %v3580
        %v3621 = vadd.f32 %v3540, %v3581
        %v3622 = vadd.f32 %v3541, %v3582
        %v3623 = vadd.f32 %v3542, %v3583
        %v3624 = vadd.f32 %v3543, %v3584
        %v3625 = vadd.f32 %v3544, %v3585
        %v3626 = vadd.f32 %v3545, %v3586
        %v3627 = vadd.f32 %v3546, %v3587
        %v3628 = vadd.f32 %v3547, %v3588
        %v3629 = vadd.f32 %v3548, %v3589
        %v3630 = vadd.f32 %v3549, %v3590
        %v3631 = vadd.f32 %v3550, %v3591
        %v3632 = vadd.f32 %v3551, %v3592
        %v3633 = vadd.f32 %v3552, %v3593
        %v3634 = vadd.f32 %v3553, %v3594
        %v3635 = vadd.f32 %v3554, %v3595
        %v3636 = vadd.f32 %v3555, %v3596
        %v3637 = vadd.f32 %v3556, %v3597
        %v3638 = vadd.f32 %v3557, %v3598
        %v3639 = vadd.f32 %v3558, %v3599
        %v3640 = vadd.f32 %v3559, %v3600
        %v3641 = vadd.f32 %v3560, %v3601
        %v3642 = vadd.f32 %v3561, %v3602
        %v3643 = vadd.f32 %v3562, %v3603
        %v3644 = vadd.f32 %v3563, %v3604
        %v3645 = vadd.f32 %v3564, %v3605
        %v3646 = vadd.f32 %v3565, %v3606
        %v3647 = vadd.f32 %v3566, %v3607
        %v3648 = vadd.f32 %v3567, %v3608
        %v3649 = vadd.f32 %v3568, %v3609
        %vm3650 = vcmp.ge.f32.partialorder %v3610, 0.0
        %vm3651 = vcmp.ge.f32.partialorder %v3611, 0.0
        %vm3652 = vcmp.ge.f32.partialorder %v3612, 0.0
        %vm3653 = vcmp.ge.f32.partialorder %v3613, 0.0
        %vm3654 = vcmp.ge.f32.partialorder %v3614, 0.0
        %vm3655 = vcmp.ge.f32.partialorder %v3615, 0.0
        %vm3656 = vcmp.ge.f32.partialorder %v3616, 0.0
        %vm3657 = vcmp.ge.f32.partialorder %v3617, 0.0
        %vm3658 = vcmp.ge.f32.partialorder %v3618, 0.0
        %vm3659 = vcmp.ge.f32.partialorder %v3619, 0.0
        %vm3660 = vcmp.ge.f32.partialorder %v3620, 0.0
        %vm3661 = vcmp.ge.f32.partialorder %v3621, 0.0
        %vm3662 = vcmp.ge.f32.partialorder %v3622, 0.0
        %vm3663 = vcmp.ge.f32.partialorder %v3623, 0.0
        %vm3664 = vcmp.ge.f32.partialorder %v3624, 0.0
        %vm3665 = vcmp.ge.f32.partialorder %v3625, 0.0
        %vm3666 = vcmp.ge.f32.partialorder %v3626, 0.0
        %vm3667 = vcmp.ge.f32.partialorder %v3627, 0.0
        %vm3668 = vcmp.ge.f32.partialorder %v3628, 0.0
        %vm3669 = vcmp.ge.f32.partialorder %v3629, 0.0
        %vm3670 = vcmp.ge.f32.partialorder %v3630, 0.0
        %vm3671 = vcmp.ge.f32.partialorder %v3631, 0.0
        %vm3672 = vcmp.ge.f32.partialorder %v3632, 0.0
        %vm3673 = vcmp.ge.f32.partialorder %v3633, 0.0
        %vm3674 = vcmp.ge.f32.partialorder %v3634, 0.0
        %vm3675 = vcmp.ge.f32.partialorder %v3635, 0.0
        %vm3676 = vcmp.ge.f32.partialorder %v3636, 0.0
        %vm3677 = vcmp.ge.f32.partialorder %v3637, 0.0
        %vm3678 = vcmp.ge.f32.partialorder %v3638, 0.0
        %vm3679 = vcmp.ge.f32.partialorder %v3639, 0.0
        %vm3680 = vcmp.ge.f32.partialorder %v3640, 0.0
        %vm3681 = vcmp.ge.f32.partialorder %v3641, 0.0
        %vm3682 = vcmp.ge.f32.partialorder %v3642, 0.0
        %vm3683 = vcmp.ge.f32.partialorder %v3643, 0.0
        %vm3684 = vcmp.ge.f32.partialorder %v3644, 0.0
        %vm3685 = vcmp.ge.f32.partialorder %v3645, 0.0
        %vm3686 = vcmp.ge.f32.partialorder %v3646, 0.0
        %vm3687 = vcmp.ge.f32.partialorder %v3647, 0.0
        %vm3688 = vcmp.ge.f32.partialorder %v3648, 0.0
        %vm3689 = vcmp.ge.f32.partialorder %v3649, 0.0
        %v3690 = vmul.f32 %v3610, 0.2
        %v3691 = vmul.f32 %v3611, 0.2
        %v3692 = vmul.f32 %v3612, 0.2
        %v3693 = vmul.f32 %v3613, 0.2
        %v3694 = vmul.f32 %v3614, 0.2
        %v3695 = vmul.f32 %v3615, 0.2
        %v3696 = vmul.f32 %v3616, 0.2
        %v3697 = vmul.f32 %v3617, 0.2
        %v3698 = vmul.f32 %v3618, 0.2
        %v3699 = vmul.f32 %v3619, 0.2
        %v3700 = vmul.f32 %v3620, 0.2
        %v3701 = vmul.f32 %v3621, 0.2
        %v3702 = vmul.f32 %v3622, 0.2
        %v3703 = vmul.f32 %v3623, 0.2
        %v3704 = vmul.f32 %v3624, 0.2
        %v3705 = vmul.f32 %v3625, 0.2
        %v3706 = vmul.f32 %v3626, 0.2
        %v3707 = vmul.f32 %v3627, 0.2
        %v3708 = vmul.f32 %v3628, 0.2
        %v3709 = vmul.f32 %v3629, 0.2
        %v3710 = vmul.f32 %v3630, 0.2
        %v3711 = vmul.f32 %v3631, 0.2
        %v3712 = vmul.f32 %v3632, 0.2
        %v3713 = vmul.f32 %v3633, 0.2
        %v3714 = vmul.f32 %v3634, 0.2
        %v3715 = vmul.f32 %v3635, 0.2
        %v3716 = vmul.f32 %v3636, 0.2
        %v3717 = vmul.f32 %v3637, 0.2
        %v3718 = vmul.f32 %v3638, 0.2
        %v3719 = vmul.f32 %v3639, 0.2
        %v3720 = vmul.f32 %v3640, 0.2
        %v3721 = vmul.f32 %v3641, 0.2
        %v3722 = vmul.f32 %v3642, 0.2
        %v3723 = vmul.f32 %v3643, 0.2
        %v3724 = vmul.f32 %v3644, 0.2
        %v3725 = vmul.f32 %v3645, 0.2
        %v3726 = vmul.f32 %v3646, 0.2
        %v3727 = vmul.f32 %v3647, 0.2
        %v3728 = vmul.f32 %v3648, 0.2
        %v3729 = vmul.f32 %v3649, 0.2
        %v3730 = vsel %vm3650, %v3610, %v3690
        %v3731 = vsel %vm3651, %v3611, %v3691
        %v3732 = vsel %vm3652, %v3612, %v3692
        %v3733 = vsel %vm3653, %v3613, %v3693
        %v3734 = vsel %vm3654, %v3614, %v3694
        %v3735 = vsel %vm3655, %v3615, %v3695
        %v3736 = vsel %vm3656, %v3616, %v3696
        %v3737 = vsel %vm3657, %v3617, %v3697
        %v3738 = vsel %vm3658, %v3618, %v3698
        %v3739 = vsel %vm3659, %v3619, %v3699
        %v3740 = vsel %vm3660, %v3620, %v3700
        %v3741 = vsel %vm3661, %v3621, %v3701
        %v3742 = vsel %vm3662, %v3622, %v3702
        %v3743 = vsel %vm3663, %v3623, %v3703
        %v3744 = vsel %vm3664, %v3624, %v3704
        %v3745 = vsel %vm3665, %v3625, %v3705
        %v3746 = vsel %vm3666, %v3626, %v3706
        %v3747 = vsel %vm3667, %v3627, %v3707
        %v3748 = vsel %vm3668, %v3628, %v3708
        %v3749 = vsel %vm3669, %v3629, %v3709
        %v3750 = vsel %vm3670, %v3630, %v3710
        %v3751 = vsel %vm3671, %v3631, %v3711
        %v3752 = vsel %vm3672, %v3632, %v3712
        %v3753 = vsel %vm3673, %v3633, %v3713
        %v3754 = vsel %vm3674, %v3634, %v3714
        %v3755 = vsel %vm3675, %v3635, %v3715
        %v3756 = vsel %vm3676, %v3636, %v3716
        %v3757 = vsel %vm3677, %v3637, %v3717
        %v3758 = vsel %vm3678, %v3638, %v3718
        %v3759 = vsel %vm3679, %v3639, %v3719
        %v3760 = vsel %vm3680, %v3640, %v3720
        %v3761 = vsel %vm3681, %v3641, %v3721
        %v3762 = vsel %vm3682, %v3642, %v3722
        %v3763 = vsel %vm3683, %v3643, %v3723
        %v3764 = vsel %vm3684, %v3644, %v3724
        %v3765 = vsel %vm3685, %v3645, %v3725
        %v3766 = vsel %vm3686, %v3646, %v3726
        %v3767 = vsel %vm3687, %v3647, %v3727
        %v3768 = vsel %vm3688, %v3648, %v3728
        %v3769 = vsel %vm3689, %v3649, %v3729
        %3770 = vst [vmem:[#allocation2 + $0x8] sm:$0xff] %v3730
        %3771 = vst [vmem:[#allocation2 + $0x10] sm:$0xff] %v3731
        %3772 = vst [vmem:[#allocation2 + $0x18] sm:$0xff] %v3732
        %3773 = vst [vmem:[#allocation2 + $0x20] sm:$0xff] %v3733
        %3774 = vst [vmem:[#allocation2 + $0x28] sm:$0xff] %v3734
        %3775 = vst [vmem:[#allocation2 + $0x30] sm:$0xff] %v3735
        %3776 = vst [vmem:[#allocation2 + $0x38] sm:$0xff] %v3736
        %3777 = vst [vmem:[#allocation2 + $0x40] sm:$0xff] %v3737
        %3778 = vst [vmem:[#allocation2 + $0x48] sm:$0xff] %v3738
        %3779 = vst [vmem:[#allocation2 + $0x50] sm:$0xff] %v3739
        %3780 = vst [vmem:[#allocation2 + $0x58] sm:$0xff] %v3740
        %3781 = vst [vmem:[#allocation2 + $0x60] sm:$0xff] %v3741
        %3782 = vst [vmem:[#allocation2 + $0x68] sm:$0xff] %v3742
        %3783 = vst [vmem:[#allocation2 + $0x70] sm:$0xff] %v3743
        %3784 = vst [vmem:[#allocation2 + $0x78] sm:$0xff] %v3744
        %3785 = vst [vmem:[#allocation2 + $0x80] sm:$0xff] %v3745
        %3786 = vst [vmem:[#allocation2 + $0x88] sm:$0xff] %v3746
        %3787 = vst [vmem:[#allocation2 + $0x90] sm:$0xff] %v3747
        %3788 = vst [vmem:[#allocation2 + $0x98] sm:$0xff] %v3748
        %3789 = vst [vmem:[#allocation2 + $0xa0] sm:$0xff] %v3749
        %3790 = vst [vmem:[#allocation2 + $0xa8] sm:$0xff] %v3750
        %3791 = vst [vmem:[#allocation2 + $0xb0] sm:$0xff] %v3751
        %3792 = vst [vmem:[#allocation2 + $0xb8] sm:$0xff] %v3752
        %3793 = vst [vmem:[#allocation2 + $0xc0] sm:$0xff] %v3753
        %3794 = vst [vmem:[#allocation2 + $0xc8] sm:$0xff] %v3754
        %3795 = vst [vmem:[#allocation2 + $0xd0] sm:$0xff] %v3755
        %3796 = vst [vmem:[#allocation2 + $0xd8] sm:$0xff] %v3756
        %3797 = vst [vmem:[#allocation2 + $0xe0] sm:$0xff] %v3757
        %3798 = vst [vmem:[#allocation2 + $0xe8] sm:$0xff] %v3758
        %3799 = vst [vmem:[#allocation2 + $0xf0] sm:$0xff] %v3759
        %3800 = vst [vmem:[#allocation2 + $0xf8] sm:$0xff] %v3760
        %3801 = vst [vmem:[#allocation2 + $0x100] sm:$0xff] %v3761
        %3802 = vst [vmem:[#allocation2 + $0x108] sm:$0xff] %v3762
        %3803 = vst [vmem:[#allocation2 + $0x110] sm:$0xff] %v3763
        %3804 = vst [vmem:[#allocation2 + $0x118] sm:$0xff] %v3764
        %3805 = vst [vmem:[#allocation2 + $0x120] sm:$0xff] %v3765
        %3806 = vst [vmem:[#allocation2 + $0x128] sm:$0xff] %v3766
        %3807 = vst [vmem:[#allocation2 + $0x130] sm:$0xff] %v3767
        %3808 = vst [vmem:[#allocation2 + $0x138] sm:$0xff] %v3768
        %3809 = vst [vmem:[#allocation2 + $0x140] sm:$0x1] %v3769
        %v3810 = vld [vmem:[#allocation2 + $0x7] sm:$0xff]
        %v3811 = vld [vmem:[#allocation2 + $0xf] sm:$0xff]
        %v3812 = vld [vmem:[#allocation2 + $0x17] sm:$0xff]
        %v3813 = vld [vmem:[#allocation2 + $0x1f] sm:$0xff]
        %v3814 = vld [vmem:[#allocation2 + $0x27] sm:$0xff]
        %v3815 = vld [vmem:[#allocation2 + $0x2f] sm:$0xff]
        %v3816 = vld [vmem:[#allocation2 + $0x37] sm:$0xff]
        %v3817 = vld [vmem:[#allocation2 + $0x3f] sm:$0xff]
        %v3818 = vld [vmem:[#allocation2 + $0x47] sm:$0xff]
        %v3819 = vld [vmem:[#allocation2 + $0x4f] sm:$0xff]
        %v3820 = vld [vmem:[#allocation2 + $0x57] sm:$0xff]
        %v3821 = vld [vmem:[#allocation2 + $0x5f] sm:$0xff]
        %v3822 = vld [vmem:[#allocation2 + $0x67] sm:$0xff]
        %v3823 = vld [vmem:[#allocation2 + $0x6f] sm:$0xff]
        %v3824 = vld [vmem:[#allocation2 + $0x77] sm:$0xff]
        %v3825 = vld [vmem:[#allocation2 + $0x7f] sm:$0xff]
        %v3826 = vld [vmem:[#allocation2 + $0x87] sm:$0xff]
        %v3827 = vld [vmem:[#allocation2 + $0x8f] sm:$0xff]
        %v3828 = vld [vmem:[#allocation2 + $0x97] sm:$0xff]
        %v3829 = vld [vmem:[#allocation2 + $0x9f] sm:$0xff]
        %v3830 = vld [vmem:[#allocation2 + $0xa7] sm:$0xff]
        %v3831 = vld [vmem:[#allocation2 + $0xaf] sm:$0xff]
        %v3832 = vld [vmem:[#allocation2 + $0xb7] sm:$0xff]
        %v3833 = vld [vmem:[#allocation2 + $0xbf] sm:$0xff]
        %v3834 = vld [vmem:[#allocation2 + $0xc7] sm:$0xff]
        %v3835 = vld [vmem:[#allocation2 + $0xcf] sm:$0xff]
        %v3836 = vld [vmem:[#allocation2 + $0xd7] sm:$0xff]
        %v3837 = vld [vmem:[#allocation2 + $0xdf] sm:$0xff]
        %v3838 = vld [vmem:[#allocation2 + $0xe7] sm:$0xff]
        %v3839 = vld [vmem:[#allocation2 + $0xef] sm:$0xff]
        %v3840 = vld [vmem:[#allocation2 + $0xf7] sm:$0xff]
        %v3841 = vld [vmem:[#allocation2 + $0xff] sm:$0xff]
        %v3842 = vld [vmem:[#allocation2 + $0x107] sm:$0xff]
        %v3843 = vld [vmem:[#allocation2 + $0x10f] sm:$0xff]
        %v3844 = vld [vmem:[#allocation2 + $0x117] sm:$0xff]
        %v3845 = vld [vmem:[#allocation2 + $0x11f] sm:$0xff]
        %v3846 = vld [vmem:[#allocation2 + $0x127] sm:$0xff]
        %v3847 = vld [vmem:[#allocation2 + $0x12f] sm:$0xff]
        %v3848 = vld [vmem:[#allocation2 + $0x137] sm:$0xff]
        %v3849 = vld [vmem:[#allocation2 + $0x13f] sm:$0x1]
        %v3850 = vpack.c.bf16 %v3811, %v3810
        %v3851 = vpack.c.bf16 %v3813, %v3812
        %v3852 = vpack.c.bf16 %v3815, %v3814
        %v3853 = vpack.c.bf16 %v3817, %v3816
        %v3854 = vpack.c.bf16 %v3819, %v3818
        %v3855 = vpack.c.bf16 %v3821, %v3820
        %v3856 = vpack.c.bf16 %v3823, %v3822
        %v3857 = vpack.c.bf16 %v3825, %v3824
        %v3858 = vpack.c.bf16 %v3827, %v3826
        %v3859 = vpack.c.bf16 %v3829, %v3828
        %v3860 = vpack.c.bf16 %v3831, %v3830
        %v3861 = vpack.c.bf16 %v3833, %v3832
        %v3862 = vpack.c.bf16 %v3835, %v3834
        %v3863 = vpack.c.bf16 %v3837, %v3836
        %v3864 = vpack.c.bf16 %v3839, %v3838
        %v3865 = vpack.c.bf16 %v3841, %v3840
        %v3866 = vpack.c.bf16 %v3843, %v3842
        %v3867 = vpack.c.bf16 %v3845, %v3844
        %v3868 = vpack.c.bf16 %v3847, %v3846
        %v3869 = vpack.c.bf16 %v3849, %v3848
        %v3870 = vpack.c.bf16 %v3731, %v3730
        %v3871 = vpack.c.bf16 %v3733, %v3732
        %v3872 = vpack.c.bf16 %v3735, %v3734
        %v3873 = vpack.c.bf16 %v3737, %v3736
        %v3874 = vpack.c.bf16 %v3739, %v3738
        %v3875 = vpack.c.bf16 %v3741, %v3740
        %v3876 = vpack.c.bf16 %v3743, %v3742
        %v3877 = vpack.c.bf16 %v3745, %v3744
        %v3878 = vpack.c.bf16 %v3747, %v3746
        %v3879 = vpack.c.bf16 %v3749, %v3748
        %v3880 = vpack.c.bf16 %v3751, %v3750
        %v3881 = vpack.c.bf16 %v3753, %v3752
        %v3882 = vpack.c.bf16 %v3755, %v3754
        %v3883 = vpack.c.bf16 %v3757, %v3756
        %v3884 = vpack.c.bf16 %v3759, %v3758
        %v3885 = vpack.c.bf16 %v3761, %v3760
        %v3886 = vpack.c.bf16 %v3763, %v3762
        %v3887 = vpack.c.bf16 %v3765, %v3764
        %v3888 = vpack.c.bf16 %v3767, %v3766
        %v3889 = vpack.c.bf16 %v3769, %v3768
        %v3890 = vld [vmem:[#allocation2 + $0x9] sm:$0xff]
        %v3891 = vld [vmem:[#allocation2 + $0x11] sm:$0xff]
        %v3892 = vld [vmem:[#allocation2 + $0x19] sm:$0xff]
        %v3893 = vld [vmem:[#allocation2 + $0x21] sm:$0xff]
        %v3894 = vld [vmem:[#allocation2 + $0x29] sm:$0xff]
        %v3895 = vld [vmem:[#allocation2 + $0x31] sm:$0xff]
        %v3896 = vld [vmem:[#allocation2 + $0x39] sm:$0xff]
        %v3897 = vld [vmem:[#allocation2 + $0x41] sm:$0xff]
        %v3898 = vld [vmem:[#allocation2 + $0x49] sm:$0xff]
        %v3899 = vld [vmem:[#allocation2 + $0x51] sm:$0xff]
        %v3900 = vld [vmem:[#allocation2 + $0x59] sm:$0xff]
        %v3901 = vld [vmem:[#allocation2 + $0x61] sm:$0xff]
        %v3902 = vld [vmem:[#allocation2 + $0x69] sm:$0xff]
        %v3903 = vld [vmem:[#allocation2 + $0x71] sm:$0xff]
        %v3904 = vld [vmem:[#allocation2 + $0x79] sm:$0xff]
        %v3905 = vld [vmem:[#allocation2 + $0x81] sm:$0xff]
        %v3906 = vld [vmem:[#allocation2 + $0x89] sm:$0xff]
        %v3907 = vld [vmem:[#allocation2 + $0x91] sm:$0xff]
        %v3908 = vld [vmem:[#allocation2 + $0x99] sm:$0xff]
        %v3909 = vld [vmem:[#allocation2 + $0xa1] sm:$0xff]
        %v3910 = vld [vmem:[#allocation2 + $0xa9] sm:$0xff]
        %v3911 = vld [vmem:[#allocation2 + $0xb1] sm:$0xff]
        %v3912 = vld [vmem:[#allocation2 + $0xb9] sm:$0xff]
        %v3913 = vld [vmem:[#allocation2 + $0xc1] sm:$0xff]
        %v3914 = vld [vmem:[#allocation2 + $0xc9] sm:$0xff]
        %v3915 = vld [vmem:[#allocation2 + $0xd1] sm:$0xff]
        %v3916 = vld [vmem:[#allocation2 + $0xd9] sm:$0xff]
        %v3917 = vld [vmem:[#allocation2 + $0xe1] sm:$0xff]
        %v3918 = vld [vmem:[#allocation2 + $0xe9] sm:$0xff]
        %v3919 = vld [vmem:[#allocation2 + $0xf1] sm:$0xff]
        %v3920 = vld [vmem:[#allocation2 + $0xf9] sm:$0xff]
        %v3921 = vld [vmem:[#allocation2 + $0x101] sm:$0xff]
        %v3922 = vld [vmem:[#allocation2 + $0x109] sm:$0xff]
        %v3923 = vld [vmem:[#allocation2 + $0x111] sm:$0xff]
        %v3924 = vld [vmem:[#allocation2 + $0x119] sm:$0xff]
        %v3925 = vld [vmem:[#allocation2 + $0x121] sm:$0xff]
        %v3926 = vld [vmem:[#allocation2 + $0x129] sm:$0xff]
        %v3927 = vld [vmem:[#allocation2 + $0x131] sm:$0xff]
        %v3928 = vld [vmem:[#allocation2 + $0x139] sm:$0xff]
        %v3929 = vld [vmem:[#allocation2 + $0x141] sm:$0x1]
        %v3930 = vpack.c.bf16 %v3891, %v3890
        %v3931 = vpack.c.bf16 %v3893, %v3892
        %v3932 = vpack.c.bf16 %v3895, %v3894
        %v3933 = vpack.c.bf16 %v3897, %v3896
        %v3934 = vpack.c.bf16 %v3899, %v3898
        %v3935 = vpack.c.bf16 %v3901, %v3900
        %v3936 = vpack.c.bf16 %v3903, %v3902
        %v3937 = vpack.c.bf16 %v3905, %v3904
        %v3938 = vpack.c.bf16 %v3907, %v3906
        %v3939 = vpack.c.bf16 %v3909, %v3908
        %v3940 = vpack.c.bf16 %v3911, %v3910
        %v3941 = vpack.c.bf16 %v3913, %v3912
        %v3942 = vpack.c.bf16 %v3915, %v3914
        %v3943 = vpack.c.bf16 %v3917, %v3916
        %v3944 = vpack.c.bf16 %v3919, %v3918
        %v3945 = vpack.c.bf16 %v3921, %v3920
        %v3946 = vpack.c.bf16 %v3923, %v3922
        %v3947 = vpack.c.bf16 %v3925, %v3924
        %v3948 = vpack.c.bf16 %v3927, %v3926
        %v3949 = vpack.c.bf16 %v3929, %v3928
        %s3950 = scalar_lea.vmem %s2, 192
        %v3951 = vld [vmem:[%s3950] sm:$0xf]
        %v3952 = vld [vmem:[%s3950 + $0x4] sm:$0xf]
        %v3953 = vld [vmem:[%s3950 + $0x8] sm:$0xf]
        %v3954 = vld [vmem:[%s3950 + $0xc] sm:$0xf]
        %v3955 = vld [vmem:[%s3950 + $0x10] sm:$0xf]
        %v3956 = vld [vmem:[%s3950 + $0x14] sm:$0xf]
        %v3957 = vld [vmem:[%s3950 + $0x18] sm:$0xf]
        %v3958 = vld [vmem:[%s3950 + $0x1c] sm:$0xf]
        %v3959 = vld [vmem:[%s3950 + $0x20] sm:$0xf]
        %v3960 = vld [vmem:[%s3950 + $0x24] sm:$0xf]
        %v3961 = vld [vmem:[%s3950 + $0x28] sm:$0xf]
        %v3962 = vld [vmem:[%s3950 + $0x2c] sm:$0xf]
        %v3963 = vld [vmem:[%s3950 + $0x30] sm:$0xf]
        %v3964 = vld [vmem:[%s3950 + $0x34] sm:$0xf]
        %v3965 = vld [vmem:[%s3950 + $0x38] sm:$0xf]
        %v3966 = vld [vmem:[%s3950 + $0x3c] sm:$0xf]
        %s3967 = scalar_lea.vmem %s2, 256
        %v3968 = vld [vmem:[%s3967] sm:$0xf]
        %v3969 = vld [vmem:[%s3967 + $0x4] sm:$0xf]
        %v3970 = vld [vmem:[%s3967 + $0x8] sm:$0xf]
        %v3971 = vld [vmem:[%s3967 + $0xc] sm:$0xf]
        %v3972 = vld [vmem:[%s3967 + $0x10] sm:$0xf]
        %v3973 = vld [vmem:[%s3967 + $0x14] sm:$0xf]
        %v3974 = vld [vmem:[%s3967 + $0x18] sm:$0xf]
        %v3975 = vld [vmem:[%s3967 + $0x1c] sm:$0xf]
        %v3976 = vld [vmem:[%s3967 + $0x20] sm:$0xf]
        %v3977 = vld [vmem:[%s3967 + $0x24] sm:$0xf]
        %v3978 = vld [vmem:[%s3967 + $0x28] sm:$0xf]
        %v3979 = vld [vmem:[%s3967 + $0x2c] sm:$0xf]
        %v3980 = vld [vmem:[%s3967 + $0x30] sm:$0xf]
        %v3981 = vld [vmem:[%s3967 + $0x34] sm:$0xf]
        %v3982 = vld [vmem:[%s3967 + $0x38] sm:$0xf]
        %v3983 = vld [vmem:[%s3967 + $0x3c] sm:$0xf]
        %v4000 = vunpack.c.l.b16 %v3968
        %v4001 = vunpack.c.l.b16 %v3969
        %v4002 = vunpack.c.l.b16 %v3970
        %v4003 = vunpack.c.l.b16 %v3971
        %v4004 = vunpack.c.l.b16 %v3972
        %v4005 = vunpack.c.l.b16 %v3973
        %v4006 = vunpack.c.l.b16 %v3974
        %v4007 = vunpack.c.l.b16 %v3975
        %v4008 = vunpack.c.l.b16 %v3976
        %v4009 = vunpack.c.l.b16 %v3977
        %v4010 = vunpack.c.l.b16 %v3978
        %v4011 = vunpack.c.l.b16 %v3979
        %v4012 = vunpack.c.l.b16 %v3980
        %v4013 = vunpack.c.l.b16 %v3981
        %v4014 = vunpack.c.l.b16 %v3982
        %v4015 = vunpack.c.l.b16 %v3983
        %v4016 = vpack.c.b16 %v4001, %v4000
        %v4017 = vpack.c.b16 %v4003, %v4002
        %v4018 = vpack.c.b16 %v4005, %v4004
        %v4019 = vpack.c.b16 %v4007, %v4006
        %v4020 = vpack.c.b16 %v4009, %v4008
        %v4021 = vpack.c.b16 %v4011, %v4010
        %v4022 = vpack.c.b16 %v4013, %v4012
        %v4023 = vpack.c.b16 %v4015, %v4014
        %4032 = vmatprep.subr.bf16.mxu0 0
        %4033 = vmatpush1.bf16.msra.mxu0 %v4023
        %4034 = vmatprep.subr.bf16.mxu0 0
        %4035 = vmatpush1.bf16.msra.mxu0 %v4022
        %4036 = vmatprep.subr.bf16.mxu0 0
        %4037 = vmatpush1.bf16.msra.mxu0 %v4021
        %4038 = vmatprep.subr.bf16.mxu0 0
        %4039 = vmatpush1.bf16.msra.mxu0 %v4020
        %4040 = vmatprep.subr.bf16.mxu0 0
        %4041 = vmatpush1.bf16.msra.mxu0 %v4019
        %4042 = vmatprep.subr.bf16.mxu0 0
        %4043 = vmatpush1.bf16.msra.mxu0 %v4018
        %4044 = vmatprep.subr.bf16.mxu0 0
        %4045 = vmatpush1.bf16.msra.mxu0 %v4017
        %4046 = vmatprep.subr.bf16.mxu0 0
        %4047 = vmatpush1.bf16.msra.mxu0 %v4016
        %4048 = vmatprep.subr.bf16.mxu0 0
        %4049 = vmatpush2.bf16.msra.mxu0 0
        %4050 = vmatprep.subr.bf16.mxu0 0
        %4051 = vmatpush2.bf16.msra.mxu0 0
        %4052 = vmatprep.subr.bf16.mxu0 0
        %4053 = vmatpush2.bf16.msra.mxu0 0
        %4054 = vmatprep.subr.bf16.mxu0 0
        %4055 = vmatpush2.bf16.msra.mxu0 0
        %4056 = vmatprep.subr.bf16.mxu0 0
        %4057 = vmatpush2.bf16.msra.mxu0 0
        %4058 = vmatprep.subr.bf16.mxu0 0
        %4059 = vmatpush2.bf16.msra.mxu0 0
        %4060 = vmatprep.subr.bf16.mxu0 0
        %4061 = vmatpush2.bf16.msra.mxu0 0
        %4062 = vmatprep.subr.bf16.mxu0 0
        %4063 = vmatpush2.bf16.msra.mxu0 0
        %4064 = vmatprep.mubr.bf16.mxu0 0
        %4065 = vmatmul.mubr.bf16.gmra.mxu0 %v3870
        %v4066 = vpop.f32.mrf.mxu0
        %v4067 = vadd.f32 0.0, %v4066
        %v4068 = vpop.f32.mrf.mxu0
        %v4069 = vpop.f32.mrf.mxu0
        %v4070 = vadd.f32 0.0, %v4069
        %v4071 = vpop.f32.mrf.mxu0
        %4072 = vmatprep.mubr.bf16.mxu0 0
        %4073 = vmatmul.mubr.bf16.gmra.mxu0 %v3871
        %v4074 = vpop.f32.mrf.mxu0
        %v4075 = vadd.f32 0.0, %v4074
        %v4076 = vpop.f32.mrf.mxu0
        %v4077 = vpop.f32.mrf.mxu0
        %v4078 = vadd.f32 0.0, %v4077
        %v4079 = vpop.f32.mrf.mxu0
        %4080 = vmatprep.mubr.bf16.mxu0 0
        %4081 = vmatmul.mubr.bf16.gmra.mxu0 %v3872
        %v4082 = vpop.f32.mrf.mxu0
        %v4083 = vadd.f32 0.0, %v4082
        %v4084 = vpop.f32.mrf.mxu0
        %v4085 = vpop.f32.mrf.mxu0
        %v4086 = vadd.f32 0.0, %v4085
        %v4087 = vpop.f32.mrf.mxu0
        %4088 = vmatprep.mubr.bf16.mxu0 0
        %4089 = vmatmul.mubr.bf16.gmra.mxu0 %v3873
        %v4090 = vpop.f32.mrf.mxu0
        %v4091 = vadd.f32 0.0, %v4090
        %v4092 = vpop.f32.mrf.mxu0
        %v4093 = vpop.f32.mrf.mxu0
        %v4094 = vadd.f32 0.0, %v4093
        %v4095 = vpop.f32.mrf.mxu0
        %4096 = vmatprep.mubr.bf16.mxu0 0
        %4097 = vmatmul.mubr.bf16.gmra.mxu0 %v3874
        %v4098 = vpop.f32.mrf.mxu0
        %v4099 = vadd.f32 0.0, %v4098
        %v4100 = vpop.f32.mrf.mxu0
        %v4101 = vpop.f32.mrf.mxu0
        %v4102 = vadd.f32 0.0, %v4101
        %v4103 = vpop.f32.mrf.mxu0
        %4104 = vmatprep.mubr.bf16.mxu0 0
        %4105 = vmatmul.mubr.bf16.gmra.mxu0 %v3875
        %v4106 = vpop.f32.mrf.mxu0
        %v4107 = vadd.f32 0.0, %v4106
        %v4108 = vpop.f32.mrf.mxu0
        %v4109 = vpop.f32.mrf.mxu0
        %v4110 = vadd.f32 0.0, %v4109
        %v4111 = vpop.f32.mrf.mxu0
        %4112 = vmatprep.mubr.bf16.mxu0 0
        %4113 = vmatmul.mubr.bf16.gmra.mxu0 %v3876
        %v4114 = vpop.f32.mrf.mxu0
        %v4115 = vadd.f32 0.0, %v4114
        %v4116 = vpop.f32.mrf.mxu0
        %v4117 = vpop.f32.mrf.mxu0
        %v4118 = vadd.f32 0.0, %v4117
        %v4119 = vpop.f32.mrf.mxu0
        %4120 = vmatprep.mubr.bf16.mxu0 0
        %4121 = vmatmul.mubr.bf16.gmra.mxu0 %v3877
        %v4122 = vpop.f32.mrf.mxu0
        %v4123 = vadd.f32 0.0, %v4122
        %v4124 = vpop.f32.mrf.mxu0
        %v4125 = vpop.f32.mrf.mxu0
        %v4126 = vadd.f32 0.0, %v4125
        %v4127 = vpop.f32.mrf.mxu0
        %4128 = vmatprep.mubr.bf16.mxu0 0
        %4129 = vmatmul.mubr.bf16.gmra.mxu0 %v3878
        %v4130 = vpop.f32.mrf.mxu0
        %v4131 = vadd.f32 0.0, %v4130
        %v4132 = vpop.f32.mrf.mxu0
        %v4133 = vpop.f32.mrf.mxu0
        %v4134 = vadd.f32 0.0, %v4133
        %v4135 = vpop.f32.mrf.mxu0
        %4136 = vmatprep.mubr.bf16.mxu0 0
        %4137 = vmatmul.mubr.bf16.gmra.mxu0 %v3879
        %v4138 = vpop.f32.mrf.mxu0
        %v4139 = vadd.f32 0.0, %v4138
        %v4140 = vpop.f32.mrf.mxu0
        %v4141 = vpop.f32.mrf.mxu0
        %v4142 = vadd.f32 0.0, %v4141
        %v4143 = vpop.f32.mrf.mxu0
        %4144 = vmatprep.mubr.bf16.mxu0 0
        %4145 = vmatmul.mubr.bf16.gmra.mxu0 %v3880
        %v4146 = vpop.f32.mrf.mxu0
        %v4147 = vadd.f32 0.0, %v4146
        %v4148 = vpop.f32.mrf.mxu0
        %v4149 = vpop.f32.mrf.mxu0
        %v4150 = vadd.f32 0.0, %v4149
        %v4151 = vpop.f32.mrf.mxu0
        %4152 = vmatprep.mubr.bf16.mxu0 0
        %4153 = vmatmul.mubr.bf16.gmra.mxu0 %v3881
        %v4154 = vpop.f32.mrf.mxu0
        %v4155 = vadd.f32 0.0, %v4154
        %v4156 = vpop.f32.mrf.mxu0
        %v4157 = vpop.f32.mrf.mxu0
        %v4158 = vadd.f32 0.0, %v4157
        %v4159 = vpop.f32.mrf.mxu0
        %4160 = vmatprep.mubr.bf16.mxu0 0
        %4161 = vmatmul.mubr.bf16.gmra.mxu0 %v3882
        %v4162 = vpop.f32.mrf.mxu0
        %v4163 = vadd.f32 0.0, %v4162
        %v4164 = vpop.f32.mrf.mxu0
        %v4165 = vpop.f32.mrf.mxu0
        %v4166 = vadd.f32 0.0, %v4165
        %v4167 = vpop.f32.mrf.mxu0
        %4168 = vmatprep.mubr.bf16.mxu0 0
        %4169 = vmatmul.mubr.bf16.gmra.mxu0 %v3883
        %v4170 = vpop.f32.mrf.mxu0
        %v4171 = vadd.f32 0.0, %v4170
        %v4172 = vpop.f32.mrf.mxu0
        %v4173 = vpop.f32.mrf.mxu0
        %v4174 = vadd.f32 0.0, %v4173
        %v4175 = vpop.f32.mrf.mxu0
        %4176 = vmatprep.mubr.bf16.mxu0 0
        %4177 = vmatmul.mubr.bf16.gmra.mxu0 %v3884
        %v4178 = vpop.f32.mrf.mxu0
        %v4179 = vadd.f32 0.0, %v4178
        %v4180 = vpop.f32.mrf.mxu0
        %v4181 = vpop.f32.mrf.mxu0
        %v4182 = vadd.f32 0.0, %v4181
        %v4183 = vpop.f32.mrf.mxu0
        %4184 = vmatprep.mubr.bf16.mxu0 0
        %4185 = vmatmul.mubr.bf16.gmra.mxu0 %v3885
        %v4186 = vpop.f32.mrf.mxu0
        %v4187 = vadd.f32 0.0, %v4186
        %v4188 = vpop.f32.mrf.mxu0
        %v4189 = vpop.f32.mrf.mxu0
        %v4190 = vadd.f32 0.0, %v4189
        %v4191 = vpop.f32.mrf.mxu0
        %4192 = vmatprep.mubr.bf16.mxu0 0
        %4193 = vmatmul.mubr.bf16.gmra.mxu0 %v3886
        %v4194 = vpop.f32.mrf.mxu0
        %v4195 = vadd.f32 0.0, %v4194
        %v4196 = vpop.f32.mrf.mxu0
        %v4197 = vpop.f32.mrf.mxu0
        %v4198 = vadd.f32 0.0, %v4197
        %v4199 = vpop.f32.mrf.mxu0
        %4200 = vmatprep.mubr.bf16.mxu0 0
        %4201 = vmatmul.mubr.bf16.gmra.mxu0 %v3887
        %v4202 = vpop.f32.mrf.mxu0
        %v4203 = vadd.f32 0.0, %v4202
        %v4204 = vpop.f32.mrf.mxu0
        %v4205 = vpop.f32.mrf.mxu0
        %v4206 = vadd.f32 0.0, %v4205
        %v4207 = vpop.f32.mrf.mxu0
        %4208 = vmatprep.mubr.bf16.mxu0 0
        %4209 = vmatmul.mubr.bf16.gmra.mxu0 %v3888
        %v4210 = vpop.f32.mrf.mxu0
        %v4211 = vadd.f32 0.0, %v4210
        %v4212 = vpop.f32.mrf.mxu0
        %v4213 = vpop.f32.mrf.mxu0
        %v4214 = vadd.f32 0.0, %v4213
        %v4215 = vpop.f32.mrf.mxu0
        %4216 = vmatprep.mubr.bf16.mxu0 0
        %4217 = vmatmul.mubr.bf16.gmra.mxu0 %v3889
        %v4218 = vpop.f32.mrf.mxu0
        %v4219 = vadd.f32 0.0, %v4218
        %v4220 = vpop.f32.mrf.mxu0
        %v4221 = vpop.f32.mrf.mxu0
        %v4222 = vadd.f32 0.0, %v4221
        %v4223 = vpop.f32.mrf.mxu0
        %4224 = vdwg.mxu0
        %v4241 = vunpack.c.l.b16 %v3951
        %v4242 = vunpack.c.l.b16 %v3952
        %v4243 = vunpack.c.l.b16 %v3953
        %v4244 = vunpack.c.l.b16 %v3954
        %v4245 = vunpack.c.l.b16 %v3955
        %v4246 = vunpack.c.l.b16 %v3956
        %v4247 = vunpack.c.l.b16 %v3957
        %v4248 = vunpack.c.l.b16 %v3958
        %v4249 = vunpack.c.l.b16 %v3959
        %v4250 = vunpack.c.l.b16 %v3960
        %v4251 = vunpack.c.l.b16 %v3961
        %v4252 = vunpack.c.l.b16 %v3962
        %v4253 = vunpack.c.l.b16 %v3963
        %v4254 = vunpack.c.l.b16 %v3964
        %v4255 = vunpack.c.l.b16 %v3965
        %v4256 = vunpack.c.l.b16 %v3966
        %v4257 = vpack.c.b16 %v4242, %v4241
        %v4258 = vpack.c.b16 %v4244, %v4243
        %v4259 = vpack.c.b16 %v4246, %v4245
        %v4260 = vpack.c.b16 %v4248, %v4247
        %v4261 = vpack.c.b16 %v4250, %v4249
        %v4262 = vpack.c.b16 %v4252, %v4251
        %v4263 = vpack.c.b16 %v4254, %v4253
        %v4264 = vpack.c.b16 %v4256, %v4255
        %4273 = vmatprep.subr.bf16.mxu0 0
        %4274 = vmatpush1.bf16.msra.mxu0 %v4264
        %4275 = vmatprep.subr.bf16.mxu0 0
        %4276 = vmatpush1.bf16.msra.mxu0 %v4263
        %4277 = vmatprep.subr.bf16.mxu0 0
        %4278 = vmatpush1.bf16.msra.mxu0 %v4262
        %4279 = vmatprep.subr.bf16.mxu0 0
        %4280 = vmatpush1.bf16.msra.mxu0 %v4261
        %4281 = vmatprep.subr.bf16.mxu0 0
        %4282 = vmatpush1.bf16.msra.mxu0 %v4260
        %4283 = vmatprep.subr.bf16.mxu0 0
        %4284 = vmatpush1.bf16.msra.mxu0 %v4259
        %4285 = vmatprep.subr.bf16.mxu0 0
        %4286 = vmatpush1.bf16.msra.mxu0 %v4258
        %4287 = vmatprep.subr.bf16.mxu0 0
        %4288 = vmatpush1.bf16.msra.mxu0 %v4257
        %4289 = vmatprep.subr.bf16.mxu0 0
        %4290 = vmatpush2.bf16.msra.mxu0 0
        %4291 = vmatprep.subr.bf16.mxu0 0
        %4292 = vmatpush2.bf16.msra.mxu0 0
        %4293 = vmatprep.subr.bf16.mxu0 0
        %4294 = vmatpush2.bf16.msra.mxu0 0
        %4295 = vmatprep.subr.bf16.mxu0 0
        %4296 = vmatpush2.bf16.msra.mxu0 0
        %4297 = vmatprep.subr.bf16.mxu0 0
        %4298 = vmatpush2.bf16.msra.mxu0 0
        %4299 = vmatprep.subr.bf16.mxu0 0
        %4300 = vmatpush2.bf16.msra.mxu0 0
        %4301 = vmatprep.subr.bf16.mxu0 0
        %4302 = vmatpush2.bf16.msra.mxu0 0
        %4303 = vmatprep.subr.bf16.mxu0 0
        %4304 = vmatpush2.bf16.msra.mxu0 0
        %4305 = vmatprep.mubr.bf16.mxu0 0
        %4306 = vmatmul.mubr.bf16.gmra.mxu0 %v3850
        %v4307 = vpop.f32.mrf.mxu0
        %v4308 = vadd.f32 %v4067, %v4307
        %v4309 = vpop.f32.mrf.mxu0
        %v4310 = vpop.f32.mrf.mxu0
        %v4311 = vadd.f32 %v4070, %v4310
        %v4312 = vpop.f32.mrf.mxu0
        %4313 = vmatprep.mubr.bf16.mxu0 0
        %4314 = vmatmul.mubr.bf16.gmra.mxu0 %v3851
        %v4315 = vpop.f32.mrf.mxu0
        %v4316 = vadd.f32 %v4075, %v4315
        %v4317 = vpop.f32.mrf.mxu0
        %v4318 = vpop.f32.mrf.mxu0
        %v4319 = vadd.f32 %v4078, %v4318
        %v4320 = vpop.f32.mrf.mxu0
        %4321 = vmatprep.mubr.bf16.mxu0 0
        %4322 = vmatmul.mubr.bf16.gmra.mxu0 %v3852
        %v4323 = vpop.f32.mrf.mxu0
        %v4324 = vadd.f32 %v4083, %v4323
        %v4325 = vpop.f32.mrf.mxu0
        %v4326 = vpop.f32.mrf.mxu0
        %v4327 = vadd.f32 %v4086, %v4326
        %v4328 = vpop.f32.mrf.mxu0
        %4329 = vmatprep.mubr.bf16.mxu0 0
        %4330 = vmatmul.mubr.bf16.gmra.mxu0 %v3853
        %v4331 = vpop.f32.mrf.mxu0
        %v4332 = vadd.f32 %v4091, %v4331
        %v4333 = vpop.f32.mrf.mxu0
        %v4334 = vpop.f32.mrf.mxu0
        %v4335 = vadd.f32 %v4094, %v4334
        %v4336 = vpop.f32.mrf.mxu0
        %4337 = vmatprep.mubr.bf16.mxu0 0
        %4338 = vmatmul.mubr.bf16.gmra.mxu0 %v3854
        %v4339 = vpop.f32.mrf.mxu0
        %v4340 = vadd.f32 %v4099, %v4339
        %v4341 = vpop.f32.mrf.mxu0
        %v4342 = vpop.f32.mrf.mxu0
        %v4343 = vadd.f32 %v4102, %v4342
        %v4344 = vpop.f32.mrf.mxu0
        %4345 = vmatprep.mubr.bf16.mxu0 0
        %4346 = vmatmul.mubr.bf16.gmra.mxu0 %v3855
        %v4347 = vpop.f32.mrf.mxu0
        %v4348 = vadd.f32 %v4107, %v4347
        %v4349 = vpop.f32.mrf.mxu0
        %v4350 = vpop.f32.mrf.mxu0
        %v4351 = vadd.f32 %v4110, %v4350
        %v4352 = vpop.f32.mrf.mxu0
        %4353 = vmatprep.mubr.bf16.mxu0 0
        %4354 = vmatmul.mubr.bf16.gmra.mxu0 %v3856
        %v4355 = vpop.f32.mrf.mxu0
        %v4356 = vadd.f32 %v4115, %v4355
        %v4357 = vpop.f32.mrf.mxu0
        %v4358 = vpop.f32.mrf.mxu0
        %v4359 = vadd.f32 %v4118, %v4358
        %v4360 = vpop.f32.mrf.mxu0
        %4361 = vmatprep.mubr.bf16.mxu0 0
        %4362 = vmatmul.mubr.bf16.gmra.mxu0 %v3857
        %v4363 = vpop.f32.mrf.mxu0
        %v4364 = vadd.f32 %v4123, %v4363
        %v4365 = vpop.f32.mrf.mxu0
        %v4366 = vpop.f32.mrf.mxu0
        %v4367 = vadd.f32 %v4126, %v4366
        %v4368 = vpop.f32.mrf.mxu0
        %4369 = vmatprep.mubr.bf16.mxu0 0
        %4370 = vmatmul.mubr.bf16.gmra.mxu0 %v3858
        %v4371 = vpop.f32.mrf.mxu0
        %v4372 = vadd.f32 %v4131, %v4371
        %v4373 = vpop.f32.mrf.mxu0
        %v4374 = vpop.f32.mrf.mxu0
        %v4375 = vadd.f32 %v4134, %v4374
        %v4376 = vpop.f32.mrf.mxu0
        %4377 = vmatprep.mubr.bf16.mxu0 0
        %4378 = vmatmul.mubr.bf16.gmra.mxu0 %v3859
        %v4379 = vpop.f32.mrf.mxu0
        %v4380 = vadd.f32 %v4139, %v4379
        %v4381 = vpop.f32.mrf.mxu0
        %v4382 = vpop.f32.mrf.mxu0
        %v4383 = vadd.f32 %v4142, %v4382
        %v4384 = vpop.f32.mrf.mxu0
        %4385 = vmatprep.mubr.bf16.mxu0 0
        %4386 = vmatmul.mubr.bf16.gmra.mxu0 %v3860
        %v4387 = vpop.f32.mrf.mxu0
        %v4388 = vadd.f32 %v4147, %v4387
        %v4389 = vpop.f32.mrf.mxu0
        %v4390 = vpop.f32.mrf.mxu0
        %v4391 = vadd.f32 %v4150, %v4390
        %v4392 = vpop.f32.mrf.mxu0
        %4393 = vmatprep.mubr.bf16.mxu0 0
        %4394 = vmatmul.mubr.bf16.gmra.mxu0 %v3861
        %v4395 = vpop.f32.mrf.mxu0
        %v4396 = vadd.f32 %v4155, %v4395
        %v4397 = vpop.f32.mrf.mxu0
        %v4398 = vpop.f32.mrf.mxu0
        %v4399 = vadd.f32 %v4158, %v4398
        %v4400 = vpop.f32.mrf.mxu0
        %4401 = vmatprep.mubr.bf16.mxu0 0
        %4402 = vmatmul.mubr.bf16.gmra.mxu0 %v3862
        %v4403 = vpop.f32.mrf.mxu0
        %v4404 = vadd.f32 %v4163, %v4403
        %v4405 = vpop.f32.mrf.mxu0
        %v4406 = vpop.f32.mrf.mxu0
        %v4407 = vadd.f32 %v4166, %v4406
        %v4408 = vpop.f32.mrf.mxu0
        %4409 = vmatprep.mubr.bf16.mxu0 0
        %4410 = vmatmul.mubr.bf16.gmra.mxu0 %v3863
        %v4411 = vpop.f32.mrf.mxu0
        %v4412 = vadd.f32 %v4171, %v4411
        %v4413 = vpop.f32.mrf.mxu0
        %v4414 = vpop.f32.mrf.mxu0
        %v4415 = vadd.f32 %v4174, %v4414
        %v4416 = vpop.f32.mrf.mxu0
        %4417 = vmatprep.mubr.bf16.mxu0 0
        %4418 = vmatmul.mubr.bf16.gmra.mxu0 %v3864
        %v4419 = vpop.f32.mrf.mxu0
        %v4420 = vadd.f32 %v4179, %v4419
        %v4421 = vpop.f32.mrf.mxu0
        %v4422 = vpop.f32.mrf.mxu0
        %v4423 = vadd.f32 %v4182, %v4422
        %v4424 = vpop.f32.mrf.mxu0
        %4425 = vmatprep.mubr.bf16.mxu0 0
        %4426 = vmatmul.mubr.bf16.gmra.mxu0 %v3865
        %v4427 = vpop.f32.mrf.mxu0
        %v4428 = vadd.f32 %v4187, %v4427
        %v4429 = vpop.f32.mrf.mxu0
        %v4430 = vpop.f32.mrf.mxu0
        %v4431 = vadd.f32 %v4190, %v4430
        %v4432 = vpop.f32.mrf.mxu0
        %4433 = vmatprep.mubr.bf16.mxu0 0
        %4434 = vmatmul.mubr.bf16.gmra.mxu0 %v3866
        %v4435 = vpop.f32.mrf.mxu0
        %v4436 = vadd.f32 %v4195, %v4435
        %v4437 = vpop.f32.mrf.mxu0
        %v4438 = vpop.f32.mrf.mxu0
        %v4439 = vadd.f32 %v4198, %v4438
        %v4440 = vpop.f32.mrf.mxu0
        %4441 = vmatprep.mubr.bf16.mxu0 0
        %4442 = vmatmul.mubr.bf16.gmra.mxu0 %v3867
        %v4443 = vpop.f32.mrf.mxu0
        %v4444 = vadd.f32 %v4203, %v4443
        %v4445 = vpop.f32.mrf.mxu0
        %v4446 = vpop.f32.mrf.mxu0
        %v4447 = vadd.f32 %v4206, %v4446
        %v4448 = vpop.f32.mrf.mxu0
        %4449 = vmatprep.mubr.bf16.mxu0 0
        %4450 = vmatmul.mubr.bf16.gmra.mxu0 %v3868
        %v4451 = vpop.f32.mrf.mxu0
        %v4452 = vadd.f32 %v4211, %v4451
        %v4453 = vpop.f32.mrf.mxu0
        %v4454 = vpop.f32.mrf.mxu0
        %v4455 = vadd.f32 %v4214, %v4454
        %v4456 = vpop.f32.mrf.mxu0
        %4457 = vmatprep.mubr.bf16.mxu0 0
        %4458 = vmatmul.mubr.bf16.gmra.mxu0 %v3869
        %v4459 = vpop.f32.mrf.mxu0
        %v4460 = vadd.f32 %v4219, %v4459
        %v4461 = vpop.f32.mrf.mxu0
        %v4462 = vpop.f32.mrf.mxu0
        %v4463 = vadd.f32 %v4222, %v4462
        %v4464 = vpop.f32.mrf.mxu0
        %4465 = vdwg.mxu0
        %s4466 = scalar_lea.vmem %s2, 320
        %v4467 = vld [vmem:[%s4466] sm:$0xf]
        %v4468 = vld [vmem:[%s4466 + $0x4] sm:$0xf]
        %v4469 = vld [vmem:[%s4466 + $0x8] sm:$0xf]
        %v4470 = vld [vmem:[%s4466 + $0xc] sm:$0xf]
        %v4471 = vld [vmem:[%s4466 + $0x10] sm:$0xf]
        %v4472 = vld [vmem:[%s4466 + $0x14] sm:$0xf]
        %v4473 = vld [vmem:[%s4466 + $0x18] sm:$0xf]
        %v4474 = vld [vmem:[%s4466 + $0x1c] sm:$0xf]
        %v4475 = vld [vmem:[%s4466 + $0x20] sm:$0xf]
        %v4476 = vld [vmem:[%s4466 + $0x24] sm:$0xf]
        %v4477 = vld [vmem:[%s4466 + $0x28] sm:$0xf]
        %v4478 = vld [vmem:[%s4466 + $0x2c] sm:$0xf]
        %v4479 = vld [vmem:[%s4466 + $0x30] sm:$0xf]
        %v4480 = vld [vmem:[%s4466 + $0x34] sm:$0xf]
        %v4481 = vld [vmem:[%s4466 + $0x38] sm:$0xf]
        %v4482 = vld [vmem:[%s4466 + $0x3c] sm:$0xf]
        %v4499 = vunpack.c.l.b16 %v4467
        %v4500 = vunpack.c.l.b16 %v4468
        %v4501 = vunpack.c.l.b16 %v4469
        %v4502 = vunpack.c.l.b16 %v4470
        %v4503 = vunpack.c.l.b16 %v4471
        %v4504 = vunpack.c.l.b16 %v4472
        %v4505 = vunpack.c.l.b16 %v4473
        %v4506 = vunpack.c.l.b16 %v4474
        %v4507 = vunpack.c.l.b16 %v4475
        %v4508 = vunpack.c.l.b16 %v4476
        %v4509 = vunpack.c.l.b16 %v4477
        %v4510 = vunpack.c.l.b16 %v4478
        %v4511 = vunpack.c.l.b16 %v4479
        %v4512 = vunpack.c.l.b16 %v4480
        %v4513 = vunpack.c.l.b16 %v4481
        %v4514 = vunpack.c.l.b16 %v4482
        %v4515 = vpack.c.b16 %v4500, %v4499
        %v4516 = vpack.c.b16 %v4502, %v4501
        %v4517 = vpack.c.b16 %v4504, %v4503
        %v4518 = vpack.c.b16 %v4506, %v4505
        %v4519 = vpack.c.b16 %v4508, %v4507
        %v4520 = vpack.c.b16 %v4510, %v4509
        %v4521 = vpack.c.b16 %v4512, %v4511
        %v4522 = vpack.c.b16 %v4514, %v4513
        %4531 = vmatprep.subr.bf16.mxu0 0
        %4532 = vmatpush1.bf16.msra.mxu0 %v4522
        %4533 = vmatprep.subr.bf16.mxu0 0
        %4534 = vmatpush1.bf16.msra.mxu0 %v4521
        %4535 = vmatprep.subr.bf16.mxu0 0
        %4536 = vmatpush1.bf16.msra.mxu0 %v4520
        %4537 = vmatprep.subr.bf16.mxu0 0
        %4538 = vmatpush1.bf16.msra.mxu0 %v4519
        %4539 = vmatprep.subr.bf16.mxu0 0
        %4540 = vmatpush1.bf16.msra.mxu0 %v4518
        %4541 = vmatprep.subr.bf16.mxu0 0
        %4542 = vmatpush1.bf16.msra.mxu0 %v4517
        %4543 = vmatprep.subr.bf16.mxu0 0
        %4544 = vmatpush1.bf16.msra.mxu0 %v4516
        %4545 = vmatprep.subr.bf16.mxu0 0
        %4546 = vmatpush1.bf16.msra.mxu0 %v4515
        %4547 = vmatprep.subr.bf16.mxu0 0
        %4548 = vmatpush2.bf16.msra.mxu0 0
        %4549 = vmatprep.subr.bf16.mxu0 0
        %4550 = vmatpush2.bf16.msra.mxu0 0
        %4551 = vmatprep.subr.bf16.mxu0 0
        %4552 = vmatpush2.bf16.msra.mxu0 0
        %4553 = vmatprep.subr.bf16.mxu0 0
        %4554 = vmatpush2.bf16.msra.mxu0 0
        %4555 = vmatprep.subr.bf16.mxu0 0
        %4556 = vmatpush2.bf16.msra.mxu0 0
        %4557 = vmatprep.subr.bf16.mxu0 0
        %4558 = vmatpush2.bf16.msra.mxu0 0
        %4559 = vmatprep.subr.bf16.mxu0 0
        %4560 = vmatpush2.bf16.msra.mxu0 0
        %4561 = vmatprep.subr.bf16.mxu0 0
        %4562 = vmatpush2.bf16.msra.mxu0 0
        %4563 = vmatprep.mubr.bf16.mxu0 0
        %4564 = vmatmul.mubr.bf16.gmra.mxu0 %v3930
        %v4565 = vpop.f32.mrf.mxu0
        %v4566 = vadd.f32 0.0, %v4565
        %v4567 = vpop.f32.mrf.mxu0
        %v4568 = vpop.f32.mrf.mxu0
        %v4569 = vadd.f32 0.0, %v4568
        %v4570 = vpop.f32.mrf.mxu0
        %4571 = vmatprep.mubr.bf16.mxu0 0
        %4572 = vmatmul.mubr.bf16.gmra.mxu0 %v3931
        %v4573 = vpop.f32.mrf.mxu0
        %v4574 = vadd.f32 0.0, %v4573
        %v4575 = vpop.f32.mrf.mxu0
        %v4576 = vpop.f32.mrf.mxu0
        %v4577 = vadd.f32 0.0, %v4576
        %v4578 = vpop.f32.mrf.mxu0
        %4579 = vmatprep.mubr.bf16.mxu0 0
        %4580 = vmatmul.mubr.bf16.gmra.mxu0 %v3932
        %v4581 = vpop.f32.mrf.mxu0
        %v4582 = vadd.f32 0.0, %v4581
        %v4583 = vpop.f32.mrf.mxu0
        %v4584 = vpop.f32.mrf.mxu0
        %v4585 = vadd.f32 0.0, %v4584
        %v4586 = vpop.f32.mrf.mxu0
        %4587 = vmatprep.mubr.bf16.mxu0 0
        %4588 = vmatmul.mubr.bf16.gmra.mxu0 %v3933
        %v4589 = vpop.f32.mrf.mxu0
        %v4590 = vadd.f32 0.0, %v4589
        %v4591 = vpop.f32.mrf.mxu0
        %v4592 = vpop.f32.mrf.mxu0
        %v4593 = vadd.f32 0.0, %v4592
        %v4594 = vpop.f32.mrf.mxu0
        %4595 = vmatprep.mubr.bf16.mxu0 0
        %4596 = vmatmul.mubr.bf16.gmra.mxu0 %v3934
        %v4597 = vpop.f32.mrf.mxu0
        %v4598 = vadd.f32 0.0, %v4597
        %v4599 = vpop.f32.mrf.mxu0
        %v4600 = vpop.f32.mrf.mxu0
        %v4601 = vadd.f32 0.0, %v4600
        %v4602 = vpop.f32.mrf.mxu0
        %4603 = vmatprep.mubr.bf16.mxu0 0
        %4604 = vmatmul.mubr.bf16.gmra.mxu0 %v3935
        %v4605 = vpop.f32.mrf.mxu0
        %v4606 = vadd.f32 0.0, %v4605
        %v4607 = vpop.f32.mrf.mxu0
        %v4608 = vpop.f32.mrf.mxu0
        %v4609 = vadd.f32 0.0, %v4608
        %v4610 = vpop.f32.mrf.mxu0
        %4611 = vmatprep.mubr.bf16.mxu0 0
        %4612 = vmatmul.mubr.bf16.gmra.mxu0 %v3936
        %v4613 = vpop.f32.mrf.mxu0
        %v4614 = vadd.f32 0.0, %v4613
        %v4615 = vpop.f32.mrf.mxu0
        %v4616 = vpop.f32.mrf.mxu0
        %v4617 = vadd.f32 0.0, %v4616
        %v4618 = vpop.f32.mrf.mxu0
        %4619 = vmatprep.mubr.bf16.mxu0 0
        %4620 = vmatmul.mubr.bf16.gmra.mxu0 %v3937
        %v4621 = vpop.f32.mrf.mxu0
        %v4622 = vadd.f32 0.0, %v4621
        %v4623 = vpop.f32.mrf.mxu0
        %v4624 = vpop.f32.mrf.mxu0
        %v4625 = vadd.f32 0.0, %v4624
        %v4626 = vpop.f32.mrf.mxu0
        %4627 = vmatprep.mubr.bf16.mxu0 0
        %4628 = vmatmul.mubr.bf16.gmra.mxu0 %v3938
        %v4629 = vpop.f32.mrf.mxu0
        %v4630 = vadd.f32 0.0, %v4629
        %v4631 = vpop.f32.mrf.mxu0
        %v4632 = vpop.f32.mrf.mxu0
        %v4633 = vadd.f32 0.0, %v4632
        %v4634 = vpop.f32.mrf.mxu0
        %4635 = vmatprep.mubr.bf16.mxu0 0
        %4636 = vmatmul.mubr.bf16.gmra.mxu0 %v3939
        %v4637 = vpop.f32.mrf.mxu0
        %v4638 = vadd.f32 0.0, %v4637
        %v4639 = vpop.f32.mrf.mxu0
        %v4640 = vpop.f32.mrf.mxu0
        %v4641 = vadd.f32 0.0, %v4640
        %v4642 = vpop.f32.mrf.mxu0
        %4643 = vmatprep.mubr.bf16.mxu0 0
        %4644 = vmatmul.mubr.bf16.gmra.mxu0 %v3940
        %v4645 = vpop.f32.mrf.mxu0
        %v4646 = vadd.f32 0.0, %v4645
        %v4647 = vpop.f32.mrf.mxu0
        %v4648 = vpop.f32.mrf.mxu0
        %v4649 = vadd.f32 0.0, %v4648
        %v4650 = vpop.f32.mrf.mxu0
        %4651 = vmatprep.mubr.bf16.mxu0 0
        %4652 = vmatmul.mubr.bf16.gmra.mxu0 %v3941
        %v4653 = vpop.f32.mrf.mxu0
        %v4654 = vadd.f32 0.0, %v4653
        %v4655 = vpop.f32.mrf.mxu0
        %v4656 = vpop.f32.mrf.mxu0
        %v4657 = vadd.f32 0.0, %v4656
        %v4658 = vpop.f32.mrf.mxu0
        %4659 = vmatprep.mubr.bf16.mxu0 0
        %4660 = vmatmul.mubr.bf16.gmra.mxu0 %v3942
        %v4661 = vpop.f32.mrf.mxu0
        %v4662 = vadd.f32 0.0, %v4661
        %v4663 = vpop.f32.mrf.mxu0
        %v4664 = vpop.f32.mrf.mxu0
        %v4665 = vadd.f32 0.0, %v4664
        %v4666 = vpop.f32.mrf.mxu0
        %4667 = vmatprep.mubr.bf16.mxu0 0
        %4668 = vmatmul.mubr.bf16.gmra.mxu0 %v3943
        %v4669 = vpop.f32.mrf.mxu0
        %v4670 = vadd.f32 0.0, %v4669
        %v4671 = vpop.f32.mrf.mxu0
        %v4672 = vpop.f32.mrf.mxu0
        %v4673 = vadd.f32 0.0, %v4672
        %v4674 = vpop.f32.mrf.mxu0
        %4675 = vmatprep.mubr.bf16.mxu0 0
        %4676 = vmatmul.mubr.bf16.gmra.mxu0 %v3944
        %v4677 = vpop.f32.mrf.mxu0
        %v4678 = vadd.f32 0.0, %v4677
        %v4679 = vpop.f32.mrf.mxu0
        %v4680 = vpop.f32.mrf.mxu0
        %v4681 = vadd.f32 0.0, %v4680
        %v4682 = vpop.f32.mrf.mxu0
        %4683 = vmatprep.mubr.bf16.mxu0 0
        %4684 = vmatmul.mubr.bf16.gmra.mxu0 %v3945
        %v4685 = vpop.f32.mrf.mxu0
        %v4686 = vadd.f32 0.0, %v4685
        %v4687 = vpop.f32.mrf.mxu0
        %v4688 = vpop.f32.mrf.mxu0
        %v4689 = vadd.f32 0.0, %v4688
        %v4690 = vpop.f32.mrf.mxu0
        %4691 = vmatprep.mubr.bf16.mxu0 0
        %4692 = vmatmul.mubr.bf16.gmra.mxu0 %v3946
        %v4693 = vpop.f32.mrf.mxu0
        %v4694 = vadd.f32 0.0, %v4693
        %v4695 = vpop.f32.mrf.mxu0
        %v4696 = vpop.f32.mrf.mxu0
        %v4697 = vadd.f32 0.0, %v4696
        %v4698 = vpop.f32.mrf.mxu0
        %4699 = vmatprep.mubr.bf16.mxu0 0
        %4700 = vmatmul.mubr.bf16.gmra.mxu0 %v3947
        %v4701 = vpop.f32.mrf.mxu0
        %v4702 = vadd.f32 0.0, %v4701
        %v4703 = vpop.f32.mrf.mxu0
        %v4704 = vpop.f32.mrf.mxu0
        %v4705 = vadd.f32 0.0, %v4704
        %v4706 = vpop.f32.mrf.mxu0
        %4707 = vmatprep.mubr.bf16.mxu0 0
        %4708 = vmatmul.mubr.bf16.gmra.mxu0 %v3948
        %v4709 = vpop.f32.mrf.mxu0
        %v4710 = vadd.f32 0.0, %v4709
        %v4711 = vpop.f32.mrf.mxu0
        %v4712 = vpop.f32.mrf.mxu0
        %v4713 = vadd.f32 0.0, %v4712
        %v4714 = vpop.f32.mrf.mxu0
        %4715 = vmatprep.mubr.bf16.mxu0 0
        %4716 = vmatmul.mubr.bf16.gmra.mxu0 %v3949
        %v4717 = vpop.f32.mrf.mxu0
        %v4718 = vadd.f32 0.0, %v4717
        %v4719 = vpop.f32.mrf.mxu0
        %v4720 = vpop.f32.mrf.mxu0
        %v4721 = vadd.f32 0.0, %v4720
        %v4722 = vpop.f32.mrf.mxu0
        %4723 = vdwg.mxu0
        %v4724 = vadd.f32 %v4308, %v4566
        %v4725 = vadd.f32 %v4311, %v4569
        %v4726 = vadd.f32 %v4316, %v4574
        %v4727 = vadd.f32 %v4319, %v4577
        %v4728 = vadd.f32 %v4324, %v4582
        %v4729 = vadd.f32 %v4327, %v4585
        %v4730 = vadd.f32 %v4332, %v4590
        %v4731 = vadd.f32 %v4335, %v4593
        %v4732 = vadd.f32 %v4340, %v4598
        %v4733 = vadd.f32 %v4343, %v4601
        %v4734 = vadd.f32 %v4348, %v4606
        %v4735 = vadd.f32 %v4351, %v4609
        %v4736 = vadd.f32 %v4356, %v4614
        %v4737 = vadd.f32 %v4359, %v4617
        %v4738 = vadd.f32 %v4364, %v4622
        %v4739 = vadd.f32 %v4367, %v4625
        %v4740 = vadd.f32 %v4372, %v4630
        %v4741 = vadd.f32 %v4375, %v4633
        %v4742 = vadd.f32 %v4380, %v4638
        %v4743 = vadd.f32 %v4383, %v4641
        %v4744 = vadd.f32 %v4388, %v4646
        %v4745 = vadd.f32 %v4391, %v4649
        %v4746 = vadd.f32 %v4396, %v4654
        %v4747 = vadd.f32 %v4399, %v4657
        %v4748 = vadd.f32 %v4404, %v4662
        %v4749 = vadd.f32 %v4407, %v4665
        %v4750 = vadd.f32 %v4412, %v4670
        %v4751 = vadd.f32 %v4415, %v4673
        %v4752 = vadd.f32 %v4420, %v4678
        %v4753 = vadd.f32 %v4423, %v4681
        %v4754 = vadd.f32 %v4428, %v4686
        %v4755 = vadd.f32 %v4431, %v4689
        %v4756 = vadd.f32 %v4436, %v4694
        %v4757 = vadd.f32 %v4439, %v4697
        %v4758 = vadd.f32 %v4444, %v4702
        %v4759 = vadd.f32 %v4447, %v4705
        %v4760 = vadd.f32 %v4452, %v4710
        %v4761 = vadd.f32 %v4455, %v4713
        %v4762 = vadd.f32 %v4460, %v4718
        %v4763 = vadd.f32 %v4463, %v4721
        %v4764 = vadd.f32 %v4724, %v4725
        %v4765 = vadd.f32 %v4764, %v4726
        %v4766 = vadd.f32 %v4765, %v4727
        %v4767 = vadd.f32 %v4766, %v4728
        %v4768 = vadd.f32 %v4767, %v4729
        %v4769 = vadd.f32 %v4768, %v4730
        %v4770 = vadd.f32 %v4769, %v4731
        %v4771 = vadd.f32 %v4770, %v4732
        %v4772 = vadd.f32 %v4771, %v4733
        %v4773 = vadd.f32 %v4772, %v4734
        %v4774 = vadd.f32 %v4773, %v4735
        %v4775 = vadd.f32 %v4774, %v4736
        %v4776 = vadd.f32 %v4775, %v4737
        %v4777 = vadd.f32 %v4776, %v4738
        %v4778 = vadd.f32 %v4777, %v4739
        %v4779 = vadd.f32 %v4778, %v4740
        %v4780 = vadd.f32 %v4779, %v4741
        %v4781 = vadd.f32 %v4780, %v4742
        %v4782 = vadd.f32 %v4781, %v4743
        %v4783 = vadd.f32 %v4782, %v4744
        %v4784 = vadd.f32 %v4783, %v4745
        %v4785 = vadd.f32 %v4784, %v4746
        %v4786 = vadd.f32 %v4785, %v4747
        %v4787 = vadd.f32 %v4786, %v4748
        %v4788 = vadd.f32 %v4787, %v4749
        %v4789 = vadd.f32 %v4788, %v4750
        %v4790 = vadd.f32 %v4789, %v4751
        %v4791 = vadd.f32 %v4790, %v4752
        %v4792 = vadd.f32 %v4791, %v4753
        %v4793 = vadd.f32 %v4792, %v4754
        %v4794 = vadd.f32 %v4793, %v4755
        %v4795 = vadd.f32 %v4794, %v4756
        %v4796 = vadd.f32 %v4795, %v4757
        %v4797 = vadd.f32 %v4796, %v4758
        %v4798 = vadd.f32 %v4797, %v4759
        %v4799 = vadd.f32 %v4798, %v4760
        %v4800 = vadd.f32 %v4799, %v4761
        %v4801 = vadd.f32 %v4800, %v4762
        %v4802 = vsel %vm1811, %v4763, 0.0
        %v4803 = vadd.f32 %v4801, %v4802
        %v4804 = vrot.slane %v4803, 4
        %v4805 = vadd.f32 %v4803, %v4804
        %v4806 = vrot.slane %v4805, 2
        %v4807 = vadd.f32 %v4805, %v4806
        %v4808 = vrot.slane %v4807, 1
        %v4809 = vadd.f32 %v4807, %v4808
        %v4810 = vmul.f32 %v4809, %v1820
        %v4811 = vmul.f32 %v4724, %v4724
        %v4812 = vmul.f32 %v4725, %v4725
        %v4813 = vmul.f32 %v4726, %v4726
        %v4814 = vmul.f32 %v4727, %v4727
        %v4815 = vmul.f32 %v4728, %v4728
        %v4816 = vmul.f32 %v4729, %v4729
        %v4817 = vmul.f32 %v4730, %v4730
        %v4818 = vmul.f32 %v4731, %v4731
        %v4819 = vmul.f32 %v4732, %v4732
        %v4820 = vmul.f32 %v4733, %v4733
        %v4821 = vmul.f32 %v4734, %v4734
        %v4822 = vmul.f32 %v4735, %v4735
        %v4823 = vmul.f32 %v4736, %v4736
        %v4824 = vmul.f32 %v4737, %v4737
        %v4825 = vmul.f32 %v4738, %v4738
        %v4826 = vmul.f32 %v4739, %v4739
        %v4827 = vmul.f32 %v4740, %v4740
        %v4828 = vmul.f32 %v4741, %v4741
        %v4829 = vmul.f32 %v4742, %v4742
        %v4830 = vmul.f32 %v4743, %v4743
        %v4831 = vmul.f32 %v4744, %v4744
        %v4832 = vmul.f32 %v4745, %v4745
        %v4833 = vmul.f32 %v4746, %v4746
        %v4834 = vmul.f32 %v4747, %v4747
        %v4835 = vmul.f32 %v4748, %v4748
        %v4836 = vmul.f32 %v4749, %v4749
        %v4837 = vmul.f32 %v4750, %v4750
        %v4838 = vmul.f32 %v4751, %v4751
        %v4839 = vmul.f32 %v4752, %v4752
        %v4840 = vmul.f32 %v4753, %v4753
        %v4841 = vmul.f32 %v4754, %v4754
        %v4842 = vmul.f32 %v4755, %v4755
        %v4843 = vmul.f32 %v4756, %v4756
        %v4844 = vmul.f32 %v4757, %v4757
        %v4845 = vmul.f32 %v4758, %v4758
        %v4846 = vmul.f32 %v4759, %v4759
        %v4847 = vmul.f32 %v4760, %v4760
        %v4848 = vmul.f32 %v4761, %v4761
        %v4849 = vmul.f32 %v4762, %v4762
        %v4850 = vmul.f32 %v4763, %v4763
        %v4851 = vadd.f32 %v4811, %v4812
        %v4852 = vadd.f32 %v4851, %v4813
        %v4853 = vadd.f32 %v4852, %v4814
        %v4854 = vadd.f32 %v4853, %v4815
        %v4855 = vadd.f32 %v4854, %v4816
        %v4856 = vadd.f32 %v4855, %v4817
        %v4857 = vadd.f32 %v4856, %v4818
        %v4858 = vadd.f32 %v4857, %v4819
        %v4859 = vadd.f32 %v4858, %v4820
        %v4860 = vadd.f32 %v4859, %v4821
        %v4861 = vadd.f32 %v4860, %v4822
        %v4862 = vadd.f32 %v4861, %v4823
        %v4863 = vadd.f32 %v4862, %v4824
        %v4864 = vadd.f32 %v4863, %v4825
        %v4865 = vadd.f32 %v4864, %v4826
        %v4866 = vadd.f32 %v4865, %v4827
        %v4867 = vadd.f32 %v4866, %v4828
        %v4868 = vadd.f32 %v4867, %v4829
        %v4869 = vadd.f32 %v4868, %v4830
        %v4870 = vadd.f32 %v4869, %v4831
        %v4871 = vadd.f32 %v4870, %v4832
        %v4872 = vadd.f32 %v4871, %v4833
        %v4873 = vadd.f32 %v4872, %v4834
        %v4874 = vadd.f32 %v4873, %v4835
        %v4875 = vadd.f32 %v4874, %v4836
        %v4876 = vadd.f32 %v4875, %v4837
        %v4877 = vadd.f32 %v4876, %v4838
        %v4878 = vadd.f32 %v4877, %v4839
        %v4879 = vadd.f32 %v4878, %v4840
        %v4880 = vadd.f32 %v4879, %v4841
        %v4881 = vadd.f32 %v4880, %v4842
        %v4882 = vadd.f32 %v4881, %v4843
        %v4883 = vadd.f32 %v4882, %v4844
        %v4884 = vadd.f32 %v4883, %v4845
        %v4885 = vadd.f32 %v4884, %v4846
        %v4886 = vadd.f32 %v4885, %v4847
        %v4887 = vadd.f32 %v4886, %v4848
        %v4888 = vadd.f32 %v4887, %v4849
        %v4889 = vsel %vm1811, %v4850, 0.0
        %v4890 = vadd.f32 %v4888, %v4889
        %v4891 = vrot.slane %v4890, 4
        %v4892 = vadd.f32 %v4890, %v4891
        %v4893 = vrot.slane %v4892, 2
        %v4894 = vadd.f32 %v4892, %v4893
        %v4895 = vrot.slane %v4894, 1
        %v4896 = vadd.f32 %v4894, %v4895
        %v4897 = vmul.f32 %v4896, %v1820
        %v4898 = vmul.f32 %v4810, %v4810
        %v4899 = vsub.f32 %v4897, %v4898
        %v4900 = vadd.f32 %v4899, 1e-05
        %v4901 = vrsqrt.pop %v4900
        %v4902 = vsub.f32 0.0, %v4810
        %v4903 = vmul.f32 %v4902, %v4901
        %v4904 = vmul.f32 %v4724, %v4901
        %v4905 = vmul.f32 %v4725, %v4901
        %v4906 = vmul.f32 %v4726, %v4901
        %v4907 = vmul.f32 %v4727, %v4901
        %v4908 = vmul.f32 %v4728, %v4901
        %v4909 = vmul.f32 %v4729, %v4901
        %v4910 = vmul.f32 %v4730, %v4901
        %v4911 = vmul.f32 %v4731, %v4901
        %v4912 = vmul.f32 %v4732, %v4901
        %v4913 = vmul.f32 %v4733, %v4901
        %v4914 = vmul.f32 %v4734, %v4901
        %v4915 = vmul.f32 %v4735, %v4901
        %v4916 = vmul.f32 %v4736, %v4901
        %v4917 = vmul.f32 %v4737, %v4901
        %v4918 = vmul.f32 %v4738, %v4901
        %v4919 = vmul.f32 %v4739, %v4901
        %v4920 = vmul.f32 %v4740, %v4901
        %v4921 = vmul.f32 %v4741, %v4901
        %v4922 = vmul.f32 %v4742, %v4901
        %v4923 = vmul.f32 %v4743, %v4901
        %v4924 = vmul.f32 %v4744, %v4901
        %v4925 = vmul.f32 %v4745, %v4901
        %v4926 = vmul.f32 %v4746, %v4901
        %v4927 = vmul.f32 %v4747, %v4901
        %v4928 = vmul.f32 %v4748, %v4901
        %v4929 = vmul.f32 %v4749, %v4901
        %v4930 = vmul.f32 %v4750, %v4901
        %v4931 = vmul.f32 %v4751, %v4901
        %v4932 = vmul.f32 %v4752, %v4901
        %v4933 = vmul.f32 %v4753, %v4901
        %v4934 = vmul.f32 %v4754, %v4901
        %v4935 = vmul.f32 %v4755, %v4901
        %v4936 = vmul.f32 %v4756, %v4901
        %v4937 = vmul.f32 %v4757, %v4901
        %v4938 = vmul.f32 %v4758, %v4901
        %v4939 = vmul.f32 %v4759, %v4901
        %v4940 = vmul.f32 %v4760, %v4901
        %v4941 = vmul.f32 %v4761, %v4901
        %v4942 = vmul.f32 %v4762, %v4901
        %v4943 = vmul.f32 %v4763, %v4901
        %v4944 = vadd.f32 %v4904, %v4903
        %v4945 = vadd.f32 %v4905, %v4903
        %v4946 = vadd.f32 %v4906, %v4903
        %v4947 = vadd.f32 %v4907, %v4903
        %v4948 = vadd.f32 %v4908, %v4903
        %v4949 = vadd.f32 %v4909, %v4903
        %v4950 = vadd.f32 %v4910, %v4903
        %v4951 = vadd.f32 %v4911, %v4903
        %v4952 = vadd.f32 %v4912, %v4903
        %v4953 = vadd.f32 %v4913, %v4903
        %v4954 = vadd.f32 %v4914, %v4903
        %v4955 = vadd.f32 %v4915, %v4903
        %v4956 = vadd.f32 %v4916, %v4903
        %v4957 = vadd.f32 %v4917, %v4903
        %v4958 = vadd.f32 %v4918, %v4903
        %v4959 = vadd.f32 %v4919, %v4903
        %v4960 = vadd.f32 %v4920, %v4903
        %v4961 = vadd.f32 %v4921, %v4903
        %v4962 = vadd.f32 %v4922, %v4903
        %v4963 = vadd.f32 %v4923, %v4903
        %v4964 = vadd.f32 %v4924, %v4903
        %v4965 = vadd.f32 %v4925, %v4903
        %v4966 = vadd.f32 %v4926, %v4903
        %v4967 = vadd.f32 %v4927, %v4903
        %v4968 = vadd.f32 %v4928, %v4903
        %v4969 = vadd.f32 %v4929, %v4903
        %v4970 = vadd.f32 %v4930, %v4903
        %v4971 = vadd.f32 %v4931, %v4903
        %v4972 = vadd.f32 %v4932, %v4903
        %v4973 = vadd.f32 %v4933, %v4903
        %v4974 = vadd.f32 %v4934, %v4903
        %v4975 = vadd.f32 %v4935, %v4903
        %v4976 = vadd.f32 %v4936, %v4903
        %v4977 = vadd.f32 %v4937, %v4903
        %v4978 = vadd.f32 %v4938, %v4903
        %v4979 = vadd.f32 %v4939, %v4903
        %v4980 = vadd.f32 %v4940, %v4903
        %v4981 = vadd.f32 %v4941, %v4903
        %v4982 = vadd.f32 %v4942, %v4903
        %v4983 = vadd.f32 %v4943, %v4903
        %s4984 = scalar_lea.vmem %s3, 640
        %v4985 = vld [vmem:[%s4984] sm:$0xff]
        %v4986 = vld [vmem:[%s4984 + $0x8] sm:$0xff]
        %v4987 = vld [vmem:[%s4984 + $0x10] sm:$0xff]
        %v4988 = vld [vmem:[%s4984 + $0x18] sm:$0xff]
        %v4989 = vld [vmem:[%s4984 + $0x20] sm:$0xff]
        %v4990 = vld [vmem:[%s4984 + $0x28] sm:$0xff]
        %v4991 = vld [vmem:[%s4984 + $0x30] sm:$0xff]
        %v4992 = vld [vmem:[%s4984 + $0x38] sm:$0xff]
        %v4993 = vld [vmem:[%s4984 + $0x40] sm:$0xff]
        %v4994 = vld [vmem:[%s4984 + $0x48] sm:$0xff]
        %v4995 = vld [vmem:[%s4984 + $0x50] sm:$0xff]
        %v4996 = vld [vmem:[%s4984 + $0x58] sm:$0xff]
        %v4997 = vld [vmem:[%s4984 + $0x60] sm:$0xff]
        %v4998 = vld [vmem:[%s4984 + $0x68] sm:$0xff]
        %v4999 = vld [vmem:[%s4984 + $0x70] sm:$0xff]
        %v5000 = vld [vmem:[%s4984 + $0x78] sm:$0xff]
        %v5001 = vld [vmem:[%s4984 + $0x80] sm:$0xff]
        %v5002 = vld [vmem:[%s4984 + $0x88] sm:$0xff]
        %v5003 = vld [vmem:[%s4984 + $0x90] sm:$0xff]
        %v5004 = vld [vmem:[%s4984 + $0x98] sm:$0xff]
        %v5005 = vld [vmem:[%s4984 + $0xa0] sm:$0xff]
        %v5006 = vld [vmem:[%s4984 + $0xa8] sm:$0xff]
        %v5007 = vld [vmem:[%s4984 + $0xb0] sm:$0xff]
        %v5008 = vld [vmem:[%s4984 + $0xb8] sm:$0xff]
        %v5009 = vld [vmem:[%s4984 + $0xc0] sm:$0xff]
        %v5010 = vld [vmem:[%s4984 + $0xc8] sm:$0xff]
        %v5011 = vld [vmem:[%s4984 + $0xd0] sm:$0xff]
        %v5012 = vld [vmem:[%s4984 + $0xd8] sm:$0xff]
        %v5013 = vld [vmem:[%s4984 + $0xe0] sm:$0xff]
        %v5014 = vld [vmem:[%s4984 + $0xe8] sm:$0xff]
        %v5015 = vld [vmem:[%s4984 + $0xf0] sm:$0xff]
        %v5016 = vld [vmem:[%s4984 + $0xf8] sm:$0xff]
        %v5017 = vld [vmem:[%s4984 + $0x100] sm:$0xff]
        %v5018 = vld [vmem:[%s4984 + $0x108] sm:$0xff]
        %v5019 = vld [vmem:[%s4984 + $0x110] sm:$0xff]
        %v5020 = vld [vmem:[%s4984 + $0x118] sm:$0xff]
        %v5021 = vld [vmem:[%s4984 + $0x120] sm:$0xff]
        %v5022 = vld [vmem:[%s4984 + $0x128] sm:$0xff]
        %v5023 = vld [vmem:[%s4984 + $0x130] sm:$0xff]
        %v5024 = vld [vmem:[%s4984 + $0x138] sm:$0x1]
        %v5025 = vmul.f32 %v4944, %v4985
        %v5026 = vmul.f32 %v4945, %v4986
        %v5027 = vmul.f32 %v4946, %v4987
        %v5028 = vmul.f32 %v4947, %v4988
        %v5029 = vmul.f32 %v4948, %v4989
        %v5030 = vmul.f32 %v4949, %v4990
        %v5031 = vmul.f32 %v4950, %v4991
        %v5032 = vmul.f32 %v4951, %v4992
        %v5033 = vmul.f32 %v4952, %v4993
        %v5034 = vmul.f32 %v4953, %v4994
        %v5035 = vmul.f32 %v4954, %v4995
        %v5036 = vmul.f32 %v4955, %v4996
        %v5037 = vmul.f32 %v4956, %v4997
        %v5038 = vmul.f32 %v4957, %v4998
        %v5039 = vmul.f32 %v4958, %v4999
        %v5040 = vmul.f32 %v4959, %v5000
        %v5041 = vmul.f32 %v4960, %v5001
        %v5042 = vmul.f32 %v4961, %v5002
        %v5043 = vmul.f32 %v4962, %v5003
        %v5044 = vmul.f32 %v4963, %v5004
        %v5045 = vmul.f32 %v4964, %v5005
        %v5046 = vmul.f32 %v4965, %v5006
        %v5047 = vmul.f32 %v4966, %v5007
        %v5048 = vmul.f32 %v4967, %v5008
        %v5049 = vmul.f32 %v4968, %v5009
        %v5050 = vmul.f32 %v4969, %v5010
        %v5051 = vmul.f32 %v4970, %v5011
        %v5052 = vmul.f32 %v4971, %v5012
        %v5053 = vmul.f32 %v4972, %v5013
        %v5054 = vmul.f32 %v4973, %v5014
        %v5055 = vmul.f32 %v4974, %v5015
        %v5056 = vmul.f32 %v4975, %v5016
        %v5057 = vmul.f32 %v4976, %v5017
        %v5058 = vmul.f32 %v4977, %v5018
        %v5059 = vmul.f32 %v4978, %v5019
        %v5060 = vmul.f32 %v4979, %v5020
        %v5061 = vmul.f32 %v4980, %v5021
        %v5062 = vmul.f32 %v4981, %v5022
        %v5063 = vmul.f32 %v4982, %v5023
        %v5064 = vmul.f32 %v4983, %v5024
        %s5065 = scalar_lea.vmem %s4, 640
        %v5066 = vld [vmem:[%s5065] sm:$0xff]
        %v5067 = vld [vmem:[%s5065 + $0x8] sm:$0xff]
        %v5068 = vld [vmem:[%s5065 + $0x10] sm:$0xff]
        %v5069 = vld [vmem:[%s5065 + $0x18] sm:$0xff]
        %v5070 = vld [vmem:[%s5065 + $0x20] sm:$0xff]
        %v5071 = vld [vmem:[%s5065 + $0x28] sm:$0xff]
        %v5072 = vld [vmem:[%s5065 + $0x30] sm:$0xff]
        %v5073 = vld [vmem:[%s5065 + $0x38] sm:$0xff]
        %v5074 = vld [vmem:[%s5065 + $0x40] sm:$0xff]
        %v5075 = vld [vmem:[%s5065 + $0x48] sm:$0xff]
        %v5076 = vld [vmem:[%s5065 + $0x50] sm:$0xff]
        %v5077 = vld [vmem:[%s5065 + $0x58] sm:$0xff]
        %v5078 = vld [vmem:[%s5065 + $0x60] sm:$0xff]
        %v5079 = vld [vmem:[%s5065 + $0x68] sm:$0xff]
        %v5080 = vld [vmem:[%s5065 + $0x70] sm:$0xff]
        %v5081 = vld [vmem:[%s5065 + $0x78] sm:$0xff]
        %v5082 = vld [vmem:[%s5065 + $0x80] sm:$0xff]
        %v5083 = vld [vmem:[%s5065 + $0x88] sm:$0xff]
        %v5084 = vld [vmem:[%s5065 + $0x90] sm:$0xff]
        %v5085 = vld [vmem:[%s5065 + $0x98] sm:$0xff]
        %v5086 = vld [vmem:[%s5065 + $0xa0] sm:$0xff]
        %v5087 = vld [vmem:[%s5065 + $0xa8] sm:$0xff]
        %v5088 = vld [vmem:[%s5065 + $0xb0] sm:$0xff]
        %v5089 = vld [vmem:[%s5065 + $0xb8] sm:$0xff]
        %v5090 = vld [vmem:[%s5065 + $0xc0] sm:$0xff]
        %v5091 = vld [vmem:[%s5065 + $0xc8] sm:$0xff]
        %v5092 = vld [vmem:[%s5065 + $0xd0] sm:$0xff]
        %v5093 = vld [vmem:[%s5065 + $0xd8] sm:$0xff]
        %v5094 = vld [vmem:[%s5065 + $0xe0] sm:$0xff]
        %v5095 = vld [vmem:[%s5065 + $0xe8] sm:$0xff]
        %v5096 = vld [vmem:[%s5065 + $0xf0] sm:$0xff]
        %v5097 = vld [vmem:[%s5065 + $0xf8] sm:$0xff]
        %v5098 = vld [vmem:[%s5065 + $0x100] sm:$0xff]
        %v5099 = vld [vmem:[%s5065 + $0x108] sm:$0xff]
        %v5100 = vld [vmem:[%s5065 + $0x110] sm:$0xff]
        %v5101 = vld [vmem:[%s5065 + $0x118] sm:$0xff]
        %v5102 = vld [vmem:[%s5065 + $0x120] sm:$0xff]
        %v5103 = vld [vmem:[%s5065 + $0x128] sm:$0xff]
        %v5104 = vld [vmem:[%s5065 + $0x130] sm:$0xff]
        %v5105 = vld [vmem:[%s5065 + $0x138] sm:$0x1]
        %v5106 = vadd.f32 %v5025, %v5066
        %v5107 = vadd.f32 %v5026, %v5067
        %v5108 = vadd.f32 %v5027, %v5068
        %v5109 = vadd.f32 %v5028, %v5069
        %v5110 = vadd.f32 %v5029, %v5070
        %v5111 = vadd.f32 %v5030, %v5071
        %v5112 = vadd.f32 %v5031, %v5072
        %v5113 = vadd.f32 %v5032, %v5073
        %v5114 = vadd.f32 %v5033, %v5074
        %v5115 = vadd.f32 %v5034, %v5075
        %v5116 = vadd.f32 %v5035, %v5076
        %v5117 = vadd.f32 %v5036, %v5077
        %v5118 = vadd.f32 %v5037, %v5078
        %v5119 = vadd.f32 %v5038, %v5079
        %v5120 = vadd.f32 %v5039, %v5080
        %v5121 = vadd.f32 %v5040, %v5081
        %v5122 = vadd.f32 %v5041, %v5082
        %v5123 = vadd.f32 %v5042, %v5083
        %v5124 = vadd.f32 %v5043, %v5084
        %v5125 = vadd.f32 %v5044, %v5085
        %v5126 = vadd.f32 %v5045, %v5086
        %v5127 = vadd.f32 %v5046, %v5087
        %v5128 = vadd.f32 %v5047, %v5088
        %v5129 = vadd.f32 %v5048, %v5089
        %v5130 = vadd.f32 %v5049, %v5090
        %v5131 = vadd.f32 %v5050, %v5091
        %v5132 = vadd.f32 %v5051, %v5092
        %v5133 = vadd.f32 %v5052, %v5093
        %v5134 = vadd.f32 %v5053, %v5094
        %v5135 = vadd.f32 %v5054, %v5095
        %v5136 = vadd.f32 %v5055, %v5096
        %v5137 = vadd.f32 %v5056, %v5097
        %v5138 = vadd.f32 %v5057, %v5098
        %v5139 = vadd.f32 %v5058, %v5099
        %v5140 = vadd.f32 %v5059, %v5100
        %v5141 = vadd.f32 %v5060, %v5101
        %v5142 = vadd.f32 %v5061, %v5102
        %v5143 = vadd.f32 %v5062, %v5103
        %v5144 = vadd.f32 %v5063, %v5104
        %v5145 = vadd.f32 %v5064, %v5105
        %vm5146 = vcmp.ge.f32.partialorder %v5106, 0.0
        %vm5147 = vcmp.ge.f32.partialorder %v5107, 0.0
        %vm5148 = vcmp.ge.f32.partialorder %v5108, 0.0
        %vm5149 = vcmp.ge.f32.partialorder %v5109, 0.0
        %vm5150 = vcmp.ge.f32.partialorder %v5110, 0.0
        %vm5151 = vcmp.ge.f32.partialorder %v5111, 0.0
        %vm5152 = vcmp.ge.f32.partialorder %v5112, 0.0
        %vm5153 = vcmp.ge.f32.partialorder %v5113, 0.0
        %vm5154 = vcmp.ge.f32.partialorder %v5114, 0.0
        %vm5155 = vcmp.ge.f32.partialorder %v5115, 0.0
        %vm5156 = vcmp.ge.f32.partialorder %v5116, 0.0
        %vm5157 = vcmp.ge.f32.partialorder %v5117, 0.0
        %vm5158 = vcmp.ge.f32.partialorder %v5118, 0.0
        %vm5159 = vcmp.ge.f32.partialorder %v5119, 0.0
        %vm5160 = vcmp.ge.f32.partialorder %v5120, 0.0
        %vm5161 = vcmp.ge.f32.partialorder %v5121, 0.0
        %vm5162 = vcmp.ge.f32.partialorder %v5122, 0.0
        %vm5163 = vcmp.ge.f32.partialorder %v5123, 0.0
        %vm5164 = vcmp.ge.f32.partialorder %v5124, 0.0
        %vm5165 = vcmp.ge.f32.partialorder %v5125, 0.0
        %vm5166 = vcmp.ge.f32.partialorder %v5126, 0.0
        %vm5167 = vcmp.ge.f32.partialorder %v5127, 0.0
        %vm5168 = vcmp.ge.f32.partialorder %v5128, 0.0
        %vm5169 = vcmp.ge.f32.partialorder %v5129, 0.0
        %vm5170 = vcmp.ge.f32.partialorder %v5130, 0.0
        %vm5171 = vcmp.ge.f32.partialorder %v5131, 0.0
        %vm5172 = vcmp.ge.f32.partialorder %v5132, 0.0
        %vm5173 = vcmp.ge.f32.partialorder %v5133, 0.0
        %vm5174 = vcmp.ge.f32.partialorder %v5134, 0.0
        %vm5175 = vcmp.ge.f32.partialorder %v5135, 0.0
        %vm5176 = vcmp.ge.f32.partialorder %v5136, 0.0
        %vm5177 = vcmp.ge.f32.partialorder %v5137, 0.0
        %vm5178 = vcmp.ge.f32.partialorder %v5138, 0.0
        %vm5179 = vcmp.ge.f32.partialorder %v5139, 0.0
        %vm5180 = vcmp.ge.f32.partialorder %v5140, 0.0
        %vm5181 = vcmp.ge.f32.partialorder %v5141, 0.0
        %vm5182 = vcmp.ge.f32.partialorder %v5142, 0.0
        %vm5183 = vcmp.ge.f32.partialorder %v5143, 0.0
        %vm5184 = vcmp.ge.f32.partialorder %v5144, 0.0
        %vm5185 = vcmp.ge.f32.partialorder %v5145, 0.0
        %v5186 = vmul.f32 %v5106, 0.2
        %v5187 = vmul.f32 %v5107, 0.2
        %v5188 = vmul.f32 %v5108, 0.2
        %v5189 = vmul.f32 %v5109, 0.2
        %v5190 = vmul.f32 %v5110, 0.2
        %v5191 = vmul.f32 %v5111, 0.2
        %v5192 = vmul.f32 %v5112, 0.2
        %v5193 = vmul.f32 %v5113, 0.2
        %v5194 = vmul.f32 %v5114, 0.2
        %v5195 = vmul.f32 %v5115, 0.2
        %v5196 = vmul.f32 %v5116, 0.2
        %v5197 = vmul.f32 %v5117, 0.2
        %v5198 = vmul.f32 %v5118, 0.2
        %v5199 = vmul.f32 %v5119, 0.2
        %v5200 = vmul.f32 %v5120, 0.2
        %v5201 = vmul.f32 %v5121, 0.2
        %v5202 = vmul.f32 %v5122, 0.2
        %v5203 = vmul.f32 %v5123, 0.2
        %v5204 = vmul.f32 %v5124, 0.2
        %v5205 = vmul.f32 %v5125, 0.2
        %v5206 = vmul.f32 %v5126, 0.2
        %v5207 = vmul.f32 %v5127, 0.2
        %v5208 = vmul.f32 %v5128, 0.2
        %v5209 = vmul.f32 %v5129, 0.2
        %v5210 = vmul.f32 %v5130, 0.2
        %v5211 = vmul.f32 %v5131, 0.2
        %v5212 = vmul.f32 %v5132, 0.2
        %v5213 = vmul.f32 %v5133, 0.2
        %v5214 = vmul.f32 %v5134, 0.2
        %v5215 = vmul.f32 %v5135, 0.2
        %v5216 = vmul.f32 %v5136, 0.2
        %v5217 = vmul.f32 %v5137, 0.2
        %v5218 = vmul.f32 %v5138, 0.2
        %v5219 = vmul.f32 %v5139, 0.2
        %v5220 = vmul.f32 %v5140, 0.2
        %v5221 = vmul.f32 %v5141, 0.2
        %v5222 = vmul.f32 %v5142, 0.2
        %v5223 = vmul.f32 %v5143, 0.2
        %v5224 = vmul.f32 %v5144, 0.2
        %v5225 = vmul.f32 %v5145, 0.2
        %v5226 = vsel %vm5146, %v5106, %v5186
        %v5227 = vsel %vm5147, %v5107, %v5187
        %v5228 = vsel %vm5148, %v5108, %v5188
        %v5229 = vsel %vm5149, %v5109, %v5189
        %v5230 = vsel %vm5150, %v5110, %v5190
        %v5231 = vsel %vm5151, %v5111, %v5191
        %v5232 = vsel %vm5152, %v5112, %v5192
        %v5233 = vsel %vm5153, %v5113, %v5193
        %v5234 = vsel %vm5154, %v5114, %v5194
        %v5235 = vsel %vm5155, %v5115, %v5195
        %v5236 = vsel %vm5156, %v5116, %v5196
        %v5237 = vsel %vm5157, %v5117, %v5197
        %v5238 = vsel %vm5158, %v5118, %v5198
        %v5239 = vsel %vm5159, %v5119, %v5199
        %v5240 = vsel %vm5160, %v5120, %v5200
        %v5241 = vsel %vm5161, %v5121, %v5201
        %v5242 = vsel %vm5162, %v5122, %v5202
        %v5243 = vsel %vm5163, %v5123, %v5203
        %v5244 = vsel %vm5164, %v5124, %v5204
        %v5245 = vsel %vm5165, %v5125, %v5205
        %v5246 = vsel %vm5166, %v5126, %v5206
        %v5247 = vsel %vm5167, %v5127, %v5207
        %v5248 = vsel %vm5168, %v5128, %v5208
        %v5249 = vsel %vm5169, %v5129, %v5209
        %v5250 = vsel %vm5170, %v5130, %v5210
        %v5251 = vsel %vm5171, %v5131, %v5211
        %v5252 = vsel %vm5172, %v5132, %v5212
        %v5253 = vsel %vm5173, %v5133, %v5213
        %v5254 = vsel %vm5174, %v5134, %v5214
        %v5255 = vsel %vm5175, %v5135, %v5215
        %v5256 = vsel %vm5176, %v5136, %v5216
        %v5257 = vsel %vm5177, %v5137, %v5217
        %v5258 = vsel %vm5178, %v5138, %v5218
        %v5259 = vsel %vm5179, %v5139, %v5219
        %v5260 = vsel %vm5180, %v5140, %v5220
        %v5261 = vsel %vm5181, %v5141, %v5221
        %v5262 = vsel %vm5182, %v5142, %v5222
        %v5263 = vsel %vm5183, %v5143, %v5223
        %v5264 = vsel %vm5184, %v5144, %v5224
        %v5265 = vsel %vm5185, %v5145, %v5225
        %5266 = vst [vmem:[#allocation2 + $0x8] sm:$0xff] %v5226
        %5267 = vst [vmem:[#allocation2 + $0x10] sm:$0xff] %v5227
        %5268 = vst [vmem:[#allocation2 + $0x18] sm:$0xff] %v5228
        %5269 = vst [vmem:[#allocation2 + $0x20] sm:$0xff] %v5229
        %5270 = vst [vmem:[#allocation2 + $0x28] sm:$0xff] %v5230
        %5271 = vst [vmem:[#allocation2 + $0x30] sm:$0xff] %v5231
        %5272 = vst [vmem:[#allocation2 + $0x38] sm:$0xff] %v5232
        %5273 = vst [vmem:[#allocation2 + $0x40] sm:$0xff] %v5233
        %5274 = vst [vmem:[#allocation2 + $0x48] sm:$0xff] %v5234
        %5275 = vst [vmem:[#allocation2 + $0x50] sm:$0xff] %v5235
        %5276 = vst [vmem:[#allocation2 + $0x58] sm:$0xff] %v5236
        %5277 = vst [vmem:[#allocation2 + $0x60] sm:$0xff] %v5237
        %5278 = vst [vmem:[#allocation2 + $0x68] sm:$0xff] %v5238
        %5279 = vst [vmem:[#allocation2 + $0x70] sm:$0xff] %v5239
        %5280 = vst [vmem:[#allocation2 + $0x78] sm:$0xff] %v5240
        %5281 = vst [vmem:[#allocation2 + $0x80] sm:$0xff] %v5241
        %5282 = vst [vmem:[#allocation2 + $0x88] sm:$0xff] %v5242
        %5283 = vst [vmem:[#allocation2 + $0x90] sm:$0xff] %v5243
        %5284 = vst [vmem:[#allocation2 + $0x98] sm:$0xff] %v5244
        %5285 = vst [vmem:[#allocation2 + $0xa0] sm:$0xff] %v5245
        %5286 = vst [vmem:[#allocation2 + $0xa8] sm:$0xff] %v5246
        %5287 = vst [vmem:[#allocation2 + $0xb0] sm:$0xff] %v5247
        %5288 = vst [vmem:[#allocation2 + $0xb8] sm:$0xff] %v5248
        %5289 = vst [vmem:[#allocation2 + $0xc0] sm:$0xff] %v5249
        %5290 = vst [vmem:[#allocation2 + $0xc8] sm:$0xff] %v5250
        %5291 = vst [vmem:[#allocation2 + $0xd0] sm:$0xff] %v5251
        %5292 = vst [vmem:[#allocation2 + $0xd8] sm:$0xff] %v5252
        %5293 = vst [vmem:[#allocation2 + $0xe0] sm:$0xff] %v5253
        %5294 = vst [vmem:[#allocation2 + $0xe8] sm:$0xff] %v5254
        %5295 = vst [vmem:[#allocation2 + $0xf0] sm:$0xff] %v5255
        %5296 = vst [vmem:[#allocation2 + $0xf8] sm:$0xff] %v5256
        %5297 = vst [vmem:[#allocation2 + $0x100] sm:$0xff] %v5257
        %5298 = vst [vmem:[#allocation2 + $0x108] sm:$0xff] %v5258
        %5299 = vst [vmem:[#allocation2 + $0x110] sm:$0xff] %v5259
        %5300 = vst [vmem:[#allocation2 + $0x118] sm:$0xff] %v5260
        %5301 = vst [vmem:[#allocation2 + $0x120] sm:$0xff] %v5261
        %5302 = vst [vmem:[#allocation2 + $0x128] sm:$0xff] %v5262
        %5303 = vst [vmem:[#allocation2 + $0x130] sm:$0xff] %v5263
        %5304 = vst [vmem:[#allocation2 + $0x138] sm:$0xff] %v5264
        %5305 = vst [vmem:[#allocation2 + $0x140] sm:$0x1] %v5265
        %v5306 = vld [vmem:[#allocation2 + $0x7] sm:$0xff]
        %v5307 = vld [vmem:[#allocation2 + $0xf] sm:$0xff]
        %v5308 = vld [vmem:[#allocation2 + $0x17] sm:$0xff]
        %v5309 = vld [vmem:[#allocation2 + $0x1f] sm:$0xff]
        %v5310 = vld [vmem:[#allocation2 + $0x27] sm:$0xff]
        %v5311 = vld [vmem:[#allocation2 + $0x2f] sm:$0xff]
        %v5312 = vld [vmem:[#allocation2 + $0x37] sm:$0xff]
        %v5313 = vld [vmem:[#allocation2 + $0x3f] sm:$0xff]
        %v5314 = vld [vmem:[#allocation2 + $0x47] sm:$0xff]
        %v5315 = vld [vmem:[#allocation2 + $0x4f] sm:$0xff]
        %v5316 = vld [vmem:[#allocation2 + $0x57] sm:$0xff]
        %v5317 = vld [vmem:[#allocation2 + $0x5f] sm:$0xff]
        %v5318 = vld [vmem:[#allocation2 + $0x67] sm:$0xff]
        %v5319 = vld [vmem:[#allocation2 + $0x6f] sm:$0xff]
        %v5320 = vld [vmem:[#allocation2 + $0x77] sm:$0xff]
        %v5321 = vld [vmem:[#allocation2 + $0x7f] sm:$0xff]
        %v5322 = vld [vmem:[#allocation2 + $0x87] sm:$0xff]
        %v5323 = vld [vmem:[#allocation2 + $0x8f] sm:$0xff]
        %v5324 = vld [vmem:[#allocation2 + $0x97] sm:$0xff]
        %v5325 = vld [vmem:[#allocation2 + $0x9f] sm:$0xff]
        %v5326 = vld [vmem:[#allocation2 + $0xa7] sm:$0xff]
        %v5327 = vld [vmem:[#allocation2 + $0xaf] sm:$0xff]
        %v5328 = vld [vmem:[#allocation2 + $0xb7] sm:$0xff]
        %v5329 = vld [vmem:[#allocation2 + $0xbf] sm:$0xff]
        %v5330 = vld [vmem:[#allocation2 + $0xc7] sm:$0xff]
        %v5331 = vld [vmem:[#allocation2 + $0xcf] sm:$0xff]
        %v5332 = vld [vmem:[#allocation2 + $0xd7] sm:$0xff]
        %v5333 = vld [vmem:[#allocation2 + $0xdf] sm:$0xff]
        %v5334 = vld [vmem:[#allocation2 + $0xe7] sm:$0xff]
        %v5335 = vld [vmem:[#allocation2 + $0xef] sm:$0xff]
        %v5336 = vld [vmem:[#allocation2 + $0xf7] sm:$0xff]
        %v5337 = vld [vmem:[#allocation2 + $0xff] sm:$0xff]
        %v5338 = vld [vmem:[#allocation2 + $0x107] sm:$0xff]
        %v5339 = vld [vmem:[#allocation2 + $0x10f] sm:$0xff]
        %v5340 = vld [vmem:[#allocation2 + $0x117] sm:$0xff]
        %v5341 = vld [vmem:[#allocation2 + $0x11f] sm:$0xff]
        %v5342 = vld [vmem:[#allocation2 + $0x127] sm:$0xff]
        %v5343 = vld [vmem:[#allocation2 + $0x12f] sm:$0xff]
        %v5344 = vld [vmem:[#allocation2 + $0x137] sm:$0xff]
        %v5345 = vld [vmem:[#allocation2 + $0x13f] sm:$0x1]
        %v5346 = vpack.c.bf16 %v5307, %v5306
        %v5347 = vpack.c.bf16 %v5309, %v5308
        %v5348 = vpack.c.bf16 %v5311, %v5310
        %v5349 = vpack.c.bf16 %v5313, %v5312
        %v5350 = vpack.c.bf16 %v5315, %v5314
        %v5351 = vpack.c.bf16 %v5317, %v5316
        %v5352 = vpack.c.bf16 %v5319, %v5318
        %v5353 = vpack.c.bf16 %v5321, %v5320
        %v5354 = vpack.c.bf16 %v5323, %v5322
        %v5355 = vpack.c.bf16 %v5325, %v5324
        %v5356 = vpack.c.bf16 %v5327, %v5326
        %v5357 = vpack.c.bf16 %v5329, %v5328
        %v5358 = vpack.c.bf16 %v5331, %v5330
        %v5359 = vpack.c.bf16 %v5333, %v5332
        %v5360 = vpack.c.bf16 %v5335, %v5334
        %v5361 = vpack.c.bf16 %v5337, %v5336
        %v5362 = vpack.c.bf16 %v5339, %v5338
        %v5363 = vpack.c.bf16 %v5341, %v5340
        %v5364 = vpack.c.bf16 %v5343, %v5342
        %v5365 = vpack.c.bf16 %v5345, %v5344
        %v5366 = vpack.c.bf16 %v5227, %v5226
        %v5367 = vpack.c.bf16 %v5229, %v5228
        %v5368 = vpack.c.bf16 %v5231, %v5230
        %v5369 = vpack.c.bf16 %v5233, %v5232
        %v5370 = vpack.c.bf16 %v5235, %v5234
        %v5371 = vpack.c.bf16 %v5237, %v5236
        %v5372 = vpack.c.bf16 %v5239, %v5238
        %v5373 = vpack.c.bf16 %v5241, %v5240
        %v5374 = vpack.c.bf16 %v5243, %v5242
        %v5375 = vpack.c.bf16 %v5245, %v5244
        %v5376 = vpack.c.bf16 %v5247, %v5246
        %v5377 = vpack.c.bf16 %v5249, %v5248
        %v5378 = vpack.c.bf16 %v5251, %v5250
        %v5379 = vpack.c.bf16 %v5253, %v5252
        %v5380 = vpack.c.bf16 %v5255, %v5254
        %v5381 = vpack.c.bf16 %v5257, %v5256
        %v5382 = vpack.c.bf16 %v5259, %v5258
        %v5383 = vpack.c.bf16 %v5261, %v5260
        %v5384 = vpack.c.bf16 %v5263, %v5262
        %v5385 = vpack.c.bf16 %v5265, %v5264
        %v5386 = vld [vmem:[#allocation2 + $0x9] sm:$0xff]
        %v5387 = vld [vmem:[#allocation2 + $0x11] sm:$0xff]
        %v5388 = vld [vmem:[#allocation2 + $0x19] sm:$0xff]
        %v5389 = vld [vmem:[#allocation2 + $0x21] sm:$0xff]
        %v5390 = vld [vmem:[#allocation2 + $0x29] sm:$0xff]
        %v5391 = vld [vmem:[#allocation2 + $0x31] sm:$0xff]
        %v5392 = vld [vmem:[#allocation2 + $0x39] sm:$0xff]
        %v5393 = vld [vmem:[#allocation2 + $0x41] sm:$0xff]
        %v5394 = vld [vmem:[#allocation2 + $0x49] sm:$0xff]
        %v5395 = vld [vmem:[#allocation2 + $0x51] sm:$0xff]
        %v5396 = vld [vmem:[#allocation2 + $0x59] sm:$0xff]
        %v5397 = vld [vmem:[#allocation2 + $0x61] sm:$0xff]
        %v5398 = vld [vmem:[#allocation2 + $0x69] sm:$0xff]
        %v5399 = vld [vmem:[#allocation2 + $0x71] sm:$0xff]
        %v5400 = vld [vmem:[#allocation2 + $0x79] sm:$0xff]
        %v5401 = vld [vmem:[#allocation2 + $0x81] sm:$0xff]
        %v5402 = vld [vmem:[#allocation2 + $0x89] sm:$0xff]
        %v5403 = vld [vmem:[#allocation2 + $0x91] sm:$0xff]
        %v5404 = vld [vmem:[#allocation2 + $0x99] sm:$0xff]
        %v5405 = vld [vmem:[#allocation2 + $0xa1] sm:$0xff]
        %v5406 = vld [vmem:[#allocation2 + $0xa9] sm:$0xff]
        %v5407 = vld [vmem:[#allocation2 + $0xb1] sm:$0xff]
        %v5408 = vld [vmem:[#allocation2 + $0xb9] sm:$0xff]
        %v5409 = vld [vmem:[#allocation2 + $0xc1] sm:$0xff]
        %v5410 = vld [vmem:[#allocation2 + $0xc9] sm:$0xff]
        %v5411 = vld [vmem:[#allocation2 + $0xd1] sm:$0xff]
        %v5412 = vld [vmem:[#allocation2 + $0xd9] sm:$0xff]
        %v5413 = vld [vmem:[#allocation2 + $0xe1] sm:$0xff]
        %v5414 = vld [vmem:[#allocation2 + $0xe9] sm:$0xff]
        %v5415 = vld [vmem:[#allocation2 + $0xf1] sm:$0xff]
        %v5416 = vld [vmem:[#allocation2 + $0xf9] sm:$0xff]
        %v5417 = vld [vmem:[#allocation2 + $0x101] sm:$0xff]
        %v5418 = vld [vmem:[#allocation2 + $0x109] sm:$0xff]
        %v5419 = vld [vmem:[#allocation2 + $0x111] sm:$0xff]
        %v5420 = vld [vmem:[#allocation2 + $0x119] sm:$0xff]
        %v5421 = vld [vmem:[#allocation2 + $0x121] sm:$0xff]
        %v5422 = vld [vmem:[#allocation2 + $0x129] sm:$0xff]
        %v5423 = vld [vmem:[#allocation2 + $0x131] sm:$0xff]
        %v5424 = vld [vmem:[#allocation2 + $0x139] sm:$0xff]
        %v5425 = vld [vmem:[#allocation2 + $0x141] sm:$0x1]
        %v5426 = vpack.c.bf16 %v5387, %v5386
        %v5427 = vpack.c.bf16 %v5389, %v5388
        %v5428 = vpack.c.bf16 %v5391, %v5390
        %v5429 = vpack.c.bf16 %v5393, %v5392
        %v5430 = vpack.c.bf16 %v5395, %v5394
        %v5431 = vpack.c.bf16 %v5397, %v5396
        %v5432 = vpack.c.bf16 %v5399, %v5398
        %v5433 = vpack.c.bf16 %v5401, %v5400
        %v5434 = vpack.c.bf16 %v5403, %v5402
        %v5435 = vpack.c.bf16 %v5405, %v5404
        %v5436 = vpack.c.bf16 %v5407, %v5406
        %v5437 = vpack.c.bf16 %v5409, %v5408
        %v5438 = vpack.c.bf16 %v5411, %v5410
        %v5439 = vpack.c.bf16 %v5413, %v5412
        %v5440 = vpack.c.bf16 %v5415, %v5414
        %v5441 = vpack.c.bf16 %v5417, %v5416
        %v5442 = vpack.c.bf16 %v5419, %v5418
        %v5443 = vpack.c.bf16 %v5421, %v5420
        %v5444 = vpack.c.bf16 %v5423, %v5422
        %v5445 = vpack.c.bf16 %v5425, %v5424
        %s5446 = scalar_lea.vmem %s2, 384
        %v5447 = vld [vmem:[%s5446] sm:$0xf]
        %v5448 = vld [vmem:[%s5446 + $0x4] sm:$0xf]
        %v5449 = vld [vmem:[%s5446 + $0x8] sm:$0xf]
        %v5450 = vld [vmem:[%s5446 + $0xc] sm:$0xf]
        %v5451 = vld [vmem:[%s5446 + $0x10] sm:$0xf]
        %v5452 = vld [vmem:[%s5446 + $0x14] sm:$0xf]
        %v5453 = vld [vmem:[%s5446 + $0x18] sm:$0xf]
        %v5454 = vld [vmem:[%s5446 + $0x1c] sm:$0xf]
        %v5455 = vld [vmem:[%s5446 + $0x20] sm:$0xf]
        %v5456 = vld [vmem:[%s5446 + $0x24] sm:$0xf]
        %v5457 = vld [vmem:[%s5446 + $0x28] sm:$0xf]
        %v5458 = vld [vmem:[%s5446 + $0x2c] sm:$0xf]
        %v5459 = vld [vmem:[%s5446 + $0x30] sm:$0xf]
        %v5460 = vld [vmem:[%s5446 + $0x34] sm:$0xf]
        %v5461 = vld [vmem:[%s5446 + $0x38] sm:$0xf]
        %v5462 = vld [vmem:[%s5446 + $0x3c] sm:$0xf]
        %s5463 = scalar_lea.vmem %s2, 448
        %v5464 = vld [vmem:[%s5463] sm:$0xf]
        %v5465 = vld [vmem:[%s5463 + $0x4] sm:$0xf]
        %v5466 = vld [vmem:[%s5463 + $0x8] sm:$0xf]
        %v5467 = vld [vmem:[%s5463 + $0xc] sm:$0xf]
        %v5468 = vld [vmem:[%s5463 + $0x10] sm:$0xf]
        %v5469 = vld [vmem:[%s5463 + $0x14] sm:$0xf]
        %v5470 = vld [vmem:[%s5463 + $0x18] sm:$0xf]
        %v5471 = vld [vmem:[%s5463 + $0x1c] sm:$0xf]
        %v5472 = vld [vmem:[%s5463 + $0x20] sm:$0xf]
        %v5473 = vld [vmem:[%s5463 + $0x24] sm:$0xf]
        %v5474 = vld [vmem:[%s5463 + $0x28] sm:$0xf]
        %v5475 = vld [vmem:[%s5463 + $0x2c] sm:$0xf]
        %v5476 = vld [vmem:[%s5463 + $0x30] sm:$0xf]
        %v5477 = vld [vmem:[%s5463 + $0x34] sm:$0xf]
        %v5478 = vld [vmem:[%s5463 + $0x38] sm:$0xf]
        %v5479 = vld [vmem:[%s5463 + $0x3c] sm:$0xf]
        %v5496 = vunpack.c.l.b16 %v5464
        %v5497 = vunpack.c.l.b16 %v5465
        %v5498 = vunpack.c.l.b16 %v5466
        %v5499 = vunpack.c.l.b16 %v5467
        %v5500 = vunpack.c.l.b16 %v5468
        %v5501 = vunpack.c.l.b16 %v5469
        %v5502 = vunpack.c.l.b16 %v5470
        %v5503 = vunpack.c.l.b16 %v5471
        %v5504 = vunpack.c.l.b16 %v5472
        %v5505 = vunpack.c.l.b16 %v5473
        %v5506 = vunpack.c.l.b16 %v5474
        %v5507 = vunpack.c.l.b16 %v5475
        %v5508 = vunpack.c.l.b16 %v5476
        %v5509 = vunpack.c.l.b16 %v5477
        %v5510 = vunpack.c.l.b16 %v5478
        %v5511 = vunpack.c.l.b16 %v5479
        %v5512 = vpack.c.b16 %v5497, %v5496
        %v5513 = vpack.c.b16 %v5499, %v5498
        %v5514 = vpack.c.b16 %v5501, %v5500
        %v5515 = vpack.c.b16 %v5503, %v5502
        %v5516 = vpack.c.b16 %v5505, %v5504
        %v5517 = vpack.c.b16 %v5507, %v5506
        %v5518 = vpack.c.b16 %v5509, %v5508
        %v5519 = vpack.c.b16 %v5511, %v5510
        %5528 = vmatprep.subr.bf16.mxu0 0
        %5529 = vmatpush1.bf16.msra.mxu0 %v5519
        %5530 = vmatprep.subr.bf16.mxu0 0
        %5531 = vmatpush1.bf16.msra.mxu0 %v5518
        %5532 = vmatprep.subr.bf16.mxu0 0
        %5533 = vmatpush1.bf16.msra.mxu0 %v5517
        %5534 = vmatprep.subr.bf16.mxu0 0
        %5535 = vmatpush1.bf16.msra.mxu0 %v5516
        %5536 = vmatprep.subr.bf16.mxu0 0
        %5537 = vmatpush1.bf16.msra.mxu0 %v5515
        %5538 = vmatprep.subr.bf16.mxu0 0
        %5539 = vmatpush1.bf16.msra.mxu0 %v5514
        %5540 = vmatprep.subr.bf16.mxu0 0
        %5541 = vmatpush1.bf16.msra.mxu0 %v5513
        %5542 = vmatprep.subr.bf16.mxu0 0
        %5543 = vmatpush1.bf16.msra.mxu0 %v5512
        %5544 = vmatprep.subr.bf16.mxu0 0
        %5545 = vmatpush2.bf16.msra.mxu0 0
        %5546 = vmatprep.subr.bf16.mxu0 0
        %5547 = vmatpush2.bf16.msra.mxu0 0
        %5548 = vmatprep.subr.bf16.mxu0 0
        %5549 = vmatpush2.bf16.msra.mxu0 0
        %5550 = vmatprep.subr.bf16.mxu0 0
        %5551 = vmatpush2.bf16.msra.mxu0 0
        %5552 = vmatprep.subr.bf16.mxu0 0
        %5553 = vmatpush2.bf16.msra.mxu0 0
        %5554 = vmatprep.subr.bf16.mxu0 0
        %5555 = vmatpush2.bf16.msra.mxu0 0
        %5556 = vmatprep.subr.bf16.mxu0 0
        %5557 = vmatpush2.bf16.msra.mxu0 0
        %5558 = vmatprep.subr.bf16.mxu0 0
        %5559 = vmatpush2.bf16.msra.mxu0 0
        %5560 = vmatprep.mubr.bf16.mxu0 0
        %5561 = vmatmul.mubr.bf16.gmra.mxu0 %v5366
        %v5562 = vpop.f32.mrf.mxu0
        %v5563 = vadd.f32 0.0, %v5562
        %v5564 = vpop.f32.mrf.mxu0
        %v5565 = vpop.f32.mrf.mxu0
        %v5566 = vadd.f32 0.0, %v5565
        %v5567 = vpop.f32.mrf.mxu0
        %5568 = vmatprep.mubr.bf16.mxu0 0
        %5569 = vmatmul.mubr.bf16.gmra.mxu0 %v5367
        %v5570 = vpop.f32.mrf.mxu0
        %v5571 = vadd.f32 0.0, %v5570
        %v5572 = vpop.f32.mrf.mxu0
        %v5573 = vpop.f32.mrf.mxu0
        %v5574 = vadd.f32 0.0, %v5573
        %v5575 = vpop.f32.mrf.mxu0
        %5576 = vmatprep.mubr.bf16.mxu0 0
        %5577 = vmatmul.mubr.bf16.gmra.mxu0 %v5368
        %v5578 = vpop.f32.mrf.mxu0
        %v5579 = vadd.f32 0.0, %v5578
        %v5580 = vpop.f32.mrf.mxu0
        %v5581 = vpop.f32.mrf.mxu0
        %v5582 = vadd.f32 0.0, %v5581
        %v5583 = vpop.f32.mrf.mxu0
        %5584 = vmatprep.mubr.bf16.mxu0 0
        %5585 = vmatmul.mubr.bf16.gmra.mxu0 %v5369
        %v5586 = vpop.f32.mrf.mxu0
        %v5587 = vadd.f32 0.0, %v5586
        %v5588 = vpop.f32.mrf.mxu0
        %v5589 = vpop.f32.mrf.mxu0
        %v5590 = vadd.f32 0.0, %v5589
        %v5591 = vpop.f32.mrf.mxu0
        %5592 = vmatprep.mubr.bf16.mxu0 0
        %5593 = vmatmul.mubr.bf16.gmra.mxu0 %v5370
        %v5594 = vpop.f32.mrf.mxu0
        %v5595 = vadd.f32 0.0, %v5594
        %v5596 = vpop.f32.mrf.mxu0
        %v5597 = vpop.f32.mrf.mxu0
        %v5598 = vadd.f32 0.0, %v5597
        %v5599 = vpop.f32.mrf.mxu0
        %5600 = vmatprep.mubr.bf16.mxu0 0
        %5601 = vmatmul.mubr.bf16.gmra.mxu0 %v5371
        %v5602 = vpop.f32.mrf.mxu0
        %v5603 = vadd.f32 0.0, %v5602
        %v5604 = vpop.f32.mrf.mxu0
        %v5605 = vpop.f32.mrf.mxu0
        %v5606 = vadd.f32 0.0, %v5605
        %v5607 = vpop.f32.mrf.mxu0
        %5608 = vmatprep.mubr.bf16.mxu0 0
        %5609 = vmatmul.mubr.bf16.gmra.mxu0 %v5372
        %v5610 = vpop.f32.mrf.mxu0
        %v5611 = vadd.f32 0.0, %v5610
        %v5612 = vpop.f32.mrf.mxu0
        %v5613 = vpop.f32.mrf.mxu0
        %v5614 = vadd.f32 0.0, %v5613
        %v5615 = vpop.f32.mrf.mxu0
        %5616 = vmatprep.mubr.bf16.mxu0 0
        %5617 = vmatmul.mubr.bf16.gmra.mxu0 %v5373
        %v5618 = vpop.f32.mrf.mxu0
        %v5619 = vadd.f32 0.0, %v5618
        %v5620 = vpop.f32.mrf.mxu0
        %v5621 = vpop.f32.mrf.mxu0
        %v5622 = vadd.f32 0.0, %v5621
        %v5623 = vpop.f32.mrf.mxu0
        %5624 = vmatprep.mubr.bf16.mxu0 0
        %5625 = vmatmul.mubr.bf16.gmra.mxu0 %v5374
        %v5626 = vpop.f32.mrf.mxu0
        %v5627 = vadd.f32 0.0, %v5626
        %v5628 = vpop.f32.mrf.mxu0
        %v5629 = vpop.f32.mrf.mxu0
        %v5630 = vadd.f32 0.0, %v5629
        %v5631 = vpop.f32.mrf.mxu0
        %5632 = vmatprep.mubr.bf16.mxu0 0
        %5633 = vmatmul.mubr.bf16.gmra.mxu0 %v5375
        %v5634 = vpop.f32.mrf.mxu0
        %v5635 = vadd.f32 0.0, %v5634
        %v5636 = vpop.f32.mrf.mxu0
        %v5637 = vpop.f32.mrf.mxu0
        %v5638 = vadd.f32 0.0, %v5637
        %v5639 = vpop.f32.mrf.mxu0
        %5640 = vmatprep.mubr.bf16.mxu0 0
        %5641 = vmatmul.mubr.bf16.gmra.mxu0 %v5376
        %v5642 = vpop.f32.mrf.mxu0
        %v5643 = vadd.f32 0.0, %v5642
        %v5644 = vpop.f32.mrf.mxu0
        %v5645 = vpop.f32.mrf.mxu0
        %v5646 = vadd.f32 0.0, %v5645
        %v5647 = vpop.f32.mrf.mxu0
        %5648 = vmatprep.mubr.bf16.mxu0 0
        %5649 = vmatmul.mubr.bf16.gmra.mxu0 %v5377
        %v5650 = vpop.f32.mrf.mxu0
        %v5651 = vadd.f32 0.0, %v5650
        %v5652 = vpop.f32.mrf.mxu0
        %v5653 = vpop.f32.mrf.mxu0
        %v5654 = vadd.f32 0.0, %v5653
        %v5655 = vpop.f32.mrf.mxu0
        %5656 = vmatprep.mubr.bf16.mxu0 0
        %5657 = vmatmul.mubr.bf16.gmra.mxu0 %v5378
        %v5658 = vpop.f32.mrf.mxu0
        %v5659 = vadd.f32 0.0, %v5658
        %v5660 = vpop.f32.mrf.mxu0
        %v5661 = vpop.f32.mrf.mxu0
        %v5662 = vadd.f32 0.0, %v5661
        %v5663 = vpop.f32.mrf.mxu0
        %5664 = vmatprep.mubr.bf16.mxu0 0
        %5665 = vmatmul.mubr.bf16.gmra.mxu0 %v5379
        %v5666 = vpop.f32.mrf.mxu0
        %v5667 = vadd.f32 0.0, %v5666
        %v5668 = vpop.f32.mrf.mxu0
        %v5669 = vpop.f32.mrf.mxu0
        %v5670 = vadd.f32 0.0, %v5669
        %v5671 = vpop.f32.mrf.mxu0
        %5672 = vmatprep.mubr.bf16.mxu0 0
        %5673 = vmatmul.mubr.bf16.gmra.mxu0 %v5380
        %v5674 = vpop.f32.mrf.mxu0
        %v5675 = vadd.f32 0.0, %v5674
        %v5676 = vpop.f32.mrf.mxu0
        %v5677 = vpop.f32.mrf.mxu0
        %v5678 = vadd.f32 0.0, %v5677
        %v5679 = vpop.f32.mrf.mxu0
        %5680 = vmatprep.mubr.bf16.mxu0 0
        %5681 = vmatmul.mubr.bf16.gmra.mxu0 %v5381
        %v5682 = vpop.f32.mrf.mxu0
        %v5683 = vadd.f32 0.0, %v5682
        %v5684 = vpop.f32.mrf.mxu0
        %v5685 = vpop.f32.mrf.mxu0
        %v5686 = vadd.f32 0.0, %v5685
        %v5687 = vpop.f32.mrf.mxu0
        %5688 = vmatprep.mubr.bf16.mxu0 0
        %5689 = vmatmul.mubr.bf16.gmra.mxu0 %v5382
        %v5690 = vpop.f32.mrf.mxu0
        %v5691 = vadd.f32 0.0, %v5690
        %v5692 = vpop.f32.mrf.mxu0
        %v5693 = vpop.f32.mrf.mxu0
        %v5694 = vadd.f32 0.0, %v5693
        %v5695 = vpop.f32.mrf.mxu0
        %5696 = vmatprep.mubr.bf16.mxu0 0
        %5697 = vmatmul.mubr.bf16.gmra.mxu0 %v5383
        %v5698 = vpop.f32.mrf.mxu0
        %v5699 = vadd.f32 0.0, %v5698
        %v5700 = vpop.f32.mrf.mxu0
        %v5701 = vpop.f32.mrf.mxu0
        %v5702 = vadd.f32 0.0, %v5701
        %v5703 = vpop.f32.mrf.mxu0
        %5704 = vmatprep.mubr.bf16.mxu0 0
        %5705 = vmatmul.mubr.bf16.gmra.mxu0 %v5384
        %v5706 = vpop.f32.mrf.mxu0
        %v5707 = vadd.f32 0.0, %v5706
        %v5708 = vpop.f32.mrf.mxu0
        %v5709 = vpop.f32.mrf.mxu0
        %v5710 = vadd.f32 0.0, %v5709
        %v5711 = vpop.f32.mrf.mxu0
        %5712 = vmatprep.mubr.bf16.mxu0 0
        %5713 = vmatmul.mubr.bf16.gmra.mxu0 %v5385
        %v5714 = vpop.f32.mrf.mxu0
        %v5715 = vadd.f32 0.0, %v5714
        %v5716 = vpop.f32.mrf.mxu0
        %v5717 = vpop.f32.mrf.mxu0
        %v5718 = vadd.f32 0.0, %v5717
        %v5719 = vpop.f32.mrf.mxu0
        %5720 = vdwg.mxu0
        %v5737 = vunpack.c.l.b16 %v5447
        %v5738 = vunpack.c.l.b16 %v5448
        %v5739 = vunpack.c.l.b16 %v5449
        %v5740 = vunpack.c.l.b16 %v5450
        %v5741 = vunpack.c.l.b16 %v5451
        %v5742 = vunpack.c.l.b16 %v5452
        %v5743 = vunpack.c.l.b16 %v5453
        %v5744 = vunpack.c.l.b16 %v5454
        %v5745 = vunpack.c.l.b16 %v5455
        %v5746 = vunpack.c.l.b16 %v5456
        %v5747 = vunpack.c.l.b16 %v5457
        %v5748 = vunpack.c.l.b16 %v5458
        %v5749 = vunpack.c.l.b16 %v5459
        %v5750 = vunpack.c.l.b16 %v5460
        %v5751 = vunpack.c.l.b16 %v5461
        %v5752 = vunpack.c.l.b16 %v5462
        %v5753 = vpack.c.b16 %v5738, %v5737
        %v5754 = vpack.c.b16 %v5740, %v5739
        %v5755 = vpack.c.b16 %v5742, %v5741
        %v5756 = vpack.c.b16 %v5744, %v5743
        %v5757 = vpack.c.b16 %v5746, %v5745
        %v5758 = vpack.c.b16 %v5748, %v5747
        %v5759 = vpack.c.b16 %v5750, %v5749
        %v5760 = vpack.c.b16 %v5752, %v5751
        %5769 = vmatprep.subr.bf16.mxu0 0
        %5770 = vmatpush1.bf16.msra.mxu0 %v5760
        %5771 = vmatprep.subr.bf16.mxu0 0
        %5772 = vmatpush1.bf16.msra.mxu0 %v5759
        %5773 = vmatprep.subr.bf16.mxu0 0
        %5774 = vmatpush1.bf16.msra.mxu0 %v5758
        %5775 = vmatprep.subr.bf16.mxu0 0
        %5776 = vmatpush1.bf16.msra.mxu0 %v5757
        %5777 = vmatprep.subr.bf16.mxu0 0
        %5778 = vmatpush1.bf16.msra.mxu0 %v5756
        %5779 = vmatprep.subr.bf16.mxu0 0
        %5780 = vmatpush1.bf16.msra.mxu0 %v5755
        %5781 = vmatprep.subr.bf16.mxu0 0
        %5782 = vmatpush1.bf16.msra.mxu0 %v5754
        %5783 = vmatprep.subr.bf16.mxu0 0
        %5784 = vmatpush1.bf16.msra.mxu0 %v5753
        %5785 = vmatprep.subr.bf16.mxu0 0
        %5786 = vmatpush2.bf16.msra.mxu0 0
        %5787 = vmatprep.subr.bf16.mxu0 0
        %5788 = vmatpush2.bf16.msra.mxu0 0
        %5789 = vmatprep.subr.bf16.mxu0 0
        %5790 = vmatpush2.bf16.msra.mxu0 0
        %5791 = vmatprep.subr.bf16.mxu0 0
        %5792 = vmatpush2.bf16.msra.mxu0 0
        %5793 = vmatprep.subr.bf16.mxu0 0
        %5794 = vmatpush2.bf16.msra.mxu0 0
        %5795 = vmatprep.subr.bf16.mxu0 0
        %5796 = vmatpush2.bf16.msra.mxu0 0
        %5797 = vmatprep.subr.bf16.mxu0 0
        %5798 = vmatpush2.bf16.msra.mxu0 0
        %5799 = vmatprep.subr.bf16.mxu0 0
        %5800 = vmatpush2.bf16.msra.mxu0 0
        %5801 = vmatprep.mubr.bf16.mxu0 0
        %5802 = vmatmul.mubr.bf16.gmra.mxu0 %v5346
        %v5803 = vpop.f32.mrf.mxu0
        %v5804 = vadd.f32 %v5563, %v5803
        %v5805 = vpop.f32.mrf.mxu0
        %v5806 = vpop.f32.mrf.mxu0
        %v5807 = vadd.f32 %v5566, %v5806
        %v5808 = vpop.f32.mrf.mxu0
        %5809 = vmatprep.mubr.bf16.mxu0 0
        %5810 = vmatmul.mubr.bf16.gmra.mxu0 %v5347
        %v5811 = vpop.f32.mrf.mxu0
        %v5812 = vadd.f32 %v5571, %v5811
        %v5813 = vpop.f32.mrf.mxu0
        %v5814 = vpop.f32.mrf.mxu0
        %v5815 = vadd.f32 %v5574, %v5814
        %v5816 = vpop.f32.mrf.mxu0
        %5817 = vmatprep.mubr.bf16.mxu0 0
        %5818 = vmatmul.mubr.bf16.gmra.mxu0 %v5348
        %v5819 = vpop.f32.mrf.mxu0
        %v5820 = vadd.f32 %v5579, %v5819
        %v5821 = vpop.f32.mrf.mxu0
        %v5822 = vpop.f32.mrf.mxu0
        %v5823 = vadd.f32 %v5582, %v5822
        %v5824 = vpop.f32.mrf.mxu0
        %5825 = vmatprep.mubr.bf16.mxu0 0
        %5826 = vmatmul.mubr.bf16.gmra.mxu0 %v5349
        %v5827 = vpop.f32.mrf.mxu0
        %v5828 = vadd.f32 %v5587, %v5827
        %v5829 = vpop.f32.mrf.mxu0
        %v5830 = vpop.f32.mrf.mxu0
        %v5831 = vadd.f32 %v5590, %v5830
        %v5832 = vpop.f32.mrf.mxu0
        %5833 = vmatprep.mubr.bf16.mxu0 0
        %5834 = vmatmul.mubr.bf16.gmra.mxu0 %v5350
        %v5835 = vpop.f32.mrf.mxu0
        %v5836 = vadd.f32 %v5595, %v5835
        %v5837 = vpop.f32.mrf.mxu0
        %v5838 = vpop.f32.mrf.mxu0
        %v5839 = vadd.f32 %v5598, %v5838
        %v5840 = vpop.f32.mrf.mxu0
        %5841 = vmatprep.mubr.bf16.mxu0 0
        %5842 = vmatmul.mubr.bf16.gmra.mxu0 %v5351
        %v5843 = vpop.f32.mrf.mxu0
        %v5844 = vadd.f32 %v5603, %v5843
        %v5845 = vpop.f32.mrf.mxu0
        %v5846 = vpop.f32.mrf.mxu0
        %v5847 = vadd.f32 %v5606, %v5846
        %v5848 = vpop.f32.mrf.mxu0
        %5849 = vmatprep.mubr.bf16.mxu0 0
        %5850 = vmatmul.mubr.bf16.gmra.mxu0 %v5352
        %v5851 = vpop.f32.mrf.mxu0
        %v5852 = vadd.f32 %v5611, %v5851
        %v5853 = vpop.f32.mrf.mxu0
        %v5854 = vpop.f32.mrf.mxu0
        %v5855 = vadd.f32 %v5614, %v5854
        %v5856 = vpop.f32.mrf.mxu0
        %5857 = vmatprep.mubr.bf16.mxu0 0
        %5858 = vmatmul.mubr.bf16.gmra.mxu0 %v5353
        %v5859 = vpop.f32.mrf.mxu0
        %v5860 = vadd.f32 %v5619, %v5859
        %v5861 = vpop.f32.mrf.mxu0
        %v5862 = vpop.f32.mrf.mxu0
        %v5863 = vadd.f32 %v5622, %v5862
        %v5864 = vpop.f32.mrf.mxu0
        %5865 = vmatprep.mubr.bf16.mxu0 0
        %5866 = vmatmul.mubr.bf16.gmra.mxu0 %v5354
        %v5867 = vpop.f32.mrf.mxu0
        %v5868 = vadd.f32 %v5627, %v5867
        %v5869 = vpop.f32.mrf.mxu0
        %v5870 = vpop.f32.mrf.mxu0
        %v5871 = vadd.f32 %v5630, %v5870
        %v5872 = vpop.f32.mrf.mxu0
        %5873 = vmatprep.mubr.bf16.mxu0 0
        %5874 = vmatmul.mubr.bf16.gmra.mxu0 %v5355
        %v5875 = vpop.f32.mrf.mxu0
        %v5876 = vadd.f32 %v5635, %v5875
        %v5877 = vpop.f32.mrf.mxu0
        %v5878 = vpop.f32.mrf.mxu0
        %v5879 = vadd.f32 %v5638, %v5878
        %v5880 = vpop.f32.mrf.mxu0
        %5881 = vmatprep.mubr.bf16.mxu0 0
        %5882 = vmatmul.mubr.bf16.gmra.mxu0 %v5356
        %v5883 = vpop.f32.mrf.mxu0
        %v5884 = vadd.f32 %v5643, %v5883
        %v5885 = vpop.f32.mrf.mxu0
        %v5886 = vpop.f32.mrf.mxu0
        %v5887 = vadd.f32 %v5646, %v5886
        %v5888 = vpop.f32.mrf.mxu0
        %5889 = vmatprep.mubr.bf16.mxu0 0
        %5890 = vmatmul.mubr.bf16.gmra.mxu0 %v5357
        %v5891 = vpop.f32.mrf.mxu0
        %v5892 = vadd.f32 %v5651, %v5891
        %v5893 = vpop.f32.mrf.mxu0
        %v5894 = vpop.f32.mrf.mxu0
        %v5895 = vadd.f32 %v5654, %v5894
        %v5896 = vpop.f32.mrf.mxu0
        %5897 = vmatprep.mubr.bf16.mxu0 0
        %5898 = vmatmul.mubr.bf16.gmra.mxu0 %v5358
        %v5899 = vpop.f32.mrf.mxu0
        %v5900 = vadd.f32 %v5659, %v5899
        %v5901 = vpop.f32.mrf.mxu0
        %v5902 = vpop.f32.mrf.mxu0
        %v5903 = vadd.f32 %v5662, %v5902
        %v5904 = vpop.f32.mrf.mxu0
        %5905 = vmatprep.mubr.bf16.mxu0 0
        %5906 = vmatmul.mubr.bf16.gmra.mxu0 %v5359
        %v5907 = vpop.f32.mrf.mxu0
        %v5908 = vadd.f32 %v5667, %v5907
        %v5909 = vpop.f32.mrf.mxu0
        %v5910 = vpop.f32.mrf.mxu0
        %v5911 = vadd.f32 %v5670, %v5910
        %v5912 = vpop.f32.mrf.mxu0
        %5913 = vmatprep.mubr.bf16.mxu0 0
        %5914 = vmatmul.mubr.bf16.gmra.mxu0 %v5360
        %v5915 = vpop.f32.mrf.mxu0
        %v5916 = vadd.f32 %v5675, %v5915
        %v5917 = vpop.f32.mrf.mxu0
        %v5918 = vpop.f32.mrf.mxu0
        %v5919 = vadd.f32 %v5678, %v5918
        %v5920 = vpop.f32.mrf.mxu0
        %5921 = vmatprep.mubr.bf16.mxu0 0
        %5922 = vmatmul.mubr.bf16.gmra.mxu0 %v5361
        %v5923 = vpop.f32.mrf.mxu0
        %v5924 = vadd.f32 %v5683, %v5923
        %v5925 = vpop.f32.mrf.mxu0
        %v5926 = vpop.f32.mrf.mxu0
        %v5927 = vadd.f32 %v5686, %v5926
        %v5928 = vpop.f32.mrf.mxu0
        %5929 = vmatprep.mubr.bf16.mxu0 0
        %5930 = vmatmul.mubr.bf16.gmra.mxu0 %v5362
        %v5931 = vpop.f32.mrf.mxu0
        %v5932 = vadd.f32 %v5691, %v5931
        %v5933 = vpop.f32.mrf.mxu0
        %v5934 = vpop.f32.mrf.mxu0
        %v5935 = vadd.f32 %v5694, %v5934
        %v5936 = vpop.f32.mrf.mxu0
        %5937 = vmatprep.mubr.bf16.mxu0 0
        %5938 = vmatmul.mubr.bf16.gmra.mxu0 %v5363
        %v5939 = vpop.f32.mrf.mxu0
        %v5940 = vadd.f32 %v5699, %v5939
        %v5941 = vpop.f32.mrf.mxu0
        %v5942 = vpop.f32.mrf.mxu0
        %v5943 = vadd.f32 %v5702, %v5942
        %v5944 = vpop.f32.mrf.mxu0
        %5945 = vmatprep.mubr.bf16.mxu0 0
        %5946 = vmatmul.mubr.bf16.gmra.mxu0 %v5364
        %v5947 = vpop.f32.mrf.mxu0
        %v5948 = vadd.f32 %v5707, %v5947
        %v5949 = vpop.f32.mrf.mxu0
        %v5950 = vpop.f32.mrf.mxu0
        %v5951 = vadd.f32 %v5710, %v5950
        %v5952 = vpop.f32.mrf.mxu0
        %5953 = vmatprep.mubr.bf16.mxu0 0
        %5954 = vmatmul.mubr.bf16.gmra.mxu0 %v5365
        %v5955 = vpop.f32.mrf.mxu0
        %v5956 = vadd.f32 %v5715, %v5955
        %v5957 = vpop.f32.mrf.mxu0
        %v5958 = vpop.f32.mrf.mxu0
        %v5959 = vadd.f32 %v5718, %v5958
        %v5960 = vpop.f32.mrf.mxu0
        %5961 = vdwg.mxu0
        %s5962 = scalar_lea.vmem %s2, 512
        %v5963 = vld [vmem:[%s5962] sm:$0xf]
        %v5964 = vld [vmem:[%s5962 + $0x4] sm:$0xf]
        %v5965 = vld [vmem:[%s5962 + $0x8] sm:$0xf]
        %v5966 = vld [vmem:[%s5962 + $0xc] sm:$0xf]
        %v5967 = vld [vmem:[%s5962 + $0x10] sm:$0xf]
        %v5968 = vld [vmem:[%s5962 + $0x14] sm:$0xf]
        %v5969 = vld [vmem:[%s5962 + $0x18] sm:$0xf]
        %v5970 = vld [vmem:[%s5962 + $0x1c] sm:$0xf]
        %v5971 = vld [vmem:[%s5962 + $0x20] sm:$0xf]
        %v5972 = vld [vmem:[%s5962 + $0x24] sm:$0xf]
        %v5973 = vld [vmem:[%s5962 + $0x28] sm:$0xf]
        %v5974 = vld [vmem:[%s5962 + $0x2c] sm:$0xf]
        %v5975 = vld [vmem:[%s5962 + $0x30] sm:$0xf]
        %v5976 = vld [vmem:[%s5962 + $0x34] sm:$0xf]
        %v5977 = vld [vmem:[%s5962 + $0x38] sm:$0xf]
        %v5978 = vld [vmem:[%s5962 + $0x3c] sm:$0xf]
        %v5995 = vunpack.c.l.b16 %v5963
        %v5996 = vunpack.c.l.b16 %v5964
        %v5997 = vunpack.c.l.b16 %v5965
        %v5998 = vunpack.c.l.b16 %v5966
        %v5999 = vunpack.c.l.b16 %v5967
        %v6000 = vunpack.c.l.b16 %v5968
        %v6001 = vunpack.c.l.b16 %v5969
        %v6002 = vunpack.c.l.b16 %v5970
        %v6003 = vunpack.c.l.b16 %v5971
        %v6004 = vunpack.c.l.b16 %v5972
        %v6005 = vunpack.c.l.b16 %v5973
        %v6006 = vunpack.c.l.b16 %v5974
        %v6007 = vunpack.c.l.b16 %v5975
        %v6008 = vunpack.c.l.b16 %v5976
        %v6009 = vunpack.c.l.b16 %v5977
        %v6010 = vunpack.c.l.b16 %v5978
        %v6011 = vpack.c.b16 %v5996, %v5995
        %v6012 = vpack.c.b16 %v5998, %v5997
        %v6013 = vpack.c.b16 %v6000, %v5999
        %v6014 = vpack.c.b16 %v6002, %v6001
        %v6015 = vpack.c.b16 %v6004, %v6003
        %v6016 = vpack.c.b16 %v6006, %v6005
        %v6017 = vpack.c.b16 %v6008, %v6007
        %v6018 = vpack.c.b16 %v6010, %v6009
        %6027 = vmatprep.subr.bf16.mxu0 0
        %6028 = vmatpush1.bf16.msra.mxu0 %v6018
        %6029 = vmatprep.subr.bf16.mxu0 0
        %6030 = vmatpush1.bf16.msra.mxu0 %v6017
        %6031 = vmatprep.subr.bf16.mxu0 0
        %6032 = vmatpush1.bf16.msra.mxu0 %v6016
        %6033 = vmatprep.subr.bf16.mxu0 0
        %6034 = vmatpush1.bf16.msra.mxu0 %v6015
        %6035 = vmatprep.subr.bf16.mxu0 0
        %6036 = vmatpush1.bf16.msra.mxu0 %v6014
        %6037 = vmatprep.subr.bf16.mxu0 0
        %6038 = vmatpush1.bf16.msra.mxu0 %v6013
        %6039 = vmatprep.subr.bf16.mxu0 0
        %6040 = vmatpush1.bf16.msra.mxu0 %v6012
        %6041 = vmatprep.subr.bf16.mxu0 0
        %6042 = vmatpush1.bf16.msra.mxu0 %v6011
        %6043 = vmatprep.subr.bf16.mxu0 0
        %6044 = vmatpush2.bf16.msra.mxu0 0
        %6045 = vmatprep.subr.bf16.mxu0 0
        %6046 = vmatpush2.bf16.msra.mxu0 0
        %6047 = vmatprep.subr.bf16.mxu0 0
        %6048 = vmatpush2.bf16.msra.mxu0 0
        %6049 = vmatprep.subr.bf16.mxu0 0
        %6050 = vmatpush2.bf16.msra.mxu0 0
        %6051 = vmatprep.subr.bf16.mxu0 0
        %6052 = vmatpush2.bf16.msra.mxu0 0
        %6053 = vmatprep.subr.bf16.mxu0 0
        %6054 = vmatpush2.bf16.msra.mxu0 0
        %6055 = vmatprep.subr.bf16.mxu0 0
        %6056 = vmatpush2.bf16.msra.mxu0 0
        %6057 = vmatprep.subr.bf16.mxu0 0
        %6058 = vmatpush2.bf16.msra.mxu0 0
        %6059 = vmatprep.mubr.bf16.mxu0 0
        %6060 = vmatmul.mubr.bf16.gmra.mxu0 %v5426
        %v6061 = vpop.f32.mrf.mxu0
        %v6062 = vadd.f32 0.0, %v6061
        %v6063 = vpop.f32.mrf.mxu0
        %v6064 = vpop.f32.mrf.mxu0
        %v6065 = vadd.f32 0.0, %v6064
        %v6066 = vpop.f32.mrf.mxu0
        %6067 = vmatprep.mubr.bf16.mxu0 0
        %6068 = vmatmul.mubr.bf16.gmra.mxu0 %v5427
        %v6069 = vpop.f32.mrf.mxu0
        %v6070 = vadd.f32 0.0, %v6069
        %v6071 = vpop.f32.mrf.mxu0
        %v6072 = vpop.f32.mrf.mxu0
        %v6073 = vadd.f32 0.0, %v6072
        %v6074 = vpop.f32.mrf.mxu0
        %6075 = vmatprep.mubr.bf16.mxu0 0
        %6076 = vmatmul.mubr.bf16.gmra.mxu0 %v5428
        %v6077 = vpop.f32.mrf.mxu0
        %v6078 = vadd.f32 0.0, %v6077
        %v6079 = vpop.f32.mrf.mxu0
        %v6080 = vpop.f32.mrf.mxu0
        %v6081 = vadd.f32 0.0, %v6080
        %v6082 = vpop.f32.mrf.mxu0
        %6083 = vmatprep.mubr.bf16.mxu0 0
        %6084 = vmatmul.mubr.bf16.gmra.mxu0 %v5429
        %v6085 = vpop.f32.mrf.mxu0
        %v6086 = vadd.f32 0.0, %v6085
        %v6087 = vpop.f32.mrf.mxu0
        %v6088 = vpop.f32.mrf.mxu0
        %v6089 = vadd.f32 0.0, %v6088
        %v6090 = vpop.f32.mrf.mxu0
        %6091 = vmatprep.mubr.bf16.mxu0 0
        %6092 = vmatmul.mubr.bf16.gmra.mxu0 %v5430
        %v6093 = vpop.f32.mrf.mxu0
        %v6094 = vadd.f32 0.0, %v6093
        %v6095 = vpop.f32.mrf.mxu0
        %v6096 = vpop.f32.mrf.mxu0
        %v6097 = vadd.f32 0.0, %v6096
        %v6098 = vpop.f32.mrf.mxu0
        %6099 = vmatprep.mubr.bf16.mxu0 0
        %6100 = vmatmul.mubr.bf16.gmra.mxu0 %v5431
        %v6101 = vpop.f32.mrf.mxu0
        %v6102 = vadd.f32 0.0, %v6101
        %v6103 = vpop.f32.mrf.mxu0
        %v6104 = vpop.f32.mrf.mxu0
        %v6105 = vadd.f32 0.0, %v6104
        %v6106 = vpop.f32.mrf.mxu0
        %6107 = vmatprep.mubr.bf16.mxu0 0
        %6108 = vmatmul.mubr.bf16.gmra.mxu0 %v5432
        %v6109 = vpop.f32.mrf.mxu0
        %v6110 = vadd.f32 0.0, %v6109
        %v6111 = vpop.f32.mrf.mxu0
        %v6112 = vpop.f32.mrf.mxu0
        %v6113 = vadd.f32 0.0, %v6112
        %v6114 = vpop.f32.mrf.mxu0
        %6115 = vmatprep.mubr.bf16.mxu0 0
        %6116 = vmatmul.mubr.bf16.gmra.mxu0 %v5433
        %v6117 = vpop.f32.mrf.mxu0
        %v6118 = vadd.f32 0.0, %v6117
        %v6119 = vpop.f32.mrf.mxu0
        %v6120 = vpop.f32.mrf.mxu0
        %v6121 = vadd.f32 0.0, %v6120
        %v6122 = vpop.f32.mrf.mxu0
        %6123 = vmatprep.mubr.bf16.mxu0 0
        %6124 = vmatmul.mubr.bf16.gmra.mxu0 %v5434
        %v6125 = vpop.f32.mrf.mxu0
        %v6126 = vadd.f32 0.0, %v6125
        %v6127 = vpop.f32.mrf.mxu0
        %v6128 = vpop.f32.mrf.mxu0
        %v6129 = vadd.f32 0.0, %v6128
        %v6130 = vpop.f32.mrf.mxu0
        %6131 = vmatprep.mubr.bf16.mxu0 0
        %6132 = vmatmul.mubr.bf16.gmra.mxu0 %v5435
        %v6133 = vpop.f32.mrf.mxu0
        %v6134 = vadd.f32 0.0, %v6133
        %v6135 = vpop.f32.mrf.mxu0
        %v6136 = vpop.f32.mrf.mxu0
        %v6137 = vadd.f32 0.0, %v6136
        %v6138 = vpop.f32.mrf.mxu0
        %6139 = vmatprep.mubr.bf16.mxu0 0
        %6140 = vmatmul.mubr.bf16.gmra.mxu0 %v5436
        %v6141 = vpop.f32.mrf.mxu0
        %v6142 = vadd.f32 0.0, %v6141
        %v6143 = vpop.f32.mrf.mxu0
        %v6144 = vpop.f32.mrf.mxu0
        %v6145 = vadd.f32 0.0, %v6144
        %v6146 = vpop.f32.mrf.mxu0
        %6147 = vmatprep.mubr.bf16.mxu0 0
        %6148 = vmatmul.mubr.bf16.gmra.mxu0 %v5437
        %v6149 = vpop.f32.mrf.mxu0
        %v6150 = vadd.f32 0.0, %v6149
        %v6151 = vpop.f32.mrf.mxu0
        %v6152 = vpop.f32.mrf.mxu0
        %v6153 = vadd.f32 0.0, %v6152
        %v6154 = vpop.f32.mrf.mxu0
        %6155 = vmatprep.mubr.bf16.mxu0 0
        %6156 = vmatmul.mubr.bf16.gmra.mxu0 %v5438
        %v6157 = vpop.f32.mrf.mxu0
        %v6158 = vadd.f32 0.0, %v6157
        %v6159 = vpop.f32.mrf.mxu0
        %v6160 = vpop.f32.mrf.mxu0
        %v6161 = vadd.f32 0.0, %v6160
        %v6162 = vpop.f32.mrf.mxu0
        %6163 = vmatprep.mubr.bf16.mxu0 0
        %6164 = vmatmul.mubr.bf16.gmra.mxu0 %v5439
        %v6165 = vpop.f32.mrf.mxu0
        %v6166 = vadd.f32 0.0, %v6165
        %v6167 = vpop.f32.mrf.mxu0
        %v6168 = vpop.f32.mrf.mxu0
        %v6169 = vadd.f32 0.0, %v6168
        %v6170 = vpop.f32.mrf.mxu0
        %6171 = vmatprep.mubr.bf16.mxu0 0
        %6172 = vmatmul.mubr.bf16.gmra.mxu0 %v5440
        %v6173 = vpop.f32.mrf.mxu0
        %v6174 = vadd.f32 0.0, %v6173
        %v6175 = vpop.f32.mrf.mxu0
        %v6176 = vpop.f32.mrf.mxu0
        %v6177 = vadd.f32 0.0, %v6176
        %v6178 = vpop.f32.mrf.mxu0
        %6179 = vmatprep.mubr.bf16.mxu0 0
        %6180 = vmatmul.mubr.bf16.gmra.mxu0 %v5441
        %v6181 = vpop.f32.mrf.mxu0
        %v6182 = vadd.f32 0.0, %v6181
        %v6183 = vpop.f32.mrf.mxu0
        %v6184 = vpop.f32.mrf.mxu0
        %v6185 = vadd.f32 0.0, %v6184
        %v6186 = vpop.f32.mrf.mxu0
        %6187 = vmatprep.mubr.bf16.mxu0 0
        %6188 = vmatmul.mubr.bf16.gmra.mxu0 %v5442
        %v6189 = vpop.f32.mrf.mxu0
        %v6190 = vadd.f32 0.0, %v6189
        %v6191 = vpop.f32.mrf.mxu0
        %v6192 = vpop.f32.mrf.mxu0
        %v6193 = vadd.f32 0.0, %v6192
        %v6194 = vpop.f32.mrf.mxu0
        %6195 = vmatprep.mubr.bf16.mxu0 0
        %6196 = vmatmul.mubr.bf16.gmra.mxu0 %v5443
        %v6197 = vpop.f32.mrf.mxu0
        %v6198 = vadd.f32 0.0, %v6197
        %v6199 = vpop.f32.mrf.mxu0
        %v6200 = vpop.f32.mrf.mxu0
        %v6201 = vadd.f32 0.0, %v6200
        %v6202 = vpop.f32.mrf.mxu0
        %6203 = vmatprep.mubr.bf16.mxu0 0
        %6204 = vmatmul.mubr.bf16.gmra.mxu0 %v5444
        %v6205 = vpop.f32.mrf.mxu0
        %v6206 = vadd.f32 0.0, %v6205
        %v6207 = vpop.f32.mrf.mxu0
        %v6208 = vpop.f32.mrf.mxu0
        %v6209 = vadd.f32 0.0, %v6208
        %v6210 = vpop.f32.mrf.mxu0
        %6211 = vmatprep.mubr.bf16.mxu0 0
        %6212 = vmatmul.mubr.bf16.gmra.mxu0 %v5445
        %v6213 = vpop.f32.mrf.mxu0
        %v6214 = vadd.f32 0.0, %v6213
        %v6215 = vpop.f32.mrf.mxu0
        %v6216 = vpop.f32.mrf.mxu0
        %v6217 = vadd.f32 0.0, %v6216
        %v6218 = vpop.f32.mrf.mxu0
        %6219 = vdwg.mxu0
        %v6220 = vadd.f32 %v5804, %v6062
        %v6221 = vadd.f32 %v5807, %v6065
        %v6222 = vadd.f32 %v5812, %v6070
        %v6223 = vadd.f32 %v5815, %v6073
        %v6224 = vadd.f32 %v5820, %v6078
        %v6225 = vadd.f32 %v5823, %v6081
        %v6226 = vadd.f32 %v5828, %v6086
        %v6227 = vadd.f32 %v5831, %v6089
        %v6228 = vadd.f32 %v5836, %v6094
        %v6229 = vadd.f32 %v5839, %v6097
        %v6230 = vadd.f32 %v5844, %v6102
        %v6231 = vadd.f32 %v5847, %v6105
        %v6232 = vadd.f32 %v5852, %v6110
        %v6233 = vadd.f32 %v5855, %v6113
        %v6234 = vadd.f32 %v5860, %v6118
        %v6235 = vadd.f32 %v5863, %v6121
        %v6236 = vadd.f32 %v5868, %v6126
        %v6237 = vadd.f32 %v5871, %v6129
        %v6238 = vadd.f32 %v5876, %v6134
        %v6239 = vadd.f32 %v5879, %v6137
        %v6240 = vadd.f32 %v5884, %v6142
        %v6241 = vadd.f32 %v5887, %v6145
        %v6242 = vadd.f32 %v5892, %v6150
        %v6243 = vadd.f32 %v5895, %v6153
        %v6244 = vadd.f32 %v5900, %v6158
        %v6245 = vadd.f32 %v5903, %v6161
        %v6246 = vadd.f32 %v5908, %v6166
        %v6247 = vadd.f32 %v5911, %v6169
        %v6248 = vadd.f32 %v5916, %v6174
        %v6249 = vadd.f32 %v5919, %v6177
        %v6250 = vadd.f32 %v5924, %v6182
        %v6251 = vadd.f32 %v5927, %v6185
        %v6252 = vadd.f32 %v5932, %v6190
        %v6253 = vadd.f32 %v5935, %v6193
        %v6254 = vadd.f32 %v5940, %v6198
        %v6255 = vadd.f32 %v5943, %v6201
        %v6256 = vadd.f32 %v5948, %v6206
        %v6257 = vadd.f32 %v5951, %v6209
        %v6258 = vadd.f32 %v5956, %v6214
        %v6259 = vadd.f32 %v5959, %v6217
        %v6260 = vsel %vm1811, %v6259, 0.0
        %6261 = vxpose.xlu0.b32.start [1/16] %v6220, 128
        %6262 = vxpose.xlu0.b32.cont [2/16] %v6221, 128
        %6263 = vxpose.xlu0.b32.cont [3/16] %v6222, 128
        %6264 = vxpose.xlu0.b32.cont [4/16] %v6223, 128
        %6265 = vxpose.xlu0.b32.cont [5/16] %v6224, 128
        %6266 = vxpose.xlu0.b32.cont [6/16] %v6225, 128
        %6267 = vxpose.xlu0.b32.cont [7/16] %v6226, 128
        %6268 = vxpose.xlu0.b32.cont [8/16] %v6227, 128
        %6269 = vxpose.xlu0.b32.cont [9/16] %v6228, 128
        %6270 = vxpose.xlu0.b32.cont [10/16] %v6229, 128
        %6271 = vxpose.xlu0.b32.cont [11/16] %v6230, 128
        %6272 = vxpose.xlu0.b32.cont [12/16] %v6231, 128
        %6273 = vxpose.xlu0.b32.cont [13/16] %v6232, 128
        %6274 = vxpose.xlu0.b32.cont [14/16] %v6233, 128
        %6275 = vxpose.xlu0.b32.cont [15/16] %v6234, 128
        %6276 = vxpose.xlu0.b32.end [16/16] %v6235, 128
        %v6277 = vpop.trf.xlu0
        %v6278 = vpop.trf.xlu0
        %v6279 = vpop.trf.xlu0
        %v6280 = vpop.trf.xlu0
        %v6281 = vpop.trf.xlu0
        %v6282 = vpop.trf.xlu0
        %v6283 = vpop.trf.xlu0
        %v6284 = vpop.trf.xlu0
        %v6285 = vpop.trf.xlu0
        %v6286 = vpop.trf.xlu0
        %v6287 = vpop.trf.xlu0
        %v6288 = vpop.trf.xlu0
        %v6289 = vpop.trf.xlu0
        %v6290 = vpop.trf.xlu0
        %v6291 = vpop.trf.xlu0
        %v6292 = vpop.trf.xlu0
        %6293 = vst [vmem:[%s239] sm:$0xff] %v6277
        %6294 = vst [vmem:[%s239 + $0x18] sm:$0xff] %v6278
        %6295 = vst [vmem:[%s239 + $0x30] sm:$0xff] %v6279
        %6296 = vst [vmem:[%s239 + $0x48] sm:$0xff] %v6280
        %6297 = vst [vmem:[%s239 + $0x60] sm:$0xff] %v6281
        %6298 = vst [vmem:[%s239 + $0x78] sm:$0xff] %v6282
        %6299 = vst [vmem:[%s239 + $0x90] sm:$0xff] %v6283
        %6300 = vst [vmem:[%s239 + $0xa8] sm:$0xff] %v6284
        %6301 = vst [vmem:[%s239 + $0xc0] sm:$0xff] %v6285
        %6302 = vst [vmem:[%s239 + $0xd8] sm:$0xff] %v6286
        %6303 = vst [vmem:[%s239 + $0xf0] sm:$0xff] %v6287
        %6304 = vst [vmem:[%s239 + $0x108] sm:$0xff] %v6288
        %6305 = vst [vmem:[%s239 + $0x120] sm:$0xff] %v6289
        %6306 = vst [vmem:[%s239 + $0x138] sm:$0xff] %v6290
        %6307 = vst [vmem:[%s239 + $0x150] sm:$0xff] %v6291
        %6308 = vst [vmem:[%s239 + $0x168] sm:$0xff] %v6292
        %6309 = vxpose.xlu0.b32.start [1/16] %v6236, 128
        %6310 = vxpose.xlu0.b32.cont [2/16] %v6237, 128
        %6311 = vxpose.xlu0.b32.cont [3/16] %v6238, 128
        %6312 = vxpose.xlu0.b32.cont [4/16] %v6239, 128
        %6313 = vxpose.xlu0.b32.cont [5/16] %v6240, 128
        %6314 = vxpose.xlu0.b32.cont [6/16] %v6241, 128
        %6315 = vxpose.xlu0.b32.cont [7/16] %v6242, 128
        %6316 = vxpose.xlu0.b32.cont [8/16] %v6243, 128
        %6317 = vxpose.xlu0.b32.cont [9/16] %v6244, 128
        %6318 = vxpose.xlu0.b32.cont [10/16] %v6245, 128
        %6319 = vxpose.xlu0.b32.cont [11/16] %v6246, 128
        %6320 = vxpose.xlu0.b32.cont [12/16] %v6247, 128
        %6321 = vxpose.xlu0.b32.cont [13/16] %v6248, 128
        %6322 = vxpose.xlu0.b32.cont [14/16] %v6249, 128
        %6323 = vxpose.xlu0.b32.cont [15/16] %v6250, 128
        %6324 = vxpose.xlu0.b32.end [16/16] %v6251, 128
        %v6325 = vpop.trf.xlu0
        %v6326 = vpop.trf.xlu0
        %v6327 = vpop.trf.xlu0
        %v6328 = vpop.trf.xlu0
        %v6329 = vpop.trf.xlu0
        %v6330 = vpop.trf.xlu0
        %v6331 = vpop.trf.xlu0
        %v6332 = vpop.trf.xlu0
        %v6333 = vpop.trf.xlu0
        %v6334 = vpop.trf.xlu0
        %v6335 = vpop.trf.xlu0
        %v6336 = vpop.trf.xlu0
        %v6337 = vpop.trf.xlu0
        %v6338 = vpop.trf.xlu0
        %v6339 = vpop.trf.xlu0
        %v6340 = vpop.trf.xlu0
        %6341 = vst [vmem:[%s239 + $0x8] sm:$0xff] %v6325
        %6342 = vst [vmem:[%s239 + $0x20] sm:$0xff] %v6326
        %6343 = vst [vmem:[%s239 + $0x38] sm:$0xff] %v6327
        %6344 = vst [vmem:[%s239 + $0x50] sm:$0xff] %v6328
        %6345 = vst [vmem:[%s239 + $0x68] sm:$0xff] %v6329
        %6346 = vst [vmem:[%s239 + $0x80] sm:$0xff] %v6330
        %6347 = vst [vmem:[%s239 + $0x98] sm:$0xff] %v6331
        %6348 = vst [vmem:[%s239 + $0xb0] sm:$0xff] %v6332
        %6349 = vst [vmem:[%s239 + $0xc8] sm:$0xff] %v6333
        %6350 = vst [vmem:[%s239 + $0xe0] sm:$0xff] %v6334
        %6351 = vst [vmem:[%s239 + $0xf8] sm:$0xff] %v6335
        %6352 = vst [vmem:[%s239 + $0x110] sm:$0xff] %v6336
        %6353 = vst [vmem:[%s239 + $0x128] sm:$0xff] %v6337
        %6354 = vst [vmem:[%s239 + $0x140] sm:$0xff] %v6338
        %6355 = vst [vmem:[%s239 + $0x158] sm:$0xff] %v6339
        %6356 = vst [vmem:[%s239 + $0x170] sm:$0xff] %v6340
        %6357 = vxpose.xlu0.b32.start [1/16] %v6252, 128
        %6358 = vxpose.xlu0.b32.cont [2/16] %v6253, 128
        %6359 = vxpose.xlu0.b32.cont [3/16] %v6254, 128
        %6360 = vxpose.xlu0.b32.cont [4/16] %v6255, 128
        %6361 = vxpose.xlu0.b32.cont [5/16] %v6256, 128
        %6362 = vxpose.xlu0.b32.cont [6/16] %v6257, 128
        %6363 = vxpose.xlu0.b32.cont [7/16] %v6258, 128
        %6364 = vxpose.xlu0.b32.cont [8/16] %v6260, 128
        %6365 = vxpose.xlu0.b32.cont [9/16] 0.0, 128
        %6366 = vxpose.xlu0.b32.cont [10/16] 0.0, 128
        %6367 = vxpose.xlu0.b32.cont [11/16] 0.0, 128
        %6368 = vxpose.xlu0.b32.cont [12/16] 0.0, 128
        %6369 = vxpose.xlu0.b32.cont [13/16] 0.0, 128
        %6370 = vxpose.xlu0.b32.cont [14/16] 0.0, 128
        %6371 = vxpose.xlu0.b32.cont [15/16] 0.0, 128
        %6372 = vxpose.xlu0.b32.end [16/16] 0.0, 128
        %v6373 = vpop.trf.xlu0
        %v6374 = vpop.trf.xlu0
        %v6375 = vpop.trf.xlu0
        %v6376 = vpop.trf.xlu0
        %v6377 = vpop.trf.xlu0
        %v6378 = vpop.trf.xlu0
        %v6379 = vpop.trf.xlu0
        %v6380 = vpop.trf.xlu0
        %v6381 = vpop.trf.xlu0
        %v6382 = vpop.trf.xlu0
        %v6383 = vpop.trf.xlu0
        %v6384 = vpop.trf.xlu0
        %v6385 = vpop.trf.xlu0
        %v6386 = vpop.trf.xlu0
        %v6387 = vpop.trf.xlu0
        %v6388 = vpop.trf.xlu0
        %vm6389 = vcmask 465920
        %6390 = vst.msk [vmem:[%s239 + $0x10] sm:$0xff] %vm6389, %v6373
        %6391 = vst.msk [vmem:[%s239 + $0x28] sm:$0xff] %vm6389, %v6374
        %6392 = vst.msk [vmem:[%s239 + $0x40] sm:$0xff] %vm6389, %v6375
        %6393 = vst.msk [vmem:[%s239 + $0x58] sm:$0xff] %vm6389, %v6376
        %6394 = vst.msk [vmem:[%s239 + $0x70] sm:$0xff] %vm6389, %v6377
        %6395 = vst.msk [vmem:[%s239 + $0x88] sm:$0xff] %vm6389, %v6378
        %6396 = vst.msk [vmem:[%s239 + $0xa0] sm:$0xff] %vm6389, %v6379
        %6397 = vst.msk [vmem:[%s239 + $0xb8] sm:$0xff] %vm6389, %v6380
        %6398 = vst.msk [vmem:[%s239 + $0xd0] sm:$0xff] %vm6389, %v6381
        %6399 = vst.msk [vmem:[%s239 + $0xe8] sm:$0xff] %vm6389, %v6382
        %6400 = vst.msk [vmem:[%s239 + $0x100] sm:$0xff] %vm6389, %v6383
        %6401 = vst.msk [vmem:[%s239 + $0x118] sm:$0xff] %vm6389, %v6384
        %6402 = vst.msk [vmem:[%s239 + $0x130] sm:$0xff] %vm6389, %v6385
        %6403 = vst.msk [vmem:[%s239 + $0x148] sm:$0xff] %vm6389, %v6386
        %6404 = vst.msk [vmem:[%s239 + $0x160] sm:$0xff] %vm6389, %v6387
        %6405 = vst.msk [vmem:[%s239 + $0x178] sm:$0xff] %vm6389, %v6388
        %p6406 = scmp.lt.s32.totalorder %s17, 1
        %s6407 = scalar_select %p6406, %s17, 1
        %s6408 = smul.addr %s6407, 48
        %s6409 = smul.addr %s6408, 8
        %s6410 = scalar_lea.vmem %s5, %s6409
        // Predicated region
        $region45: #{tpu_custom_call.1} parent=39 // pred_check
          %p6411 = pneg %p145
        $region46: #{tpu_custom_call.1} parent=39 // pred_check_branch
          %6413 = sbr.rel (%p6411) target = $region48
        $region47: #{tpu_custom_call.1} parent=39 // pred_region
          _
        $region48: #{tpu_custom_call.1} parent=39 // pred_fallthru
          _
      $region40: #{tpu_custom_call.1} parent=5 // pred_fallthru
        _
      %p6414 = scmp.le.s32.totalorder 2, %s12
      // Predicated region
      $region49: #{tpu_custom_call.1} parent=5 // pred_check
        %p6415 = pneg %p6414
      $region50: #{tpu_custom_call.1} parent=5 // pred_check_branch
        %6417 = sbr.rel (%p6415) target = $region52
      $region51: #{tpu_custom_call.1} parent=5 // pred_region
        %s6418 = ssub.s32 %s12, 2
        // Predicated region
        $region53: #{tpu_custom_call.1} parent=51 // pred_check
          %p6419 = pneg %p151
        $region54: #{tpu_custom_call.1} parent=51 // pred_check_branch
          %6421 = sbr.rel (%p6419) target = $region56
        $region55: #{tpu_custom_call.1} parent=51 // pred_region
          %p6422 = scmp.lt.s32.totalorder %s18, 1
          %s6423 = scalar_select %p6422, %s18, 1
          %s6424 = smul.addr %s6423, 48
          %s6425 = smul.addr %s6424, 8
          %s6426 = scalar_lea.vmem %s5, %s6425
        $region56: #{tpu_custom_call.1} parent=51 // pred_fallthru
          _
      $region52: #{tpu_custom_call.1} parent=5 // pred_fallthru
        _
    $region6: #{tpu_custom_call.1} parent=1 // loop_footer
      %s16 = sadd.s32 1, %s12
    $region7: #{tpu_custom_call.1} parent=1 // loop_footer_branch
      %11 = sbr.rel target = $region3
    $region8: #{tpu_custom_call.1} parent=1 // loop_exit
      _
    %6427 = vsyncpa [#allocation4], 1
    %s6428 = scalar_lea.sflag [#allocation4], 1
    %6429 = vsyncpa %s6428, 1

</llo_original>
